<compile_context>
chip_gen: v5e
topology: v5e:2x2
jax: 0.10.0
libtpu: 0.0.40
codegen_flags: <defaults>
</compile_context>

<pallas_src>
import functools

import jax
import jax.numpy as jnp
from jax.experimental import pallas as pl
from jax.experimental.pallas import tpu as pltpu


# ------------------------------ in-kernel helpers ------------------------------ #

def _ln(x, g, b, eps):
    """LayerNorm over the last axis (f32 math).  x:[M,D], g/b:[1,D]."""
    mu = jnp.mean(x, axis=-1, keepdims=True)
    xc = x - mu
    var = jnp.mean(xc * xc, axis=-1, keepdims=True)
    return xc * jax.lax.rsqrt(var + eps) * g + b


# --------------------------- single fused forward kernel --------------------------- #

def _fused_forward_kernel(*refs, depth, heads, n_stages, ln_eps):
    o_ref = refs[-1]
    it = iter(refs[:-1])
    patches_ref, add_ref, pw_ref = next(it), next(it), next(it)

    # ---- patch embedding fused with cls-token / positional-embedding add ----
    # patches row 0 is zero (cls slot); add_ref row 0 = cls + pos0, rows 1..P = conv_b + pos.
    p = patches_ref[0].astype(jnp.bfloat16)                                # [S, C*k*k]
    x = jnp.dot(p, pw_ref[...], preferred_element_type=jnp.float32) + add_ref[...]  # [S, E]

    S, E = x.shape
    Dh = E // heads
    scale = float(Dh) ** -0.5

    # Hoisted per-head lane masks over the 2E-wide [q | v] / [k | 0] activations:
    #   q_h lives in lanes [h*Dh, (h+1)*Dh), v_h in lanes [E + h*Dh, E + (h+1)*Dh).
    lane = jax.lax.broadcasted_iota(jnp.int32, (1, 2 * E), 1)
    qmasks = [jnp.where((lane >= h * Dh) & (lane < (h + 1) * Dh), 1.0, 0.0)
              for h in range(heads)]
    vmasks = [jnp.where((lane >= E + h * Dh) & (lane < E + (h + 1) * Dh), 1.0, 0.0)
              for h in range(heads)]

    # ---- transformer blocks (pre-norm), fully resident ----
    for _ in range(depth):
        ln1_g, ln1_b = next(it), next(it)
        qv_w, qv_b = next(it), next(it)
        k_w, k_b = next(it), next(it)
        pj_w, pj_b = next(it), next(it)
        ln2_g, ln2_b = next(it), next(it)
        f1_w, f1_b = next(it), next(it)
        f2_w, f2_b = next(it), next(it)

        h1 = _ln(x, ln1_g[...], ln1_b[...], ln_eps).astype(jnp.bfloat16)
        # Two 128-lane MXU pushes: [q | v] and [k | 0] (k padded with zero columns).
        qv = jnp.dot(h1, qv_w[...], preferred_element_type=jnp.float32) + qv_b[...]   # [S, 2E]
        kk = (jnp.dot(h1, k_w[...], preferred_element_type=jnp.float32)
              + k_b[...]).astype(jnp.bfloat16)                                        # [S, 2E]

        # Per-head attention via lane masks; q_h and k_h occupy the same lanes, so a full
        # 2E contraction of (qv*qmask_h) against kk yields q_h @ k_h^T exactly.
        attn = None
        for hd in range(heads):
            qh = (qv * qmasks[hd]).astype(jnp.bfloat16)
            s = jax.lax.dot_general(qh, kk, (((1,), (1,)), ((), ())),
                                    preferred_element_type=jnp.float32) * scale       # [S, S]
            s = s - jnp.max(s, axis=-1, keepdims=True)
            pr = jnp.exp(s)
            pr = pr * pl.reciprocal(jnp.sum(pr, axis=-1, keepdims=True), approx=True)
            vh = (qv * vmasks[hd]).astype(jnp.bfloat16)
            oh = jnp.dot(pr.astype(jnp.bfloat16), vh,
                         preferred_element_type=jnp.float32)                           # [S, 2E]
            attn = oh if attn is None else attn + oh
        # Head outputs live in lanes [E, 2E); proj weight is row-padded to pick them up.
        x = x + (jnp.dot(attn.astype(jnp.bfloat16), pj_w[...],
                         preferred_element_type=jnp.float32) + pj_b[...])

        h2 = _ln(x, ln2_g[...], ln2_b[...], ln_eps)
        h2 = jnp.dot(h2.astype(jnp.bfloat16), f1_w[...],
                     preferred_element_type=jnp.float32) + f1_b[...]
        h2 = jax.nn.gelu(h2)   # TODO(synk): tanh approximation (timm nn.GELU is exact erf)
        h2 = jnp.dot(h2.astype(jnp.bfloat16), f2_w[...],
                     preferred_element_type=jnp.float32) + f2_b[...]
        x = x + h2

    # ---- final LN on the cls token + backbone head Linear(E -> 1000, padded 1024) ----
    ng, nb, hw, hb = next(it), next(it), next(it), next(it)
    h = _ln(x[0:1, :], ng[...], nb[...], ln_eps)                                       # [1, E]
    h = jnp.dot(h.astype(jnp.bfloat16), hw[...],
                preferred_element_type=jnp.float32) + hb[...]                          # [1, 1024]

    # ---- 3 x (BatchNorm1d eval [folded scale/shift] -> ReLU -> Dropout=id -> Linear) ----
    for _ in range(n_stages):
        a, c, w, b = next(it), next(it), next(it), next(it)
        h = jnp.maximum(h * a[...] + c[...], 0.0)
        h = jnp.dot(h.astype(jnp.bfloat16), w[...],
                    preferred_element_type=jnp.float32) + b[...]
    o_ref[0] = h.astype(o_ref.dtype)                                                   # [1, NP]


# ------------------------- parameter initialization ------------------------ #

def init_params(key, num_classes, *, img=32, patch=16, in_ch=3, embed=64,
                depth=2, heads=4, mlp_ratio=4, backbone_out=1000):
    keys = iter(jax.random.split(key, 512))
    BF = jnp.bfloat16  # matmul weights stored bf16 (MXU-native); everything else f32

    def nrm(shape, scale=0.02):
        return (scale * jax.random.normal(next(keys), shape)).astype(jnp.float32)

    P = (img // patch) ** 2
    S = P + 1
    E = embed
    BOp = 1024  # backbone head width (1000) padded to a lane multiple

    params = {
        "patch_w": nrm((in_ch * patch * patch, E)).astype(BF),
        "patch_b": jnp.zeros((E,), jnp.float32),
        "cls": nrm((1, 1, E)),
        "pos": nrm((1, S, E)),
        "norm_g": jnp.ones((E,), jnp.float32),
        "norm_b": jnp.zeros((E,), jnp.float32),
        "head_w": jnp.pad(nrm((E, backbone_out)),
                          ((0, 0), (0, BOp - backbone_out))).astype(BF),
        "head_b": jnp.zeros((BOp,), jnp.float32),
        "blocks": [],
        "seq": [],
    }
    for _ in range(depth):
        qkv_w = nrm((E, 3 * E))
        q_w, k_w, v_w = qkv_w[:, :E], qkv_w[:, E:2 * E], qkv_w[:, 2 * E:]
        params["blocks"].append({
            "ln1_g": jnp.ones((E,), jnp.float32), "ln1_b": jnp.zeros((E,), jnp.float32),
            # fused [q | v] projection (128 output lanes) and zero-padded [k | 0] projection
            "qv_w": jnp.concatenate([q_w, v_w], axis=1).astype(BF),        # [E, 2E]
            "qv_b": jnp.zeros((2 * E,), jnp.float32),
            "k_w": jnp.pad(k_w, ((0, 0), (0, E))).astype(BF),              # [E, 2E]
            "k_b": jnp.zeros((2 * E,), jnp.float32),
            # proj consumes head outputs that live in lanes [E, 2E) of the 2E-wide attn slab
            "proj_w": jnp.pad(nrm((E, E)), ((E, 0), (0, 0))).astype(BF),   # [2E, E]
            "proj_b": jnp.zeros((E,), jnp.float32),
            "ln2_g": jnp.ones((E,), jnp.float32), "ln2_b": jnp.zeros((E,), jnp.float32),
            "fc1_w": nrm((E, mlp_ratio * E)).astype(BF),
            "fc1_b": jnp.zeros((mlp_ratio * E,), jnp.float32),
            "fc2_w": nrm((mlp_ratio * E, E)).astype(BF),
            "fc2_b": jnp.zeros((E,), jnp.float32),
        })

    # sequence head: BN(1000)->ReLU->Drop->Lin(1000,500)->BN(500)->ReLU->Drop->Lin(500,200)
    #                ->BN(200)->ReLU->Drop->Lin(200,num_classes)
    # All widths padded to lane multiples (1024/512/256/NP); pad regions are exactly zero:
    # padded BN gamma/beta/mean are 0 (var 1) and padded weight rows/cols are 0, so padded
    # features are 0 and contribute 0 downstream.
    NP = ((num_classes + 127) // 128) * 128
    dims = [(backbone_out, BOp, 500, 512), (500, 512, 200, 256), (200, 256, num_classes, NP)]
    for (K, Kp, N, Np) in dims:
        w = jnp.pad(nrm((K, N)), ((0, Kp - K), (0, Np - N)))
        params["seq"].append({
            "bn_g": jnp.pad(1.0 + nrm((K,), 0.1), (0, Kp - K)),
            "bn_b": jnp.pad(nrm((K,), 0.1), (0, Kp - K)),
            "bn_mean": jnp.pad(nrm((K,), 0.1), (0, Kp - K)),
            "bn_var": jnp.pad(1.0 + jnp.abs(nrm((K,), 0.1)), (0, Kp - K),
                              constant_values=1.0),
            "lin_w": w.astype(BF),
            "lin_b": jnp.zeros((Np,), jnp.float32),
        })
    return params


# -------------------------------- forward ---------------------------------- #

def maskvit_forward(params, x, *, num_classes, patch=16, heads=4,
                    ln_eps=1e-6, bn_eps=1e-5):
    """x: [B, C, H, W] (NCHW, float32) -> logits [B, num_classes]."""
    B, C, H, W = x.shape
    Hp, Wp = H // patch, W // patch
    P = Hp * Wp
    S = P + 1
    E = params["patch_w"].shape[1]
    Cpp = C * patch * patch

    # patchify (matches Conv2d(k=patch, s=patch) with weight flattened as (C, kh, kw));
    # prepend a zero row so row 0 of the patch matmul is the cls slot.
    patches = (x.reshape(B, C, Hp, patch, Wp, patch)
                .transpose(0, 2, 4, 1, 3, 5)
                .reshape(B, P, Cpp))
    patches_ext = jnp.pad(patches, ((0, 0), (1, 0), (0, 0)))                # [B, S, Cpp]

    # additive slab folded into the patch matmul: row 0 = cls + pos0, rows 1..P = conv_b + pos
    pos = params["pos"][0]                                                   # [S, E]
    add_full = jnp.concatenate(
        [params["cls"][0, 0][None, :] + pos[:1],
         params["patch_b"][None, :] + pos[1:]], axis=0)                      # [S, E]

    vec = lambda a: a.reshape(1, -1)
    inputs = [patches_ext, add_full, params["patch_w"]]
    for blk in params["blocks"]:
        inputs += [vec(blk["ln1_g"]), vec(blk["ln1_b"]),
                   blk["qv_w"], vec(blk["qv_b"]),
                   blk["k_w"], vec(blk["k_b"]),
                   blk["proj_w"], vec(blk["proj_b"]),
                   vec(blk["ln2_g"]), vec(blk["ln2_b"]),
                   blk["fc1_w"], vec(blk["fc1_b"]),
                   blk["fc2_w"], vec(blk["fc2_b"])]
    inputs += [vec(params["norm_g"]), vec(params["norm_b"]),
               params["head_w"], vec(params["head_b"])]
    for st in params["seq"]:
        a = st["bn_g"] * jax.lax.rsqrt(st["bn_var"] + bn_eps)   # fold BN(eval) affine
        c = st["bn_b"] - st["bn_mean"] * a
        inputs += [vec(a), vec(c), st["lin_w"], vec(st["lin_b"])]

    NP = params["seq"][-1]["lin_b"].shape[0]

    in_specs = [pl.BlockSpec((1, S, Cpp), lambda i: (i, 0, 0))]
    in_specs += [pl.BlockSpec(a.shape, lambda i, n=a.ndim: (0,) * n) for a in inputs[1:]]

    out = pl.pallas_call(
        functools.partial(_fused_forward_kernel,
                          depth=len(params["blocks"]), heads=heads,
                          n_stages=len(params["seq"]), ln_eps=ln_eps),
        grid=(B,),
        in_specs=in_specs,
        out_specs=pl.BlockSpec((1, 1, NP), lambda i: (i, 0, 0)),
        out_shape=jax.ShapeDtypeStruct((B, 1, NP), jnp.float32),
        compiler_params=pltpu.CompilerParams(dimension_semantics=("parallel",)),
    )(*inputs)
    return out.reshape(B, NP)[:, :num_classes]                              # [B, num_classes]


# ---------------------------------- main ------------------------------------ #

if __name__ == "__main__":
    num_classes = 10
    key = jax.random.PRNGKey(0)
    k_param, k_x = jax.random.split(key)

    params = init_params(k_param, num_classes, img=32, patch=16, in_ch=3,
                         embed=64, depth=2, heads=4)
    x = jax.random.normal(k_x, (2, 3, 32, 32), dtype=jnp.float32)            # NCHW

    fwd = jax.jit(functools.partial(maskvit_forward, num_classes=num_classes,
                                    patch=16, heads=4))
    out = jax.block_until_ready(fwd(params, x))

    assert out.shape == (2, num_classes), out.shape
    assert bool(jnp.all(jnp.isfinite(out)))
    print("KERNEL_OK")
</pallas_src>

<mosaic_0001>
module attributes {stable_mosaic.version = 11 : i64} {
  func.func @_fused_forward_kernel(%arg0: i32, %arg1: memref<1x5x768xf32, #tpu.memory_space<vmem>>, %arg2: memref<5x64xf32, #tpu.memory_space<vmem>>, %arg3: memref<768x64xbf16, #tpu.memory_space<vmem>>, %arg4: memref<1x64xf32, #tpu.memory_space<vmem>>, %arg5: memref<1x64xf32, #tpu.memory_space<vmem>>, %arg6: memref<64x128xbf16, #tpu.memory_space<vmem>>, %arg7: memref<1x128xf32, #tpu.memory_space<vmem>>, %arg8: memref<64x128xbf16, #tpu.memory_space<vmem>>, %arg9: memref<1x128xf32, #tpu.memory_space<vmem>>, %arg10: memref<128x64xbf16, #tpu.memory_space<vmem>>, %arg11: memref<1x64xf32, #tpu.memory_space<vmem>>, %arg12: memref<1x64xf32, #tpu.memory_space<vmem>>, %arg13: memref<1x64xf32, #tpu.memory_space<vmem>>, %arg14: memref<64x256xbf16, #tpu.memory_space<vmem>>, %arg15: memref<1x256xf32, #tpu.memory_space<vmem>>, %arg16: memref<256x64xbf16, #tpu.memory_space<vmem>>, %arg17: memref<1x64xf32, #tpu.memory_space<vmem>>, %arg18: memref<1x64xf32, #tpu.memory_space<vmem>>, %arg19: memref<1x64xf32, #tpu.memory_space<vmem>>, %arg20: memref<64x128xbf16, #tpu.memory_space<vmem>>, %arg21: memref<1x128xf32, #tpu.memory_space<vmem>>, %arg22: memref<64x128xbf16, #tpu.memory_space<vmem>>, %arg23: memref<1x128xf32, #tpu.memory_space<vmem>>, %arg24: memref<128x64xbf16, #tpu.memory_space<vmem>>, %arg25: memref<1x64xf32, #tpu.memory_space<vmem>>, %arg26: memref<1x64xf32, #tpu.memory_space<vmem>>, %arg27: memref<1x64xf32, #tpu.memory_space<vmem>>, %arg28: memref<64x256xbf16, #tpu.memory_space<vmem>>, %arg29: memref<1x256xf32, #tpu.memory_space<vmem>>, %arg30: memref<256x64xbf16, #tpu.memory_space<vmem>>, %arg31: memref<1x64xf32, #tpu.memory_space<vmem>>, %arg32: memref<1x64xf32, #tpu.memory_space<vmem>>, %arg33: memref<1x64xf32, #tpu.memory_space<vmem>>, %arg34: memref<64x1024xbf16, #tpu.memory_space<vmem>>, %arg35: memref<1x1024xf32, #tpu.memory_space<vmem>>, %arg36: memref<1x1024xf32, #tpu.memory_space<vmem>>, %arg37: memref<1x1024xf32, #tpu.memory_space<vmem>>, %arg38: memref<1024x512xbf16, #tpu.memory_space<vmem>>, %arg39: memref<1x512xf32, #tpu.memory_space<vmem>>, %arg40: memref<1x512xf32, #tpu.memory_space<vmem>>, %arg41: memref<1x512xf32, #tpu.memory_space<vmem>>, %arg42: memref<512x256xbf16, #tpu.memory_space<vmem>>, %arg43: memref<1x256xf32, #tpu.memory_space<vmem>>, %arg44: memref<1x256xf32, #tpu.memory_space<vmem>>, %arg45: memref<1x256xf32, #tpu.memory_space<vmem>>, %arg46: memref<256x128xbf16, #tpu.memory_space<vmem>>, %arg47: memref<1x128xf32, #tpu.memory_space<vmem>>, %arg48: memref<1x1x128xf32, #tpu.memory_space<vmem>>) attributes {dimension_semantics = [#tpu.dimension_semantics<parallel>], iteration_bounds = array<i64: 2>, scalar_prefetch = 0 : i64, scratch_operands = 0 : i64, tpu.core_type = #tpu.core_type<tc>, window_params = [{transform_indices = @transform_0, window_bounds = array<i64: 1, 5, 768>}, {pipeline_mode = #tpu.pipeline_mode<synchronous>, transform_indices = @transform_1, window_bounds = array<i64: 5, 64>}, {pipeline_mode = #tpu.pipeline_mode<synchronous>, transform_indices = @transform_2, window_bounds = array<i64: 768, 64>}, {pipeline_mode = #tpu.pipeline_mode<synchronous>, transform_indices = @transform_3, window_bounds = array<i64: 1, 64>}, {pipeline_mode = #tpu.pipeline_mode<synchronous>, transform_indices = @transform_4, window_bounds = array<i64: 1, 64>}, {pipeline_mode = #tpu.pipeline_mode<synchronous>, transform_indices = @transform_5, window_bounds = array<i64: 64, 128>}, {pipeline_mode = #tpu.pipeline_mode<synchronous>, transform_indices = @transform_6, window_bounds = array<i64: 1, 128>}, {pipeline_mode = #tpu.pipeline_mode<synchronous>, transform_indices = @transform_7, window_bounds = array<i64: 64, 128>}, {pipeline_mode = #tpu.pipeline_mode<synchronous>, transform_indices = @transform_8, window_bounds = array<i64: 1, 128>}, {pipeline_mode = #tpu.pipeline_mode<synchronous>, transform_indices = @transform_9, window_bounds = array<i64: 128, 64>}, {pipeline_mode = #tpu.pipeline_mode<synchronous>, transform_indices = @transform_10, window_bounds = array<i64: 1, 64>}, {pipeline_mode = #tpu.pipeline_mode<synchronous>, transform_indices = @transform_11, window_bounds = array<i64: 1, 64>}, {pipeline_mode = #tpu.pipeline_mode<synchronous>, transform_indices = @transform_12, window_bounds = array<i64: 1, 64>}, {pipeline_mode = #tpu.pipeline_mode<synchronous>, transform_indices = @transform_13, window_bounds = array<i64: 64, 256>}, {pipeline_mode = #tpu.pipeline_mode<synchronous>, transform_indices = @transform_14, window_bounds = array<i64: 1, 256>}, {pipeline_mode = #tpu.pipeline_mode<synchronous>, transform_indices = @transform_15, window_bounds = array<i64: 256, 64>}, {pipeline_mode = #tpu.pipeline_mode<synchronous>, transform_indices = @transform_16, window_bounds = array<i64: 1, 64>}, {pipeline_mode = #tpu.pipeline_mode<synchronous>, transform_indices = @transform_17, window_bounds = array<i64: 1, 64>}, {pipeline_mode = #tpu.pipeline_mode<synchronous>, transform_indices = @transform_18, window_bounds = array<i64: 1, 64>}, {pipeline_mode = #tpu.pipeline_mode<synchronous>, transform_indices = @transform_19, window_bounds = array<i64: 64, 128>}, {pipeline_mode = #tpu.pipeline_mode<synchronous>, transform_indices = @transform_20, window_bounds = array<i64: 1, 128>}, {pipeline_mode = #tpu.pipeline_mode<synchronous>, transform_indices = @transform_21, window_bounds = array<i64: 64, 128>}, {pipeline_mode = #tpu.pipeline_mode<synchronous>, transform_indices = @transform_22, window_bounds = array<i64: 1, 128>}, {pipeline_mode = #tpu.pipeline_mode<synchronous>, transform_indices = @transform_23, window_bounds = array<i64: 128, 64>}, {pipeline_mode = #tpu.pipeline_mode<synchronous>, transform_indices = @transform_24, window_bounds = array<i64: 1, 64>}, {pipeline_mode = #tpu.pipeline_mode<synchronous>, transform_indices = @transform_25, window_bounds = array<i64: 1, 64>}, {pipeline_mode = #tpu.pipeline_mode<synchronous>, transform_indices = @transform_26, window_bounds = array<i64: 1, 64>}, {pipeline_mode = #tpu.pipeline_mode<synchronous>, transform_indices = @transform_27, window_bounds = array<i64: 64, 256>}, {pipeline_mode = #tpu.pipeline_mode<synchronous>, transform_indices = @transform_28, window_bounds = array<i64: 1, 256>}, {pipeline_mode = #tpu.pipeline_mode<synchronous>, transform_indices = @transform_29, window_bounds = array<i64: 256, 64>}, {pipeline_mode = #tpu.pipeline_mode<synchronous>, transform_indices = @transform_30, window_bounds = array<i64: 1, 64>}, {pipeline_mode = #tpu.pipeline_mode<synchronous>, transform_indices = @transform_31, window_bounds = array<i64: 1, 64>}, {pipeline_mode = #tpu.pipeline_mode<synchronous>, transform_indices = @transform_32, window_bounds = array<i64: 1, 64>}, {pipeline_mode = #tpu.pipeline_mode<synchronous>, transform_indices = @transform_33, window_bounds = array<i64: 64, 1024>}, {pipeline_mode = #tpu.pipeline_mode<synchronous>, transform_indices = @transform_34, window_bounds = array<i64: 1, 1024>}, {pipeline_mode = #tpu.pipeline_mode<synchronous>, transform_indices = @transform_35, window_bounds = array<i64: 1, 1024>}, {pipeline_mode = #tpu.pipeline_mode<synchronous>, transform_indices = @transform_36, window_bounds = array<i64: 1, 1024>}, {pipeline_mode = #tpu.pipeline_mode<synchronous>, transform_indices = @transform_37, window_bounds = array<i64: 1024, 512>}, {pipeline_mode = #tpu.pipeline_mode<synchronous>, transform_indices = @transform_38, window_bounds = array<i64: 1, 512>}, {pipeline_mode = #tpu.pipeline_mode<synchronous>, transform_indices = @transform_39, window_bounds = array<i64: 1, 512>}, {pipeline_mode = #tpu.pipeline_mode<synchronous>, transform_indices = @transform_40, window_bounds = array<i64: 1, 512>}, {pipeline_mode = #tpu.pipeline_mode<synchronous>, transform_indices = @transform_41, window_bounds = array<i64: 512, 256>}, {pipeline_mode = #tpu.pipeline_mode<synchronous>, transform_indices = @transform_42, window_bounds = array<i64: 1, 256>}, {pipeline_mode = #tpu.pipeline_mode<synchronous>, transform_indices = @transform_43, window_bounds = array<i64: 1, 256>}, {pipeline_mode = #tpu.pipeline_mode<synchronous>, transform_indices = @transform_44, window_bounds = array<i64: 1, 256>}, {pipeline_mode = #tpu.pipeline_mode<synchronous>, transform_indices = @transform_45, window_bounds = array<i64: 256, 128>}, {pipeline_mode = #tpu.pipeline_mode<synchronous>, transform_indices = @transform_46, window_bounds = array<i64: 1, 128>}, {transform_indices = @transform_47, window_bounds = array<i64: 1, 1, 128>}]} {
    %c0 = arith.constant 0 : index
    %c0_0 = arith.constant 0 : index
    %c0_1 = arith.constant 0 : index
    %0 = vector.load %arg1[%c0, %c0_0, %c0_1] : memref<1x5x768xf32, #tpu.memory_space<vmem>>, vector<1x5x768xf32>
    %1 = vector.shape_cast %0 : vector<1x5x768xf32> to vector<5x768xf32>
    %2 = arith.truncf %1 : vector<5x768xf32> to vector<5x768xbf16>
    %c0_2 = arith.constant 0 : index
    %c0_3 = arith.constant 0 : index
    %3 = vector.load %arg3[%c0_2, %c0_3] : memref<768x64xbf16, #tpu.memory_space<vmem>>, vector<768x64xbf16>
    %cst = arith.constant dense<0.000000e+00> : vector<5x64xf32>
    %4 = tpu.matmul %2, %3, %cst {dimension_numbers = #tpu.dot_dimension_numbers<[1], [0], [0], [1], [0, 0, 1, 1], [], []>} : vector<5x768xbf16>, vector<768x64xbf16>, vector<5x64xf32> -> vector<5x64xf32>
    %c0_4 = arith.constant 0 : index
    %c0_5 = arith.constant 0 : index
    %5 = vector.load %arg2[%c0_4, %c0_5] : memref<5x64xf32, #tpu.memory_space<vmem>>, vector<5x64xf32>
    %6 = arith.addf %4, %5 : vector<5x64xf32>
    %7 = tpu.iota {dimensions = array<i32: 1>} : vector<1x128xi32>
    %c0_i32 = arith.constant 0 : i32
    %8 = vector.broadcast %c0_i32 : i32 to vector<1x128xi32>
    %9 = arith.cmpi sge, %7, %8 : vector<1x128xi32>
    %c16_i32 = arith.constant 16 : i32
    %10 = vector.broadcast %c16_i32 : i32 to vector<1x128xi32>
    %11 = arith.cmpi slt, %7, %10 : vector<1x128xi32>
    %12 = arith.andi %9, %11 : vector<1x128xi1>
    %cst_6 = arith.constant 1.000000e+00 : f32
    %cst_7 = arith.constant 0.000000e+00 : f32
    %13 = vector.broadcast %cst_6 : f32 to vector<1x128xf32>
    %14 = vector.broadcast %cst_7 : f32 to vector<1x128xf32>
    %15 = arith.select %12, %13, %14 : vector<1x128xi1>, vector<1x128xf32>
    %c16_i32_8 = arith.constant 16 : i32
    %16 = vector.broadcast %c16_i32_8 : i32 to vector<1x128xi32>
    %17 = arith.cmpi sge, %7, %16 : vector<1x128xi32>
    %c32_i32 = arith.constant 32 : i32
    %18 = vector.broadcast %c32_i32 : i32 to vector<1x128xi32>
    %19 = arith.cmpi slt, %7, %18 : vector<1x128xi32>
    %20 = arith.andi %17, %19 : vector<1x128xi1>
    %cst_9 = arith.constant 1.000000e+00 : f32
    %cst_10 = arith.constant 0.000000e+00 : f32
    %21 = vector.broadcast %cst_9 : f32 to vector<1x128xf32>
    %22 = vector.broadcast %cst_10 : f32 to vector<1x128xf32>
    %23 = arith.select %20, %21, %22 : vector<1x128xi1>, vector<1x128xf32>
    %c32_i32_11 = arith.constant 32 : i32
    %24 = vector.broadcast %c32_i32_11 : i32 to vector<1x128xi32>
    %25 = arith.cmpi sge, %7, %24 : vector<1x128xi32>
    %c48_i32 = arith.constant 48 : i32
    %26 = vector.broadcast %c48_i32 : i32 to vector<1x128xi32>
    %27 = arith.cmpi slt, %7, %26 : vector<1x128xi32>
    %28 = arith.andi %25, %27 : vector<1x128xi1>
    %cst_12 = arith.constant 1.000000e+00 : f32
    %cst_13 = arith.constant 0.000000e+00 : f32
    %29 = vector.broadcast %cst_12 : f32 to vector<1x128xf32>
    %30 = vector.broadcast %cst_13 : f32 to vector<1x128xf32>
    %31 = arith.select %28, %29, %30 : vector<1x128xi1>, vector<1x128xf32>
    %c48_i32_14 = arith.constant 48 : i32
    %32 = vector.broadcast %c48_i32_14 : i32 to vector<1x128xi32>
    %33 = arith.cmpi sge, %7, %32 : vector<1x128xi32>
    %c64_i32 = arith.constant 64 : i32
    %34 = vector.broadcast %c64_i32 : i32 to vector<1x128xi32>
    %35 = arith.cmpi slt, %7, %34 : vector<1x128xi32>
    %36 = arith.andi %33, %35 : vector<1x128xi1>
    %cst_15 = arith.constant 1.000000e+00 : f32
    %cst_16 = arith.constant 0.000000e+00 : f32
    %37 = vector.broadcast %cst_15 : f32 to vector<1x128xf32>
    %38 = vector.broadcast %cst_16 : f32 to vector<1x128xf32>
    %39 = arith.select %36, %37, %38 : vector<1x128xi1>, vector<1x128xf32>
    %c64_i32_17 = arith.constant 64 : i32
    %40 = vector.broadcast %c64_i32_17 : i32 to vector<1x128xi32>
    %41 = arith.cmpi sge, %7, %40 : vector<1x128xi32>
    %c80_i32 = arith.constant 80 : i32
    %42 = vector.broadcast %c80_i32 : i32 to vector<1x128xi32>
    %43 = arith.cmpi slt, %7, %42 : vector<1x128xi32>
    %44 = arith.andi %41, %43 : vector<1x128xi1>
    %cst_18 = arith.constant 1.000000e+00 : f32
    %cst_19 = arith.constant 0.000000e+00 : f32
    %45 = vector.broadcast %cst_18 : f32 to vector<1x128xf32>
    %46 = vector.broadcast %cst_19 : f32 to vector<1x128xf32>
    %47 = arith.select %44, %45, %46 : vector<1x128xi1>, vector<1x128xf32>
    %c80_i32_20 = arith.constant 80 : i32
    %48 = vector.broadcast %c80_i32_20 : i32 to vector<1x128xi32>
    %49 = arith.cmpi sge, %7, %48 : vector<1x128xi32>
    %c96_i32 = arith.constant 96 : i32
    %50 = vector.broadcast %c96_i32 : i32 to vector<1x128xi32>
    %51 = arith.cmpi slt, %7, %50 : vector<1x128xi32>
    %52 = arith.andi %49, %51 : vector<1x128xi1>
    %cst_21 = arith.constant 1.000000e+00 : f32
    %cst_22 = arith.constant 0.000000e+00 : f32
    %53 = vector.broadcast %cst_21 : f32 to vector<1x128xf32>
    %54 = vector.broadcast %cst_22 : f32 to vector<1x128xf32>
    %55 = arith.select %52, %53, %54 : vector<1x128xi1>, vector<1x128xf32>
    %c96_i32_23 = arith.constant 96 : i32
    %56 = vector.broadcast %c96_i32_23 : i32 to vector<1x128xi32>
    %57 = arith.cmpi sge, %7, %56 : vector<1x128xi32>
    %c112_i32 = arith.constant 112 : i32
    %58 = vector.broadcast %c112_i32 : i32 to vector<1x128xi32>
    %59 = arith.cmpi slt, %7, %58 : vector<1x128xi32>
    %60 = arith.andi %57, %59 : vector<1x128xi1>
    %cst_24 = arith.constant 1.000000e+00 : f32
    %cst_25 = arith.constant 0.000000e+00 : f32
    %61 = vector.broadcast %cst_24 : f32 to vector<1x128xf32>
    %62 = vector.broadcast %cst_25 : f32 to vector<1x128xf32>
    %63 = arith.select %60, %61, %62 : vector<1x128xi1>, vector<1x128xf32>
    %c112_i32_26 = arith.constant 112 : i32
    %64 = vector.broadcast %c112_i32_26 : i32 to vector<1x128xi32>
    %65 = arith.cmpi sge, %7, %64 : vector<1x128xi32>
    %c128_i32 = arith.constant 128 : i32
    %66 = vector.broadcast %c128_i32 : i32 to vector<1x128xi32>
    %67 = arith.cmpi slt, %7, %66 : vector<1x128xi32>
    %68 = arith.andi %65, %67 : vector<1x128xi1>
    %cst_27 = arith.constant 1.000000e+00 : f32
    %cst_28 = arith.constant 0.000000e+00 : f32
    %69 = vector.broadcast %cst_27 : f32 to vector<1x128xf32>
    %70 = vector.broadcast %cst_28 : f32 to vector<1x128xf32>
    %71 = arith.select %68, %69, %70 : vector<1x128xi1>, vector<1x128xf32>
    %c0_29 = arith.constant 0 : index
    %c0_30 = arith.constant 0 : index
    %72 = vector.load %arg4[%c0_29, %c0_30] : memref<1x64xf32, #tpu.memory_space<vmem>>, vector<1x64xf32>
    %c0_31 = arith.constant 0 : index
    %c0_32 = arith.constant 0 : index
    %73 = vector.load %arg5[%c0_31, %c0_32] : memref<1x64xf32, #tpu.memory_space<vmem>>, vector<1x64xf32>
    %cst_33 = arith.constant dense<0.000000e+00> : vector<5xf32>
    %74 = vector.multi_reduction <add>, %6, %cst_33 [1] : vector<5x64xf32> to vector<5xf32>
    %75 = vector.shape_cast %74 : vector<5xf32> to vector<5x1xf32>
    %cst_34 = arith.constant 6.400000e+01 : f32
    %76 = vector.broadcast %cst_34 : f32 to vector<5x1xf32>
    %77 = arith.divf %75, %76 : vector<5x1xf32>
    %78 = vector.broadcast %77 : vector<5x1xf32> to vector<5x64xf32>
    %79 = arith.subf %6, %78 : vector<5x64xf32>
    %80 = arith.mulf %79, %79 : vector<5x64xf32>
    %cst_35 = arith.constant dense<0.000000e+00> : vector<5xf32>
    %81 = vector.multi_reduction <add>, %80, %cst_35 [1] : vector<5x64xf32> to vector<5xf32>
    %82 = vector.shape_cast %81 : vector<5xf32> to vector<5x1xf32>
    %cst_36 = arith.constant 6.400000e+01 : f32
    %83 = vector.broadcast %cst_36 : f32 to vector<5x1xf32>
    %84 = arith.divf %82, %83 : vector<5x1xf32>
    %cst_37 = arith.constant 9.99999997E-7 : f32
    %85 = vector.broadcast %cst_37 : f32 to vector<5x1xf32>
    %86 = arith.addf %84, %85 : vector<5x1xf32>
    %87 = math.rsqrt %86 : vector<5x1xf32>
    %88 = vector.broadcast %87 : vector<5x1xf32> to vector<5x64xf32>
    %89 = arith.mulf %79, %88 : vector<5x64xf32>
    %90 = vector.broadcast %72 : vector<1x64xf32> to vector<5x64xf32>
    %91 = arith.mulf %89, %90 : vector<5x64xf32>
    %92 = vector.broadcast %73 : vector<1x64xf32> to vector<5x64xf32>
    %93 = arith.addf %91, %92 : vector<5x64xf32>
    %94 = arith.truncf %93 : vector<5x64xf32> to vector<5x64xbf16>
    %c0_38 = arith.constant 0 : index
    %c0_39 = arith.constant 0 : index
    %95 = vector.load %arg6[%c0_38, %c0_39] : memref<64x128xbf16, #tpu.memory_space<vmem>>, vector<64x128xbf16>
    %cst_40 = arith.constant dense<0.000000e+00> : vector<5x128xf32>
    %96 = tpu.matmul %94, %95, %cst_40 {dimension_numbers = #tpu.dot_dimension_numbers<[1], [0], [0], [1], [0, 0, 1, 1], [], []>} : vector<5x64xbf16>, vector<64x128xbf16>, vector<5x128xf32> -> vector<5x128xf32>
    %c0_41 = arith.constant 0 : index
    %c0_42 = arith.constant 0 : index
    %97 = vector.load %arg7[%c0_41, %c0_42] : memref<1x128xf32, #tpu.memory_space<vmem>>, vector<1x128xf32>
    %98 = vector.broadcast %97 : vector<1x128xf32> to vector<5x128xf32>
    %99 = arith.addf %96, %98 : vector<5x128xf32>
    %c0_43 = arith.constant 0 : index
    %c0_44 = arith.constant 0 : index
    %100 = vector.load %arg8[%c0_43, %c0_44] : memref<64x128xbf16, #tpu.memory_space<vmem>>, vector<64x128xbf16>
    %cst_45 = arith.constant dense<0.000000e+00> : vector<5x128xf32>
    %101 = tpu.matmul %94, %100, %cst_45 {dimension_numbers = #tpu.dot_dimension_numbers<[1], [0], [0], [1], [0, 0, 1, 1], [], []>} : vector<5x64xbf16>, vector<64x128xbf16>, vector<5x128xf32> -> vector<5x128xf32>
    %c0_46 = arith.constant 0 : index
    %c0_47 = arith.constant 0 : index
    %102 = vector.load %arg9[%c0_46, %c0_47] : memref<1x128xf32, #tpu.memory_space<vmem>>, vector<1x128xf32>
    %103 = vector.broadcast %102 : vector<1x128xf32> to vector<5x128xf32>
    %104 = arith.addf %101, %103 : vector<5x128xf32>
    %105 = arith.truncf %104 : vector<5x128xf32> to vector<5x128xbf16>
    %106 = vector.broadcast %15 : vector<1x128xf32> to vector<5x128xf32>
    %107 = arith.mulf %99, %106 : vector<5x128xf32>
    %108 = arith.truncf %107 : vector<5x128xf32> to vector<5x128xbf16>
    %cst_48 = arith.constant dense<0.000000e+00> : vector<5x5xf32>
    %109 = tpu.matmul %108, %105, %cst_48 {dimension_numbers = #tpu.dot_dimension_numbers<[1], [1], [0], [0], [0, 0, 1, 0], [], []>} : vector<5x128xbf16>, vector<5x128xbf16>, vector<5x5xf32> -> vector<5x5xf32>
    %cst_49 = arith.constant 2.500000e-01 : f32
    %110 = vector.broadcast %cst_49 : f32 to vector<5x5xf32>
    %111 = arith.mulf %109, %110 : vector<5x5xf32>
    %cst_50 = arith.constant dense<0xFF800000> : vector<5xf32>
    %112 = vector.multi_reduction <maximumf>, %111, %cst_50 [1] : vector<5x5xf32> to vector<5xf32>
    %113 = vector.shape_cast %112 : vector<5xf32> to vector<5x1xf32>
    %114 = vector.broadcast %113 : vector<5x1xf32> to vector<5x5xf32>
    %115 = arith.subf %111, %114 : vector<5x5xf32>
    %116 = math.exp %115 : vector<5x5xf32>
    %cst_51 = arith.constant dense<0.000000e+00> : vector<5xf32>
    %117 = vector.multi_reduction <add>, %116, %cst_51 [1] : vector<5x5xf32> to vector<5xf32>
    %118 = vector.shape_cast %117 : vector<5xf32> to vector<5x1xf32>
    %119 = tpu.reciprocal %118 {approx = true} : vector<5x1xf32> -> vector<5x1xf32>
    %120 = vector.broadcast %119 : vector<5x1xf32> to vector<5x5xf32>
    %121 = arith.mulf %116, %120 : vector<5x5xf32>
    %122 = vector.broadcast %47 : vector<1x128xf32> to vector<5x128xf32>
    %123 = arith.mulf %99, %122 : vector<5x128xf32>
    %124 = arith.truncf %123 : vector<5x128xf32> to vector<5x128xbf16>
    %125 = arith.truncf %121 : vector<5x5xf32> to vector<5x5xbf16>
    %cst_52 = arith.constant dense<0.000000e+00> : vector<5x128xf32>
    %126 = tpu.matmul %125, %124, %cst_52 {dimension_numbers = #tpu.dot_dimension_numbers<[1], [0], [0], [1], [0, 0, 1, 1], [], []>} : vector<5x5xbf16>, vector<5x128xbf16>, vector<5x128xf32> -> vector<5x128xf32>
    %127 = vector.broadcast %23 : vector<1x128xf32> to vector<5x128xf32>
    %128 = arith.mulf %99, %127 : vector<5x128xf32>
    %129 = arith.truncf %128 : vector<5x128xf32> to vector<5x128xbf16>
    %cst_53 = arith.constant dense<0.000000e+00> : vector<5x5xf32>
    %130 = tpu.matmul %129, %105, %cst_53 {dimension_numbers = #tpu.dot_dimension_numbers<[1], [1], [0], [0], [0, 0, 1, 0], [], []>} : vector<5x128xbf16>, vector<5x128xbf16>, vector<5x5xf32> -> vector<5x5xf32>
    %cst_54 = arith.constant 2.500000e-01 : f32
    %131 = vector.broadcast %cst_54 : f32 to vector<5x5xf32>
    %132 = arith.mulf %130, %131 : vector<5x5xf32>
    %cst_55 = arith.constant dense<0xFF800000> : vector<5xf32>
    %133 = vector.multi_reduction <maximumf>, %132, %cst_55 [1] : vector<5x5xf32> to vector<5xf32>
    %134 = vector.shape_cast %133 : vector<5xf32> to vector<5x1xf32>
    %135 = vector.broadcast %134 : vector<5x1xf32> to vector<5x5xf32>
    %136 = arith.subf %132, %135 : vector<5x5xf32>
    %137 = math.exp %136 : vector<5x5xf32>
    %cst_56 = arith.constant dense<0.000000e+00> : vector<5xf32>
    %138 = vector.multi_reduction <add>, %137, %cst_56 [1] : vector<5x5xf32> to vector<5xf32>
    %139 = vector.shape_cast %138 : vector<5xf32> to vector<5x1xf32>
    %140 = tpu.reciprocal %139 {approx = true} : vector<5x1xf32> -> vector<5x1xf32>
    %141 = vector.broadcast %140 : vector<5x1xf32> to vector<5x5xf32>
    %142 = arith.mulf %137, %141 : vector<5x5xf32>
    %143 = vector.broadcast %55 : vector<1x128xf32> to vector<5x128xf32>
    %144 = arith.mulf %99, %143 : vector<5x128xf32>
    %145 = arith.truncf %144 : vector<5x128xf32> to vector<5x128xbf16>
    %146 = arith.truncf %142 : vector<5x5xf32> to vector<5x5xbf16>
    %cst_57 = arith.constant dense<0.000000e+00> : vector<5x128xf32>
    %147 = tpu.matmul %146, %145, %cst_57 {dimension_numbers = #tpu.dot_dimension_numbers<[1], [0], [0], [1], [0, 0, 1, 1], [], []>} : vector<5x5xbf16>, vector<5x128xbf16>, vector<5x128xf32> -> vector<5x128xf32>
    %148 = arith.addf %126, %147 : vector<5x128xf32>
    %149 = vector.broadcast %31 : vector<1x128xf32> to vector<5x128xf32>
    %150 = arith.mulf %99, %149 : vector<5x128xf32>
    %151 = arith.truncf %150 : vector<5x128xf32> to vector<5x128xbf16>
    %cst_58 = arith.constant dense<0.000000e+00> : vector<5x5xf32>
    %152 = tpu.matmul %151, %105, %cst_58 {dimension_numbers = #tpu.dot_dimension_numbers<[1], [1], [0], [0], [0, 0, 1, 0], [], []>} : vector<5x128xbf16>, vector<5x128xbf16>, vector<5x5xf32> -> vector<5x5xf32>
    %cst_59 = arith.constant 2.500000e-01 : f32
    %153 = vector.broadcast %cst_59 : f32 to vector<5x5xf32>
    %154 = arith.mulf %152, %153 : vector<5x5xf32>
    %cst_60 = arith.constant dense<0xFF800000> : vector<5xf32>
    %155 = vector.multi_reduction <maximumf>, %154, %cst_60 [1] : vector<5x5xf32> to vector<5xf32>
    %156 = vector.shape_cast %155 : vector<5xf32> to vector<5x1xf32>
    %157 = vector.broadcast %156 : vector<5x1xf32> to vector<5x5xf32>
    %158 = arith.subf %154, %157 : vector<5x5xf32>
    %159 = math.exp %158 : vector<5x5xf32>
    %cst_61 = arith.constant dense<0.000000e+00> : vector<5xf32>
    %160 = vector.multi_reduction <add>, %159, %cst_61 [1] : vector<5x5xf32> to vector<5xf32>
    %161 = vector.shape_cast %160 : vector<5xf32> to vector<5x1xf32>
    %162 = tpu.reciprocal %161 {approx = true} : vector<5x1xf32> -> vector<5x1xf32>
    %163 = vector.broadcast %162 : vector<5x1xf32> to vector<5x5xf32>
    %164 = arith.mulf %159, %163 : vector<5x5xf32>
    %165 = vector.broadcast %63 : vector<1x128xf32> to vector<5x128xf32>
    %166 = arith.mulf %99, %165 : vector<5x128xf32>
    %167 = arith.truncf %166 : vector<5x128xf32> to vector<5x128xbf16>
    %168 = arith.truncf %164 : vector<5x5xf32> to vector<5x5xbf16>
    %cst_62 = arith.constant dense<0.000000e+00> : vector<5x128xf32>
    %169 = tpu.matmul %168, %167, %cst_62 {dimension_numbers = #tpu.dot_dimension_numbers<[1], [0], [0], [1], [0, 0, 1, 1], [], []>} : vector<5x5xbf16>, vector<5x128xbf16>, vector<5x128xf32> -> vector<5x128xf32>
    %170 = arith.addf %148, %169 : vector<5x128xf32>
    %171 = vector.broadcast %39 : vector<1x128xf32> to vector<5x128xf32>
    %172 = arith.mulf %99, %171 : vector<5x128xf32>
    %173 = arith.truncf %172 : vector<5x128xf32> to vector<5x128xbf16>
    %cst_63 = arith.constant dense<0.000000e+00> : vector<5x5xf32>
    %174 = tpu.matmul %173, %105, %cst_63 {dimension_numbers = #tpu.dot_dimension_numbers<[1], [1], [0], [0], [0, 0, 1, 0], [], []>} : vector<5x128xbf16>, vector<5x128xbf16>, vector<5x5xf32> -> vector<5x5xf32>
    %cst_64 = arith.constant 2.500000e-01 : f32
    %175 = vector.broadcast %cst_64 : f32 to vector<5x5xf32>
    %176 = arith.mulf %174, %175 : vector<5x5xf32>
    %cst_65 = arith.constant dense<0xFF800000> : vector<5xf32>
    %177 = vector.multi_reduction <maximumf>, %176, %cst_65 [1] : vector<5x5xf32> to vector<5xf32>
    %178 = vector.shape_cast %177 : vector<5xf32> to vector<5x1xf32>
    %179 = vector.broadcast %178 : vector<5x1xf32> to vector<5x5xf32>
    %180 = arith.subf %176, %179 : vector<5x5xf32>
    %181 = math.exp %180 : vector<5x5xf32>
    %cst_66 = arith.constant dense<0.000000e+00> : vector<5xf32>
    %182 = vector.multi_reduction <add>, %181, %cst_66 [1] : vector<5x5xf32> to vector<5xf32>
    %183 = vector.shape_cast %182 : vector<5xf32> to vector<5x1xf32>
    %184 = tpu.reciprocal %183 {approx = true} : vector<5x1xf32> -> vector<5x1xf32>
    %185 = vector.broadcast %184 : vector<5x1xf32> to vector<5x5xf32>
    %186 = arith.mulf %181, %185 : vector<5x5xf32>
    %187 = vector.broadcast %71 : vector<1x128xf32> to vector<5x128xf32>
    %188 = arith.mulf %99, %187 : vector<5x128xf32>
    %189 = arith.truncf %188 : vector<5x128xf32> to vector<5x128xbf16>
    %190 = arith.truncf %186 : vector<5x5xf32> to vector<5x5xbf16>
    %cst_67 = arith.constant dense<0.000000e+00> : vector<5x128xf32>
    %191 = tpu.matmul %190, %189, %cst_67 {dimension_numbers = #tpu.dot_dimension_numbers<[1], [0], [0], [1], [0, 0, 1, 1], [], []>} : vector<5x5xbf16>, vector<5x128xbf16>, vector<5x128xf32> -> vector<5x128xf32>
    %192 = arith.addf %170, %191 : vector<5x128xf32>
    %193 = arith.truncf %192 : vector<5x128xf32> to vector<5x128xbf16>
    %c0_68 = arith.constant 0 : index
    %c0_69 = arith.constant 0 : index
    %194 = vector.load %arg10[%c0_68, %c0_69] : memref<128x64xbf16, #tpu.memory_space<vmem>>, vector<128x64xbf16>
    %cst_70 = arith.constant dense<0.000000e+00> : vector<5x64xf32>
    %195 = tpu.matmul %193, %194, %cst_70 {dimension_numbers = #tpu.dot_dimension_numbers<[1], [0], [0], [1], [0, 0, 1, 1], [], []>} : vector<5x128xbf16>, vector<128x64xbf16>, vector<5x64xf32> -> vector<5x64xf32>
    %c0_71 = arith.constant 0 : index
    %c0_72 = arith.constant 0 : index
    %196 = vector.load %arg11[%c0_71, %c0_72] : memref<1x64xf32, #tpu.memory_space<vmem>>, vector<1x64xf32>
    %197 = vector.broadcast %196 : vector<1x64xf32> to vector<5x64xf32>
    %198 = arith.addf %195, %197 : vector<5x64xf32>
    %199 = arith.addf %6, %198 : vector<5x64xf32>
    %c0_73 = arith.constant 0 : index
    %c0_74 = arith.constant 0 : index
    %200 = vector.load %arg12[%c0_73, %c0_74] : memref<1x64xf32, #tpu.memory_space<vmem>>, vector<1x64xf32>
    %c0_75 = arith.constant 0 : index
    %c0_76 = arith.constant 0 : index
    %201 = vector.load %arg13[%c0_75, %c0_76] : memref<1x64xf32, #tpu.memory_space<vmem>>, vector<1x64xf32>
    %cst_77 = arith.constant dense<0.000000e+00> : vector<5xf32>
    %202 = vector.multi_reduction <add>, %199, %cst_77 [1] : vector<5x64xf32> to vector<5xf32>
    %203 = vector.shape_cast %202 : vector<5xf32> to vector<5x1xf32>
    %cst_78 = arith.constant 6.400000e+01 : f32
    %204 = vector.broadcast %cst_78 : f32 to vector<5x1xf32>
    %205 = arith.divf %203, %204 : vector<5x1xf32>
    %206 = vector.broadcast %205 : vector<5x1xf32> to vector<5x64xf32>
    %207 = arith.subf %199, %206 : vector<5x64xf32>
    %208 = arith.mulf %207, %207 : vector<5x64xf32>
    %cst_79 = arith.constant dense<0.000000e+00> : vector<5xf32>
    %209 = vector.multi_reduction <add>, %208, %cst_79 [1] : vector<5x64xf32> to vector<5xf32>
    %210 = vector.shape_cast %209 : vector<5xf32> to vector<5x1xf32>
    %cst_80 = arith.constant 6.400000e+01 : f32
    %211 = vector.broadcast %cst_80 : f32 to vector<5x1xf32>
    %212 = arith.divf %210, %211 : vector<5x1xf32>
    %cst_81 = arith.constant 9.99999997E-7 : f32
    %213 = vector.broadcast %cst_81 : f32 to vector<5x1xf32>
    %214 = arith.addf %212, %213 : vector<5x1xf32>
    %215 = math.rsqrt %214 : vector<5x1xf32>
    %216 = vector.broadcast %215 : vector<5x1xf32> to vector<5x64xf32>
    %217 = arith.mulf %207, %216 : vector<5x64xf32>
    %218 = vector.broadcast %200 : vector<1x64xf32> to vector<5x64xf32>
    %219 = arith.mulf %217, %218 : vector<5x64xf32>
    %220 = vector.broadcast %201 : vector<1x64xf32> to vector<5x64xf32>
    %221 = arith.addf %219, %220 : vector<5x64xf32>
    %222 = arith.truncf %221 : vector<5x64xf32> to vector<5x64xbf16>
    %c0_82 = arith.constant 0 : index
    %c0_83 = arith.constant 0 : index
    %223 = vector.load %arg14[%c0_82, %c0_83] : memref<64x256xbf16, #tpu.memory_space<vmem>>, vector<64x256xbf16>
    %cst_84 = arith.constant dense<0.000000e+00> : vector<5x256xf32>
    %224 = tpu.matmul %222, %223, %cst_84 {dimension_numbers = #tpu.dot_dimension_numbers<[1], [0], [0], [1], [0, 0, 1, 1], [], []>} : vector<5x64xbf16>, vector<64x256xbf16>, vector<5x256xf32> -> vector<5x256xf32>
    %c0_85 = arith.constant 0 : index
    %c0_86 = arith.constant 0 : index
    %225 = vector.load %arg15[%c0_85, %c0_86] : memref<1x256xf32, #tpu.memory_space<vmem>>, vector<1x256xf32>
    %226 = vector.broadcast %225 : vector<1x256xf32> to vector<5x256xf32>
    %227 = arith.addf %224, %226 : vector<5x256xf32>
    %228 = arith.mulf %227, %227 : vector<5x256xf32>
    %229 = arith.mulf %227, %228 : vector<5x256xf32>
    %cst_87 = arith.constant 4.471500e-02 : f32
    %230 = vector.broadcast %cst_87 : f32 to vector<5x256xf32>
    %231 = arith.mulf %230, %229 : vector<5x256xf32>
    %232 = arith.addf %227, %231 : vector<5x256xf32>
    %cst_88 = arith.constant 0.797884583 : f32
    %233 = vector.broadcast %cst_88 : f32 to vector<5x256xf32>
    %234 = arith.mulf %233, %232 : vector<5x256xf32>
    %235 = math.tanh %234 : vector<5x256xf32>
    %cst_89 = arith.constant 1.000000e+00 : f32
    %236 = vector.broadcast %cst_89 : f32 to vector<5x256xf32>
    %237 = arith.addf %236, %235 : vector<5x256xf32>
    %cst_90 = arith.constant 5.000000e-01 : f32
    %238 = vector.broadcast %cst_90 : f32 to vector<5x256xf32>
    %239 = arith.mulf %238, %237 : vector<5x256xf32>
    %240 = arith.mulf %227, %239 : vector<5x256xf32>
    %241 = arith.truncf %240 : vector<5x256xf32> to vector<5x256xbf16>
    %c0_91 = arith.constant 0 : index
    %c0_92 = arith.constant 0 : index
    %242 = vector.load %arg16[%c0_91, %c0_92] : memref<256x64xbf16, #tpu.memory_space<vmem>>, vector<256x64xbf16>
    %cst_93 = arith.constant dense<0.000000e+00> : vector<5x64xf32>
    %243 = tpu.matmul %241, %242, %cst_93 {dimension_numbers = #tpu.dot_dimension_numbers<[1], [0], [0], [1], [0, 0, 1, 1], [], []>} : vector<5x256xbf16>, vector<256x64xbf16>, vector<5x64xf32> -> vector<5x64xf32>
    %c0_94 = arith.constant 0 : index
    %c0_95 = arith.constant 0 : index
    %244 = vector.load %arg17[%c0_94, %c0_95] : memref<1x64xf32, #tpu.memory_space<vmem>>, vector<1x64xf32>
    %245 = vector.broadcast %244 : vector<1x64xf32> to vector<5x64xf32>
    %246 = arith.addf %243, %245 : vector<5x64xf32>
    %247 = arith.addf %199, %246 : vector<5x64xf32>
    %c0_96 = arith.constant 0 : index
    %c0_97 = arith.constant 0 : index
    %248 = vector.load %arg18[%c0_96, %c0_97] : memref<1x64xf32, #tpu.memory_space<vmem>>, vector<1x64xf32>
    %c0_98 = arith.constant 0 : index
    %c0_99 = arith.constant 0 : index
    %249 = vector.load %arg19[%c0_98, %c0_99] : memref<1x64xf32, #tpu.memory_space<vmem>>, vector<1x64xf32>
    %cst_100 = arith.constant dense<0.000000e+00> : vector<5xf32>
    %250 = vector.multi_reduction <add>, %247, %cst_100 [1] : vector<5x64xf32> to vector<5xf32>
    %251 = vector.shape_cast %250 : vector<5xf32> to vector<5x1xf32>
    %cst_101 = arith.constant 6.400000e+01 : f32
    %252 = vector.broadcast %cst_101 : f32 to vector<5x1xf32>
    %253 = arith.divf %251, %252 : vector<5x1xf32>
    %254 = vector.broadcast %253 : vector<5x1xf32> to vector<5x64xf32>
    %255 = arith.subf %247, %254 : vector<5x64xf32>
    %256 = arith.mulf %255, %255 : vector<5x64xf32>
    %cst_102 = arith.constant dense<0.000000e+00> : vector<5xf32>
    %257 = vector.multi_reduction <add>, %256, %cst_102 [1] : vector<5x64xf32> to vector<5xf32>
    %258 = vector.shape_cast %257 : vector<5xf32> to vector<5x1xf32>
    %cst_103 = arith.constant 6.400000e+01 : f32
    %259 = vector.broadcast %cst_103 : f32 to vector<5x1xf32>
    %260 = arith.divf %258, %259 : vector<5x1xf32>
    %cst_104 = arith.constant 9.99999997E-7 : f32
    %261 = vector.broadcast %cst_104 : f32 to vector<5x1xf32>
    %262 = arith.addf %260, %261 : vector<5x1xf32>
    %263 = math.rsqrt %262 : vector<5x1xf32>
    %264 = vector.broadcast %263 : vector<5x1xf32> to vector<5x64xf32>
    %265 = arith.mulf %255, %264 : vector<5x64xf32>
    %266 = vector.broadcast %248 : vector<1x64xf32> to vector<5x64xf32>
    %267 = arith.mulf %265, %266 : vector<5x64xf32>
    %268 = vector.broadcast %249 : vector<1x64xf32> to vector<5x64xf32>
    %269 = arith.addf %267, %268 : vector<5x64xf32>
    %270 = arith.truncf %269 : vector<5x64xf32> to vector<5x64xbf16>
    %c0_105 = arith.constant 0 : index
    %c0_106 = arith.constant 0 : index
    %271 = vector.load %arg20[%c0_105, %c0_106] : memref<64x128xbf16, #tpu.memory_space<vmem>>, vector<64x128xbf16>
    %cst_107 = arith.constant dense<0.000000e+00> : vector<5x128xf32>
    %272 = tpu.matmul %270, %271, %cst_107 {dimension_numbers = #tpu.dot_dimension_numbers<[1], [0], [0], [1], [0, 0, 1, 1], [], []>} : vector<5x64xbf16>, vector<64x128xbf16>, vector<5x128xf32> -> vector<5x128xf32>
    %c0_108 = arith.constant 0 : index
    %c0_109 = arith.constant 0 : index
    %273 = vector.load %arg21[%c0_108, %c0_109] : memref<1x128xf32, #tpu.memory_space<vmem>>, vector<1x128xf32>
    %274 = vector.broadcast %273 : vector<1x128xf32> to vector<5x128xf32>
    %275 = arith.addf %272, %274 : vector<5x128xf32>
    %c0_110 = arith.constant 0 : index
    %c0_111 = arith.constant 0 : index
    %276 = vector.load %arg22[%c0_110, %c0_111] : memref<64x128xbf16, #tpu.memory_space<vmem>>, vector<64x128xbf16>
    %cst_112 = arith.constant dense<0.000000e+00> : vector<5x128xf32>
    %277 = tpu.matmul %270, %276, %cst_112 {dimension_numbers = #tpu.dot_dimension_numbers<[1], [0], [0], [1], [0, 0, 1, 1], [], []>} : vector<5x64xbf16>, vector<64x128xbf16>, vector<5x128xf32> -> vector<5x128xf32>
    %c0_113 = arith.constant 0 : index
    %c0_114 = arith.constant 0 : index
    %278 = vector.load %arg23[%c0_113, %c0_114] : memref<1x128xf32, #tpu.memory_space<vmem>>, vector<1x128xf32>
    %279 = vector.broadcast %278 : vector<1x128xf32> to vector<5x128xf32>
    %280 = arith.addf %277, %279 : vector<5x128xf32>
    %281 = arith.truncf %280 : vector<5x128xf32> to vector<5x128xbf16>
    %282 = vector.broadcast %15 : vector<1x128xf32> to vector<5x128xf32>
    %283 = arith.mulf %275, %282 : vector<5x128xf32>
    %284 = arith.truncf %283 : vector<5x128xf32> to vector<5x128xbf16>
    %cst_115 = arith.constant dense<0.000000e+00> : vector<5x5xf32>
    %285 = tpu.matmul %284, %281, %cst_115 {dimension_numbers = #tpu.dot_dimension_numbers<[1], [1], [0], [0], [0, 0, 1, 0], [], []>} : vector<5x128xbf16>, vector<5x128xbf16>, vector<5x5xf32> -> vector<5x5xf32>
    %cst_116 = arith.constant 2.500000e-01 : f32
    %286 = vector.broadcast %cst_116 : f32 to vector<5x5xf32>
    %287 = arith.mulf %285, %286 : vector<5x5xf32>
    %cst_117 = arith.constant dense<0xFF800000> : vector<5xf32>
    %288 = vector.multi_reduction <maximumf>, %287, %cst_117 [1] : vector<5x5xf32> to vector<5xf32>
    %289 = vector.shape_cast %288 : vector<5xf32> to vector<5x1xf32>
    %290 = vector.broadcast %289 : vector<5x1xf32> to vector<5x5xf32>
    %291 = arith.subf %287, %290 : vector<5x5xf32>
    %292 = math.exp %291 : vector<5x5xf32>
    %cst_118 = arith.constant dense<0.000000e+00> : vector<5xf32>
    %293 = vector.multi_reduction <add>, %292, %cst_118 [1] : vector<5x5xf32> to vector<5xf32>
    %294 = vector.shape_cast %293 : vector<5xf32> to vector<5x1xf32>
    %295 = tpu.reciprocal %294 {approx = true} : vector<5x1xf32> -> vector<5x1xf32>
    %296 = vector.broadcast %295 : vector<5x1xf32> to vector<5x5xf32>
    %297 = arith.mulf %292, %296 : vector<5x5xf32>
    %298 = vector.broadcast %47 : vector<1x128xf32> to vector<5x128xf32>
    %299 = arith.mulf %275, %298 : vector<5x128xf32>
    %300 = arith.truncf %299 : vector<5x128xf32> to vector<5x128xbf16>
    %301 = arith.truncf %297 : vector<5x5xf32> to vector<5x5xbf16>
    %cst_119 = arith.constant dense<0.000000e+00> : vector<5x128xf32>
    %302 = tpu.matmul %301, %300, %cst_119 {dimension_numbers = #tpu.dot_dimension_numbers<[1], [0], [0], [1], [0, 0, 1, 1], [], []>} : vector<5x5xbf16>, vector<5x128xbf16>, vector<5x128xf32> -> vector<5x128xf32>
    %303 = vector.broadcast %23 : vector<1x128xf32> to vector<5x128xf32>
    %304 = arith.mulf %275, %303 : vector<5x128xf32>
    %305 = arith.truncf %304 : vector<5x128xf32> to vector<5x128xbf16>
    %cst_120 = arith.constant dense<0.000000e+00> : vector<5x5xf32>
    %306 = tpu.matmul %305, %281, %cst_120 {dimension_numbers = #tpu.dot_dimension_numbers<[1], [1], [0], [0], [0, 0, 1, 0], [], []>} : vector<5x128xbf16>, vector<5x128xbf16>, vector<5x5xf32> -> vector<5x5xf32>
    %cst_121 = arith.constant 2.500000e-01 : f32
    %307 = vector.broadcast %cst_121 : f32 to vector<5x5xf32>
    %308 = arith.mulf %306, %307 : vector<5x5xf32>
    %cst_122 = arith.constant dense<0xFF800000> : vector<5xf32>
    %309 = vector.multi_reduction <maximumf>, %308, %cst_122 [1] : vector<5x5xf32> to vector<5xf32>
    %310 = vector.shape_cast %309 : vector<5xf32> to vector<5x1xf32>
    %311 = vector.broadcast %310 : vector<5x1xf32> to vector<5x5xf32>
    %312 = arith.subf %308, %311 : vector<5x5xf32>
    %313 = math.exp %312 : vector<5x5xf32>
    %cst_123 = arith.constant dense<0.000000e+00> : vector<5xf32>
    %314 = vector.multi_reduction <add>, %313, %cst_123 [1] : vector<5x5xf32> to vector<5xf32>
    %315 = vector.shape_cast %314 : vector<5xf32> to vector<5x1xf32>
    %316 = tpu.reciprocal %315 {approx = true} : vector<5x1xf32> -> vector<5x1xf32>
    %317 = vector.broadcast %316 : vector<5x1xf32> to vector<5x5xf32>
    %318 = arith.mulf %313, %317 : vector<5x5xf32>
    %319 = vector.broadcast %55 : vector<1x128xf32> to vector<5x128xf32>
    %320 = arith.mulf %275, %319 : vector<5x128xf32>
    %321 = arith.truncf %320 : vector<5x128xf32> to vector<5x128xbf16>
    %322 = arith.truncf %318 : vector<5x5xf32> to vector<5x5xbf16>
    %cst_124 = arith.constant dense<0.000000e+00> : vector<5x128xf32>
    %323 = tpu.matmul %322, %321, %cst_124 {dimension_numbers = #tpu.dot_dimension_numbers<[1], [0], [0], [1], [0, 0, 1, 1], [], []>} : vector<5x5xbf16>, vector<5x128xbf16>, vector<5x128xf32> -> vector<5x128xf32>
    %324 = arith.addf %302, %323 : vector<5x128xf32>
    %325 = vector.broadcast %31 : vector<1x128xf32> to vector<5x128xf32>
    %326 = arith.mulf %275, %325 : vector<5x128xf32>
    %327 = arith.truncf %326 : vector<5x128xf32> to vector<5x128xbf16>
    %cst_125 = arith.constant dense<0.000000e+00> : vector<5x5xf32>
    %328 = tpu.matmul %327, %281, %cst_125 {dimension_numbers = #tpu.dot_dimension_numbers<[1], [1], [0], [0], [0, 0, 1, 0], [], []>} : vector<5x128xbf16>, vector<5x128xbf16>, vector<5x5xf32> -> vector<5x5xf32>
    %cst_126 = arith.constant 2.500000e-01 : f32
    %329 = vector.broadcast %cst_126 : f32 to vector<5x5xf32>
    %330 = arith.mulf %328, %329 : vector<5x5xf32>
    %cst_127 = arith.constant dense<0xFF800000> : vector<5xf32>
    %331 = vector.multi_reduction <maximumf>, %330, %cst_127 [1] : vector<5x5xf32> to vector<5xf32>
    %332 = vector.shape_cast %331 : vector<5xf32> to vector<5x1xf32>
    %333 = vector.broadcast %332 : vector<5x1xf32> to vector<5x5xf32>
    %334 = arith.subf %330, %333 : vector<5x5xf32>
    %335 = math.exp %334 : vector<5x5xf32>
    %cst_128 = arith.constant dense<0.000000e+00> : vector<5xf32>
    %336 = vector.multi_reduction <add>, %335, %cst_128 [1] : vector<5x5xf32> to vector<5xf32>
    %337 = vector.shape_cast %336 : vector<5xf32> to vector<5x1xf32>
    %338 = tpu.reciprocal %337 {approx = true} : vector<5x1xf32> -> vector<5x1xf32>
    %339 = vector.broadcast %338 : vector<5x1xf32> to vector<5x5xf32>
    %340 = arith.mulf %335, %339 : vector<5x5xf32>
    %341 = vector.broadcast %63 : vector<1x128xf32> to vector<5x128xf32>
    %342 = arith.mulf %275, %341 : vector<5x128xf32>
    %343 = arith.truncf %342 : vector<5x128xf32> to vector<5x128xbf16>
    %344 = arith.truncf %340 : vector<5x5xf32> to vector<5x5xbf16>
    %cst_129 = arith.constant dense<0.000000e+00> : vector<5x128xf32>
    %345 = tpu.matmul %344, %343, %cst_129 {dimension_numbers = #tpu.dot_dimension_numbers<[1], [0], [0], [1], [0, 0, 1, 1], [], []>} : vector<5x5xbf16>, vector<5x128xbf16>, vector<5x128xf32> -> vector<5x128xf32>
    %346 = arith.addf %324, %345 : vector<5x128xf32>
    %347 = vector.broadcast %39 : vector<1x128xf32> to vector<5x128xf32>
    %348 = arith.mulf %275, %347 : vector<5x128xf32>
    %349 = arith.truncf %348 : vector<5x128xf32> to vector<5x128xbf16>
    %cst_130 = arith.constant dense<0.000000e+00> : vector<5x5xf32>
    %350 = tpu.matmul %349, %281, %cst_130 {dimension_numbers = #tpu.dot_dimension_numbers<[1], [1], [0], [0], [0, 0, 1, 0], [], []>} : vector<5x128xbf16>, vector<5x128xbf16>, vector<5x5xf32> -> vector<5x5xf32>
    %cst_131 = arith.constant 2.500000e-01 : f32
    %351 = vector.broadcast %cst_131 : f32 to vector<5x5xf32>
    %352 = arith.mulf %350, %351 : vector<5x5xf32>
    %cst_132 = arith.constant dense<0xFF800000> : vector<5xf32>
    %353 = vector.multi_reduction <maximumf>, %352, %cst_132 [1] : vector<5x5xf32> to vector<5xf32>
    %354 = vector.shape_cast %353 : vector<5xf32> to vector<5x1xf32>
    %355 = vector.broadcast %354 : vector<5x1xf32> to vector<5x5xf32>
    %356 = arith.subf %352, %355 : vector<5x5xf32>
    %357 = math.exp %356 : vector<5x5xf32>
    %cst_133 = arith.constant dense<0.000000e+00> : vector<5xf32>
    %358 = vector.multi_reduction <add>, %357, %cst_133 [1] : vector<5x5xf32> to vector<5xf32>
    %359 = vector.shape_cast %358 : vector<5xf32> to vector<5x1xf32>
    %360 = tpu.reciprocal %359 {approx = true} : vector<5x1xf32> -> vector<5x1xf32>
    %361 = vector.broadcast %360 : vector<5x1xf32> to vector<5x5xf32>
    %362 = arith.mulf %357, %361 : vector<5x5xf32>
    %363 = vector.broadcast %71 : vector<1x128xf32> to vector<5x128xf32>
    %364 = arith.mulf %275, %363 : vector<5x128xf32>
    %365 = arith.truncf %364 : vector<5x128xf32> to vector<5x128xbf16>
    %366 = arith.truncf %362 : vector<5x5xf32> to vector<5x5xbf16>
    %cst_134 = arith.constant dense<0.000000e+00> : vector<5x128xf32>
    %367 = tpu.matmul %366, %365, %cst_134 {dimension_numbers = #tpu.dot_dimension_numbers<[1], [0], [0], [1], [0, 0, 1, 1], [], []>} : vector<5x5xbf16>, vector<5x128xbf16>, vector<5x128xf32> -> vector<5x128xf32>
    %368 = arith.addf %346, %367 : vector<5x128xf32>
    %369 = arith.truncf %368 : vector<5x128xf32> to vector<5x128xbf16>
    %c0_135 = arith.constant 0 : index
    %c0_136 = arith.constant 0 : index
    %370 = vector.load %arg24[%c0_135, %c0_136] : memref<128x64xbf16, #tpu.memory_space<vmem>>, vector<128x64xbf16>
    %cst_137 = arith.constant dense<0.000000e+00> : vector<5x64xf32>
    %371 = tpu.matmul %369, %370, %cst_137 {dimension_numbers = #tpu.dot_dimension_numbers<[1], [0], [0], [1], [0, 0, 1, 1], [], []>} : vector<5x128xbf16>, vector<128x64xbf16>, vector<5x64xf32> -> vector<5x64xf32>
    %c0_138 = arith.constant 0 : index
    %c0_139 = arith.constant 0 : index
    %372 = vector.load %arg25[%c0_138, %c0_139] : memref<1x64xf32, #tpu.memory_space<vmem>>, vector<1x64xf32>
    %373 = vector.broadcast %372 : vector<1x64xf32> to vector<5x64xf32>
    %374 = arith.addf %371, %373 : vector<5x64xf32>
    %375 = arith.addf %247, %374 : vector<5x64xf32>
    %c0_140 = arith.constant 0 : index
    %c0_141 = arith.constant 0 : index
    %376 = vector.load %arg26[%c0_140, %c0_141] : memref<1x64xf32, #tpu.memory_space<vmem>>, vector<1x64xf32>
    %c0_142 = arith.constant 0 : index
    %c0_143 = arith.constant 0 : index
    %377 = vector.load %arg27[%c0_142, %c0_143] : memref<1x64xf32, #tpu.memory_space<vmem>>, vector<1x64xf32>
    %cst_144 = arith.constant dense<0.000000e+00> : vector<5xf32>
    %378 = vector.multi_reduction <add>, %375, %cst_144 [1] : vector<5x64xf32> to vector<5xf32>
    %379 = vector.shape_cast %378 : vector<5xf32> to vector<5x1xf32>
    %cst_145 = arith.constant 6.400000e+01 : f32
    %380 = vector.broadcast %cst_145 : f32 to vector<5x1xf32>
    %381 = arith.divf %379, %380 : vector<5x1xf32>
    %382 = vector.broadcast %381 : vector<5x1xf32> to vector<5x64xf32>
    %383 = arith.subf %375, %382 : vector<5x64xf32>
    %384 = arith.mulf %383, %383 : vector<5x64xf32>
    %cst_146 = arith.constant dense<0.000000e+00> : vector<5xf32>
    %385 = vector.multi_reduction <add>, %384, %cst_146 [1] : vector<5x64xf32> to vector<5xf32>
    %386 = vector.shape_cast %385 : vector<5xf32> to vector<5x1xf32>
    %cst_147 = arith.constant 6.400000e+01 : f32
    %387 = vector.broadcast %cst_147 : f32 to vector<5x1xf32>
    %388 = arith.divf %386, %387 : vector<5x1xf32>
    %cst_148 = arith.constant 9.99999997E-7 : f32
    %389 = vector.broadcast %cst_148 : f32 to vector<5x1xf32>
    %390 = arith.addf %388, %389 : vector<5x1xf32>
    %391 = math.rsqrt %390 : vector<5x1xf32>
    %392 = vector.broadcast %391 : vector<5x1xf32> to vector<5x64xf32>
    %393 = arith.mulf %383, %392 : vector<5x64xf32>
    %394 = vector.broadcast %376 : vector<1x64xf32> to vector<5x64xf32>
    %395 = arith.mulf %393, %394 : vector<5x64xf32>
    %396 = vector.broadcast %377 : vector<1x64xf32> to vector<5x64xf32>
    %397 = arith.addf %395, %396 : vector<5x64xf32>
    %398 = arith.truncf %397 : vector<5x64xf32> to vector<5x64xbf16>
    %c0_149 = arith.constant 0 : index
    %c0_150 = arith.constant 0 : index
    %399 = vector.load %arg28[%c0_149, %c0_150] : memref<64x256xbf16, #tpu.memory_space<vmem>>, vector<64x256xbf16>
    %cst_151 = arith.constant dense<0.000000e+00> : vector<5x256xf32>
    %400 = tpu.matmul %398, %399, %cst_151 {dimension_numbers = #tpu.dot_dimension_numbers<[1], [0], [0], [1], [0, 0, 1, 1], [], []>} : vector<5x64xbf16>, vector<64x256xbf16>, vector<5x256xf32> -> vector<5x256xf32>
    %c0_152 = arith.constant 0 : index
    %c0_153 = arith.constant 0 : index
    %401 = vector.load %arg29[%c0_152, %c0_153] : memref<1x256xf32, #tpu.memory_space<vmem>>, vector<1x256xf32>
    %402 = vector.broadcast %401 : vector<1x256xf32> to vector<5x256xf32>
    %403 = arith.addf %400, %402 : vector<5x256xf32>
    %404 = arith.mulf %403, %403 : vector<5x256xf32>
    %405 = arith.mulf %403, %404 : vector<5x256xf32>
    %cst_154 = arith.constant 4.471500e-02 : f32
    %406 = vector.broadcast %cst_154 : f32 to vector<5x256xf32>
    %407 = arith.mulf %406, %405 : vector<5x256xf32>
    %408 = arith.addf %403, %407 : vector<5x256xf32>
    %cst_155 = arith.constant 0.797884583 : f32
    %409 = vector.broadcast %cst_155 : f32 to vector<5x256xf32>
    %410 = arith.mulf %409, %408 : vector<5x256xf32>
    %411 = math.tanh %410 : vector<5x256xf32>
    %cst_156 = arith.constant 1.000000e+00 : f32
    %412 = vector.broadcast %cst_156 : f32 to vector<5x256xf32>
    %413 = arith.addf %412, %411 : vector<5x256xf32>
    %cst_157 = arith.constant 5.000000e-01 : f32
    %414 = vector.broadcast %cst_157 : f32 to vector<5x256xf32>
    %415 = arith.mulf %414, %413 : vector<5x256xf32>
    %416 = arith.mulf %403, %415 : vector<5x256xf32>
    %417 = arith.truncf %416 : vector<5x256xf32> to vector<5x256xbf16>
    %c0_158 = arith.constant 0 : index
    %c0_159 = arith.constant 0 : index
    %418 = vector.load %arg30[%c0_158, %c0_159] : memref<256x64xbf16, #tpu.memory_space<vmem>>, vector<256x64xbf16>
    %cst_160 = arith.constant dense<0.000000e+00> : vector<5x64xf32>
    %419 = tpu.matmul %417, %418, %cst_160 {dimension_numbers = #tpu.dot_dimension_numbers<[1], [0], [0], [1], [0, 0, 1, 1], [], []>} : vector<5x256xbf16>, vector<256x64xbf16>, vector<5x64xf32> -> vector<5x64xf32>
    %c0_161 = arith.constant 0 : index
    %c0_162 = arith.constant 0 : index
    %420 = vector.load %arg31[%c0_161, %c0_162] : memref<1x64xf32, #tpu.memory_space<vmem>>, vector<1x64xf32>
    %421 = vector.broadcast %420 : vector<1x64xf32> to vector<5x64xf32>
    %422 = arith.addf %419, %421 : vector<5x64xf32>
    %423 = arith.addf %375, %422 : vector<5x64xf32>
    %424 = vector.extract_strided_slice %423 {offsets = [0, 0], sizes = [1, 64], strides = [1, 1]} : vector<5x64xf32> to vector<1x64xf32>
    %c0_163 = arith.constant 0 : index
    %c0_164 = arith.constant 0 : index
    %425 = vector.load %arg32[%c0_163, %c0_164] : memref<1x64xf32, #tpu.memory_space<vmem>>, vector<1x64xf32>
    %c0_165 = arith.constant 0 : index
    %c0_166 = arith.constant 0 : index
    %426 = vector.load %arg33[%c0_165, %c0_166] : memref<1x64xf32, #tpu.memory_space<vmem>>, vector<1x64xf32>
    %cst_167 = arith.constant dense<0.000000e+00> : vector<1xf32>
    %427 = vector.multi_reduction <add>, %424, %cst_167 [1] : vector<1x64xf32> to vector<1xf32>
    %428 = vector.shape_cast %427 : vector<1xf32> to vector<1x1xf32>
    %cst_168 = arith.constant 6.400000e+01 : f32
    %429 = vector.broadcast %cst_168 : f32 to vector<1x1xf32>
    %430 = arith.divf %428, %429 : vector<1x1xf32>
    %431 = vector.broadcast %430 : vector<1x1xf32> to vector<1x64xf32>
    %432 = arith.subf %424, %431 : vector<1x64xf32>
    %433 = arith.mulf %432, %432 : vector<1x64xf32>
    %cst_169 = arith.constant dense<0.000000e+00> : vector<1xf32>
    %434 = vector.multi_reduction <add>, %433, %cst_169 [1] : vector<1x64xf32> to vector<1xf32>
    %435 = vector.shape_cast %434 : vector<1xf32> to vector<1x1xf32>
    %cst_170 = arith.constant 6.400000e+01 : f32
    %436 = vector.broadcast %cst_170 : f32 to vector<1x1xf32>
    %437 = arith.divf %435, %436 : vector<1x1xf32>
    %cst_171 = arith.constant 9.99999997E-7 : f32
    %438 = vector.broadcast %cst_171 : f32 to vector<1x1xf32>
    %439 = arith.addf %437, %438 : vector<1x1xf32>
    %440 = math.rsqrt %439 : vector<1x1xf32>
    %441 = vector.broadcast %440 : vector<1x1xf32> to vector<1x64xf32>
    %442 = arith.mulf %432, %441 : vector<1x64xf32>
    %443 = arith.mulf %442, %425 : vector<1x64xf32>
    %444 = arith.addf %443, %426 : vector<1x64xf32>
    %445 = arith.truncf %444 : vector<1x64xf32> to vector<1x64xbf16>
    %c0_172 = arith.constant 0 : index
    %c0_173 = arith.constant 0 : index
    %446 = vector.load %arg34[%c0_172, %c0_173] : memref<64x1024xbf16, #tpu.memory_space<vmem>>, vector<64x1024xbf16>
    %cst_174 = arith.constant dense<0.000000e+00> : vector<1x1024xf32>
    %447 = tpu.matmul %445, %446, %cst_174 {dimension_numbers = #tpu.dot_dimension_numbers<[1], [0], [0], [1], [0, 0, 1, 1], [], []>} : vector<1x64xbf16>, vector<64x1024xbf16>, vector<1x1024xf32> -> vector<1x1024xf32>
    %c0_175 = arith.constant 0 : index
    %c0_176 = arith.constant 0 : index
    %448 = vector.load %arg35[%c0_175, %c0_176] : memref<1x1024xf32, #tpu.memory_space<vmem>>, vector<1x1024xf32>
    %449 = arith.addf %447, %448 : vector<1x1024xf32>
    %c0_177 = arith.constant 0 : index
    %c0_178 = arith.constant 0 : index
    %450 = vector.load %arg36[%c0_177, %c0_178] : memref<1x1024xf32, #tpu.memory_space<vmem>>, vector<1x1024xf32>
    %451 = arith.mulf %449, %450 : vector<1x1024xf32>
    %c0_179 = arith.constant 0 : index
    %c0_180 = arith.constant 0 : index
    %452 = vector.load %arg37[%c0_179, %c0_180] : memref<1x1024xf32, #tpu.memory_space<vmem>>, vector<1x1024xf32>
    %453 = arith.addf %451, %452 : vector<1x1024xf32>
    %cst_181 = arith.constant 0.000000e+00 : f32
    %454 = vector.broadcast %cst_181 : f32 to vector<1x1024xf32>
    %455 = arith.maximumf %453, %454 : vector<1x1024xf32>
    %456 = arith.truncf %455 : vector<1x1024xf32> to vector<1x1024xbf16>
    %c0_182 = arith.constant 0 : index
    %c0_183 = arith.constant 0 : index
    %457 = vector.load %arg38[%c0_182, %c0_183] : memref<1024x512xbf16, #tpu.memory_space<vmem>>, vector<1024x512xbf16>
    %cst_184 = arith.constant dense<0.000000e+00> : vector<1x512xf32>
    %458 = tpu.matmul %456, %457, %cst_184 {dimension_numbers = #tpu.dot_dimension_numbers<[1], [0], [0], [1], [0, 0, 1, 1], [], []>} : vector<1x1024xbf16>, vector<1024x512xbf16>, vector<1x512xf32> -> vector<1x512xf32>
    %c0_185 = arith.constant 0 : index
    %c0_186 = arith.constant 0 : index
    %459 = vector.load %arg39[%c0_185, %c0_186] : memref<1x512xf32, #tpu.memory_space<vmem>>, vector<1x512xf32>
    %460 = arith.addf %458, %459 : vector<1x512xf32>
    %c0_187 = arith.constant 0 : index
    %c0_188 = arith.constant 0 : index
    %461 = vector.load %arg40[%c0_187, %c0_188] : memref<1x512xf32, #tpu.memory_space<vmem>>, vector<1x512xf32>
    %462 = arith.mulf %460, %461 : vector<1x512xf32>
    %c0_189 = arith.constant 0 : index
    %c0_190 = arith.constant 0 : index
    %463 = vector.load %arg41[%c0_189, %c0_190] : memref<1x512xf32, #tpu.memory_space<vmem>>, vector<1x512xf32>
    %464 = arith.addf %462, %463 : vector<1x512xf32>
    %cst_191 = arith.constant 0.000000e+00 : f32
    %465 = vector.broadcast %cst_191 : f32 to vector<1x512xf32>
    %466 = arith.maximumf %464, %465 : vector<1x512xf32>
    %467 = arith.truncf %466 : vector<1x512xf32> to vector<1x512xbf16>
    %c0_192 = arith.constant 0 : index
    %c0_193 = arith.constant 0 : index
    %468 = vector.load %arg42[%c0_192, %c0_193] : memref<512x256xbf16, #tpu.memory_space<vmem>>, vector<512x256xbf16>
    %cst_194 = arith.constant dense<0.000000e+00> : vector<1x256xf32>
    %469 = tpu.matmul %467, %468, %cst_194 {dimension_numbers = #tpu.dot_dimension_numbers<[1], [0], [0], [1], [0, 0, 1, 1], [], []>} : vector<1x512xbf16>, vector<512x256xbf16>, vector<1x256xf32> -> vector<1x256xf32>
    %c0_195 = arith.constant 0 : index
    %c0_196 = arith.constant 0 : index
    %470 = vector.load %arg43[%c0_195, %c0_196] : memref<1x256xf32, #tpu.memory_space<vmem>>, vector<1x256xf32>
    %471 = arith.addf %469, %470 : vector<1x256xf32>
    %c0_197 = arith.constant 0 : index
    %c0_198 = arith.constant 0 : index
    %472 = vector.load %arg44[%c0_197, %c0_198] : memref<1x256xf32, #tpu.memory_space<vmem>>, vector<1x256xf32>
    %473 = arith.mulf %471, %472 : vector<1x256xf32>
    %c0_199 = arith.constant 0 : index
    %c0_200 = arith.constant 0 : index
    %474 = vector.load %arg45[%c0_199, %c0_200] : memref<1x256xf32, #tpu.memory_space<vmem>>, vector<1x256xf32>
    %475 = arith.addf %473, %474 : vector<1x256xf32>
    %cst_201 = arith.constant 0.000000e+00 : f32
    %476 = vector.broadcast %cst_201 : f32 to vector<1x256xf32>
    %477 = arith.maximumf %475, %476 : vector<1x256xf32>
    %478 = arith.truncf %477 : vector<1x256xf32> to vector<1x256xbf16>
    %c0_202 = arith.constant 0 : index
    %c0_203 = arith.constant 0 : index
    %479 = vector.load %arg46[%c0_202, %c0_203] : memref<256x128xbf16, #tpu.memory_space<vmem>>, vector<256x128xbf16>
    %cst_204 = arith.constant dense<0.000000e+00> : vector<1x128xf32>
    %480 = tpu.matmul %478, %479, %cst_204 {dimension_numbers = #tpu.dot_dimension_numbers<[1], [0], [0], [1], [0, 0, 1, 1], [], []>} : vector<1x256xbf16>, vector<256x128xbf16>, vector<1x128xf32> -> vector<1x128xf32>
    %c0_205 = arith.constant 0 : index
    %c0_206 = arith.constant 0 : index
    %481 = vector.load %arg47[%c0_205, %c0_206] : memref<1x128xf32, #tpu.memory_space<vmem>>, vector<1x128xf32>
    %482 = arith.addf %480, %481 : vector<1x128xf32>
    %c0_207 = arith.constant 0 : index
    %c0_208 = arith.constant 0 : index
    %c0_209 = arith.constant 0 : index
    %483 = vector.load %arg48[%c0_207, %c0_208, %c0_209] : memref<1x1x128xf32, #tpu.memory_space<vmem>>, vector<1x1x128xf32>
    %484 = vector.shape_cast %483 : vector<1x1x128xf32> to vector<1x128xf32>
    %485 = vector.shape_cast %482 : vector<1x128xf32> to vector<1x1x128xf32>
    tpu.vector_store %arg48[%c0_207, %c0_208, %c0_209], %485 {strides = array<i32>} : memref<1x1x128xf32, #tpu.memory_space<vmem>>, vector<1x1x128xf32>,
    return
  }
  func.func @transform_0(%arg0: i32) -> (i32, i32, i32) {
    %c0_i32 = arith.constant 0 : i32
    %c0_i32_0 = arith.constant 0 : i32
    %c0_i32_1 = arith.constant 0 : i32
    return %arg0, %c0_i32, %c0_i32_0 : i32, i32, i32
  }
  func.func @transform_1(%arg0: i32) -> (i32, i32) {
    %c0_i32 = arith.constant 0 : i32
    %c0_i32_0 = arith.constant 0 : i32
    %c0_i32_1 = arith.constant 0 : i32
    return %c0_i32, %c0_i32_0 : i32, i32
  }
  func.func @transform_2(%arg0: i32) -> (i32, i32) {
    %c0_i32 = arith.constant 0 : i32
    %c0_i32_0 = arith.constant 0 : i32
    %c0_i32_1 = arith.constant 0 : i32
    return %c0_i32, %c0_i32_0 : i32, i32
  }
  func.func @transform_3(%arg0: i32) -> (i32, i32) {
    %c0_i32 = arith.constant 0 : i32
    %c0_i32_0 = arith.constant 0 : i32
    %c0_i32_1 = arith.constant 0 : i32
    return %c0_i32, %c0_i32_0 : i32, i32
  }
  func.func @transform_4(%arg0: i32) -> (i32, i32) {
    %c0_i32 = arith.constant 0 : i32
    %c0_i32_0 = arith.constant 0 : i32
    %c0_i32_1 = arith.constant 0 : i32
    return %c0_i32, %c0_i32_0 : i32, i32
  }
  func.func @transform_5(%arg0: i32) -> (i32, i32) {
    %c0_i32 = arith.constant 0 : i32
    %c0_i32_0 = arith.constant 0 : i32
    %c0_i32_1 = arith.constant 0 : i32
    return %c0_i32, %c0_i32_0 : i32, i32
  }
  func.func @transform_6(%arg0: i32) -> (i32, i32) {
    %c0_i32 = arith.constant 0 : i32
    %c0_i32_0 = arith.constant 0 : i32
    %c0_i32_1 = arith.constant 0 : i32
    return %c0_i32, %c0_i32_0 : i32, i32
  }
  func.func @transform_7(%arg0: i32) -> (i32, i32) {
    %c0_i32 = arith.constant 0 : i32
    %c0_i32_0 = arith.constant 0 : i32
    %c0_i32_1 = arith.constant 0 : i32
    return %c0_i32, %c0_i32_0 : i32, i32
  }
  func.func @transform_8(%arg0: i32) -> (i32, i32) {
    %c0_i32 = arith.constant 0 : i32
    %c0_i32_0 = arith.constant 0 : i32
    %c0_i32_1 = arith.constant 0 : i32
    return %c0_i32, %c0_i32_0 : i32, i32
  }
  func.func @transform_9(%arg0: i32) -> (i32, i32) {
    %c0_i32 = arith.constant 0 : i32
    %c0_i32_0 = arith.constant 0 : i32
    %c0_i32_1 = arith.constant 0 : i32
    return %c0_i32, %c0_i32_0 : i32, i32
  }
  func.func @transform_10(%arg0: i32) -> (i32, i32) {
    %c0_i32 = arith.constant 0 : i32
    %c0_i32_0 = arith.constant 0 : i32
    %c0_i32_1 = arith.constant 0 : i32
    return %c0_i32, %c0_i32_0 : i32, i32
  }
  func.func @transform_11(%arg0: i32) -> (i32, i32) {
    %c0_i32 = arith.constant 0 : i32
    %c0_i32_0 = arith.constant 0 : i32
    %c0_i32_1 = arith.constant 0 : i32
    return %c0_i32, %c0_i32_0 : i32, i32
  }
  func.func @transform_12(%arg0: i32) -> (i32, i32) {
    %c0_i32 = arith.constant 0 : i32
    %c0_i32_0 = arith.constant 0 : i32
    %c0_i32_1 = arith.constant 0 : i32
    return %c0_i32, %c0_i32_0 : i32, i32
  }
  func.func @transform_13(%arg0: i32) -> (i32, i32) {
    %c0_i32 = arith.constant 0 : i32
    %c0_i32_0 = arith.constant 0 : i32
    %c0_i32_1 = arith.constant 0 : i32
    return %c0_i32, %c0_i32_0 : i32, i32
  }
  func.func @transform_14(%arg0: i32) -> (i32, i32) {
    %c0_i32 = arith.constant 0 : i32
    %c0_i32_0 = arith.constant 0 : i32
    %c0_i32_1 = arith.constant 0 : i32
    return %c0_i32, %c0_i32_0 : i32, i32
  }
  func.func @transform_15(%arg0: i32) -> (i32, i32) {
    %c0_i32 = arith.constant 0 : i32
    %c0_i32_0 = arith.constant 0 : i32
    %c0_i32_1 = arith.constant 0 : i32
    return %c0_i32, %c0_i32_0 : i32, i32
  }
  func.func @transform_16(%arg0: i32) -> (i32, i32) {
    %c0_i32 = arith.constant 0 : i32
    %c0_i32_0 = arith.constant 0 : i32
    %c0_i32_1 = arith.constant 0 : i32
    return %c0_i32, %c0_i32_0 : i32, i32
  }
  func.func @transform_17(%arg0: i32) -> (i32, i32) {
    %c0_i32 = arith.constant 0 : i32
    %c0_i32_0 = arith.constant 0 : i32
    %c0_i32_1 = arith.constant 0 : i32
    return %c0_i32, %c0_i32_0 : i32, i32
  }
  func.func @transform_18(%arg0: i32) -> (i32, i32) {
    %c0_i32 = arith.constant 0 : i32
    %c0_i32_0 = arith.constant 0 : i32
    %c0_i32_1 = arith.constant 0 : i32
    return %c0_i32, %c0_i32_0 : i32, i32
  }
  func.func @transform_19(%arg0: i32) -> (i32, i32) {
    %c0_i32 = arith.constant 0 : i32
    %c0_i32_0 = arith.constant 0 : i32
    %c0_i32_1 = arith.constant 0 : i32
    return %c0_i32, %c0_i32_0 : i32, i32
  }
  func.func @transform_20(%arg0: i32) -> (i32, i32) {
    %c0_i32 = arith.constant 0 : i32
    %c0_i32_0 = arith.constant 0 : i32
    %c0_i32_1 = arith.constant 0 : i32
    return %c0_i32, %c0_i32_0 : i32, i32
  }
  func.func @transform_21(%arg0: i32) -> (i32, i32) {
    %c0_i32 = arith.constant 0 : i32
    %c0_i32_0 = arith.constant 0 : i32
    %c0_i32_1 = arith.constant 0 : i32
    return %c0_i32, %c0_i32_0 : i32, i32
  }
  func.func @transform_22(%arg0: i32) -> (i32, i32) {
    %c0_i32 = arith.constant 0 : i32
    %c0_i32_0 = arith.constant 0 : i32
    %c0_i32_1 = arith.constant 0 : i32
    return %c0_i32, %c0_i32_0 : i32, i32
  }
  func.func @transform_23(%arg0: i32) -> (i32, i32) {
    %c0_i32 = arith.constant 0 : i32
    %c0_i32_0 = arith.constant 0 : i32
    %c0_i32_1 = arith.constant 0 : i32
    return %c0_i32, %c0_i32_0 : i32, i32
  }
  func.func @transform_24(%arg0: i32) -> (i32, i32) {
    %c0_i32 = arith.constant 0 : i32
    %c0_i32_0 = arith.constant 0 : i32
    %c0_i32_1 = arith.constant 0 : i32
    return %c0_i32, %c0_i32_0 : i32, i32
  }
  func.func @transform_25(%arg0: i32) -> (i32, i32) {
    %c0_i32 = arith.constant 0 : i32
    %c0_i32_0 = arith.constant 0 : i32
    %c0_i32_1 = arith.constant 0 : i32
    return %c0_i32, %c0_i32_0 : i32, i32
  }
  func.func @transform_26(%arg0: i32) -> (i32, i32) {
    %c0_i32 = arith.constant 0 : i32
    %c0_i32_0 = arith.constant 0 : i32
    %c0_i32_1 = arith.constant 0 : i32
    return %c0_i32, %c0_i32_0 : i32, i32
  }
  func.func @transform_27(%arg0: i32) -> (i32, i32) {
    %c0_i32 = arith.constant 0 : i32
    %c0_i32_0 = arith.constant 0 : i32
    %c0_i32_1 = arith.constant 0 : i32
    return %c0_i32, %c0_i32_0 : i32, i32
  }
  func.func @transform_28(%arg0: i32) -> (i32, i32) {
    %c0_i32 = arith.constant 0 : i32
    %c0_i32_0 = arith.constant 0 : i32
    %c0_i32_1 = arith.constant 0 : i32
    return %c0_i32, %c0_i32_0 : i32, i32
  }
  func.func @transform_29(%arg0: i32) -> (i32, i32) {
    %c0_i32 = arith.constant 0 : i32
    %c0_i32_0 = arith.constant 0 : i32
    %c0_i32_1 = arith.constant 0 : i32
    return %c0_i32, %c0_i32_0 : i32, i32
  }
  func.func @transform_30(%arg0: i32) -> (i32, i32) {
    %c0_i32 = arith.constant 0 : i32
    %c0_i32_0 = arith.constant 0 : i32
    %c0_i32_1 = arith.constant 0 : i32
    return %c0_i32, %c0_i32_0 : i32, i32
  }
  func.func @transform_31(%arg0: i32) -> (i32, i32) {
    %c0_i32 = arith.constant 0 : i32
    %c0_i32_0 = arith.constant 0 : i32
    %c0_i32_1 = arith.constant 0 : i32
    return %c0_i32, %c0_i32_0 : i32, i32
  }
  func.func @transform_32(%arg0: i32) -> (i32, i32) {
    %c0_i32 = arith.constant 0 : i32
    %c0_i32_0 = arith.constant 0 : i32
    %c0_i32_1 = arith.constant 0 : i32
    return %c0_i32, %c0_i32_0 : i32, i32
  }
  func.func @transform_33(%arg0: i32) -> (i32, i32) {
    %c0_i32 = arith.constant 0 : i32
    %c0_i32_0 = arith.constant 0 : i32
    %c0_i32_1 = arith.constant 0 : i32
    return %c0_i32, %c0_i32_0 : i32, i32
  }
  func.func @transform_34(%arg0: i32) -> (i32, i32) {
    %c0_i32 = arith.constant 0 : i32
    %c0_i32_0 = arith.constant 0 : i32
    %c0_i32_1 = arith.constant 0 : i32
    return %c0_i32, %c0_i32_0 : i32, i32
  }
  func.func @transform_35(%arg0: i32) -> (i32, i32) {
    %c0_i32 = arith.constant 0 : i32
    %c0_i32_0 = arith.constant 0 : i32
    %c0_i32_1 = arith.constant 0 : i32
    return %c0_i32, %c0_i32_0 : i32, i32
  }
  func.func @transform_36(%arg0: i32) -> (i32, i32) {
    %c0_i32 = arith.constant 0 : i32
    %c0_i32_0 = arith.constant 0 : i32
    %c0_i32_1 = arith.constant 0 : i32
    return %c0_i32, %c0_i32_0 : i32, i32
  }
  func.func @transform_37(%arg0: i32) -> (i32, i32) {
    %c0_i32 = arith.constant 0 : i32
    %c0_i32_0 = arith.constant 0 : i32
    %c0_i32_1 = arith.constant 0 : i32
    return %c0_i32, %c0_i32_0 : i32, i32
  }
  func.func @transform_38(%arg0: i32) -> (i32, i32) {
    %c0_i32 = arith.constant 0 : i32
    %c0_i32_0 = arith.constant 0 : i32
    %c0_i32_1 = arith.constant 0 : i32
    return %c0_i32, %c0_i32_0 : i32, i32
  }
  func.func @transform_39(%arg0: i32) -> (i32, i32) {
    %c0_i32 = arith.constant 0 : i32
    %c0_i32_0 = arith.constant 0 : i32
    %c0_i32_1 = arith.constant 0 : i32
    return %c0_i32, %c0_i32_0 : i32, i32
  }
  func.func @transform_40(%arg0: i32) -> (i32, i32) {
    %c0_i32 = arith.constant 0 : i32
    %c0_i32_0 = arith.constant 0 : i32
    %c0_i32_1 = arith.constant 0 : i32
    return %c0_i32, %c0_i32_0 : i32, i32
  }
  func.func @transform_41(%arg0: i32) -> (i32, i32) {
    %c0_i32 = arith.constant 0 : i32
    %c0_i32_0 = arith.constant 0 : i32
    %c0_i32_1 = arith.constant 0 : i32
    return %c0_i32, %c0_i32_0 : i32, i32
  }
  func.func @transform_42(%arg0: i32) -> (i32, i32) {
    %c0_i32 = arith.constant 0 : i32
    %c0_i32_0 = arith.constant 0 : i32
    %c0_i32_1 = arith.constant 0 : i32
    return %c0_i32, %c0_i32_0 : i32, i32
  }
  func.func @transform_43(%arg0: i32) -> (i32, i32) {
    %c0_i32 = arith.constant 0 : i32
    %c0_i32_0 = arith.constant 0 : i32
    %c0_i32_1 = arith.constant 0 : i32
    return %c0_i32, %c0_i32_0 : i32, i32
  }
  func.func @transform_44(%arg0: i32) -> (i32, i32) {
    %c0_i32 = arith.constant 0 : i32
    %c0_i32_0 = arith.constant 0 : i32
    %c0_i32_1 = arith.constant 0 : i32
    return %c0_i32, %c0_i32_0 : i32, i32
  }
  func.func @transform_45(%arg0: i32) -> (i32, i32) {
    %c0_i32 = arith.constant 0 : i32
    %c0_i32_0 = arith.constant 0 : i32
    %c0_i32_1 = arith.constant 0 : i32
    return %c0_i32, %c0_i32_0 : i32, i32
  }
  func.func @transform_46(%arg0: i32) -> (i32, i32) {
    %c0_i32 = arith.constant 0 : i32
    %c0_i32_0 = arith.constant 0 : i32
    %c0_i32_1 = arith.constant 0 : i32
    return %c0_i32, %c0_i32_0 : i32, i32
  }
  func.func @transform_47(%arg0: i32) -> (i32, i32, i32) {
    %c0_i32 = arith.constant 0 : i32
    %c0_i32_0 = arith.constant 0 : i32
    %c0_i32_1 = arith.constant 0 : i32
    return %arg0, %c0_i32, %c0_i32_0 : i32, i32, i32
  }
}

</mosaic_0001>

<llo_original>
// kernel: maskvit_forward.1
$region0: #{maskvit_forward.1}
  #allocation0 [shape = 'u32[]', space=smem, size = 0x4, offset = 0x4, fixed_abs, tag = 'smem constant byte address 0x4 - core index']
  #allocation1 [shape = 'u32[72,128]{1,0:T(1,128)}', space=vmem, size = 0x9000, scoped, tag = 'internal scratch']
  %s0 = inlined_call_operand.smem [shape: u32[48], index: -1, kind: input, shape index: {}]
  %s1 = sld [smem:[%s0]]
  %s2 = scalar_lea.smem %s0, 1
  %s3 = sld [smem:[%s2]]
  %s4 = scalar_lea.smem %s0, 2
  %s5 = sld [smem:[%s4]]
  %s6 = scalar_lea.smem %s0, 3
  %s7 = sld [smem:[%s6]]
  %s8 = scalar_lea.smem %s0, 4
  %s9 = sld [smem:[%s8]]
  %s10 = scalar_lea.smem %s0, 5
  %s11 = sld [smem:[%s10]]
  %s12 = scalar_lea.smem %s0, 6
  %s13 = sld [smem:[%s12]]
  %s14 = scalar_lea.smem %s0, 7
  %s15 = sld [smem:[%s14]]
  %s16 = scalar_lea.smem %s0, 8
  %s17 = sld [smem:[%s16]]
  %s18 = scalar_lea.smem %s0, 9
  %s19 = sld [smem:[%s18]]
  %s20 = scalar_lea.smem %s0, 10
  %s21 = sld [smem:[%s20]]
  %s22 = scalar_lea.smem %s0, 11
  %s23 = sld [smem:[%s22]]
  %s24 = scalar_lea.smem %s0, 12
  %s25 = sld [smem:[%s24]]
  %s26 = scalar_lea.smem %s0, 13
  %s27 = sld [smem:[%s26]]
  %s28 = scalar_lea.smem %s0, 14
  %s29 = sld [smem:[%s28]]
  %s30 = scalar_lea.smem %s0, 15
  %s31 = sld [smem:[%s30]]
  %s32 = scalar_lea.smem %s0, 16
  %s33 = sld [smem:[%s32]]
  %s34 = scalar_lea.smem %s0, 17
  %s35 = sld [smem:[%s34]]
  %s36 = scalar_lea.smem %s0, 18
  %s37 = sld [smem:[%s36]]
  %s38 = scalar_lea.smem %s0, 19
  %s39 = sld [smem:[%s38]]
  %s40 = scalar_lea.smem %s0, 20
  %s41 = sld [smem:[%s40]]
  %s42 = scalar_lea.smem %s0, 21
  %s43 = sld [smem:[%s42]]
  %s44 = scalar_lea.smem %s0, 22
  %s45 = sld [smem:[%s44]]
  %s46 = scalar_lea.smem %s0, 23
  %s47 = sld [smem:[%s46]]
  %s48 = scalar_lea.smem %s0, 24
  %s49 = sld [smem:[%s48]]
  %s50 = scalar_lea.smem %s0, 25
  %s51 = sld [smem:[%s50]]
  %s52 = scalar_lea.smem %s0, 26
  %s53 = sld [smem:[%s52]]
  %s54 = scalar_lea.smem %s0, 27
  %s55 = sld [smem:[%s54]]
  %s56 = scalar_lea.smem %s0, 28
  %s57 = sld [smem:[%s56]]
  %s58 = scalar_lea.smem %s0, 29
  %s59 = sld [smem:[%s58]]
  %s60 = scalar_lea.smem %s0, 30
  %s61 = sld [smem:[%s60]]
  %s62 = scalar_lea.smem %s0, 31
  %s63 = sld [smem:[%s62]]
  %s64 = scalar_lea.smem %s0, 32
  %s65 = sld [smem:[%s64]]
  %s66 = scalar_lea.smem %s0, 33
  %s67 = sld [smem:[%s66]]
  %s68 = scalar_lea.smem %s0, 34
  %s69 = sld [smem:[%s68]]
  %s70 = scalar_lea.smem %s0, 35
  %s71 = sld [smem:[%s70]]
  %s72 = scalar_lea.smem %s0, 36
  %s73 = sld [smem:[%s72]]
  %s74 = scalar_lea.smem %s0, 37
  %s75 = sld [smem:[%s74]]
  %s76 = scalar_lea.smem %s0, 38
  %s77 = sld [smem:[%s76]]
  %s78 = scalar_lea.smem %s0, 39
  %s79 = sld [smem:[%s78]]
  %s80 = scalar_lea.smem %s0, 40
  %s81 = sld [smem:[%s80]]
  %s82 = scalar_lea.smem %s0, 41
  %s83 = sld [smem:[%s82]]
  %s84 = scalar_lea.smem %s0, 42
  %s85 = sld [smem:[%s84]]
  %s86 = scalar_lea.smem %s0, 43
  %s87 = sld [smem:[%s86]]
  %s88 = scalar_lea.smem %s0, 44
  %s89 = sld [smem:[%s88]]
  %s90 = scalar_lea.smem %s0, 45
  %s91 = sld [smem:[%s90]]
  %s92 = scalar_lea.smem %s0, 46
  %s93 = sld [smem:[%s92]]
  %s94 = scalar_lea.smem %s0, 47
  %s95 = sld [smem:[%s94]]
  %s96 = sld [smem:[#allocation0]]
  $region245: #{maskvit_forward.1} parent=0
    _
  %s98 = ssub.s32 1, %s96
  %s99 = scalar_select 0, %s98, %s96
  $region1: #{maskvit_forward.1} parent=0
    #allocation2 [shape = 'u8[512]{0}', space=vmem, size = 0x400, scoped, tag = 'input window, operand 26, single buffered']
    #allocation3 [shape = 's32[2]{0}', space=sflag, size = 0x8, scoped, tag = 'scoped memory for maskvit_forward.1']
    #allocation4 [shape = 's32[2]{0}', space=sflag, size = 0x8, scoped, tag = 'scoped memory for maskvit_forward.1']
    #allocation5 [shape = 'u8[512]{0}', space=vmem, size = 0x400, scoped, tag = 'input window, operand 30, single buffered']
    #allocation6 [shape = 's32[1]{0}', space=sflag, size = 0x4, scoped, tag = 'scoped memory for maskvit_forward.1']
    #allocation7 [shape = 'u8[512]{0}', space=vmem, size = 0x400, scoped, tag = 'input window, operand 31, single buffered']
    #allocation8 [shape = 'u8[512]{0}', space=vmem, size = 0x400, scoped, tag = 'input window, operand 32, single buffered']
    #allocation9 [shape = 's32[1]{0}', space=sflag, size = 0x4, scoped, tag = 'scoped memory for maskvit_forward.1']
    #allocation10 [shape = 'u8[1048576]{0}', space=vmem, size = 0x100000, scoped, tag = 'input window, operand 37, single buffered']
    #allocation11 [shape = 'u8[512]{0}', space=vmem, size = 0x400, scoped, tag = 'input window, operand 46, single buffered']
    #allocation12 [shape = 's32[1]{0}', space=sflag, size = 0x4, scoped, tag = 'scoped memory for maskvit_forward.1']
    #allocation13 [shape = 'u8[1024]{0}', space=vmem, size = 0x400, scoped, tag = 'output window, operand 0']
    %100 = vsyncpa [#allocation3], 0
    %101 = vsyncpa [#allocation6], 0
    %102 = vsyncpa [#allocation9], 0
    %103 = vsyncpa [#allocation12], 0
    %104 = vsyncpa [#allocation4], 0
    %s105 = scalar_lea.sflag [#allocation4], 1
    %106 = vsyncpa %s105, 0
    loop: start=0, step=1, limit=4
    $region2: #{maskvit_forward.1} parent=1 // loop_pre_header
      _
    $region3: #{maskvit_forward.1} parent=1 // loop_header
      %s108 = sphi 0, %s112
      %p109 = scmp.ge.s32.totalorder %s108, 4
      %s118 = sphi 0, %s120
      %s121 = sphi 0, %s118
      %s122 = sphi 0, %s121
      %s138 = sphi 0, %s122
      %s142 = sphi 0, %s142
      %s144 = sphi 0, %s142
      %s145 = sphi 0, %s144
      %s159 = sphi 0, %s145
      %s163 = sphi 0, %s163
      %s165 = sphi 0, %s163
      %s166 = sphi 0, %s165
      %s180 = sphi 0, %s166
      %s184 = sphi 0, %s184
      %s186 = sphi 0, %s184
      %s187 = sphi 0, %s186
      %s201 = sphi 0, %s187
      %s205 = sphi 0, %s205
      %s207 = sphi 0, %s205
      %s208 = sphi 0, %s207
      %s222 = sphi 0, %s208
      %s226 = sphi 0, %s226
      %s228 = sphi 0, %s226
      %s229 = sphi 0, %s228
      %s243 = sphi 0, %s229
      %s247 = sphi 0, %s247
      %s249 = sphi 0, %s247
      %s250 = sphi 0, %s249
      %s264 = sphi 0, %s250
      %s268 = sphi 0, %s268
      %s270 = sphi 0, %s268
      %s271 = sphi 0, %s270
      %s285 = sphi 0, %s271
      %s289 = sphi 0, %s289
      %s291 = sphi 0, %s289
      %s292 = sphi 0, %s291
      %s306 = sphi 0, %s292
      %s310 = sphi 0, %s310
      %s312 = sphi 0, %s310
      %s313 = sphi 0, %s312
      %s327 = sphi 0, %s313
      %s331 = sphi 0, %s331
      %s333 = sphi 0, %s331
      %s334 = sphi 0, %s333
      %s348 = sphi 0, %s334
      %s352 = sphi 0, %s352
      %s354 = sphi 0, %s352
      %s355 = sphi 0, %s354
      %s369 = sphi 0, %s355
      %s373 = sphi 0, %s373
      %s375 = sphi 0, %s373
      %s376 = sphi 0, %s375
      %s390 = sphi 0, %s376
      %s394 = sphi 0, %s394
      %s396 = sphi 0, %s394
      %s397 = sphi 0, %s396
      %s411 = sphi 0, %s397
      %s415 = sphi 0, %s415
      %s417 = sphi 0, %s415
      %s418 = sphi 0, %s417
      %s432 = sphi 0, %s418
      %s436 = sphi 0, %s436
      %s438 = sphi 0, %s436
      %s439 = sphi 0, %s438
      %s453 = sphi 0, %s439
      %s457 = sphi 0, %s457
      %s459 = sphi 0, %s457
      %s460 = sphi 0, %s459
      %s474 = sphi 0, %s460
      %s478 = sphi 0, %s478
      %s480 = sphi 0, %s478
      %s481 = sphi 0, %s480
      %s495 = sphi 0, %s481
      %s499 = sphi 0, %s499
      %s501 = sphi 0, %s499
      %s502 = sphi 0, %s501
      %s516 = sphi 0, %s502
      %s520 = sphi 0, %s520
      %s522 = sphi 0, %s520
      %s523 = sphi 0, %s522
      %s537 = sphi 0, %s523
      %s541 = sphi 0, %s541
      %s543 = sphi 0, %s541
      %s544 = sphi 0, %s543
      %s558 = sphi 0, %s544
      %s562 = sphi 0, %s562
      %s564 = sphi 0, %s562
      %s565 = sphi 0, %s564
      %s579 = sphi 0, %s565
      %s583 = sphi 0, %s583
      %s585 = sphi 0, %s583
      %s586 = sphi 0, %s585
      %s600 = sphi 0, %s586
      %s604 = sphi 0, %s604
      %s606 = sphi 0, %s604
      %s607 = sphi 0, %s606
      %s621 = sphi 0, %s607
      %s625 = sphi 0, %s625
      %s627 = sphi 0, %s625
      %s628 = sphi 0, %s627
      %s642 = sphi 0, %s628
      %s646 = sphi 0, %s646
      %s648 = sphi 0, %s646
      %s649 = sphi 0, %s648
      %s663 = sphi 0, %s649
      %s667 = sphi 0, %s667
      %s669 = sphi 0, %s667
      %s670 = sphi 0, %s669
      %s684 = sphi 0, %s670
      %s688 = sphi 0, %s688
      %s690 = sphi 0, %s688
      %s691 = sphi 0, %s690
      %s705 = sphi 0, %s691
      %s709 = sphi 0, %s709
      %s711 = sphi 0, %s709
      %s712 = sphi 0, %s711
      %s726 = sphi 0, %s712
      %s730 = sphi 0, %s730
      %s732 = sphi 0, %s730
      %s733 = sphi 0, %s732
      %s747 = sphi 0, %s733
      %s751 = sphi 0, %s751
      %s753 = sphi 0, %s751
      %s754 = sphi 0, %s753
      %s768 = sphi 0, %s754
      %s772 = sphi 0, %s772
      %s774 = sphi 0, %s772
      %s775 = sphi 0, %s774
      %s789 = sphi 0, %s775
      %s793 = sphi 0, %s793
      %s795 = sphi 0, %s793
      %s796 = sphi 0, %s795
      %s810 = sphi 0, %s796
      %s814 = sphi 0, %s814
      %s816 = sphi 0, %s814
      %s817 = sphi 0, %s816
      %s831 = sphi 0, %s817
      %s835 = sphi 0, %s835
      %s837 = sphi 0, %s835
      %s838 = sphi 0, %s837
      %s852 = sphi 0, %s838
      %s856 = sphi 0, %s856
      %s858 = sphi 0, %s856
      %s859 = sphi 0, %s858
      %s873 = sphi 0, %s859
      %s877 = sphi 0, %s877
      %s879 = sphi 0, %s877
      %s880 = sphi 0, %s879
      %s894 = sphi 0, %s880
      %s898 = sphi 0, %s898
      %s900 = sphi 0, %s898
      %s901 = sphi 0, %s900
      %s915 = sphi 0, %s901
      %s919 = sphi 0, %s919
      %s921 = sphi 0, %s919
      %s922 = sphi 0, %s921
      %s936 = sphi 0, %s922
      %s940 = sphi 0, %s940
      %s942 = sphi 0, %s940
      %s943 = sphi 0, %s942
      %s957 = sphi 0, %s943
      %s961 = sphi 0, %s961
      %s963 = sphi 0, %s961
      %s964 = sphi 0, %s963
      %s978 = sphi 0, %s964
      %s982 = sphi 0, %s982
      %s984 = sphi 0, %s982
      %s985 = sphi 0, %s984
      %s999 = sphi 0, %s985
      %s1003 = sphi 0, %s1003
      %s1005 = sphi 0, %s1003
      %s1006 = sphi 0, %s1005
      %s1020 = sphi 0, %s1006
      %s1024 = sphi 0, %s1024
      %s1026 = sphi 0, %s1024
      %s1027 = sphi 0, %s1026
      %s1041 = sphi 0, %s1027
      %s1045 = sphi 0, %s1045
      %s1047 = sphi 0, %s1045
      %s1048 = sphi 0, %s1047
      %s1062 = sphi 0, %s1048
      %s1066 = sphi 0, %s1066
      %s1068 = sphi 0, %s1066
      %s1069 = sphi 0, %s1068
      %s1083 = sphi 0, %s1069
      %s1087 = sphi 0, %s1087
      %s1089 = sphi 0, %s1087
      %s1090 = sphi 0, %s1089
      %s1104 = sphi 0, %s1090
      %s1110 = sphi 0, %s1112
      %s1113 = sphi 0, %s1110
      %s1114 = sphi 0, %s1113
      %s1130 = sphi 0, %s1114
    $region4: #{maskvit_forward.1} parent=1 // loop_header_branch
      %111 = sbr.rel (%p109) target = $region8
    $region5: #{maskvit_forward.1} parent=1 // loop_body
      %s113 = ssub.s32 %s108, 1
      %s114 = ssub.s32 %s108, 2
      %s115 = sadd.s32 %s108, 1
      %s116 = ssub.s32 %s108, %s115
      %p117 = scmp.eq.s32.totalorder %s116, 0
      %s119 = sadd.s32 %s118, 1
      %s120 = scalar_select %p117, %s118, %s119
      %p123 = pneg %p117
      %p124 = scmp.eq.s32.totalorder %s108, 1
      %p125 = por %p123, %p124
      %p126 = scmp.ne.s32.totalorder %s118, %s121
      %p127 = scmp.eq.s32.totalorder %s108, 0
      %p128 = por %p126, %p127
      %p129 = scmp.ne.s32.totalorder %s118, %s121
      %p130 = scmp.eq.s32.totalorder %s113, 1
      %p131 = por %p129, %p130
      %p132 = scmp.ne.s32.totalorder %s121, %s122
      %p133 = scmp.eq.s32.totalorder %s113, 0
      %p134 = por %p132, %p133
      %p135 = scmp.ne.s32.totalorder %s121, %s122
      %p136 = scmp.eq.s32.totalorder %s114, 1
      %p137 = por %p135, %p136
      %p139 = scmp.ne.s32.totalorder %s122, %s138
      %p140 = scmp.eq.s32.totalorder %s114, 0
      %p141 = por %p139, %p140
      %s143 = sadd.s32 %s142, 1
      %p146 = scmp.eq.s32.totalorder %s108, 1
      %p147 = scmp.ne.s32.totalorder %s142, %s144
      %p148 = scmp.eq.s32.totalorder %s108, 0
      %p149 = por %p147, %p148
      %p150 = scmp.ne.s32.totalorder %s142, %s144
      %p151 = scmp.eq.s32.totalorder %s113, 1
      %p152 = por %p150, %p151
      %p153 = scmp.ne.s32.totalorder %s144, %s145
      %p154 = scmp.eq.s32.totalorder %s113, 0
      %p155 = por %p153, %p154
      %p156 = scmp.ne.s32.totalorder %s144, %s145
      %p157 = scmp.eq.s32.totalorder %s114, 1
      %p158 = por %p156, %p157
      %p160 = scmp.ne.s32.totalorder %s145, %s159
      %p161 = scmp.eq.s32.totalorder %s114, 0
      %p162 = por %p160, %p161
      %s164 = sadd.s32 %s163, 1
      %p167 = scmp.eq.s32.totalorder %s108, 1
      %p168 = scmp.ne.s32.totalorder %s163, %s165
      %p169 = scmp.eq.s32.totalorder %s108, 0
      %p170 = por %p168, %p169
      %p171 = scmp.ne.s32.totalorder %s163, %s165
      %p172 = scmp.eq.s32.totalorder %s113, 1
      %p173 = por %p171, %p172
      %p174 = scmp.ne.s32.totalorder %s165, %s166
      %p175 = scmp.eq.s32.totalorder %s113, 0
      %p176 = por %p174, %p175
      %p177 = scmp.ne.s32.totalorder %s165, %s166
      %p178 = scmp.eq.s32.totalorder %s114, 1
      %p179 = por %p177, %p178
      %p181 = scmp.ne.s32.totalorder %s166, %s180
      %p182 = scmp.eq.s32.totalorder %s114, 0
      %p183 = por %p181, %p182
      %s185 = sadd.s32 %s184, 1
      %p188 = scmp.eq.s32.totalorder %s108, 1
      %p189 = scmp.ne.s32.totalorder %s184, %s186
      %p190 = scmp.eq.s32.totalorder %s108, 0
      %p191 = por %p189, %p190
      %p192 = scmp.ne.s32.totalorder %s184, %s186
      %p193 = scmp.eq.s32.totalorder %s113, 1
      %p194 = por %p192, %p193
      %p195 = scmp.ne.s32.totalorder %s186, %s187
      %p196 = scmp.eq.s32.totalorder %s113, 0
      %p197 = por %p195, %p196
      %p198 = scmp.ne.s32.totalorder %s186, %s187
      %p199 = scmp.eq.s32.totalorder %s114, 1
      %p200 = por %p198, %p199
      %p202 = scmp.ne.s32.totalorder %s187, %s201
      %p203 = scmp.eq.s32.totalorder %s114, 0
      %p204 = por %p202, %p203
      %s206 = sadd.s32 %s205, 1
      %p209 = scmp.eq.s32.totalorder %s108, 1
      %p210 = scmp.ne.s32.totalorder %s205, %s207
      %p211 = scmp.eq.s32.totalorder %s108, 0
      %p212 = por %p210, %p211
      %p213 = scmp.ne.s32.totalorder %s205, %s207
      %p214 = scmp.eq.s32.totalorder %s113, 1
      %p215 = por %p213, %p214
      %p216 = scmp.ne.s32.totalorder %s207, %s208
      %p217 = scmp.eq.s32.totalorder %s113, 0
      %p218 = por %p216, %p217
      %p219 = scmp.ne.s32.totalorder %s207, %s208
      %p220 = scmp.eq.s32.totalorder %s114, 1
      %p221 = por %p219, %p220
      %p223 = scmp.ne.s32.totalorder %s208, %s222
      %p224 = scmp.eq.s32.totalorder %s114, 0
      %p225 = por %p223, %p224
      %s227 = sadd.s32 %s226, 1
      %p230 = scmp.eq.s32.totalorder %s108, 1
      %p231 = scmp.ne.s32.totalorder %s226, %s228
      %p232 = scmp.eq.s32.totalorder %s108, 0
      %p233 = por %p231, %p232
      %p234 = scmp.ne.s32.totalorder %s226, %s228
      %p235 = scmp.eq.s32.totalorder %s113, 1
      %p236 = por %p234, %p235
      %p237 = scmp.ne.s32.totalorder %s228, %s229
      %p238 = scmp.eq.s32.totalorder %s113, 0
      %p239 = por %p237, %p238
      %p240 = scmp.ne.s32.totalorder %s228, %s229
      %p241 = scmp.eq.s32.totalorder %s114, 1
      %p242 = por %p240, %p241
      %p244 = scmp.ne.s32.totalorder %s229, %s243
      %p245 = scmp.eq.s32.totalorder %s114, 0
      %p246 = por %p244, %p245
      %s248 = sadd.s32 %s247, 1
      %p251 = scmp.eq.s32.totalorder %s108, 1
      %p252 = scmp.ne.s32.totalorder %s247, %s249
      %p253 = scmp.eq.s32.totalorder %s108, 0
      %p254 = por %p252, %p253
      %p255 = scmp.ne.s32.totalorder %s247, %s249
      %p256 = scmp.eq.s32.totalorder %s113, 1
      %p257 = por %p255, %p256
      %p258 = scmp.ne.s32.totalorder %s249, %s250
      %p259 = scmp.eq.s32.totalorder %s113, 0
      %p260 = por %p258, %p259
      %p261 = scmp.ne.s32.totalorder %s249, %s250
      %p262 = scmp.eq.s32.totalorder %s114, 1
      %p263 = por %p261, %p262
      %p265 = scmp.ne.s32.totalorder %s250, %s264
      %p266 = scmp.eq.s32.totalorder %s114, 0
      %p267 = por %p265, %p266
      %s269 = sadd.s32 %s268, 1
      %p272 = scmp.eq.s32.totalorder %s108, 1
      %p273 = scmp.ne.s32.totalorder %s268, %s270
      %p274 = scmp.eq.s32.totalorder %s108, 0
      %p275 = por %p273, %p274
      %p276 = scmp.ne.s32.totalorder %s268, %s270
      %p277 = scmp.eq.s32.totalorder %s113, 1
      %p278 = por %p276, %p277
      %p279 = scmp.ne.s32.totalorder %s270, %s271
      %p280 = scmp.eq.s32.totalorder %s113, 0
      %p281 = por %p279, %p280
      %p282 = scmp.ne.s32.totalorder %s270, %s271
      %p283 = scmp.eq.s32.totalorder %s114, 1
      %p284 = por %p282, %p283
      %p286 = scmp.ne.s32.totalorder %s271, %s285
      %p287 = scmp.eq.s32.totalorder %s114, 0
      %p288 = por %p286, %p287
      %s290 = sadd.s32 %s289, 1
      %p293 = scmp.eq.s32.totalorder %s108, 1
      %p294 = scmp.ne.s32.totalorder %s289, %s291
      %p295 = scmp.eq.s32.totalorder %s108, 0
      %p296 = por %p294, %p295
      %p297 = scmp.ne.s32.totalorder %s289, %s291
      %p298 = scmp.eq.s32.totalorder %s113, 1
      %p299 = por %p297, %p298
      %p300 = scmp.ne.s32.totalorder %s291, %s292
      %p301 = scmp.eq.s32.totalorder %s113, 0
      %p302 = por %p300, %p301
      %p303 = scmp.ne.s32.totalorder %s291, %s292
      %p304 = scmp.eq.s32.totalorder %s114, 1
      %p305 = por %p303, %p304
      %p307 = scmp.ne.s32.totalorder %s292, %s306
      %p308 = scmp.eq.s32.totalorder %s114, 0
      %p309 = por %p307, %p308
      %s311 = sadd.s32 %s310, 1
      %p314 = scmp.eq.s32.totalorder %s108, 1
      %p315 = scmp.ne.s32.totalorder %s310, %s312
      %p316 = scmp.eq.s32.totalorder %s108, 0
      %p317 = por %p315, %p316
      %p318 = scmp.ne.s32.totalorder %s310, %s312
      %p319 = scmp.eq.s32.totalorder %s113, 1
      %p320 = por %p318, %p319
      %p321 = scmp.ne.s32.totalorder %s312, %s313
      %p322 = scmp.eq.s32.totalorder %s113, 0
      %p323 = por %p321, %p322
      %p324 = scmp.ne.s32.totalorder %s312, %s313
      %p325 = scmp.eq.s32.totalorder %s114, 1
      %p326 = por %p324, %p325
      %p328 = scmp.ne.s32.totalorder %s313, %s327
      %p329 = scmp.eq.s32.totalorder %s114, 0
      %p330 = por %p328, %p329
      %s332 = sadd.s32 %s331, 1
      %p335 = scmp.eq.s32.totalorder %s108, 1
      %p336 = scmp.ne.s32.totalorder %s331, %s333
      %p337 = scmp.eq.s32.totalorder %s108, 0
      %p338 = por %p336, %p337
      %p339 = scmp.ne.s32.totalorder %s331, %s333
      %p340 = scmp.eq.s32.totalorder %s113, 1
      %p341 = por %p339, %p340
      %p342 = scmp.ne.s32.totalorder %s333, %s334
      %p343 = scmp.eq.s32.totalorder %s113, 0
      %p344 = por %p342, %p343
      %p345 = scmp.ne.s32.totalorder %s333, %s334
      %p346 = scmp.eq.s32.totalorder %s114, 1
      %p347 = por %p345, %p346
      %p349 = scmp.ne.s32.totalorder %s334, %s348
      %p350 = scmp.eq.s32.totalorder %s114, 0
      %p351 = por %p349, %p350
      %s353 = sadd.s32 %s352, 1
      %p356 = scmp.eq.s32.totalorder %s108, 1
      %p357 = scmp.ne.s32.totalorder %s352, %s354
      %p358 = scmp.eq.s32.totalorder %s108, 0
      %p359 = por %p357, %p358
      %p360 = scmp.ne.s32.totalorder %s352, %s354
      %p361 = scmp.eq.s32.totalorder %s113, 1
      %p362 = por %p360, %p361
      %p363 = scmp.ne.s32.totalorder %s354, %s355
      %p364 = scmp.eq.s32.totalorder %s113, 0
      %p365 = por %p363, %p364
      %p366 = scmp.ne.s32.totalorder %s354, %s355
      %p367 = scmp.eq.s32.totalorder %s114, 1
      %p368 = por %p366, %p367
      %p370 = scmp.ne.s32.totalorder %s355, %s369
      %p371 = scmp.eq.s32.totalorder %s114, 0
      %p372 = por %p370, %p371
      %s374 = sadd.s32 %s373, 1
      %p377 = scmp.eq.s32.totalorder %s108, 1
      %p378 = scmp.ne.s32.totalorder %s373, %s375
      %p379 = scmp.eq.s32.totalorder %s108, 0
      %p380 = por %p378, %p379
      %p381 = scmp.ne.s32.totalorder %s373, %s375
      %p382 = scmp.eq.s32.totalorder %s113, 1
      %p383 = por %p381, %p382
      %p384 = scmp.ne.s32.totalorder %s375, %s376
      %p385 = scmp.eq.s32.totalorder %s113, 0
      %p386 = por %p384, %p385
      %p387 = scmp.ne.s32.totalorder %s375, %s376
      %p388 = scmp.eq.s32.totalorder %s114, 1
      %p389 = por %p387, %p388
      %p391 = scmp.ne.s32.totalorder %s376, %s390
      %p392 = scmp.eq.s32.totalorder %s114, 0
      %p393 = por %p391, %p392
      %s395 = sadd.s32 %s394, 1
      %p398 = scmp.eq.s32.totalorder %s108, 1
      %p399 = scmp.ne.s32.totalorder %s394, %s396
      %p400 = scmp.eq.s32.totalorder %s108, 0
      %p401 = por %p399, %p400
      %p402 = scmp.ne.s32.totalorder %s394, %s396
      %p403 = scmp.eq.s32.totalorder %s113, 1
      %p404 = por %p402, %p403
      %p405 = scmp.ne.s32.totalorder %s396, %s397
      %p406 = scmp.eq.s32.totalorder %s113, 0
      %p407 = por %p405, %p406
      %p408 = scmp.ne.s32.totalorder %s396, %s397
      %p409 = scmp.eq.s32.totalorder %s114, 1
      %p410 = por %p408, %p409
      %p412 = scmp.ne.s32.totalorder %s397, %s411
      %p413 = scmp.eq.s32.totalorder %s114, 0
      %p414 = por %p412, %p413
      %s416 = sadd.s32 %s415, 1
      %p419 = scmp.eq.s32.totalorder %s108, 1
      %p420 = scmp.ne.s32.totalorder %s415, %s417
      %p421 = scmp.eq.s32.totalorder %s108, 0
      %p422 = por %p420, %p421
      %p423 = scmp.ne.s32.totalorder %s415, %s417
      %p424 = scmp.eq.s32.totalorder %s113, 1
      %p425 = por %p423, %p424
      %p426 = scmp.ne.s32.totalorder %s417, %s418
      %p427 = scmp.eq.s32.totalorder %s113, 0
      %p428 = por %p426, %p427
      %p429 = scmp.ne.s32.totalorder %s417, %s418
      %p430 = scmp.eq.s32.totalorder %s114, 1
      %p431 = por %p429, %p430
      %p433 = scmp.ne.s32.totalorder %s418, %s432
      %p434 = scmp.eq.s32.totalorder %s114, 0
      %p435 = por %p433, %p434
      %s437 = sadd.s32 %s436, 1
      %p440 = scmp.eq.s32.totalorder %s108, 1
      %p441 = scmp.ne.s32.totalorder %s436, %s438
      %p442 = scmp.eq.s32.totalorder %s108, 0
      %p443 = por %p441, %p442
      %p444 = scmp.ne.s32.totalorder %s436, %s438
      %p445 = scmp.eq.s32.totalorder %s113, 1
      %p446 = por %p444, %p445
      %p447 = scmp.ne.s32.totalorder %s438, %s439
      %p448 = scmp.eq.s32.totalorder %s113, 0
      %p449 = por %p447, %p448
      %p450 = scmp.ne.s32.totalorder %s438, %s439
      %p451 = scmp.eq.s32.totalorder %s114, 1
      %p452 = por %p450, %p451
      %p454 = scmp.ne.s32.totalorder %s439, %s453
      %p455 = scmp.eq.s32.totalorder %s114, 0
      %p456 = por %p454, %p455
      %s458 = sadd.s32 %s457, 1
      %p461 = scmp.eq.s32.totalorder %s108, 1
      %p462 = scmp.ne.s32.totalorder %s457, %s459
      %p463 = scmp.eq.s32.totalorder %s108, 0
      %p464 = por %p462, %p463
      %p465 = scmp.ne.s32.totalorder %s457, %s459
      %p466 = scmp.eq.s32.totalorder %s113, 1
      %p467 = por %p465, %p466
      %p468 = scmp.ne.s32.totalorder %s459, %s460
      %p469 = scmp.eq.s32.totalorder %s113, 0
      %p470 = por %p468, %p469
      %p471 = scmp.ne.s32.totalorder %s459, %s460
      %p472 = scmp.eq.s32.totalorder %s114, 1
      %p473 = por %p471, %p472
      %p475 = scmp.ne.s32.totalorder %s460, %s474
      %p476 = scmp.eq.s32.totalorder %s114, 0
      %p477 = por %p475, %p476
      %s479 = sadd.s32 %s478, 1
      %p482 = scmp.eq.s32.totalorder %s108, 1
      %p483 = scmp.ne.s32.totalorder %s478, %s480
      %p484 = scmp.eq.s32.totalorder %s108, 0
      %p485 = por %p483, %p484
      %p486 = scmp.ne.s32.totalorder %s478, %s480
      %p487 = scmp.eq.s32.totalorder %s113, 1
      %p488 = por %p486, %p487
      %p489 = scmp.ne.s32.totalorder %s480, %s481
      %p490 = scmp.eq.s32.totalorder %s113, 0
      %p491 = por %p489, %p490
      %p492 = scmp.ne.s32.totalorder %s480, %s481
      %p493 = scmp.eq.s32.totalorder %s114, 1
      %p494 = por %p492, %p493
      %p496 = scmp.ne.s32.totalorder %s481, %s495
      %p497 = scmp.eq.s32.totalorder %s114, 0
      %p498 = por %p496, %p497
      %s500 = sadd.s32 %s499, 1
      %p503 = scmp.eq.s32.totalorder %s108, 1
      %p504 = scmp.ne.s32.totalorder %s499, %s501
      %p505 = scmp.eq.s32.totalorder %s108, 0
      %p506 = por %p504, %p505
      %p507 = scmp.ne.s32.totalorder %s499, %s501
      %p508 = scmp.eq.s32.totalorder %s113, 1
      %p509 = por %p507, %p508
      %p510 = scmp.ne.s32.totalorder %s501, %s502
      %p511 = scmp.eq.s32.totalorder %s113, 0
      %p512 = por %p510, %p511
      %p513 = scmp.ne.s32.totalorder %s501, %s502
      %p514 = scmp.eq.s32.totalorder %s114, 1
      %p515 = por %p513, %p514
      %p517 = scmp.ne.s32.totalorder %s502, %s516
      %p518 = scmp.eq.s32.totalorder %s114, 0
      %p519 = por %p517, %p518
      %s521 = sadd.s32 %s520, 1
      %p524 = scmp.eq.s32.totalorder %s108, 1
      %p525 = scmp.ne.s32.totalorder %s520, %s522
      %p526 = scmp.eq.s32.totalorder %s108, 0
      %p527 = por %p525, %p526
      %p528 = scmp.ne.s32.totalorder %s520, %s522
      %p529 = scmp.eq.s32.totalorder %s113, 1
      %p530 = por %p528, %p529
      %p531 = scmp.ne.s32.totalorder %s522, %s523
      %p532 = scmp.eq.s32.totalorder %s113, 0
      %p533 = por %p531, %p532
      %p534 = scmp.ne.s32.totalorder %s522, %s523
      %p535 = scmp.eq.s32.totalorder %s114, 1
      %p536 = por %p534, %p535
      %p538 = scmp.ne.s32.totalorder %s523, %s537
      %p539 = scmp.eq.s32.totalorder %s114, 0
      %p540 = por %p538, %p539
      %s542 = sadd.s32 %s541, 1
      %p545 = scmp.eq.s32.totalorder %s108, 1
      %p546 = scmp.ne.s32.totalorder %s541, %s543
      %p547 = scmp.eq.s32.totalorder %s108, 0
      %p548 = por %p546, %p547
      %p549 = scmp.ne.s32.totalorder %s541, %s543
      %p550 = scmp.eq.s32.totalorder %s113, 1
      %p551 = por %p549, %p550
      %p552 = scmp.ne.s32.totalorder %s543, %s544
      %p553 = scmp.eq.s32.totalorder %s113, 0
      %p554 = por %p552, %p553
      %p555 = scmp.ne.s32.totalorder %s543, %s544
      %p556 = scmp.eq.s32.totalorder %s114, 1
      %p557 = por %p555, %p556
      %p559 = scmp.ne.s32.totalorder %s544, %s558
      %p560 = scmp.eq.s32.totalorder %s114, 0
      %p561 = por %p559, %p560
      %s563 = sadd.s32 %s562, 1
      %p566 = scmp.eq.s32.totalorder %s108, 1
      %p567 = scmp.ne.s32.totalorder %s562, %s564
      %p568 = scmp.eq.s32.totalorder %s108, 0
      %p569 = por %p567, %p568
      %p570 = scmp.ne.s32.totalorder %s562, %s564
      %p571 = scmp.eq.s32.totalorder %s113, 1
      %p572 = por %p570, %p571
      %p573 = scmp.ne.s32.totalorder %s564, %s565
      %p574 = scmp.eq.s32.totalorder %s113, 0
      %p575 = por %p573, %p574
      %p576 = scmp.ne.s32.totalorder %s564, %s565
      %p577 = scmp.eq.s32.totalorder %s114, 1
      %p578 = por %p576, %p577
      %p580 = scmp.ne.s32.totalorder %s565, %s579
      %p581 = scmp.eq.s32.totalorder %s114, 0
      %p582 = por %p580, %p581
      %s584 = sadd.s32 %s583, 1
      %p587 = scmp.eq.s32.totalorder %s108, 1
      %p588 = scmp.ne.s32.totalorder %s583, %s585
      %p589 = scmp.eq.s32.totalorder %s108, 0
      %p590 = por %p588, %p589
      %p591 = scmp.ne.s32.totalorder %s583, %s585
      %p592 = scmp.eq.s32.totalorder %s113, 1
      %p593 = por %p591, %p592
      %p594 = scmp.ne.s32.totalorder %s585, %s586
      %p595 = scmp.eq.s32.totalorder %s113, 0
      %p596 = por %p594, %p595
      %p597 = scmp.ne.s32.totalorder %s585, %s586
      %p598 = scmp.eq.s32.totalorder %s114, 1
      %p599 = por %p597, %p598
      %p601 = scmp.ne.s32.totalorder %s586, %s600
      %p602 = scmp.eq.s32.totalorder %s114, 0
      %p603 = por %p601, %p602
      %s605 = sadd.s32 %s604, 1
      %p608 = scmp.eq.s32.totalorder %s108, 1
      %p609 = scmp.ne.s32.totalorder %s604, %s606
      %p610 = scmp.eq.s32.totalorder %s108, 0
      %p611 = por %p609, %p610
      %p612 = scmp.ne.s32.totalorder %s604, %s606
      %p613 = scmp.eq.s32.totalorder %s113, 1
      %p614 = por %p612, %p613
      %p615 = scmp.ne.s32.totalorder %s606, %s607
      %p616 = scmp.eq.s32.totalorder %s113, 0
      %p617 = por %p615, %p616
      %p618 = scmp.ne.s32.totalorder %s606, %s607
      %p619 = scmp.eq.s32.totalorder %s114, 1
      %p620 = por %p618, %p619
      %p622 = scmp.ne.s32.totalorder %s607, %s621
      %p623 = scmp.eq.s32.totalorder %s114, 0
      %p624 = por %p622, %p623
      %s626 = sadd.s32 %s625, 1
      %p629 = scmp.eq.s32.totalorder %s108, 1
      %p630 = scmp.ne.s32.totalorder %s625, %s627
      %p631 = scmp.eq.s32.totalorder %s108, 0
      %p632 = por %p630, %p631
      %p633 = scmp.ne.s32.totalorder %s625, %s627
      %p634 = scmp.eq.s32.totalorder %s113, 1
      %p635 = por %p633, %p634
      %p636 = scmp.ne.s32.totalorder %s627, %s628
      %p637 = scmp.eq.s32.totalorder %s113, 0
      %p638 = por %p636, %p637
      %p639 = scmp.ne.s32.totalorder %s627, %s628
      %p640 = scmp.eq.s32.totalorder %s114, 1
      %p641 = por %p639, %p640
      %p643 = scmp.ne.s32.totalorder %s628, %s642
      %p644 = scmp.eq.s32.totalorder %s114, 0
      %p645 = por %p643, %p644
      %s647 = sadd.s32 %s646, 1
      %p650 = scmp.eq.s32.totalorder %s108, 1
      %p651 = scmp.ne.s32.totalorder %s646, %s648
      %p652 = scmp.eq.s32.totalorder %s108, 0
      %p653 = por %p651, %p652
      %p654 = scmp.ne.s32.totalorder %s646, %s648
      %p655 = scmp.eq.s32.totalorder %s113, 1
      %p656 = por %p654, %p655
      %p657 = scmp.ne.s32.totalorder %s648, %s649
      %p658 = scmp.eq.s32.totalorder %s113, 0
      %p659 = por %p657, %p658
      %p660 = scmp.ne.s32.totalorder %s648, %s649
      %p661 = scmp.eq.s32.totalorder %s114, 1
      %p662 = por %p660, %p661
      %p664 = scmp.ne.s32.totalorder %s649, %s663
      %p665 = scmp.eq.s32.totalorder %s114, 0
      %p666 = por %p664, %p665
      %s668 = sadd.s32 %s667, 1
      %p671 = scmp.eq.s32.totalorder %s108, 1
      %p672 = scmp.ne.s32.totalorder %s667, %s669
      %p673 = scmp.eq.s32.totalorder %s108, 0
      %p674 = por %p672, %p673
      %p675 = scmp.ne.s32.totalorder %s667, %s669
      %p676 = scmp.eq.s32.totalorder %s113, 1
      %p677 = por %p675, %p676
      %p678 = scmp.ne.s32.totalorder %s669, %s670
      %p679 = scmp.eq.s32.totalorder %s113, 0
      %p680 = por %p678, %p679
      %p681 = scmp.ne.s32.totalorder %s669, %s670
      %p682 = scmp.eq.s32.totalorder %s114, 1
      %p683 = por %p681, %p682
      %p685 = scmp.ne.s32.totalorder %s670, %s684
      %p686 = scmp.eq.s32.totalorder %s114, 0
      %p687 = por %p685, %p686
      %s689 = sadd.s32 %s688, 1
      %p692 = scmp.eq.s32.totalorder %s108, 1
      %p693 = scmp.ne.s32.totalorder %s688, %s690
      %p694 = scmp.eq.s32.totalorder %s108, 0
      %p695 = por %p693, %p694
      %p696 = scmp.ne.s32.totalorder %s688, %s690
      %p697 = scmp.eq.s32.totalorder %s113, 1
      %p698 = por %p696, %p697
      %p699 = scmp.ne.s32.totalorder %s690, %s691
      %p700 = scmp.eq.s32.totalorder %s113, 0
      %p701 = por %p699, %p700
      %p702 = scmp.ne.s32.totalorder %s690, %s691
      %p703 = scmp.eq.s32.totalorder %s114, 1
      %p704 = por %p702, %p703
      %p706 = scmp.ne.s32.totalorder %s691, %s705
      %p707 = scmp.eq.s32.totalorder %s114, 0
      %p708 = por %p706, %p707
      %s710 = sadd.s32 %s709, 1
      %p713 = scmp.eq.s32.totalorder %s108, 1
      %p714 = scmp.ne.s32.totalorder %s709, %s711
      %p715 = scmp.eq.s32.totalorder %s108, 0
      %p716 = por %p714, %p715
      %p717 = scmp.ne.s32.totalorder %s709, %s711
      %p718 = scmp.eq.s32.totalorder %s113, 1
      %p719 = por %p717, %p718
      %p720 = scmp.ne.s32.totalorder %s711, %s712
      %p721 = scmp.eq.s32.totalorder %s113, 0
      %p722 = por %p720, %p721
      %p723 = scmp.ne.s32.totalorder %s711, %s712
      %p724 = scmp.eq.s32.totalorder %s114, 1
      %p725 = por %p723, %p724
      %p727 = scmp.ne.s32.totalorder %s712, %s726
      %p728 = scmp.eq.s32.totalorder %s114, 0
      %p729 = por %p727, %p728
      %s731 = sadd.s32 %s730, 1
      %p734 = scmp.eq.s32.totalorder %s108, 1
      %p735 = scmp.ne.s32.totalorder %s730, %s732
      %p736 = scmp.eq.s32.totalorder %s108, 0
      %p737 = por %p735, %p736
      %p738 = scmp.ne.s32.totalorder %s730, %s732
      %p739 = scmp.eq.s32.totalorder %s113, 1
      %p740 = por %p738, %p739
      %p741 = scmp.ne.s32.totalorder %s732, %s733
      %p742 = scmp.eq.s32.totalorder %s113, 0
      %p743 = por %p741, %p742
      %p744 = scmp.ne.s32.totalorder %s732, %s733
      %p745 = scmp.eq.s32.totalorder %s114, 1
      %p746 = por %p744, %p745
      %p748 = scmp.ne.s32.totalorder %s733, %s747
      %p749 = scmp.eq.s32.totalorder %s114, 0
      %p750 = por %p748, %p749
      %s752 = sadd.s32 %s751, 1
      %p755 = scmp.eq.s32.totalorder %s108, 1
      %p756 = scmp.ne.s32.totalorder %s751, %s753
      %p757 = scmp.eq.s32.totalorder %s108, 0
      %p758 = por %p756, %p757
      %p759 = scmp.ne.s32.totalorder %s751, %s753
      %p760 = scmp.eq.s32.totalorder %s113, 1
      %p761 = por %p759, %p760
      %p762 = scmp.ne.s32.totalorder %s753, %s754
      %p763 = scmp.eq.s32.totalorder %s113, 0
      %p764 = por %p762, %p763
      %p765 = scmp.ne.s32.totalorder %s753, %s754
      %p766 = scmp.eq.s32.totalorder %s114, 1
      %p767 = por %p765, %p766
      %p769 = scmp.ne.s32.totalorder %s754, %s768
      %p770 = scmp.eq.s32.totalorder %s114, 0
      %p771 = por %p769, %p770
      %s773 = sadd.s32 %s772, 1
      %p776 = scmp.eq.s32.totalorder %s108, 1
      %p777 = scmp.ne.s32.totalorder %s772, %s774
      %p778 = scmp.eq.s32.totalorder %s108, 0
      %p779 = por %p777, %p778
      %p780 = scmp.ne.s32.totalorder %s772, %s774
      %p781 = scmp.eq.s32.totalorder %s113, 1
      %p782 = por %p780, %p781
      %p783 = scmp.ne.s32.totalorder %s774, %s775
      %p784 = scmp.eq.s32.totalorder %s113, 0
      %p785 = por %p783, %p784
      %p786 = scmp.ne.s32.totalorder %s774, %s775
      %p787 = scmp.eq.s32.totalorder %s114, 1
      %p788 = por %p786, %p787
      %p790 = scmp.ne.s32.totalorder %s775, %s789
      %p791 = scmp.eq.s32.totalorder %s114, 0
      %p792 = por %p790, %p791
      %s794 = sadd.s32 %s793, 1
      %p797 = scmp.eq.s32.totalorder %s108, 1
      %p798 = scmp.ne.s32.totalorder %s793, %s795
      %p799 = scmp.eq.s32.totalorder %s108, 0
      %p800 = por %p798, %p799
      %p801 = scmp.ne.s32.totalorder %s793, %s795
      %p802 = scmp.eq.s32.totalorder %s113, 1
      %p803 = por %p801, %p802
      %p804 = scmp.ne.s32.totalorder %s795, %s796
      %p805 = scmp.eq.s32.totalorder %s113, 0
      %p806 = por %p804, %p805
      %p807 = scmp.ne.s32.totalorder %s795, %s796
      %p808 = scmp.eq.s32.totalorder %s114, 1
      %p809 = por %p807, %p808
      %p811 = scmp.ne.s32.totalorder %s796, %s810
      %p812 = scmp.eq.s32.totalorder %s114, 0
      %p813 = por %p811, %p812
      %s815 = sadd.s32 %s814, 1
      %p818 = scmp.eq.s32.totalorder %s108, 1
      %p819 = scmp.ne.s32.totalorder %s814, %s816
      %p820 = scmp.eq.s32.totalorder %s108, 0
      %p821 = por %p819, %p820
      %p822 = scmp.ne.s32.totalorder %s814, %s816
      %p823 = scmp.eq.s32.totalorder %s113, 1
      %p824 = por %p822, %p823
      %p825 = scmp.ne.s32.totalorder %s816, %s817
      %p826 = scmp.eq.s32.totalorder %s113, 0
      %p827 = por %p825, %p826
      %p828 = scmp.ne.s32.totalorder %s816, %s817
      %p829 = scmp.eq.s32.totalorder %s114, 1
      %p830 = por %p828, %p829
      %p832 = scmp.ne.s32.totalorder %s817, %s831
      %p833 = scmp.eq.s32.totalorder %s114, 0
      %p834 = por %p832, %p833
      %s836 = sadd.s32 %s835, 1
      %p839 = scmp.eq.s32.totalorder %s108, 1
      %p840 = scmp.ne.s32.totalorder %s835, %s837
      %p841 = scmp.eq.s32.totalorder %s108, 0
      %p842 = por %p840, %p841
      %p843 = scmp.ne.s32.totalorder %s835, %s837
      %p844 = scmp.eq.s32.totalorder %s113, 1
      %p845 = por %p843, %p844
      %p846 = scmp.ne.s32.totalorder %s837, %s838
      %p847 = scmp.eq.s32.totalorder %s113, 0
      %p848 = por %p846, %p847
      %p849 = scmp.ne.s32.totalorder %s837, %s838
      %p850 = scmp.eq.s32.totalorder %s114, 1
      %p851 = por %p849, %p850
      %p853 = scmp.ne.s32.totalorder %s838, %s852
      %p854 = scmp.eq.s32.totalorder %s114, 0
      %p855 = por %p853, %p854
      %s857 = sadd.s32 %s856, 1
      %p860 = scmp.eq.s32.totalorder %s108, 1
      %p861 = scmp.ne.s32.totalorder %s856, %s858
      %p862 = scmp.eq.s32.totalorder %s108, 0
      %p863 = por %p861, %p862
      %p864 = scmp.ne.s32.totalorder %s856, %s858
      %p865 = scmp.eq.s32.totalorder %s113, 1
      %p866 = por %p864, %p865
      %p867 = scmp.ne.s32.totalorder %s858, %s859
      %p868 = scmp.eq.s32.totalorder %s113, 0
      %p869 = por %p867, %p868
      %p870 = scmp.ne.s32.totalorder %s858, %s859
      %p871 = scmp.eq.s32.totalorder %s114, 1
      %p872 = por %p870, %p871
      %p874 = scmp.ne.s32.totalorder %s859, %s873
      %p875 = scmp.eq.s32.totalorder %s114, 0
      %p876 = por %p874, %p875
      %s878 = sadd.s32 %s877, 1
      %p881 = scmp.eq.s32.totalorder %s108, 1
      %p882 = scmp.ne.s32.totalorder %s877, %s879
      %p883 = scmp.eq.s32.totalorder %s108, 0
      %p884 = por %p882, %p883
      %p885 = scmp.ne.s32.totalorder %s877, %s879
      %p886 = scmp.eq.s32.totalorder %s113, 1
      %p887 = por %p885, %p886
      %p888 = scmp.ne.s32.totalorder %s879, %s880
      %p889 = scmp.eq.s32.totalorder %s113, 0
      %p890 = por %p888, %p889
      %p891 = scmp.ne.s32.totalorder %s879, %s880
      %p892 = scmp.eq.s32.totalorder %s114, 1
      %p893 = por %p891, %p892
      %p895 = scmp.ne.s32.totalorder %s880, %s894
      %p896 = scmp.eq.s32.totalorder %s114, 0
      %p897 = por %p895, %p896
      %s899 = sadd.s32 %s898, 1
      %p902 = scmp.eq.s32.totalorder %s108, 1
      %p903 = scmp.ne.s32.totalorder %s898, %s900
      %p904 = scmp.eq.s32.totalorder %s108, 0
      %p905 = por %p903, %p904
      %p906 = scmp.ne.s32.totalorder %s898, %s900
      %p907 = scmp.eq.s32.totalorder %s113, 1
      %p908 = por %p906, %p907
      %p909 = scmp.ne.s32.totalorder %s900, %s901
      %p910 = scmp.eq.s32.totalorder %s113, 0
      %p911 = por %p909, %p910
      %p912 = scmp.ne.s32.totalorder %s900, %s901
      %p913 = scmp.eq.s32.totalorder %s114, 1
      %p914 = por %p912, %p913
      %p916 = scmp.ne.s32.totalorder %s901, %s915
      %p917 = scmp.eq.s32.totalorder %s114, 0
      %p918 = por %p916, %p917
      %s920 = sadd.s32 %s919, 1
      %p923 = scmp.eq.s32.totalorder %s108, 1
      %p924 = scmp.ne.s32.totalorder %s919, %s921
      %p925 = scmp.eq.s32.totalorder %s108, 0
      %p926 = por %p924, %p925
      %p927 = scmp.ne.s32.totalorder %s919, %s921
      %p928 = scmp.eq.s32.totalorder %s113, 1
      %p929 = por %p927, %p928
      %p930 = scmp.ne.s32.totalorder %s921, %s922
      %p931 = scmp.eq.s32.totalorder %s113, 0
      %p932 = por %p930, %p931
      %p933 = scmp.ne.s32.totalorder %s921, %s922
      %p934 = scmp.eq.s32.totalorder %s114, 1
      %p935 = por %p933, %p934
      %p937 = scmp.ne.s32.totalorder %s922, %s936
      %p938 = scmp.eq.s32.totalorder %s114, 0
      %p939 = por %p937, %p938
      %s941 = sadd.s32 %s940, 1
      %p944 = scmp.eq.s32.totalorder %s108, 1
      %p945 = scmp.ne.s32.totalorder %s940, %s942
      %p946 = scmp.eq.s32.totalorder %s108, 0
      %p947 = por %p945, %p946
      %p948 = scmp.ne.s32.totalorder %s940, %s942
      %p949 = scmp.eq.s32.totalorder %s113, 1
      %p950 = por %p948, %p949
      %p951 = scmp.ne.s32.totalorder %s942, %s943
      %p952 = scmp.eq.s32.totalorder %s113, 0
      %p953 = por %p951, %p952
      %p954 = scmp.ne.s32.totalorder %s942, %s943
      %p955 = scmp.eq.s32.totalorder %s114, 1
      %p956 = por %p954, %p955
      %p958 = scmp.ne.s32.totalorder %s943, %s957
      %p959 = scmp.eq.s32.totalorder %s114, 0
      %p960 = por %p958, %p959
      %s962 = sadd.s32 %s961, 1
      %p965 = scmp.eq.s32.totalorder %s108, 1
      %p966 = scmp.ne.s32.totalorder %s961, %s963
      %p967 = scmp.eq.s32.totalorder %s108, 0
      %p968 = por %p966, %p967
      %p969 = scmp.ne.s32.totalorder %s961, %s963
      %p970 = scmp.eq.s32.totalorder %s113, 1
      %p971 = por %p969, %p970
      %p972 = scmp.ne.s32.totalorder %s963, %s964
      %p973 = scmp.eq.s32.totalorder %s113, 0
      %p974 = por %p972, %p973
      %p975 = scmp.ne.s32.totalorder %s963, %s964
      %p976 = scmp.eq.s32.totalorder %s114, 1
      %p977 = por %p975, %p976
      %p979 = scmp.ne.s32.totalorder %s964, %s978
      %p980 = scmp.eq.s32.totalorder %s114, 0
      %p981 = por %p979, %p980
      %s983 = sadd.s32 %s982, 1
      %p986 = scmp.eq.s32.totalorder %s108, 1
      %p987 = scmp.ne.s32.totalorder %s982, %s984
      %p988 = scmp.eq.s32.totalorder %s108, 0
      %p989 = por %p987, %p988
      %p990 = scmp.ne.s32.totalorder %s982, %s984
      %p991 = scmp.eq.s32.totalorder %s113, 1
      %p992 = por %p990, %p991
      %p993 = scmp.ne.s32.totalorder %s984, %s985
      %p994 = scmp.eq.s32.totalorder %s113, 0
      %p995 = por %p993, %p994
      %p996 = scmp.ne.s32.totalorder %s984, %s985
      %p997 = scmp.eq.s32.totalorder %s114, 1
      %p998 = por %p996, %p997
      %p1000 = scmp.ne.s32.totalorder %s985, %s999
      %p1001 = scmp.eq.s32.totalorder %s114, 0
      %p1002 = por %p1000, %p1001
      %s1004 = sadd.s32 %s1003, 1
      %p1007 = scmp.eq.s32.totalorder %s108, 1
      %p1008 = scmp.ne.s32.totalorder %s1003, %s1005
      %p1009 = scmp.eq.s32.totalorder %s108, 0
      %p1010 = por %p1008, %p1009
      %p1011 = scmp.ne.s32.totalorder %s1003, %s1005
      %p1012 = scmp.eq.s32.totalorder %s113, 1
      %p1013 = por %p1011, %p1012
      %p1014 = scmp.ne.s32.totalorder %s1005, %s1006
      %p1015 = scmp.eq.s32.totalorder %s113, 0
      %p1016 = por %p1014, %p1015
      %p1017 = scmp.ne.s32.totalorder %s1005, %s1006
      %p1018 = scmp.eq.s32.totalorder %s114, 1
      %p1019 = por %p1017, %p1018
      %p1021 = scmp.ne.s32.totalorder %s1006, %s1020
      %p1022 = scmp.eq.s32.totalorder %s114, 0
      %p1023 = por %p1021, %p1022
      %s1025 = sadd.s32 %s1024, 1
      %p1028 = scmp.eq.s32.totalorder %s108, 1
      %p1029 = scmp.ne.s32.totalorder %s1024, %s1026
      %p1030 = scmp.eq.s32.totalorder %s108, 0
      %p1031 = por %p1029, %p1030
      %p1032 = scmp.ne.s32.totalorder %s1024, %s1026
      %p1033 = scmp.eq.s32.totalorder %s113, 1
      %p1034 = por %p1032, %p1033
      %p1035 = scmp.ne.s32.totalorder %s1026, %s1027
      %p1036 = scmp.eq.s32.totalorder %s113, 0
      %p1037 = por %p1035, %p1036
      %p1038 = scmp.ne.s32.totalorder %s1026, %s1027
      %p1039 = scmp.eq.s32.totalorder %s114, 1
      %p1040 = por %p1038, %p1039
      %p1042 = scmp.ne.s32.totalorder %s1027, %s1041
      %p1043 = scmp.eq.s32.totalorder %s114, 0
      %p1044 = por %p1042, %p1043
      %s1046 = sadd.s32 %s1045, 1
      %p1049 = scmp.eq.s32.totalorder %s108, 1
      %p1050 = scmp.ne.s32.totalorder %s1045, %s1047
      %p1051 = scmp.eq.s32.totalorder %s108, 0
      %p1052 = por %p1050, %p1051
      %p1053 = scmp.ne.s32.totalorder %s1045, %s1047
      %p1054 = scmp.eq.s32.totalorder %s113, 1
      %p1055 = por %p1053, %p1054
      %p1056 = scmp.ne.s32.totalorder %s1047, %s1048
      %p1057 = scmp.eq.s32.totalorder %s113, 0
      %p1058 = por %p1056, %p1057
      %p1059 = scmp.ne.s32.totalorder %s1047, %s1048
      %p1060 = scmp.eq.s32.totalorder %s114, 1
      %p1061 = por %p1059, %p1060
      %p1063 = scmp.ne.s32.totalorder %s1048, %s1062
      %p1064 = scmp.eq.s32.totalorder %s114, 0
      %p1065 = por %p1063, %p1064
      %s1067 = sadd.s32 %s1066, 1
      %p1070 = scmp.eq.s32.totalorder %s108, 1
      %p1071 = scmp.ne.s32.totalorder %s1066, %s1068
      %p1072 = scmp.eq.s32.totalorder %s108, 0
      %p1073 = por %p1071, %p1072
      %p1074 = scmp.ne.s32.totalorder %s1066, %s1068
      %p1075 = scmp.eq.s32.totalorder %s113, 1
      %p1076 = por %p1074, %p1075
      %p1077 = scmp.ne.s32.totalorder %s1068, %s1069
      %p1078 = scmp.eq.s32.totalorder %s113, 0
      %p1079 = por %p1077, %p1078
      %p1080 = scmp.ne.s32.totalorder %s1068, %s1069
      %p1081 = scmp.eq.s32.totalorder %s114, 1
      %p1082 = por %p1080, %p1081
      %p1084 = scmp.ne.s32.totalorder %s1069, %s1083
      %p1085 = scmp.eq.s32.totalorder %s114, 0
      %p1086 = por %p1084, %p1085
      %s1088 = sadd.s32 %s1087, 1
      %p1091 = scmp.eq.s32.totalorder %s108, 1
      %p1092 = scmp.ne.s32.totalorder %s1087, %s1089
      %p1093 = scmp.eq.s32.totalorder %s108, 0
      %p1094 = por %p1092, %p1093
      %p1095 = scmp.ne.s32.totalorder %s1087, %s1089
      %p1096 = scmp.eq.s32.totalorder %s113, 1
      %p1097 = por %p1095, %p1096
      %p1098 = scmp.ne.s32.totalorder %s1089, %s1090
      %p1099 = scmp.eq.s32.totalorder %s113, 0
      %p1100 = por %p1098, %p1099
      %p1101 = scmp.ne.s32.totalorder %s1089, %s1090
      %p1102 = scmp.eq.s32.totalorder %s114, 1
      %p1103 = por %p1101, %p1102
      %p1105 = scmp.ne.s32.totalorder %s1090, %s1104
      %p1106 = scmp.eq.s32.totalorder %s114, 0
      %p1107 = por %p1105, %p1106
      %s1108 = ssub.s32 %s108, %s115
      %p1109 = scmp.eq.s32.totalorder %s1108, 0
      %s1111 = sadd.s32 %s1110, 1
      %s1112 = scalar_select %p1109, %s1110, %s1111
      %p1115 = pneg %p1109
      %p1116 = scmp.eq.s32.totalorder %s108, 1
      %p1117 = por %p1115, %p1116
      %p1118 = scmp.ne.s32.totalorder %s1110, %s1113
      %p1119 = scmp.eq.s32.totalorder %s108, 0
      %p1120 = por %p1118, %p1119
      %p1121 = scmp.ne.s32.totalorder %s1110, %s1113
      %p1122 = scmp.eq.s32.totalorder %s113, 1
      %p1123 = por %p1121, %p1122
      %p1124 = scmp.ne.s32.totalorder %s1113, %s1114
      %p1125 = scmp.eq.s32.totalorder %s113, 0
      %p1126 = por %p1124, %p1125
      %p1127 = scmp.ne.s32.totalorder %s1113, %s1114
      %p1128 = scmp.eq.s32.totalorder %s114, 1
      %p1129 = por %p1127, %p1128
      %p1131 = scmp.ne.s32.totalorder %s1114, %s1130
      %p1132 = scmp.eq.s32.totalorder %s114, 0
      %p1133 = por %p1131, %p1132
      %p1134 = scmp.le.s32.totalorder 1, %s108
      %p1135 = scmp.lt.s32.totalorder %s108, 3
      %p1136 = pnand %p1134, %p1135
      %p1137 = pneg %p1136
      // Predicated region
      $region9: #{maskvit_forward.1} parent=5 // pred_check
        _
      $region10: #{maskvit_forward.1} parent=5 // pred_check_branch
        %1139 = sbr.rel (%p1136) target = $region12
      $region11: #{maskvit_forward.1} parent=5 // pred_region
        %s1140 = ssub.s32 %s108, 1
        // Predicated region
        $region13: #{maskvit_forward.1} parent=11 // pred_check
          %p1141 = pneg %p155
        $region14: #{maskvit_forward.1} parent=11 // pred_check_branch
          %1143 = sbr.rel (%p1141) target = $region16
        $region15: #{maskvit_forward.1} parent=11 // pred_region
          _
        $region16: #{maskvit_forward.1} parent=11 // pred_fallthru
          _
        // Predicated region
        $region17: #{maskvit_forward.1} parent=11 // pred_check
          %p1144 = pneg %p176
        $region18: #{maskvit_forward.1} parent=11 // pred_check_branch
          %1146 = sbr.rel (%p1144) target = $region20
        $region19: #{maskvit_forward.1} parent=11 // pred_region
          _
        $region20: #{maskvit_forward.1} parent=11 // pred_fallthru
          _
        // Predicated region
        $region21: #{maskvit_forward.1} parent=11 // pred_check
          %p1147 = pneg %p197
        $region22: #{maskvit_forward.1} parent=11 // pred_check_branch
          %1149 = sbr.rel (%p1147) target = $region24
        $region23: #{maskvit_forward.1} parent=11 // pred_region
          _
        $region24: #{maskvit_forward.1} parent=11 // pred_fallthru
          _
        // Predicated region
        $region25: #{maskvit_forward.1} parent=11 // pred_check
          %p1150 = pneg %p218
        $region26: #{maskvit_forward.1} parent=11 // pred_check_branch
          %1152 = sbr.rel (%p1150) target = $region28
        $region27: #{maskvit_forward.1} parent=11 // pred_region
          _
        $region28: #{maskvit_forward.1} parent=11 // pred_fallthru
          _
        // Predicated region
        $region29: #{maskvit_forward.1} parent=11 // pred_check
          %p1153 = pneg %p239
        $region30: #{maskvit_forward.1} parent=11 // pred_check_branch
          %1155 = sbr.rel (%p1153) target = $region32
        $region31: #{maskvit_forward.1} parent=11 // pred_region
          _
        $region32: #{maskvit_forward.1} parent=11 // pred_fallthru
          _
        // Predicated region
        $region33: #{maskvit_forward.1} parent=11 // pred_check
          %p1156 = pneg %p260
        $region34: #{maskvit_forward.1} parent=11 // pred_check_branch
          %1158 = sbr.rel (%p1156) target = $region36
        $region35: #{maskvit_forward.1} parent=11 // pred_region
          _
        $region36: #{maskvit_forward.1} parent=11 // pred_fallthru
          _
        // Predicated region
        $region37: #{maskvit_forward.1} parent=11 // pred_check
          %p1159 = pneg %p281
        $region38: #{maskvit_forward.1} parent=11 // pred_check_branch
          %1161 = sbr.rel (%p1159) target = $region40
        $region39: #{maskvit_forward.1} parent=11 // pred_region
          _
        $region40: #{maskvit_forward.1} parent=11 // pred_fallthru
          _
        // Predicated region
        $region41: #{maskvit_forward.1} parent=11 // pred_check
          %p1162 = pneg %p302
        $region42: #{maskvit_forward.1} parent=11 // pred_check_branch
          %1164 = sbr.rel (%p1162) target = $region44
        $region43: #{maskvit_forward.1} parent=11 // pred_region
          _
        $region44: #{maskvit_forward.1} parent=11 // pred_fallthru
          _
        // Predicated region
        $region45: #{maskvit_forward.1} parent=11 // pred_check
          %p1165 = pneg %p323
        $region46: #{maskvit_forward.1} parent=11 // pred_check_branch
          %1167 = sbr.rel (%p1165) target = $region48
        $region47: #{maskvit_forward.1} parent=11 // pred_region
          _
        $region48: #{maskvit_forward.1} parent=11 // pred_fallthru
          _
        // Predicated region
        $region49: #{maskvit_forward.1} parent=11 // pred_check
          %p1168 = pneg %p344
        $region50: #{maskvit_forward.1} parent=11 // pred_check_branch
          %1170 = sbr.rel (%p1168) target = $region52
        $region51: #{maskvit_forward.1} parent=11 // pred_region
          _
        $region52: #{maskvit_forward.1} parent=11 // pred_fallthru
          _
        // Predicated region
        $region53: #{maskvit_forward.1} parent=11 // pred_check
          %p1171 = pneg %p365
        $region54: #{maskvit_forward.1} parent=11 // pred_check_branch
          %1173 = sbr.rel (%p1171) target = $region56
        $region55: #{maskvit_forward.1} parent=11 // pred_region
          _
        $region56: #{maskvit_forward.1} parent=11 // pred_fallthru
          _
        // Predicated region
        $region57: #{maskvit_forward.1} parent=11 // pred_check
          %p1174 = pneg %p386
        $region58: #{maskvit_forward.1} parent=11 // pred_check_branch
          %1176 = sbr.rel (%p1174) target = $region60
        $region59: #{maskvit_forward.1} parent=11 // pred_region
          _
        $region60: #{maskvit_forward.1} parent=11 // pred_fallthru
          _
        // Predicated region
        $region61: #{maskvit_forward.1} parent=11 // pred_check
          %p1177 = pneg %p407
        $region62: #{maskvit_forward.1} parent=11 // pred_check_branch
          %1179 = sbr.rel (%p1177) target = $region64
        $region63: #{maskvit_forward.1} parent=11 // pred_region
          _
        $region64: #{maskvit_forward.1} parent=11 // pred_fallthru
          _
        // Predicated region
        $region65: #{maskvit_forward.1} parent=11 // pred_check
          %p1180 = pneg %p428
        $region66: #{maskvit_forward.1} parent=11 // pred_check_branch
          %1182 = sbr.rel (%p1180) target = $region68
        $region67: #{maskvit_forward.1} parent=11 // pred_region
          _
        $region68: #{maskvit_forward.1} parent=11 // pred_fallthru
          _
        // Predicated region
        $region69: #{maskvit_forward.1} parent=11 // pred_check
          %p1183 = pneg %p449
        $region70: #{maskvit_forward.1} parent=11 // pred_check_branch
          %1185 = sbr.rel (%p1183) target = $region72
        $region71: #{maskvit_forward.1} parent=11 // pred_region
          _
        $region72: #{maskvit_forward.1} parent=11 // pred_fallthru
          _
        // Predicated region
        $region73: #{maskvit_forward.1} parent=11 // pred_check
          %p1186 = pneg %p470
        $region74: #{maskvit_forward.1} parent=11 // pred_check_branch
          %1188 = sbr.rel (%p1186) target = $region76
        $region75: #{maskvit_forward.1} parent=11 // pred_region
          _
        $region76: #{maskvit_forward.1} parent=11 // pred_fallthru
          _
        // Predicated region
        $region77: #{maskvit_forward.1} parent=11 // pred_check
          %p1189 = pneg %p491
        $region78: #{maskvit_forward.1} parent=11 // pred_check_branch
          %1191 = sbr.rel (%p1189) target = $region80
        $region79: #{maskvit_forward.1} parent=11 // pred_region
          _
        $region80: #{maskvit_forward.1} parent=11 // pred_fallthru
          _
        // Predicated region
        $region81: #{maskvit_forward.1} parent=11 // pred_check
          %p1192 = pneg %p512
        $region82: #{maskvit_forward.1} parent=11 // pred_check_branch
          %1194 = sbr.rel (%p1192) target = $region84
        $region83: #{maskvit_forward.1} parent=11 // pred_region
          _
        $region84: #{maskvit_forward.1} parent=11 // pred_fallthru
          _
        // Predicated region
        $region85: #{maskvit_forward.1} parent=11 // pred_check
          %p1195 = pneg %p533
        $region86: #{maskvit_forward.1} parent=11 // pred_check_branch
          %1197 = sbr.rel (%p1195) target = $region88
        $region87: #{maskvit_forward.1} parent=11 // pred_region
          _
        $region88: #{maskvit_forward.1} parent=11 // pred_fallthru
          _
        // Predicated region
        $region89: #{maskvit_forward.1} parent=11 // pred_check
          %p1198 = pneg %p554
        $region90: #{maskvit_forward.1} parent=11 // pred_check_branch
          %1200 = sbr.rel (%p1198) target = $region92
        $region91: #{maskvit_forward.1} parent=11 // pred_region
          _
        $region92: #{maskvit_forward.1} parent=11 // pred_fallthru
          _
        // Predicated region
        $region93: #{maskvit_forward.1} parent=11 // pred_check
          %p1201 = pneg %p575
        $region94: #{maskvit_forward.1} parent=11 // pred_check_branch
          %1203 = sbr.rel (%p1201) target = $region96
        $region95: #{maskvit_forward.1} parent=11 // pred_region
          _
        $region96: #{maskvit_forward.1} parent=11 // pred_fallthru
          _
        // Predicated region
        $region97: #{maskvit_forward.1} parent=11 // pred_check
          %p1204 = pneg %p596
        $region98: #{maskvit_forward.1} parent=11 // pred_check_branch
          %1206 = sbr.rel (%p1204) target = $region100
        $region99: #{maskvit_forward.1} parent=11 // pred_region
          _
        $region100: #{maskvit_forward.1} parent=11 // pred_fallthru
          _
        // Predicated region
        $region101: #{maskvit_forward.1} parent=11 // pred_check
          %p1207 = pneg %p617
        $region102: #{maskvit_forward.1} parent=11 // pred_check_branch
          %1209 = sbr.rel (%p1207) target = $region104
        $region103: #{maskvit_forward.1} parent=11 // pred_region
          _
        $region104: #{maskvit_forward.1} parent=11 // pred_fallthru
          _
        // Predicated region
        $region105: #{maskvit_forward.1} parent=11 // pred_check
          %p1210 = pneg %p638
        $region106: #{maskvit_forward.1} parent=11 // pred_check_branch
          %1212 = sbr.rel (%p1210) target = $region108
        $region107: #{maskvit_forward.1} parent=11 // pred_region
          _
        $region108: #{maskvit_forward.1} parent=11 // pred_fallthru
          _
        // Predicated region
        $region109: #{maskvit_forward.1} parent=11 // pred_check
          %p1213 = pneg %p659
        $region110: #{maskvit_forward.1} parent=11 // pred_check_branch
          %1215 = sbr.rel (%p1213) target = $region112
        $region111: #{maskvit_forward.1} parent=11 // pred_region
          _
        $region112: #{maskvit_forward.1} parent=11 // pred_fallthru
          _
        // Predicated region
        $region113: #{maskvit_forward.1} parent=11 // pred_check
          %p1216 = pneg %p680
        $region114: #{maskvit_forward.1} parent=11 // pred_check_branch
          %1218 = sbr.rel (%p1216) target = $region116
        $region115: #{maskvit_forward.1} parent=11 // pred_region
          %1220 = vsyncadd [#allocation3], 0
          %s1222 = sshll.u32 %s53, 4
          %s1223 = int_to_ptr.hbm [resolvable:$true] %s1222
          %s1224 = sshll.u32 [#allocation2], 4
          %s1225 = int_to_ptr.vmem [resolvable:$true] %s1224
          %1227 = dma.hbm_to_vmem [thread:$0]  %s1223, 16, %s1225, [#allocation3]
        $region116: #{maskvit_forward.1} parent=11 // pred_fallthru
          _
        // Predicated region
        $region117: #{maskvit_forward.1} parent=11 // pred_check
          %p1228 = pneg %p701
        $region118: #{maskvit_forward.1} parent=11 // pred_check_branch
          %1230 = sbr.rel (%p1228) target = $region120
        $region119: #{maskvit_forward.1} parent=11 // pred_region
          _
        $region120: #{maskvit_forward.1} parent=11 // pred_fallthru
          _
        // Predicated region
        $region121: #{maskvit_forward.1} parent=11 // pred_check
          %p1231 = pneg %p722
        $region122: #{maskvit_forward.1} parent=11 // pred_check_branch
          %1233 = sbr.rel (%p1231) target = $region124
        $region123: #{maskvit_forward.1} parent=11 // pred_region
          _
        $region124: #{maskvit_forward.1} parent=11 // pred_fallthru
          _
        // Predicated region
        $region125: #{maskvit_forward.1} parent=11 // pred_check
          %p1234 = pneg %p743
        $region126: #{maskvit_forward.1} parent=11 // pred_check_branch
          %1236 = sbr.rel (%p1234) target = $region128
        $region127: #{maskvit_forward.1} parent=11 // pred_region
          _
        $region128: #{maskvit_forward.1} parent=11 // pred_fallthru
          _
        // Predicated region
        $region129: #{maskvit_forward.1} parent=11 // pred_check
          %p1237 = pneg %p764
        $region130: #{maskvit_forward.1} parent=11 // pred_check_branch
          %1239 = sbr.rel (%p1237) target = $region132
        $region131: #{maskvit_forward.1} parent=11 // pred_region
          %1241 = vsyncadd [#allocation6], 0
          %s1243 = sshll.u32 %s61, 4
          %s1244 = int_to_ptr.hbm [resolvable:$true] %s1243
          %s1245 = sshll.u32 [#allocation5], 4
          %s1246 = int_to_ptr.vmem [resolvable:$true] %s1245
          %1248 = dma.hbm_to_vmem [thread:$0]  %s1244, 16, %s1246, [#allocation6]
        $region132: #{maskvit_forward.1} parent=11 // pred_fallthru
          _
        // Predicated region
        $region133: #{maskvit_forward.1} parent=11 // pred_check
          %p1249 = pneg %p785
        $region134: #{maskvit_forward.1} parent=11 // pred_check_branch
          %1251 = sbr.rel (%p1249) target = $region136
        $region135: #{maskvit_forward.1} parent=11 // pred_region
          %1253 = vsyncadd [#allocation6], 0
          %s1255 = sshll.u32 %s63, 4
          %s1256 = int_to_ptr.hbm [resolvable:$true] %s1255
          %s1257 = sshll.u32 [#allocation7], 4
          %s1258 = int_to_ptr.vmem [resolvable:$true] %s1257
          %1260 = dma.hbm_to_vmem [thread:$0]  %s1256, 16, %s1258, [#allocation6]
        $region136: #{maskvit_forward.1} parent=11 // pred_fallthru
          _
        // Predicated region
        $region137: #{maskvit_forward.1} parent=11 // pred_check
          %p1261 = pneg %p806
        $region138: #{maskvit_forward.1} parent=11 // pred_check_branch
          %1263 = sbr.rel (%p1261) target = $region140
        $region139: #{maskvit_forward.1} parent=11 // pred_region
          %1265 = vsyncadd [#allocation9], 0
          %s1267 = sshll.u32 %s65, 4
          %s1268 = int_to_ptr.hbm [resolvable:$true] %s1267
          %s1269 = sshll.u32 [#allocation8], 4
          %s1270 = int_to_ptr.vmem [resolvable:$true] %s1269
          %1272 = dma.hbm_to_vmem [thread:$0]  %s1268, 16, %s1270, [#allocation9]
        $region140: #{maskvit_forward.1} parent=11 // pred_fallthru
          _
        // Predicated region
        $region141: #{maskvit_forward.1} parent=11 // pred_check
          %p1273 = pneg %p827
        $region142: #{maskvit_forward.1} parent=11 // pred_check_branch
          %1275 = sbr.rel (%p1273) target = $region144
        $region143: #{maskvit_forward.1} parent=11 // pred_region
          _
        $region144: #{maskvit_forward.1} parent=11 // pred_fallthru
          _
        // Predicated region
        $region145: #{maskvit_forward.1} parent=11 // pred_check
          %p1276 = pneg %p848
        $region146: #{maskvit_forward.1} parent=11 // pred_check_branch
          %1278 = sbr.rel (%p1276) target = $region148
        $region147: #{maskvit_forward.1} parent=11 // pred_region
          _
        $region148: #{maskvit_forward.1} parent=11 // pred_fallthru
          _
        // Predicated region
        $region149: #{maskvit_forward.1} parent=11 // pred_check
          %p1279 = pneg %p869
        $region150: #{maskvit_forward.1} parent=11 // pred_check_branch
          %1281 = sbr.rel (%p1279) target = $region152
        $region151: #{maskvit_forward.1} parent=11 // pred_region
          _
        $region152: #{maskvit_forward.1} parent=11 // pred_fallthru
          _
        // Predicated region
        $region153: #{maskvit_forward.1} parent=11 // pred_check
          %p1282 = pneg %p890
        $region154: #{maskvit_forward.1} parent=11 // pred_check_branch
          %1284 = sbr.rel (%p1282) target = $region156
        $region155: #{maskvit_forward.1} parent=11 // pred_region
          _
        $region156: #{maskvit_forward.1} parent=11 // pred_fallthru
          _
        // Predicated region
        $region157: #{maskvit_forward.1} parent=11 // pred_check
          %p1285 = pneg %p911
        $region158: #{maskvit_forward.1} parent=11 // pred_check_branch
          %1287 = sbr.rel (%p1285) target = $region160
        $region159: #{maskvit_forward.1} parent=11 // pred_region
          %1289 = vsyncadd [#allocation9], 0
          %s1290 = sshll.u32 %s75, 4
          %s1291 = int_to_ptr.hbm [resolvable:$true] %s1290
          %s1292 = sshll.u32 [#allocation10], 4
          %s1293 = int_to_ptr.vmem [resolvable:$true] %s1292
          %1298 = dma.hbm_to_vmem [thread:$0]  %s1291, 32768, %s1293, [#allocation9], 256, 256, 16
        $region160: #{maskvit_forward.1} parent=11 // pred_fallthru
          _
        // Predicated region
        $region161: #{maskvit_forward.1} parent=11 // pred_check
          %p1299 = pneg %p932
        $region162: #{maskvit_forward.1} parent=11 // pred_check_branch
          %1301 = sbr.rel (%p1299) target = $region164
        $region163: #{maskvit_forward.1} parent=11 // pred_region
          _
        $region164: #{maskvit_forward.1} parent=11 // pred_fallthru
          _
        // Predicated region
        $region165: #{maskvit_forward.1} parent=11 // pred_check
          %p1302 = pneg %p953
        $region166: #{maskvit_forward.1} parent=11 // pred_check_branch
          %1304 = sbr.rel (%p1302) target = $region168
        $region167: #{maskvit_forward.1} parent=11 // pred_region
          _
        $region168: #{maskvit_forward.1} parent=11 // pred_fallthru
          _
        // Predicated region
        $region169: #{maskvit_forward.1} parent=11 // pred_check
          %p1305 = pneg %p974
        $region170: #{maskvit_forward.1} parent=11 // pred_check_branch
          %1307 = sbr.rel (%p1305) target = $region172
        $region171: #{maskvit_forward.1} parent=11 // pred_region
          _
        $region172: #{maskvit_forward.1} parent=11 // pred_fallthru
          _
        // Predicated region
        $region173: #{maskvit_forward.1} parent=11 // pred_check
          %p1308 = pneg %p995
        $region174: #{maskvit_forward.1} parent=11 // pred_check_branch
          %1310 = sbr.rel (%p1308) target = $region176
        $region175: #{maskvit_forward.1} parent=11 // pred_region
          _
        $region176: #{maskvit_forward.1} parent=11 // pred_fallthru
          _
        // Predicated region
        $region177: #{maskvit_forward.1} parent=11 // pred_check
          %p1311 = pneg %p1016
        $region178: #{maskvit_forward.1} parent=11 // pred_check_branch
          %1313 = sbr.rel (%p1311) target = $region180
        $region179: #{maskvit_forward.1} parent=11 // pred_region
          _
        $region180: #{maskvit_forward.1} parent=11 // pred_fallthru
          _
        // Predicated region
        $region181: #{maskvit_forward.1} parent=11 // pred_check
          %p1314 = pneg %p1037
        $region182: #{maskvit_forward.1} parent=11 // pred_check_branch
          %1316 = sbr.rel (%p1314) target = $region184
        $region183: #{maskvit_forward.1} parent=11 // pred_region
          _
        $region184: #{maskvit_forward.1} parent=11 // pred_fallthru
          _
        // Predicated region
        $region185: #{maskvit_forward.1} parent=11 // pred_check
          %p1317 = pneg %p1058
        $region186: #{maskvit_forward.1} parent=11 // pred_check_branch
          %1319 = sbr.rel (%p1317) target = $region188
        $region187: #{maskvit_forward.1} parent=11 // pred_region
          _
        $region188: #{maskvit_forward.1} parent=11 // pred_fallthru
          _
        // Predicated region
        $region189: #{maskvit_forward.1} parent=11 // pred_check
          %p1320 = pneg %p1079
        $region190: #{maskvit_forward.1} parent=11 // pred_check_branch
          %1322 = sbr.rel (%p1320) target = $region192
        $region191: #{maskvit_forward.1} parent=11 // pred_region
          _
        $region192: #{maskvit_forward.1} parent=11 // pred_fallthru
          _
        // Predicated region
        $region193: #{maskvit_forward.1} parent=11 // pred_check
          %p1323 = pneg %p1100
        $region194: #{maskvit_forward.1} parent=11 // pred_check_branch
          %1325 = sbr.rel (%p1323) target = $region196
        $region195: #{maskvit_forward.1} parent=11 // pred_region
          %1327 = vsyncadd [#allocation12], 0
          %s1329 = sshll.u32 %s93, 4
          %s1330 = int_to_ptr.hbm [resolvable:$true] %s1329
          %s1331 = sshll.u32 [#allocation11], 4
          %s1332 = int_to_ptr.vmem [resolvable:$true] %s1331
          %1334 = dma.hbm_to_vmem [thread:$0]  %s1330, 16, %s1332, [#allocation12]
        $region196: #{maskvit_forward.1} parent=11 // pred_fallthru
          _
      $region12: #{maskvit_forward.1} parent=5 // pred_fallthru
        _
      %p1335 = scmp.lt.s32.totalorder %s108, 2
      // Predicated region
      $region197: #{maskvit_forward.1} parent=5 // pred_check
        %p1336 = pneg %p1335
      $region198: #{maskvit_forward.1} parent=5 // pred_check_branch
        %1338 = sbr.rel (%p1336) target = $region200
      $region199: #{maskvit_forward.1} parent=5 // pred_region
        // Predicated region
        $region201: #{maskvit_forward.1} parent=199 // pred_check
          %p1339 = pneg %p128
        $region202: #{maskvit_forward.1} parent=199 // pred_check_branch
          %1341 = sbr.rel (%p1339) target = $region204
        $region203: #{maskvit_forward.1} parent=199 // pred_region
          %p1342 = scmp.lt.s32.totalorder %s108, 1
          %s1343 = scalar_select %p1342, %s108, 1
          %s1344 = smul.addr %s1343, 6
          %s1345 = smul.addr %s1344, 8
          %s1346 = scalar_lea.vmem %s1, %s1345
        $region204: #{maskvit_forward.1} parent=199 // pred_fallthru
          _
      $region200: #{maskvit_forward.1} parent=5 // pred_fallthru
        _
      %p1347 = scmp.le.s32.totalorder 1, %s108
      %p1348 = scmp.lt.s32.totalorder %s108, 3
      %p1349 = pnand %p1347, %p1348
      %p1350 = pneg %p1349
      // Predicated region
      $region205: #{maskvit_forward.1} parent=5 // pred_check
        _
      $region206: #{maskvit_forward.1} parent=5 // pred_check_branch
        %1352 = sbr.rel (%p1349) target = $region208
      $region207: #{maskvit_forward.1} parent=5 // pred_region
        %s1353 = ssub.s32 %s108, 1
        // Predicated region
        $region209: #{maskvit_forward.1} parent=207 // pred_check
          %p1354 = pneg %p680
        $region210: #{maskvit_forward.1} parent=207 // pred_check_branch
          %1356 = sbr.rel (%p1354) target = $region212
        $region211: #{maskvit_forward.1} parent=207 // pred_region
          %1358 = dma.done [#allocation3], 16
        $region212: #{maskvit_forward.1} parent=207 // pred_fallthru
          _
        // Predicated region
        $region213: #{maskvit_forward.1} parent=207 // pred_check
          %p1359 = pneg %p764
        $region214: #{maskvit_forward.1} parent=207 // pred_check_branch
          %1361 = sbr.rel (%p1359) target = $region216
        $region215: #{maskvit_forward.1} parent=207 // pred_region
          %1363 = dma.done [#allocation6], 16
        $region216: #{maskvit_forward.1} parent=207 // pred_fallthru
          _
        // Predicated region
        $region217: #{maskvit_forward.1} parent=207 // pred_check
          %p1364 = pneg %p785
        $region218: #{maskvit_forward.1} parent=207 // pred_check_branch
          %1366 = sbr.rel (%p1364) target = $region220
        $region219: #{maskvit_forward.1} parent=207 // pred_region
          %1368 = dma.done [#allocation6], 16
        $region220: #{maskvit_forward.1} parent=207 // pred_fallthru
          _
        // Predicated region
        $region221: #{maskvit_forward.1} parent=207 // pred_check
          %p1369 = pneg %p806
        $region222: #{maskvit_forward.1} parent=207 // pred_check_branch
          %1371 = sbr.rel (%p1369) target = $region224
        $region223: #{maskvit_forward.1} parent=207 // pred_region
          %1373 = dma.done [#allocation9], 16
        $region224: #{maskvit_forward.1} parent=207 // pred_fallthru
          _
        // Predicated region
        $region225: #{maskvit_forward.1} parent=207 // pred_check
          %p1374 = pneg %p911
        $region226: #{maskvit_forward.1} parent=207 // pred_check_branch
          %1376 = sbr.rel (%p1374) target = $region228
        $region227: #{maskvit_forward.1} parent=207 // pred_region
          %1378 = dma.done [#allocation9], 32768
        $region228: #{maskvit_forward.1} parent=207 // pred_fallthru
          _
        // Predicated region
        $region229: #{maskvit_forward.1} parent=207 // pred_check
          %p1379 = pneg %p1100
        $region230: #{maskvit_forward.1} parent=207 // pred_check_branch
          %1381 = sbr.rel (%p1379) target = $region232
        $region231: #{maskvit_forward.1} parent=207 // pred_region
          %1383 = dma.done [#allocation12], 16
        $region232: #{maskvit_forward.1} parent=207 // pred_fallthru
          _
        %p1384 = scmp.lt.s32.totalorder %s113, 1
        %s1385 = scalar_select %p1384, %s113, 1
        %s1386 = smul.addr %s1385, 6
        %s1387 = smul.addr %s1386, 8
        %s1388 = scalar_lea.vmem %s1, %s1387
        %p1389 = pneg %p134
        %p1390 = pneg %p131
        %p1391 = pneg %p155
        %p1392 = pneg %p152
        %p1393 = pneg %p176
        %p1394 = pneg %p173
        %p1395 = pneg %p197
        %p1396 = pneg %p194
        %p1397 = pneg %p218
        %p1398 = pneg %p215
        %p1399 = pneg %p239
        %p1400 = pneg %p236
        %p1401 = pneg %p260
        %p1402 = pneg %p257
        %p1403 = pneg %p281
        %p1404 = pneg %p278
        %p1405 = pneg %p302
        %p1406 = pneg %p299
        %p1407 = pneg %p323
        %p1408 = pneg %p320
        %p1409 = pneg %p344
        %p1410 = pneg %p341
        %p1411 = pneg %p365
        %p1412 = pneg %p362
        %p1413 = pneg %p386
        %p1414 = pneg %p383
        %p1415 = pneg %p407
        %p1416 = pneg %p404
        %p1417 = pneg %p428
        %p1418 = pneg %p425
        %p1419 = pneg %p449
        %p1420 = pneg %p446
        %p1421 = pneg %p470
        %p1422 = pneg %p467
        %p1423 = pneg %p491
        %p1424 = pneg %p488
        %p1425 = pneg %p512
        %p1426 = pneg %p509
        %p1427 = pneg %p533
        %p1428 = pneg %p530
        %p1429 = pneg %p554
        %p1430 = pneg %p551
        %p1431 = pneg %p575
        %p1432 = pneg %p572
        %p1433 = pneg %p596
        %p1434 = pneg %p593
        %p1435 = pneg %p617
        %p1436 = pneg %p614
        %p1437 = pneg %p638
        %p1438 = pneg %p635
        %p1439 = pneg %p659
        %p1440 = pneg %p656
        %p1441 = pneg %p680
        %p1442 = pneg %p677
        %p1443 = pneg %p701
        %p1444 = pneg %p698
        %p1445 = pneg %p722
        %p1446 = pneg %p719
        %p1447 = pneg %p743
        %p1448 = pneg %p740
        %p1449 = pneg %p764
        %p1450 = pneg %p761
        %p1451 = pneg %p785
        %p1452 = pneg %p782
        %p1453 = pneg %p806
        %p1454 = pneg %p803
        %p1455 = pneg %p827
        %p1456 = pneg %p824
        %p1457 = pneg %p848
        %p1458 = pneg %p845
        %p1459 = pneg %p869
        %p1460 = pneg %p866
        %p1461 = pneg %p890
        %p1462 = pneg %p887
        %p1463 = pneg %p911
        %p1464 = pneg %p908
        %p1465 = pneg %p932
        %p1466 = pneg %p929
        %p1467 = pneg %p953
        %p1468 = pneg %p950
        %p1469 = pneg %p974
        %p1470 = pneg %p971
        %p1471 = pneg %p995
        %p1472 = pneg %p992
        %p1473 = pneg %p1016
        %p1474 = pneg %p1013
        %p1475 = pneg %p1037
        %p1476 = pneg %p1034
        %p1477 = pneg %p1058
        %p1478 = pneg %p1055
        %p1479 = pneg %p1079
        %p1480 = pneg %p1076
        %p1481 = pneg %p1100
        %p1482 = pneg %p1097
        %p1483 = pneg %p1126
        %p1484 = pneg %p1123
        %s1485 = sand.u32 %s1113, 1
        %s1486 = scalar_lea.sflag [#allocation4], %s1485
        %s1487 = sand.u32 %s1113, 1
        %s1488 = scalar_lea.vmem [#allocation13], %s1487
        %p1489 = scmp.lt.s32.totalorder %s113, 1
        %s1490 = scalar_select %p1489, %s113, 1
        %s1491 = smul.addr %s1490, 6
        %s1492 = smul.addr %s1491, 8
        %s1493 = scalar_lea.vmem %s1, %s1492
        %v1495 = vld [vmem:[%s1493] sm:$0x1f]
        %v1496 = vld [vmem:[%s1493 + $0x8] sm:$0x1f]
        %v1497 = vld [vmem:[%s1493 + $0x10] sm:$0x1f]
        %v1498 = vld [vmem:[%s1493 + $0x18] sm:$0x1f]
        %v1499 = vld [vmem:[%s1493 + $0x20] sm:$0x1f]
        %v1500 = vld [vmem:[%s1493 + $0x28] sm:$0x1f]
        %v1501 = vpack.c.bf16 %v1495, %v1495
        %v1502 = vpack.c.bf16 %v1496, %v1496
        %v1503 = vpack.c.bf16 %v1497, %v1497
        %v1504 = vpack.c.bf16 %v1498, %v1498
        %v1505 = vpack.c.bf16 %v1499, %v1499
        %v1506 = vpack.c.bf16 %v1500, %v1500
        %v1507 = vld [vmem:[%s5] sm:$0xf]
        %v1508 = vld [vmem:[%s5 + $0x4] sm:$0xf]
        %v1509 = vld [vmem:[%s5 + $0x8] sm:$0xf]
        %v1510 = vld [vmem:[%s5 + $0xc] sm:$0xf]
        %v1511 = vld [vmem:[%s5 + $0x10] sm:$0xf]
        %v1512 = vld [vmem:[%s5 + $0x14] sm:$0xf]
        %v1513 = vld [vmem:[%s5 + $0x18] sm:$0xf]
        %v1514 = vld [vmem:[%s5 + $0x1c] sm:$0xf]
        %v1515 = vld [vmem:[%s5 + $0x20] sm:$0xf]
        %v1516 = vld [vmem:[%s5 + $0x24] sm:$0xf]
        %v1517 = vld [vmem:[%s5 + $0x28] sm:$0xf]
        %v1518 = vld [vmem:[%s5 + $0x2c] sm:$0xf]
        %v1519 = vld [vmem:[%s5 + $0x30] sm:$0xf]
        %v1520 = vld [vmem:[%s5 + $0x34] sm:$0xf]
        %v1521 = vld [vmem:[%s5 + $0x38] sm:$0xf]
        %v1522 = vld [vmem:[%s5 + $0x3c] sm:$0xf]
        %v1523 = vld [vmem:[%s5 + $0x40] sm:$0xf]
        %v1524 = vld [vmem:[%s5 + $0x44] sm:$0xf]
        %v1525 = vld [vmem:[%s5 + $0x48] sm:$0xf]
        %v1526 = vld [vmem:[%s5 + $0x4c] sm:$0xf]
        %v1527 = vld [vmem:[%s5 + $0x50] sm:$0xf]
        %v1528 = vld [vmem:[%s5 + $0x54] sm:$0xf]
        %v1529 = vld [vmem:[%s5 + $0x58] sm:$0xf]
        %v1530 = vld [vmem:[%s5 + $0x5c] sm:$0xf]
        %v1531 = vld [vmem:[%s5 + $0x60] sm:$0xf]
        %v1532 = vld [vmem:[%s5 + $0x64] sm:$0xf]
        %v1533 = vld [vmem:[%s5 + $0x68] sm:$0xf]
        %v1534 = vld [vmem:[%s5 + $0x6c] sm:$0xf]
        %v1535 = vld [vmem:[%s5 + $0x70] sm:$0xf]
        %v1536 = vld [vmem:[%s5 + $0x74] sm:$0xf]
        %v1537 = vld [vmem:[%s5 + $0x78] sm:$0xf]
        %v1538 = vld [vmem:[%s5 + $0x7c] sm:$0xf]
        %v1539 = vld [vmem:[%s5 + $0x80] sm:$0xf]
        %v1540 = vld [vmem:[%s5 + $0x84] sm:$0xf]
        %v1541 = vld [vmem:[%s5 + $0x88] sm:$0xf]
        %v1542 = vld [vmem:[%s5 + $0x8c] sm:$0xf]
        %v1543 = vld [vmem:[%s5 + $0x90] sm:$0xf]
        %v1544 = vld [vmem:[%s5 + $0x94] sm:$0xf]
        %v1545 = vld [vmem:[%s5 + $0x98] sm:$0xf]
        %v1546 = vld [vmem:[%s5 + $0x9c] sm:$0xf]
        %v1547 = vld [vmem:[%s5 + $0xa0] sm:$0xf]
        %v1548 = vld [vmem:[%s5 + $0xa4] sm:$0xf]
        %v1549 = vld [vmem:[%s5 + $0xa8] sm:$0xf]
        %v1550 = vld [vmem:[%s5 + $0xac] sm:$0xf]
        %v1551 = vld [vmem:[%s5 + $0xb0] sm:$0xf]
        %v1552 = vld [vmem:[%s5 + $0xb4] sm:$0xf]
        %v1553 = vld [vmem:[%s5 + $0xb8] sm:$0xf]
        %v1554 = vld [vmem:[%s5 + $0xbc] sm:$0xf]
        %v1555 = vld [vmem:[%s5 + $0xc0] sm:$0xf]
        %v1556 = vld [vmem:[%s5 + $0xc4] sm:$0xf]
        %v1557 = vld [vmem:[%s5 + $0xc8] sm:$0xf]
        %v1558 = vld [vmem:[%s5 + $0xcc] sm:$0xf]
        %v1559 = vld [vmem:[%s5 + $0xd0] sm:$0xf]
        %v1560 = vld [vmem:[%s5 + $0xd4] sm:$0xf]
        %v1561 = vld [vmem:[%s5 + $0xd8] sm:$0xf]
        %v1562 = vld [vmem:[%s5 + $0xdc] sm:$0xf]
        %v1563 = vld [vmem:[%s5 + $0xe0] sm:$0xf]
        %v1564 = vld [vmem:[%s5 + $0xe4] sm:$0xf]
        %v1565 = vld [vmem:[%s5 + $0xe8] sm:$0xf]
        %v1566 = vld [vmem:[%s5 + $0xec] sm:$0xf]
        %v1567 = vld [vmem:[%s5 + $0xf0] sm:$0xf]
        %v1568 = vld [vmem:[%s5 + $0xf4] sm:$0xf]
        %v1569 = vld [vmem:[%s5 + $0xf8] sm:$0xf]
        %v1570 = vld [vmem:[%s5 + $0xfc] sm:$0xf]
        %v1571 = vld [vmem:[%s5 + $0x100] sm:$0xf]
        %v1572 = vld [vmem:[%s5 + $0x104] sm:$0xf]
        %v1573 = vld [vmem:[%s5 + $0x108] sm:$0xf]
        %v1574 = vld [vmem:[%s5 + $0x10c] sm:$0xf]
        %v1575 = vld [vmem:[%s5 + $0x110] sm:$0xf]
        %v1576 = vld [vmem:[%s5 + $0x114] sm:$0xf]
        %v1577 = vld [vmem:[%s5 + $0x118] sm:$0xf]
        %v1578 = vld [vmem:[%s5 + $0x11c] sm:$0xf]
        %v1579 = vld [vmem:[%s5 + $0x120] sm:$0xf]
        %v1580 = vld [vmem:[%s5 + $0x124] sm:$0xf]
        %v1581 = vld [vmem:[%s5 + $0x128] sm:$0xf]
        %v1582 = vld [vmem:[%s5 + $0x12c] sm:$0xf]
        %v1583 = vld [vmem:[%s5 + $0x130] sm:$0xf]
        %v1584 = vld [vmem:[%s5 + $0x134] sm:$0xf]
        %v1585 = vld [vmem:[%s5 + $0x138] sm:$0xf]
        %v1586 = vld [vmem:[%s5 + $0x13c] sm:$0xf]
        %v1587 = vld [vmem:[%s5 + $0x140] sm:$0xf]
        %v1588 = vld [vmem:[%s5 + $0x144] sm:$0xf]
        %v1589 = vld [vmem:[%s5 + $0x148] sm:$0xf]
        %v1590 = vld [vmem:[%s5 + $0x14c] sm:$0xf]
        %v1591 = vld [vmem:[%s5 + $0x150] sm:$0xf]
        %v1592 = vld [vmem:[%s5 + $0x154] sm:$0xf]
        %v1593 = vld [vmem:[%s5 + $0x158] sm:$0xf]
        %v1594 = vld [vmem:[%s5 + $0x15c] sm:$0xf]
        %v1595 = vld [vmem:[%s5 + $0x160] sm:$0xf]
        %v1596 = vld [vmem:[%s5 + $0x164] sm:$0xf]
        %v1597 = vld [vmem:[%s5 + $0x168] sm:$0xf]
        %v1598 = vld [vmem:[%s5 + $0x16c] sm:$0xf]
        %v1599 = vld [vmem:[%s5 + $0x170] sm:$0xf]
        %v1600 = vld [vmem:[%s5 + $0x174] sm:$0xf]
        %v1601 = vld [vmem:[%s5 + $0x178] sm:$0xf]
        %v1602 = vld [vmem:[%s5 + $0x17c] sm:$0xf]
        %v1603 = vld [vmem:[%s3] sm:$0x1f]
        %v1700 = vunpack.c.l.b16 %v1507
        %v1701 = vunpack.c.l.b16 %v1508
        %v1702 = vunpack.c.l.b16 %v1509
        %v1703 = vunpack.c.l.b16 %v1510
        %v1704 = vunpack.c.l.b16 %v1511
        %v1705 = vunpack.c.l.b16 %v1512
        %v1706 = vunpack.c.l.b16 %v1513
        %v1707 = vunpack.c.l.b16 %v1514
        %v1708 = vunpack.c.l.b16 %v1515
        %v1709 = vunpack.c.l.b16 %v1516
        %v1710 = vunpack.c.l.b16 %v1517
        %v1711 = vunpack.c.l.b16 %v1518
        %v1712 = vunpack.c.l.b16 %v1519
        %v1713 = vunpack.c.l.b16 %v1520
        %v1714 = vunpack.c.l.b16 %v1521
        %v1715 = vunpack.c.l.b16 %v1522
        %v1716 = vunpack.c.l.b16 %v1523
        %v1717 = vunpack.c.l.b16 %v1524
        %v1718 = vunpack.c.l.b16 %v1525
        %v1719 = vunpack.c.l.b16 %v1526
        %v1720 = vunpack.c.l.b16 %v1527
        %v1721 = vunpack.c.l.b16 %v1528
        %v1722 = vunpack.c.l.b16 %v1529
        %v1723 = vunpack.c.l.b16 %v1530
        %v1724 = vunpack.c.l.b16 %v1531
        %v1725 = vunpack.c.l.b16 %v1532
        %v1726 = vunpack.c.l.b16 %v1533
        %v1727 = vunpack.c.l.b16 %v1534
        %v1728 = vunpack.c.l.b16 %v1535
        %v1729 = vunpack.c.l.b16 %v1536
        %v1730 = vunpack.c.l.b16 %v1537
        %v1731 = vunpack.c.l.b16 %v1538
        %v1732 = vunpack.c.l.b16 %v1539
        %v1733 = vunpack.c.l.b16 %v1540
        %v1734 = vunpack.c.l.b16 %v1541
        %v1735 = vunpack.c.l.b16 %v1542
        %v1736 = vunpack.c.l.b16 %v1543
        %v1737 = vunpack.c.l.b16 %v1544
        %v1738 = vunpack.c.l.b16 %v1545
        %v1739 = vunpack.c.l.b16 %v1546
        %v1740 = vunpack.c.l.b16 %v1547
        %v1741 = vunpack.c.l.b16 %v1548
        %v1742 = vunpack.c.l.b16 %v1549
        %v1743 = vunpack.c.l.b16 %v1550
        %v1744 = vunpack.c.l.b16 %v1551
        %v1745 = vunpack.c.l.b16 %v1552
        %v1746 = vunpack.c.l.b16 %v1553
        %v1747 = vunpack.c.l.b16 %v1554
        %v1748 = vunpack.c.l.b16 %v1555
        %v1749 = vunpack.c.l.b16 %v1556
        %v1750 = vunpack.c.l.b16 %v1557
        %v1751 = vunpack.c.l.b16 %v1558
        %v1752 = vunpack.c.l.b16 %v1559
        %v1753 = vunpack.c.l.b16 %v1560
        %v1754 = vunpack.c.l.b16 %v1561
        %v1755 = vunpack.c.l.b16 %v1562
        %v1756 = vunpack.c.l.b16 %v1563
        %v1757 = vunpack.c.l.b16 %v1564
        %v1758 = vunpack.c.l.b16 %v1565
        %v1759 = vunpack.c.l.b16 %v1566
        %v1760 = vunpack.c.l.b16 %v1567
        %v1761 = vunpack.c.l.b16 %v1568
        %v1762 = vunpack.c.l.b16 %v1569
        %v1763 = vunpack.c.l.b16 %v1570
        %v1764 = vunpack.c.l.b16 %v1571
        %v1765 = vunpack.c.l.b16 %v1572
        %v1766 = vunpack.c.l.b16 %v1573
        %v1767 = vunpack.c.l.b16 %v1574
        %v1768 = vunpack.c.l.b16 %v1575
        %v1769 = vunpack.c.l.b16 %v1576
        %v1770 = vunpack.c.l.b16 %v1577
        %v1771 = vunpack.c.l.b16 %v1578
        %v1772 = vunpack.c.l.b16 %v1579
        %v1773 = vunpack.c.l.b16 %v1580
        %v1774 = vunpack.c.l.b16 %v1581
        %v1775 = vunpack.c.l.b16 %v1582
        %v1776 = vunpack.c.l.b16 %v1583
        %v1777 = vunpack.c.l.b16 %v1584
        %v1778 = vunpack.c.l.b16 %v1585
        %v1779 = vunpack.c.l.b16 %v1586
        %v1780 = vunpack.c.l.b16 %v1587
        %v1781 = vunpack.c.l.b16 %v1588
        %v1782 = vunpack.c.l.b16 %v1589
        %v1783 = vunpack.c.l.b16 %v1590
        %v1784 = vunpack.c.l.b16 %v1591
        %v1785 = vunpack.c.l.b16 %v1592
        %v1786 = vunpack.c.l.b16 %v1593
        %v1787 = vunpack.c.l.b16 %v1594
        %v1788 = vunpack.c.l.b16 %v1595
        %v1789 = vunpack.c.l.b16 %v1596
        %v1790 = vunpack.c.l.b16 %v1597
        %v1791 = vunpack.c.l.b16 %v1598
        %v1792 = vunpack.c.l.b16 %v1599
        %v1793 = vunpack.c.l.b16 %v1600
        %v1794 = vunpack.c.l.b16 %v1601
        %v1795 = vunpack.c.l.b16 %v1602
        %v1796 = vpack.c.b16 %v1701, %v1700
        %v1797 = vpack.c.b16 %v1703, %v1702
        %v1798 = vpack.c.b16 %v1705, %v1704
        %v1799 = vpack.c.b16 %v1707, %v1706
        %v1800 = vpack.c.b16 %v1709, %v1708
        %v1801 = vpack.c.b16 %v1711, %v1710
        %v1802 = vpack.c.b16 %v1713, %v1712
        %v1803 = vpack.c.b16 %v1715, %v1714
        %v1804 = vpack.c.b16 %v1717, %v1716
        %v1805 = vpack.c.b16 %v1719, %v1718
        %v1806 = vpack.c.b16 %v1721, %v1720
        %v1807 = vpack.c.b16 %v1723, %v1722
        %v1808 = vpack.c.b16 %v1725, %v1724
        %v1809 = vpack.c.b16 %v1727, %v1726
        %v1810 = vpack.c.b16 %v1729, %v1728
        %v1811 = vpack.c.b16 %v1731, %v1730
        %v1812 = vpack.c.b16 %v1733, %v1732
        %v1813 = vpack.c.b16 %v1735, %v1734
        %v1814 = vpack.c.b16 %v1737, %v1736
        %v1815 = vpack.c.b16 %v1739, %v1738
        %v1816 = vpack.c.b16 %v1741, %v1740
        %v1817 = vpack.c.b16 %v1743, %v1742
        %v1818 = vpack.c.b16 %v1745, %v1744
        %v1819 = vpack.c.b16 %v1747, %v1746
        %v1820 = vpack.c.b16 %v1749, %v1748
        %v1821 = vpack.c.b16 %v1751, %v1750
        %v1822 = vpack.c.b16 %v1753, %v1752
        %v1823 = vpack.c.b16 %v1755, %v1754
        %v1824 = vpack.c.b16 %v1757, %v1756
        %v1825 = vpack.c.b16 %v1759, %v1758
        %v1826 = vpack.c.b16 %v1761, %v1760
        %v1827 = vpack.c.b16 %v1763, %v1762
        %v1828 = vpack.c.b16 %v1765, %v1764
        %v1829 = vpack.c.b16 %v1767, %v1766
        %v1830 = vpack.c.b16 %v1769, %v1768
        %v1831 = vpack.c.b16 %v1771, %v1770
        %v1832 = vpack.c.b16 %v1773, %v1772
        %v1833 = vpack.c.b16 %v1775, %v1774
        %v1834 = vpack.c.b16 %v1777, %v1776
        %v1835 = vpack.c.b16 %v1779, %v1778
        %v1836 = vpack.c.b16 %v1781, %v1780
        %v1837 = vpack.c.b16 %v1783, %v1782
        %v1838 = vpack.c.b16 %v1785, %v1784
        %v1839 = vpack.c.b16 %v1787, %v1786
        %v1840 = vpack.c.b16 %v1789, %v1788
        %v1841 = vpack.c.b16 %v1791, %v1790
        %v1842 = vpack.c.b16 %v1793, %v1792
        %v1843 = vpack.c.b16 %v1795, %v1794
        %1892 = vmatpush.bf16.msra.mxu0 %v1803
        %1893 = vmatpush.bf16.msra.mxu0 %v1802
        %1894 = vmatpush.bf16.msra.mxu0 %v1801
        %1895 = vmatpush.bf16.msra.mxu0 %v1800
        %1896 = vmatpush.bf16.msra.mxu0 %v1799
        %1897 = vmatpush.bf16.msra.mxu0 %v1798
        %1898 = vmatpush.bf16.msra.mxu0 %v1797
        %1899 = vmatpush.bf16.msra.mxu0 %v1796
        %1900 = vmatmul.bf16.gmra.mxu0 %v1501
        %v1901 = vpop.f32.mrf.mxu0
        %v1902 = vadd.f32 %v1603, %v1901
        %v1903 = vpop.f32.mrf.mxu0
        %1904 = vdwg.mxu0
        %1905 = vmatpush.bf16.msra.mxu0 %v1811
        %1906 = vmatpush.bf16.msra.mxu0 %v1810
        %1907 = vmatpush.bf16.msra.mxu0 %v1809
        %1908 = vmatpush.bf16.msra.mxu0 %v1808
        %1909 = vmatpush.bf16.msra.mxu0 %v1807
        %1910 = vmatpush.bf16.msra.mxu0 %v1806
        %1911 = vmatpush.bf16.msra.mxu0 %v1805
        %1912 = vmatpush.bf16.msra.mxu0 %v1804
        %1913 = vmatmul.bf16.gmra.mxu0 %v1502
        %v1914 = vpop.f32.mrf.mxu0
        %v1915 = vadd.f32 %v1902, %v1914
        %v1916 = vpop.f32.mrf.mxu0
        %1917 = vdwg.mxu0
        %1918 = vmatpush.bf16.msra.mxu0 %v1819
        %1919 = vmatpush.bf16.msra.mxu0 %v1818
        %1920 = vmatpush.bf16.msra.mxu0 %v1817
        %1921 = vmatpush.bf16.msra.mxu0 %v1816
        %1922 = vmatpush.bf16.msra.mxu0 %v1815
        %1923 = vmatpush.bf16.msra.mxu0 %v1814
        %1924 = vmatpush.bf16.msra.mxu0 %v1813
        %1925 = vmatpush.bf16.msra.mxu0 %v1812
        %1926 = vmatmul.bf16.gmra.mxu0 %v1503
        %v1927 = vpop.f32.mrf.mxu0
        %v1928 = vadd.f32 %v1915, %v1927
        %v1929 = vpop.f32.mrf.mxu0
        %1930 = vdwg.mxu0
        %1931 = vmatpush.bf16.msra.mxu0 %v1827
        %1932 = vmatpush.bf16.msra.mxu0 %v1826
        %1933 = vmatpush.bf16.msra.mxu0 %v1825
        %1934 = vmatpush.bf16.msra.mxu0 %v1824
        %1935 = vmatpush.bf16.msra.mxu0 %v1823
        %1936 = vmatpush.bf16.msra.mxu0 %v1822
        %1937 = vmatpush.bf16.msra.mxu0 %v1821
        %1938 = vmatpush.bf16.msra.mxu0 %v1820
        %1939 = vmatmul.bf16.gmra.mxu0 %v1504
        %v1940 = vpop.f32.mrf.mxu0
        %v1941 = vadd.f32 %v1928, %v1940
        %v1942 = vpop.f32.mrf.mxu0
        %1943 = vdwg.mxu0
        %1944 = vmatpush.bf16.msra.mxu0 %v1835
        %1945 = vmatpush.bf16.msra.mxu0 %v1834
        %1946 = vmatpush.bf16.msra.mxu0 %v1833
        %1947 = vmatpush.bf16.msra.mxu0 %v1832
        %1948 = vmatpush.bf16.msra.mxu0 %v1831
        %1949 = vmatpush.bf16.msra.mxu0 %v1830
        %1950 = vmatpush.bf16.msra.mxu0 %v1829
        %1951 = vmatpush.bf16.msra.mxu0 %v1828
        %1952 = vmatmul.bf16.gmra.mxu0 %v1505
        %v1953 = vpop.f32.mrf.mxu0
        %v1954 = vadd.f32 %v1941, %v1953
        %v1955 = vpop.f32.mrf.mxu0
        %1956 = vdwg.mxu0
        %1957 = vmatpush.bf16.msra.mxu0 %v1843
        %1958 = vmatpush.bf16.msra.mxu0 %v1842
        %1959 = vmatpush.bf16.msra.mxu0 %v1841
        %1960 = vmatpush.bf16.msra.mxu0 %v1840
        %1961 = vmatpush.bf16.msra.mxu0 %v1839
        %1962 = vmatpush.bf16.msra.mxu0 %v1838
        %1963 = vmatpush.bf16.msra.mxu0 %v1837
        %1964 = vmatpush.bf16.msra.mxu0 %v1836
        %1965 = vmatmul.bf16.gmra.mxu0 %v1506
        %v1966 = vpop.f32.mrf.mxu0
        %v1967 = vadd.f32 %v1954, %v1966
        %v1968 = vpop.f32.mrf.mxu0
        %1969 = vdwg.mxu0
        %v1970 = vlaneseq
        %v1971 = vand.u32 %v1970, 127
        %vm1972 = vcmp.ge.s32.totalorder %v1971, 0
        %vm1973 = vcmp.lt.s32.totalorder %v1971, 16
        %vm1974 = vmand %vm1972, %vm1973
        %v1975 = vsel %vm1974, 1.0, 0.0
        %vm1976 = vcmp.ge.s32.totalorder %v1971, 16
        %vm1977 = vcmp.lt.s32.totalorder %v1971, 32
        %vm1978 = vmand %vm1976, %vm1977
        %v1979 = vsel %vm1978, 1.0, 0.0
        %vm1980 = vcmp.ge.s32.totalorder %v1971, 32
        %vm1981 = vcmp.lt.s32.totalorder %v1971, 48
        %vm1982 = vmand %vm1980, %vm1981
        %v1983 = vsel %vm1982, 1.0, 0.0
        %vm1984 = vcmp.ge.s32.totalorder %v1971, 48
        %vm1985 = vcmp.lt.s32.totalorder %v1971, 64
        %vm1986 = vmand %vm1984, %vm1985
        %v1987 = vsel %vm1986, 1.0, 0.0
        %vm1988 = vcmp.ge.s32.totalorder %v1971, 64
        %vm1989 = vcmp.lt.s32.totalorder %v1971, 80
        %vm1990 = vmand %vm1988, %vm1989
        %v1991 = vsel %vm1990, 1.0, 0.0
        %vm1992 = vcmp.ge.s32.totalorder %v1971, 80
        %vm1993 = vcmp.lt.s32.totalorder %v1971, 96
        %vm1994 = vmand %vm1992, %vm1993
        %v1995 = vsel %vm1994, 1.0, 0.0
        %vm1996 = vcmp.ge.s32.totalorder %v1971, 96
        %vm1997 = vcmp.lt.s32.totalorder %v1971, 112
        %vm1998 = vmand %vm1996, %vm1997
        %v1999 = vsel %vm1998, 1.0, 0.0
        %vm2000 = vcmp.ge.s32.totalorder %v1971, 112
        %vm2001 = vcmp.lt.s32.totalorder %v1971, 128
        %vm2002 = vmand %vm2000, %vm2001
        %v2003 = vsel %vm2002, 1.0, 0.0
        %v2004 = vld [vmem:[%s7] sm:$0x1]
        %v2005 = vld [vmem:[%s9] sm:$0x1]
        %vm2006 = vcmask 520192
        %v2007 = vsel %vm2006, %v1967, 0.0
        %2008 = vadd.xlane.f32.xlu0 %v2007
        %v2009 = vpop.xlane.xlu0 %2008
        %v2010 = vrcp.pop 64.0
        %v2011 = vmul.f32 64.0, %v2010
        %v2012 = vsub.f32 1.0, %v2011
        %v2013 = vmul.f32 %v2010, %v2012
        %v2014 = vadd.f32 %v2010, %v2013
        %vm2015 = vweird.f32 %v2010
        %v2016 = vsel %vm2015, %v2010, %v2014
        %v2017 = vmul.f32 %v2009, %v2016
        %v2018 = vsub.f32 %v1967, %v2017
        %v2019 = vmul.f32 %v2018, %v2018
        %v2020 = vsel %vm2006, %v2019, 0.0
        %2021 = vadd.xlane.f32.xlu0 %v2020
        %v2022 = vpop.xlane.xlu0 %2021
        %v2023 = vmul.f32 %v2022, %v2016
        %v2024 = vadd.f32 %v2023, 1e-06
        %v2025 = vrsqrt.pop %v2024
        %v2026 = vmul.f32 %v2025, %v2024
        %v2027 = vmul.f32 %v2026, %v2025
        %v2028 = vmul.f32 0.5, %v2027
        %v2029 = vsub.f32 1.5, %v2028
        %v2030 = vmul.f32 %v2025, %v2029
        %vm2031 = vweird.f32 %v2024
        %vm2032 = vweird.f32 %v2025
        %vm2033 = vmor %vm2031, %vm2032
        %v2034 = vsel %vm2033, %v2025, %v2030
        %v2035 = vmul.f32 %v2018, %v2034
        %v2037 = vperm.slane %v2004, 0
        %v2039 = vmul.f32 %v2035, %v2037
        %v2041 = vperm.slane %v2005, 0
        %v2043 = vadd.f32 %v2039, %v2041
        %v2044 = vpack.c.bf16 %v2043, %v2043
        %v2045 = vld [vmem:[%s11] sm:$0xf]
        %v2046 = vld [vmem:[%s11 + $0x4] sm:$0xf]
        %v2047 = vld [vmem:[%s11 + $0x8] sm:$0xf]
        %v2048 = vld [vmem:[%s11 + $0xc] sm:$0xf]
        %v2049 = vld [vmem:[%s11 + $0x10] sm:$0xf]
        %v2050 = vld [vmem:[%s11 + $0x14] sm:$0xf]
        %v2051 = vld [vmem:[%s11 + $0x18] sm:$0xf]
        %v2052 = vld [vmem:[%s11 + $0x1c] sm:$0xf]
        %v2053 = vld [vmem:[%s13] sm:$0x1]
        %v2055 = vperm.slane %v2053, 0
        %v2065 = vunpack.c.l.b16 %v2045
        %v2066 = vunpack.c.l.b16 %v2046
        %v2067 = vunpack.c.l.b16 %v2047
        %v2068 = vunpack.c.l.b16 %v2048
        %v2069 = vunpack.c.l.b16 %v2049
        %v2070 = vunpack.c.l.b16 %v2050
        %v2071 = vunpack.c.l.b16 %v2051
        %v2072 = vunpack.c.l.b16 %v2052
        %v2073 = vpack.c.b16 %v2066, %v2065
        %v2074 = vpack.c.b16 %v2068, %v2067
        %v2075 = vpack.c.b16 %v2070, %v2069
        %v2076 = vpack.c.b16 %v2072, %v2071
        %vm2081 = vcmask 523264
        %v2083 = vsel %vm2081, %v2044, 0
        %2085 = vmatpush.bf16.msra.mxu0 0
        %2086 = vmatpush.bf16.msra.mxu0 0
        %2087 = vmatpush.bf16.msra.mxu0 0
        %2088 = vmatpush.bf16.msra.mxu0 0
        %2089 = vmatpush.bf16.msra.mxu0 %v2076
        %2090 = vmatpush.bf16.msra.mxu0 %v2075
        %2091 = vmatpush.bf16.msra.mxu0 %v2074
        %2092 = vmatpush.bf16.msra.mxu0 %v2073
        %2093 = vmatmul.bf16.gmra.mxu0 %v2083
        %v2094 = vpop.f32.mrf.mxu0
        %v2095 = vadd.f32 %v2055, %v2094
        %v2096 = vpop.f32.mrf.mxu0
        %2097 = vdwg.mxu0
        %v2098 = vld [vmem:[%s15] sm:$0xf]
        %v2099 = vld [vmem:[%s15 + $0x4] sm:$0xf]
        %v2100 = vld [vmem:[%s15 + $0x8] sm:$0xf]
        %v2101 = vld [vmem:[%s15 + $0xc] sm:$0xf]
        %v2102 = vld [vmem:[%s15 + $0x10] sm:$0xf]
        %v2103 = vld [vmem:[%s15 + $0x14] sm:$0xf]
        %v2104 = vld [vmem:[%s15 + $0x18] sm:$0xf]
        %v2105 = vld [vmem:[%s15 + $0x1c] sm:$0xf]
        %v2106 = vld [vmem:[%s17] sm:$0x1]
        %v2108 = vperm.slane %v2106, 0
        %v2118 = vunpack.c.l.b16 %v2098
        %v2119 = vunpack.c.l.b16 %v2099
        %v2120 = vunpack.c.l.b16 %v2100
        %v2121 = vunpack.c.l.b16 %v2101
        %v2122 = vunpack.c.l.b16 %v2102
        %v2123 = vunpack.c.l.b16 %v2103
        %v2124 = vunpack.c.l.b16 %v2104
        %v2125 = vunpack.c.l.b16 %v2105
        %v2126 = vpack.c.b16 %v2119, %v2118
        %v2127 = vpack.c.b16 %v2121, %v2120
        %v2128 = vpack.c.b16 %v2123, %v2122
        %v2129 = vpack.c.b16 %v2125, %v2124
        %2134 = vmatpush.bf16.msra.mxu0 0
        %2135 = vmatpush.bf16.msra.mxu0 0
        %2136 = vmatpush.bf16.msra.mxu0 0
        %2137 = vmatpush.bf16.msra.mxu0 0
        %2138 = vmatpush.bf16.msra.mxu0 %v2129
        %2139 = vmatpush.bf16.msra.mxu0 %v2128
        %2140 = vmatpush.bf16.msra.mxu0 %v2127
        %2141 = vmatpush.bf16.msra.mxu0 %v2126
        %2142 = vmatmul.bf16.gmra.mxu0 %v2083
        %v2143 = vpop.f32.mrf.mxu0
        %v2144 = vadd.f32 %v2108, %v2143
        %v2145 = vpop.f32.mrf.mxu0
        %2146 = vdwg.mxu0
        %v2147 = vpack.c.bf16 %v2144, %v2144
        %v2148 = vmul.f32 %v2095, %v1975
        %v2149 = vpack.c.bf16 %v2148, %v2148
        %2150 = vmatpush.bf16.xpose.msra.mxu0 0
        %2151 = vmatpush.bf16.xpose.msra.mxu0 0
        %2152 = vmatpush.bf16.xpose.msra.mxu0 0
        %2153 = vmatpush.bf16.xpose.msra.mxu0 0
        %2154 = vmatpush.bf16.xpose.msra.mxu0 0
        %2155 = vmatpush.bf16.xpose.msra.mxu0 0
        %2156 = vmatpush.bf16.xpose.msra.mxu0 0
        %2157 = vmatpush.bf16.xpose.msra.mxu0 %v2147
        %2158 = vmatmul.bf16.gmra.mxu0 %v2149
        %v2159 = vpop.f32.mrf.mxu0
        %v2160 = vadd.f32 0.0, %v2159
        %v2161 = vpop.f32.mrf.mxu0
        %2162 = vdwg.mxu0
        %v2163 = vmul.f32 %v2160, 0.25
        %vm2164 = vcmask 36864
        %v2165 = vsel %vm2164, %v2163, -inf
        %2166 = vmax.xlane.f32.xlu0 %v2165
        %v2167 = vpop.xlane.xlu0 %2166
        %v2168 = vsub.f32 %v2163, %v2167
        %v2169 = vmul.f32 %v2168, 1.442695
        %v2170 = vpow.pop %v2169
        %v2171 = vsel %vm2164, %v2170, 0.0
        %2172 = vadd.xlane.f32.xlu0 %v2171
        %v2173 = vpop.xlane.xlu0 %2172
        %v2174 = vrcp.pop %v2173
        %v2175 = vmul.f32 %v2170, %v2174
        %v2176 = vmul.f32 %v2095, %v1991
        %v2177 = vpack.c.bf16 %v2176, %v2176
        %v2178 = vpack.c.bf16 %v2175, %v2175
        %v2179 = vmul.f32 %v2095, %v1979
        %v2180 = vpack.c.bf16 %v2179, %v2179
        %2181 = vmatpush.bf16.xpose.msra.mxu0 0
        %2182 = vmatpush.bf16.xpose.msra.mxu0 0
        %2183 = vmatpush.bf16.xpose.msra.mxu0 0
        %2184 = vmatpush.bf16.xpose.msra.mxu0 0
        %2185 = vmatpush.bf16.xpose.msra.mxu0 0
        %2186 = vmatpush.bf16.xpose.msra.mxu0 0
        %2187 = vmatpush.bf16.xpose.msra.mxu0 0
        %2188 = vmatpush.bf16.xpose.msra.mxu0 %v2147
        %2189 = vmatmul.bf16.gmra.mxu0 %v2180
        %v2190 = vpop.f32.mrf.mxu0
        %v2191 = vadd.f32 0.0, %v2190
        %v2192 = vpop.f32.mrf.mxu0
        %2193 = vdwg.mxu0
        %v2194 = vmul.f32 %v2191, 0.25
        %v2195 = vsel %vm2164, %v2194, -inf
        %2196 = vmax.xlane.f32.xlu0 %v2195
        %v2197 = vpop.xlane.xlu0 %2196
        %v2198 = vsub.f32 %v2194, %v2197
        %v2199 = vmul.f32 %v2198, 1.442695
        %v2200 = vpow.pop %v2199
        %v2201 = vsel %vm2164, %v2200, 0.0
        %2202 = vadd.xlane.f32.xlu0 %v2201
        %v2203 = vpop.xlane.xlu0 %2202
        %v2204 = vrcp.pop %v2203
        %v2205 = vmul.f32 %v2200, %v2204
        %v2206 = vmul.f32 %v2095, %v1995
        %v2207 = vpack.c.bf16 %v2206, %v2206
        %v2208 = vpack.c.bf16 %v2205, %v2205
        %vm2209 = vcmask 39936
        %v2211 = vsel %vm2209, %v2208, 0
        %vm2213 = vcmask 1041408
        %vm2214 = vcmask 1042432
        %v2215 = vsel %vm2213, 4294967295, 65535
        %v2216 = vsel %vm2214, %v2215, 0
        %v2218 = vand.u32 %v2207, %v2216
        %2220 = vmatpush.bf16.msra.mxu0 0
        %2221 = vmatpush.bf16.msra.mxu0 0
        %2222 = vmatpush.bf16.msra.mxu0 0
        %2223 = vmatpush.bf16.msra.mxu0 0
        %2224 = vmatpush.bf16.msra.mxu0 0
        %2225 = vmatpush.bf16.msra.mxu0 0
        %2226 = vmatpush.bf16.msra.mxu0 0
        %2227 = vmatpush.bf16.msra.mxu0 %v2218
        %2228 = vmatmul.bf16.gmra.mxu0 %v2211
        %v2229 = vpop.f32.mrf.mxu0
        %v2230 = vadd.f32 0.0, %v2229
        %v2231 = vpop.f32.mrf.mxu0
        %2232 = vdwg.mxu0
        %v2234 = vsel %vm2209, %v2178, 0
        %v2237 = vand.u32 %v2177, %v2216
        %2239 = vmatpush.bf16.msra.mxu0 0
        %2240 = vmatpush.bf16.msra.mxu0 0
        %2241 = vmatpush.bf16.msra.mxu0 0
        %2242 = vmatpush.bf16.msra.mxu0 0
        %2243 = vmatpush.bf16.msra.mxu0 0
        %2244 = vmatpush.bf16.msra.mxu0 0
        %2245 = vmatpush.bf16.msra.mxu0 0
        %2246 = vmatpush.bf16.msra.mxu0 %v2237
        %2247 = vmatmul.bf16.gmra.mxu0 %v2234
        %v2248 = vpop.f32.mrf.mxu0
        %v2249 = vadd.f32 %v2230, %v2248
        %v2250 = vpop.f32.mrf.mxu0
        %2251 = vdwg.mxu0
        %v2252 = vmul.f32 %v2095, %v1983
        %v2253 = vpack.c.bf16 %v2252, %v2252
        %2254 = vmatpush.bf16.xpose.msra.mxu0 0
        %2255 = vmatpush.bf16.xpose.msra.mxu0 0
        %2256 = vmatpush.bf16.xpose.msra.mxu0 0
        %2257 = vmatpush.bf16.xpose.msra.mxu0 0
        %2258 = vmatpush.bf16.xpose.msra.mxu0 0
        %2259 = vmatpush.bf16.xpose.msra.mxu0 0
        %2260 = vmatpush.bf16.xpose.msra.mxu0 0
        %2261 = vmatpush.bf16.xpose.msra.mxu0 %v2147
        %2262 = vmatmul.bf16.gmra.mxu0 %v2253
        %v2263 = vpop.f32.mrf.mxu0
        %v2264 = vadd.f32 0.0, %v2263
        %v2265 = vpop.f32.mrf.mxu0
        %2266 = vdwg.mxu0
        %v2267 = vmul.f32 %v2264, 0.25
        %v2268 = vsel %vm2164, %v2267, -inf
        %2269 = vmax.xlane.f32.xlu0 %v2268
        %v2270 = vpop.xlane.xlu0 %2269
        %v2271 = vsub.f32 %v2267, %v2270
        %v2272 = vmul.f32 %v2271, 1.442695
        %v2273 = vpow.pop %v2272
        %v2274 = vsel %vm2164, %v2273, 0.0
        %2275 = vadd.xlane.f32.xlu0 %v2274
        %v2276 = vpop.xlane.xlu0 %2275
        %v2277 = vrcp.pop %v2276
        %v2278 = vmul.f32 %v2273, %v2277
        %v2279 = vmul.f32 %v2095, %v1999
        %v2280 = vpack.c.bf16 %v2279, %v2279
        %v2281 = vpack.c.bf16 %v2278, %v2278
        %v2283 = vsel %vm2209, %v2281, 0
        %v2286 = vand.u32 %v2280, %v2216
        %2288 = vmatpush.bf16.msra.mxu0 0
        %2289 = vmatpush.bf16.msra.mxu0 0
        %2290 = vmatpush.bf16.msra.mxu0 0
        %2291 = vmatpush.bf16.msra.mxu0 0
        %2292 = vmatpush.bf16.msra.mxu0 0
        %2293 = vmatpush.bf16.msra.mxu0 0
        %2294 = vmatpush.bf16.msra.mxu0 0
        %2295 = vmatpush.bf16.msra.mxu0 %v2286
        %2296 = vmatmul.bf16.gmra.mxu0 %v2283
        %v2297 = vpop.f32.mrf.mxu0
        %v2298 = vadd.f32 0.0, %v2297
        %v2299 = vpop.f32.mrf.mxu0
        %2300 = vdwg.mxu0
        %v2301 = vadd.f32 %v2249, %v2298
        %v2302 = vmul.f32 %v2095, %v1987
        %v2303 = vpack.c.bf16 %v2302, %v2302
        %2304 = vmatpush.bf16.xpose.msra.mxu0 0
        %2305 = vmatpush.bf16.xpose.msra.mxu0 0
        %2306 = vmatpush.bf16.xpose.msra.mxu0 0
        %2307 = vmatpush.bf16.xpose.msra.mxu0 0
        %2308 = vmatpush.bf16.xpose.msra.mxu0 0
        %2309 = vmatpush.bf16.xpose.msra.mxu0 0
        %2310 = vmatpush.bf16.xpose.msra.mxu0 0
        %2311 = vmatpush.bf16.xpose.msra.mxu0 %v2147
        %2312 = vmatmul.bf16.gmra.mxu0 %v2303
        %v2313 = vpop.f32.mrf.mxu0
        %v2314 = vadd.f32 0.0, %v2313
        %v2315 = vpop.f32.mrf.mxu0
        %2316 = vdwg.mxu0
        %v2317 = vmul.f32 %v2314, 0.25
        %v2318 = vsel %vm2164, %v2317, -inf
        %2319 = vmax.xlane.f32.xlu0 %v2318
        %v2320 = vpop.xlane.xlu0 %2319
        %v2321 = vsub.f32 %v2317, %v2320
        %v2322 = vmul.f32 %v2321, 1.442695
        %v2323 = vpow.pop %v2322
        %v2324 = vsel %vm2164, %v2323, 0.0
        %2325 = vadd.xlane.f32.xlu0 %v2324
        %v2326 = vpop.xlane.xlu0 %2325
        %v2327 = vrcp.pop %v2326
        %v2328 = vmul.f32 %v2323, %v2327
        %v2329 = vmul.f32 %v2095, %v2003
        %v2330 = vpack.c.bf16 %v2329, %v2329
        %v2331 = vpack.c.bf16 %v2328, %v2328
        %v2333 = vsel %vm2209, %v2331, 0
        %v2336 = vand.u32 %v2330, %v2216
        %2338 = vmatpush.bf16.msra.mxu0 0
        %2339 = vmatpush.bf16.msra.mxu0 0
        %2340 = vmatpush.bf16.msra.mxu0 0
        %2341 = vmatpush.bf16.msra.mxu0 0
        %2342 = vmatpush.bf16.msra.mxu0 0
        %2343 = vmatpush.bf16.msra.mxu0 0
        %2344 = vmatpush.bf16.msra.mxu0 0
        %2345 = vmatpush.bf16.msra.mxu0 %v2336
        %2346 = vmatmul.bf16.gmra.mxu0 %v2333
        %v2347 = vpop.f32.mrf.mxu0
        %v2348 = vadd.f32 0.0, %v2347
        %v2349 = vpop.f32.mrf.mxu0
        %2350 = vdwg.mxu0
        %v2351 = vadd.f32 %v2301, %v2348
        %v2352 = vpack.c.bf16 %v2351, %v2351
        %v2353 = vld [vmem:[%s19] sm:$0xf]
        %v2354 = vld [vmem:[%s19 + $0x4] sm:$0xf]
        %v2355 = vld [vmem:[%s19 + $0x8] sm:$0xf]
        %v2356 = vld [vmem:[%s19 + $0xc] sm:$0xf]
        %v2357 = vld [vmem:[%s19 + $0x10] sm:$0xf]
        %v2358 = vld [vmem:[%s19 + $0x14] sm:$0xf]
        %v2359 = vld [vmem:[%s19 + $0x18] sm:$0xf]
        %v2360 = vld [vmem:[%s19 + $0x1c] sm:$0xf]
        %v2361 = vld [vmem:[%s19 + $0x20] sm:$0xf]
        %v2362 = vld [vmem:[%s19 + $0x24] sm:$0xf]
        %v2363 = vld [vmem:[%s19 + $0x28] sm:$0xf]
        %v2364 = vld [vmem:[%s19 + $0x2c] sm:$0xf]
        %v2365 = vld [vmem:[%s19 + $0x30] sm:$0xf]
        %v2366 = vld [vmem:[%s19 + $0x34] sm:$0xf]
        %v2367 = vld [vmem:[%s19 + $0x38] sm:$0xf]
        %v2368 = vld [vmem:[%s19 + $0x3c] sm:$0xf]
        %v2369 = vld [vmem:[%s21] sm:$0x1]
        %v2371 = vperm.slane %v2369, 0
        %v2389 = vunpack.c.l.b16 %v2353
        %v2390 = vunpack.c.l.b16 %v2354
        %v2391 = vunpack.c.l.b16 %v2355
        %v2392 = vunpack.c.l.b16 %v2356
        %v2393 = vunpack.c.l.b16 %v2357
        %v2394 = vunpack.c.l.b16 %v2358
        %v2395 = vunpack.c.l.b16 %v2359
        %v2396 = vunpack.c.l.b16 %v2360
        %v2397 = vunpack.c.l.b16 %v2361
        %v2398 = vunpack.c.l.b16 %v2362
        %v2399 = vunpack.c.l.b16 %v2363
        %v2400 = vunpack.c.l.b16 %v2364
        %v2401 = vunpack.c.l.b16 %v2365
        %v2402 = vunpack.c.l.b16 %v2366
        %v2403 = vunpack.c.l.b16 %v2367
        %v2404 = vunpack.c.l.b16 %v2368
        %v2405 = vpack.c.b16 %v2390, %v2389
        %v2406 = vpack.c.b16 %v2392, %v2391
        %v2407 = vpack.c.b16 %v2394, %v2393
        %v2408 = vpack.c.b16 %v2396, %v2395
        %v2409 = vpack.c.b16 %v2398, %v2397
        %v2410 = vpack.c.b16 %v2400, %v2399
        %v2411 = vpack.c.b16 %v2402, %v2401
        %v2412 = vpack.c.b16 %v2404, %v2403
        %2421 = vmatpush.bf16.msra.mxu0 %v2412
        %2422 = vmatpush.bf16.msra.mxu0 %v2411
        %2423 = vmatpush.bf16.msra.mxu0 %v2410
        %2424 = vmatpush.bf16.msra.mxu0 %v2409
        %2425 = vmatpush.bf16.msra.mxu0 %v2408
        %2426 = vmatpush.bf16.msra.mxu0 %v2407
        %2427 = vmatpush.bf16.msra.mxu0 %v2406
        %2428 = vmatpush.bf16.msra.mxu0 %v2405
        %2429 = vmatmul.bf16.gmra.mxu0 %v2352
        %v2430 = vpop.f32.mrf.mxu0
        %v2431 = vadd.f32 %v2371, %v2430
        %v2432 = vpop.f32.mrf.mxu0
        %2433 = vdwg.mxu0
        %v2434 = vadd.f32 %v1967, %v2431
        %v2435 = vld [vmem:[%s23] sm:$0x1]
        %v2436 = vld [vmem:[%s25] sm:$0x1]
        %v2437 = vsel %vm2006, %v2434, 0.0
        %2438 = vadd.xlane.f32.xlu0 %v2437
        %v2439 = vpop.xlane.xlu0 %2438
        %v2440 = vmul.f32 %v2439, %v2016
        %v2441 = vsub.f32 %v2434, %v2440
        %v2442 = vmul.f32 %v2441, %v2441
        %v2443 = vsel %vm2006, %v2442, 0.0
        %2444 = vadd.xlane.f32.xlu0 %v2443
        %v2445 = vpop.xlane.xlu0 %2444
        %v2446 = vmul.f32 %v2445, %v2016
        %v2447 = vadd.f32 %v2446, 1e-06
        %v2448 = vrsqrt.pop %v2447
        %v2449 = vmul.f32 %v2448, %v2447
        %v2450 = vmul.f32 %v2449, %v2448
        %v2451 = vmul.f32 0.5, %v2450
        %v2452 = vsub.f32 1.5, %v2451
        %v2453 = vmul.f32 %v2448, %v2452
        %vm2454 = vweird.f32 %v2447
        %vm2455 = vweird.f32 %v2448
        %vm2456 = vmor %vm2454, %vm2455
        %v2457 = vsel %vm2456, %v2448, %v2453
        %v2458 = vmul.f32 %v2441, %v2457
        %v2460 = vperm.slane %v2435, 0
        %v2462 = vmul.f32 %v2458, %v2460
        %v2464 = vperm.slane %v2436, 0
        %v2466 = vadd.f32 %v2462, %v2464
        %v2467 = vpack.c.bf16 %v2466, %v2466
        %v2468 = vld [vmem:[%s27] sm:$0xff]
        %v2469 = vld [vmem:[%s27 + $0x8] sm:$0xff]
        %v2470 = vld [vmem:[%s27 + $0x10] sm:$0xff]
        %v2471 = vld [vmem:[%s27 + $0x18] sm:$0xff]
        %v2472 = vld [vmem:[%s27 + $0x20] sm:$0xff]
        %v2473 = vld [vmem:[%s27 + $0x28] sm:$0xff]
        %v2474 = vld [vmem:[%s27 + $0x30] sm:$0xff]
        %v2475 = vld [vmem:[%s27 + $0x38] sm:$0xff]
        %v2476 = vld [vmem:[%s29] sm:$0x3]
        %v2478 = vperm.slane %v2476, 0
        %v2479 = vperm.slane %v2476, 1
        %v2490 = vunpack.c.l.b16 %v2468
        %v2491 = vunpack.c.h.b16 %v2468
        %v2492 = vunpack.c.l.b16 %v2469
        %v2493 = vunpack.c.h.b16 %v2469
        %v2494 = vunpack.c.l.b16 %v2470
        %v2495 = vunpack.c.h.b16 %v2470
        %v2496 = vunpack.c.l.b16 %v2471
        %v2497 = vunpack.c.h.b16 %v2471
        %v2498 = vunpack.c.l.b16 %v2472
        %v2499 = vunpack.c.h.b16 %v2472
        %v2500 = vunpack.c.l.b16 %v2473
        %v2501 = vunpack.c.h.b16 %v2473
        %v2502 = vunpack.c.l.b16 %v2474
        %v2503 = vunpack.c.h.b16 %v2474
        %v2504 = vunpack.c.l.b16 %v2475
        %v2505 = vunpack.c.h.b16 %v2475
        %v2506 = vpack.c.b16 %v2492, %v2490
        %v2507 = vpack.c.b16 %v2493, %v2491
        %v2508 = vpack.c.b16 %v2496, %v2494
        %v2509 = vpack.c.b16 %v2497, %v2495
        %v2510 = vpack.c.b16 %v2500, %v2498
        %v2511 = vpack.c.b16 %v2501, %v2499
        %v2512 = vpack.c.b16 %v2504, %v2502
        %v2513 = vpack.c.b16 %v2505, %v2503
        %v2523 = vsel %vm2081, %v2467, 0
        %2525 = vmatpush.bf16.msra.mxu0 0
        %2526 = vmatpush.bf16.msra.mxu0 0
        %2527 = vmatpush.bf16.msra.mxu0 0
        %2528 = vmatpush.bf16.msra.mxu0 0
        %2529 = vmatpush.bf16.msra.mxu0 %v2512
        %2530 = vmatpush.bf16.msra.mxu0 %v2510
        %2531 = vmatpush.bf16.msra.mxu0 %v2508
        %2532 = vmatpush.bf16.msra.mxu0 %v2506
        %2533 = vmatmul.bf16.gmra.mxu0 %v2523
        %v2534 = vpop.f32.mrf.mxu0
        %v2535 = vadd.f32 %v2478, %v2534
        %v2536 = vpop.f32.mrf.mxu0
        %2537 = vdwg.mxu0
        %2538 = vmatpush.bf16.msra.mxu0 0
        %2539 = vmatpush.bf16.msra.mxu0 0
        %2540 = vmatpush.bf16.msra.mxu0 0
        %2541 = vmatpush.bf16.msra.mxu0 0
        %2542 = vmatpush.bf16.msra.mxu0 %v2513
        %2543 = vmatpush.bf16.msra.mxu0 %v2511
        %2544 = vmatpush.bf16.msra.mxu0 %v2509
        %2545 = vmatpush.bf16.msra.mxu0 %v2507
        %2546 = vmatmul.bf16.gmra.mxu0 %v2523
        %v2547 = vpop.f32.mrf.mxu0
        %v2548 = vadd.f32 %v2479, %v2547
        %v2549 = vpop.f32.mrf.mxu0
        %2550 = vdwg.mxu0
        %v2551 = vmul.f32 %v2535, %v2535
        %v2552 = vmul.f32 %v2548, %v2548
        %v2553 = vmul.f32 %v2535, %v2551
        %v2554 = vmul.f32 %v2548, %v2552
        %v2555 = vmul.f32 %v2553, 0.044715
        %v2556 = vmul.f32 %v2554, 0.044715
        %v2557 = vadd.f32 %v2535, %v2555
        %v2558 = vadd.f32 %v2548, %v2556
        %v2559 = vmul.f32 %v2557, 0.7978846
        %v2560 = vmul.f32 %v2558, 0.7978846
        %v2561 = vtanh.pop %v2559
        %v2562 = vtanh.pop %v2560
        %v2563 = vadd.f32 %v2561, 1.0
        %v2564 = vadd.f32 %v2562, 1.0
        %v2565 = vmul.f32 %v2563, 0.5
        %v2566 = vmul.f32 %v2564, 0.5
        %v2567 = vmul.f32 %v2535, %v2565
        %v2568 = vmul.f32 %v2548, %v2566
        %v2569 = vpack.c.bf16 %v2567, %v2567
        %v2570 = vpack.c.bf16 %v2568, %v2568
        %v2571 = vld [vmem:[%s31] sm:$0xf]
        %v2572 = vld [vmem:[%s31 + $0x4] sm:$0xf]
        %v2573 = vld [vmem:[%s31 + $0x8] sm:$0xf]
        %v2574 = vld [vmem:[%s31 + $0xc] sm:$0xf]
        %v2575 = vld [vmem:[%s31 + $0x10] sm:$0xf]
        %v2576 = vld [vmem:[%s31 + $0x14] sm:$0xf]
        %v2577 = vld [vmem:[%s31 + $0x18] sm:$0xf]
        %v2578 = vld [vmem:[%s31 + $0x1c] sm:$0xf]
        %v2579 = vld [vmem:[%s31 + $0x20] sm:$0xf]
        %v2580 = vld [vmem:[%s31 + $0x24] sm:$0xf]
        %v2581 = vld [vmem:[%s31 + $0x28] sm:$0xf]
        %v2582 = vld [vmem:[%s31 + $0x2c] sm:$0xf]
        %v2583 = vld [vmem:[%s31 + $0x30] sm:$0xf]
        %v2584 = vld [vmem:[%s31 + $0x34] sm:$0xf]
        %v2585 = vld [vmem:[%s31 + $0x38] sm:$0xf]
        %v2586 = vld [vmem:[%s31 + $0x3c] sm:$0xf]
        %v2587 = vld [vmem:[%s31 + $0x40] sm:$0xf]
        %v2588 = vld [vmem:[%s31 + $0x44] sm:$0xf]
        %v2589 = vld [vmem:[%s31 + $0x48] sm:$0xf]
        %v2590 = vld [vmem:[%s31 + $0x4c] sm:$0xf]
        %v2591 = vld [vmem:[%s31 + $0x50] sm:$0xf]
        %v2592 = vld [vmem:[%s31 + $0x54] sm:$0xf]
        %v2593 = vld [vmem:[%s31 + $0x58] sm:$0xf]
        %v2594 = vld [vmem:[%s31 + $0x5c] sm:$0xf]
        %v2595 = vld [vmem:[%s31 + $0x60] sm:$0xf]
        %v2596 = vld [vmem:[%s31 + $0x64] sm:$0xf]
        %v2597 = vld [vmem:[%s31 + $0x68] sm:$0xf]
        %v2598 = vld [vmem:[%s31 + $0x6c] sm:$0xf]
        %v2599 = vld [vmem:[%s31 + $0x70] sm:$0xf]
        %v2600 = vld [vmem:[%s31 + $0x74] sm:$0xf]
        %v2601 = vld [vmem:[%s31 + $0x78] sm:$0xf]
        %v2602 = vld [vmem:[%s31 + $0x7c] sm:$0xf]
        %v2603 = vld [vmem:[%s33] sm:$0x1]
        %v2605 = vperm.slane %v2603, 0
        %v2639 = vunpack.c.l.b16 %v2571
        %v2640 = vunpack.c.l.b16 %v2572
        %v2641 = vunpack.c.l.b16 %v2573
        %v2642 = vunpack.c.l.b16 %v2574
        %v2643 = vunpack.c.l.b16 %v2575
        %v2644 = vunpack.c.l.b16 %v2576
        %v2645 = vunpack.c.l.b16 %v2577
        %v2646 = vunpack.c.l.b16 %v2578
        %v2647 = vunpack.c.l.b16 %v2579
        %v2648 = vunpack.c.l.b16 %v2580
        %v2649 = vunpack.c.l.b16 %v2581
        %v2650 = vunpack.c.l.b16 %v2582
        %v2651 = vunpack.c.l.b16 %v2583
        %v2652 = vunpack.c.l.b16 %v2584
        %v2653 = vunpack.c.l.b16 %v2585
        %v2654 = vunpack.c.l.b16 %v2586
        %v2655 = vunpack.c.l.b16 %v2587
        %v2656 = vunpack.c.l.b16 %v2588
        %v2657 = vunpack.c.l.b16 %v2589
        %v2658 = vunpack.c.l.b16 %v2590
        %v2659 = vunpack.c.l.b16 %v2591
        %v2660 = vunpack.c.l.b16 %v2592
        %v2661 = vunpack.c.l.b16 %v2593
        %v2662 = vunpack.c.l.b16 %v2594
        %v2663 = vunpack.c.l.b16 %v2595
        %v2664 = vunpack.c.l.b16 %v2596
        %v2665 = vunpack.c.l.b16 %v2597
        %v2666 = vunpack.c.l.b16 %v2598
        %v2667 = vunpack.c.l.b16 %v2599
        %v2668 = vunpack.c.l.b16 %v2600
        %v2669 = vunpack.c.l.b16 %v2601
        %v2670 = vunpack.c.l.b16 %v2602
        %v2671 = vpack.c.b16 %v2640, %v2639
        %v2672 = vpack.c.b16 %v2642, %v2641
        %v2673 = vpack.c.b16 %v2644, %v2643
        %v2674 = vpack.c.b16 %v2646, %v2645
        %v2675 = vpack.c.b16 %v2648, %v2647
        %v2676 = vpack.c.b16 %v2650, %v2649
        %v2677 = vpack.c.b16 %v2652, %v2651
        %v2678 = vpack.c.b16 %v2654, %v2653
        %v2679 = vpack.c.b16 %v2656, %v2655
        %v2680 = vpack.c.b16 %v2658, %v2657
        %v2681 = vpack.c.b16 %v2660, %v2659
        %v2682 = vpack.c.b16 %v2662, %v2661
        %v2683 = vpack.c.b16 %v2664, %v2663
        %v2684 = vpack.c.b16 %v2666, %v2665
        %v2685 = vpack.c.b16 %v2668, %v2667
        %v2686 = vpack.c.b16 %v2670, %v2669
        %2703 = vmatpush.bf16.msra.mxu0 %v2678
        %2704 = vmatpush.bf16.msra.mxu0 %v2677
        %2705 = vmatpush.bf16.msra.mxu0 %v2676
        %2706 = vmatpush.bf16.msra.mxu0 %v2675
        %2707 = vmatpush.bf16.msra.mxu0 %v2674
        %2708 = vmatpush.bf16.msra.mxu0 %v2673
        %2709 = vmatpush.bf16.msra.mxu0 %v2672
        %2710 = vmatpush.bf16.msra.mxu0 %v2671
        %2711 = vmatmul.bf16.gmra.mxu0 %v2569
        %v2712 = vpop.f32.mrf.mxu0
        %v2713 = vadd.f32 %v2605, %v2712
        %v2714 = vpop.f32.mrf.mxu0
        %2715 = vdwg.mxu0
        %2716 = vmatpush.bf16.msra.mxu0 %v2686
        %2717 = vmatpush.bf16.msra.mxu0 %v2685
        %2718 = vmatpush.bf16.msra.mxu0 %v2684
        %2719 = vmatpush.bf16.msra.mxu0 %v2683
        %2720 = vmatpush.bf16.msra.mxu0 %v2682
        %2721 = vmatpush.bf16.msra.mxu0 %v2681
        %2722 = vmatpush.bf16.msra.mxu0 %v2680
        %2723 = vmatpush.bf16.msra.mxu0 %v2679
        %2724 = vmatmul.bf16.gmra.mxu0 %v2570
        %v2725 = vpop.f32.mrf.mxu0
        %v2726 = vadd.f32 %v2713, %v2725
        %v2727 = vpop.f32.mrf.mxu0
        %2728 = vdwg.mxu0
        %v2729 = vadd.f32 %v2434, %v2726
        %v2730 = vld [vmem:[%s35] sm:$0x1]
        %v2731 = vld [vmem:[%s37] sm:$0x1]
        %v2732 = vsel %vm2006, %v2729, 0.0
        %2733 = vadd.xlane.f32.xlu0 %v2732
        %v2734 = vpop.xlane.xlu0 %2733
        %v2735 = vmul.f32 %v2734, %v2016
        %v2736 = vsub.f32 %v2729, %v2735
        %v2737 = vmul.f32 %v2736, %v2736
        %v2738 = vsel %vm2006, %v2737, 0.0
        %2739 = vadd.xlane.f32.xlu0 %v2738
        %v2740 = vpop.xlane.xlu0 %2739
        %v2741 = vmul.f32 %v2740, %v2016
        %v2742 = vadd.f32 %v2741, 1e-06
        %v2743 = vrsqrt.pop %v2742
        %v2744 = vmul.f32 %v2743, %v2742
        %v2745 = vmul.f32 %v2744, %v2743
        %v2746 = vmul.f32 0.5, %v2745
        %v2747 = vsub.f32 1.5, %v2746
        %v2748 = vmul.f32 %v2743, %v2747
        %vm2749 = vweird.f32 %v2742
        %vm2750 = vweird.f32 %v2743
        %vm2751 = vmor %vm2749, %vm2750
        %v2752 = vsel %vm2751, %v2743, %v2748
        %v2753 = vmul.f32 %v2736, %v2752
        %v2755 = vperm.slane %v2730, 0
        %v2757 = vmul.f32 %v2753, %v2755
        %v2759 = vperm.slane %v2731, 0
        %v2761 = vadd.f32 %v2757, %v2759
        %v2762 = vpack.c.bf16 %v2761, %v2761
        %v2763 = vld [vmem:[%s39] sm:$0xf]
        %v2764 = vld [vmem:[%s39 + $0x4] sm:$0xf]
        %v2765 = vld [vmem:[%s39 + $0x8] sm:$0xf]
        %v2766 = vld [vmem:[%s39 + $0xc] sm:$0xf]
        %v2767 = vld [vmem:[%s39 + $0x10] sm:$0xf]
        %v2768 = vld [vmem:[%s39 + $0x14] sm:$0xf]
        %v2769 = vld [vmem:[%s39 + $0x18] sm:$0xf]
        %v2770 = vld [vmem:[%s39 + $0x1c] sm:$0xf]
        %v2771 = vld [vmem:[%s41] sm:$0x1]
        %v2773 = vperm.slane %v2771, 0
        %v2783 = vunpack.c.l.b16 %v2763
        %v2784 = vunpack.c.l.b16 %v2764
        %v2785 = vunpack.c.l.b16 %v2765
        %v2786 = vunpack.c.l.b16 %v2766
        %v2787 = vunpack.c.l.b16 %v2767
        %v2788 = vunpack.c.l.b16 %v2768
        %v2789 = vunpack.c.l.b16 %v2769
        %v2790 = vunpack.c.l.b16 %v2770
        %v2791 = vpack.c.b16 %v2784, %v2783
        %v2792 = vpack.c.b16 %v2786, %v2785
        %v2793 = vpack.c.b16 %v2788, %v2787
        %v2794 = vpack.c.b16 %v2790, %v2789
        %v2800 = vsel %vm2081, %v2762, 0
        %2802 = vmatpush.bf16.msra.mxu0 0
        %2803 = vmatpush.bf16.msra.mxu0 0
        %2804 = vmatpush.bf16.msra.mxu0 0
        %2805 = vmatpush.bf16.msra.mxu0 0
        %2806 = vmatpush.bf16.msra.mxu0 %v2794
        %2807 = vmatpush.bf16.msra.mxu0 %v2793
        %2808 = vmatpush.bf16.msra.mxu0 %v2792
        %2809 = vmatpush.bf16.msra.mxu0 %v2791
        %2810 = vmatmul.bf16.gmra.mxu0 %v2800
        %v2811 = vpop.f32.mrf.mxu0
        %v2812 = vadd.f32 %v2773, %v2811
        %v2813 = vpop.f32.mrf.mxu0
        %2814 = vdwg.mxu0
        %v2815 = vld [vmem:[%s43] sm:$0xf]
        %v2816 = vld [vmem:[%s43 + $0x4] sm:$0xf]
        %v2817 = vld [vmem:[%s43 + $0x8] sm:$0xf]
        %v2818 = vld [vmem:[%s43 + $0xc] sm:$0xf]
        %v2819 = vld [vmem:[%s43 + $0x10] sm:$0xf]
        %v2820 = vld [vmem:[%s43 + $0x14] sm:$0xf]
        %v2821 = vld [vmem:[%s43 + $0x18] sm:$0xf]
        %v2822 = vld [vmem:[%s43 + $0x1c] sm:$0xf]
        %v2823 = vld [vmem:[%s45] sm:$0x1]
        %v2825 = vperm.slane %v2823, 0
        %v2835 = vunpack.c.l.b16 %v2815
        %v2836 = vunpack.c.l.b16 %v2816
        %v2837 = vunpack.c.l.b16 %v2817
        %v2838 = vunpack.c.l.b16 %v2818
        %v2839 = vunpack.c.l.b16 %v2819
        %v2840 = vunpack.c.l.b16 %v2820
        %v2841 = vunpack.c.l.b16 %v2821
        %v2842 = vunpack.c.l.b16 %v2822
        %v2843 = vpack.c.b16 %v2836, %v2835
        %v2844 = vpack.c.b16 %v2838, %v2837
        %v2845 = vpack.c.b16 %v2840, %v2839
        %v2846 = vpack.c.b16 %v2842, %v2841
        %2851 = vmatpush.bf16.msra.mxu0 0
        %2852 = vmatpush.bf16.msra.mxu0 0
        %2853 = vmatpush.bf16.msra.mxu0 0
        %2854 = vmatpush.bf16.msra.mxu0 0
        %2855 = vmatpush.bf16.msra.mxu0 %v2846
        %2856 = vmatpush.bf16.msra.mxu0 %v2845
        %2857 = vmatpush.bf16.msra.mxu0 %v2844
        %2858 = vmatpush.bf16.msra.mxu0 %v2843
        %2859 = vmatmul.bf16.gmra.mxu0 %v2800
        %v2860 = vpop.f32.mrf.mxu0
        %v2861 = vadd.f32 %v2825, %v2860
        %v2862 = vpop.f32.mrf.mxu0
        %2863 = vdwg.mxu0
        %v2864 = vpack.c.bf16 %v2861, %v2861
        %v2865 = vmul.f32 %v2812, %v1975
        %v2866 = vpack.c.bf16 %v2865, %v2865
        %2867 = vmatpush.bf16.xpose.msra.mxu0 0
        %2868 = vmatpush.bf16.xpose.msra.mxu0 0
        %2869 = vmatpush.bf16.xpose.msra.mxu0 0
        %2870 = vmatpush.bf16.xpose.msra.mxu0 0
        %2871 = vmatpush.bf16.xpose.msra.mxu0 0
        %2872 = vmatpush.bf16.xpose.msra.mxu0 0
        %2873 = vmatpush.bf16.xpose.msra.mxu0 0
        %2874 = vmatpush.bf16.xpose.msra.mxu0 %v2864
        %2875 = vmatmul.bf16.gmra.mxu0 %v2866
        %v2876 = vpop.f32.mrf.mxu0
        %v2877 = vadd.f32 0.0, %v2876
        %v2878 = vpop.f32.mrf.mxu0
        %2879 = vdwg.mxu0
        %v2880 = vmul.f32 %v2877, 0.25
        %v2881 = vsel %vm2164, %v2880, -inf
        %2882 = vmax.xlane.f32.xlu0 %v2881
        %v2883 = vpop.xlane.xlu0 %2882
        %v2884 = vsub.f32 %v2880, %v2883
        %v2885 = vmul.f32 %v2884, 1.442695
        %v2886 = vpow.pop %v2885
        %v2887 = vsel %vm2164, %v2886, 0.0
        %2888 = vadd.xlane.f32.xlu0 %v2887
        %v2889 = vpop.xlane.xlu0 %2888
        %v2890 = vrcp.pop %v2889
        %v2891 = vmul.f32 %v2886, %v2890
        %v2892 = vmul.f32 %v2812, %v1991
        %v2893 = vpack.c.bf16 %v2892, %v2892
        %v2894 = vpack.c.bf16 %v2891, %v2891
        %v2895 = vmul.f32 %v2812, %v1979
        %v2896 = vpack.c.bf16 %v2895, %v2895
        %2897 = vmatpush.bf16.xpose.msra.mxu0 0
        %2898 = vmatpush.bf16.xpose.msra.mxu0 0
        %2899 = vmatpush.bf16.xpose.msra.mxu0 0
        %2900 = vmatpush.bf16.xpose.msra.mxu0 0
        %2901 = vmatpush.bf16.xpose.msra.mxu0 0
        %2902 = vmatpush.bf16.xpose.msra.mxu0 0
        %2903 = vmatpush.bf16.xpose.msra.mxu0 0
        %2904 = vmatpush.bf16.xpose.msra.mxu0 %v2864
        %2905 = vmatmul.bf16.gmra.mxu0 %v2896
        %v2906 = vpop.f32.mrf.mxu0
        %v2907 = vadd.f32 0.0, %v2906
        %v2908 = vpop.f32.mrf.mxu0
        %2909 = vdwg.mxu0
        %v2910 = vmul.f32 %v2907, 0.25
        %v2911 = vsel %vm2164, %v2910, -inf
        %2912 = vmax.xlane.f32.xlu0 %v2911
        %v2913 = vpop.xlane.xlu0 %2912
        %v2914 = vsub.f32 %v2910, %v2913
        %v2915 = vmul.f32 %v2914, 1.442695
        %v2916 = vpow.pop %v2915
        %v2917 = vsel %vm2164, %v2916, 0.0
        %2918 = vadd.xlane.f32.xlu0 %v2917
        %v2919 = vpop.xlane.xlu0 %2918
        %v2920 = vrcp.pop %v2919
        %v2921 = vmul.f32 %v2916, %v2920
        %v2922 = vmul.f32 %v2812, %v1995
        %v2923 = vpack.c.bf16 %v2922, %v2922
        %v2924 = vpack.c.bf16 %v2921, %v2921
        %v2926 = vsel %vm2209, %v2924, 0
        %v2929 = vand.u32 %v2923, %v2216
        %2931 = vmatpush.bf16.msra.mxu0 0
        %2932 = vmatpush.bf16.msra.mxu0 0
        %2933 = vmatpush.bf16.msra.mxu0 0
        %2934 = vmatpush.bf16.msra.mxu0 0
        %2935 = vmatpush.bf16.msra.mxu0 0
        %2936 = vmatpush.bf16.msra.mxu0 0
        %2937 = vmatpush.bf16.msra.mxu0 0
        %2938 = vmatpush.bf16.msra.mxu0 %v2929
        %2939 = vmatmul.bf16.gmra.mxu0 %v2926
        %v2940 = vpop.f32.mrf.mxu0
        %v2941 = vadd.f32 0.0, %v2940
        %v2942 = vpop.f32.mrf.mxu0
        %2943 = vdwg.mxu0
        %v2945 = vsel %vm2209, %v2894, 0
        %v2948 = vand.u32 %v2893, %v2216
        %2950 = vmatpush.bf16.msra.mxu0 0
        %2951 = vmatpush.bf16.msra.mxu0 0
        %2952 = vmatpush.bf16.msra.mxu0 0
        %2953 = vmatpush.bf16.msra.mxu0 0
        %2954 = vmatpush.bf16.msra.mxu0 0
        %2955 = vmatpush.bf16.msra.mxu0 0
        %2956 = vmatpush.bf16.msra.mxu0 0
        %2957 = vmatpush.bf16.msra.mxu0 %v2948
        %2958 = vmatmul.bf16.gmra.mxu0 %v2945
        %v2959 = vpop.f32.mrf.mxu0
        %v2960 = vadd.f32 %v2941, %v2959
        %v2961 = vpop.f32.mrf.mxu0
        %2962 = vdwg.mxu0
        %v2963 = vmul.f32 %v2812, %v1983
        %v2964 = vpack.c.bf16 %v2963, %v2963
        %2965 = vmatpush.bf16.xpose.msra.mxu0 0
        %2966 = vmatpush.bf16.xpose.msra.mxu0 0
        %2967 = vmatpush.bf16.xpose.msra.mxu0 0
        %2968 = vmatpush.bf16.xpose.msra.mxu0 0
        %2969 = vmatpush.bf16.xpose.msra.mxu0 0
        %2970 = vmatpush.bf16.xpose.msra.mxu0 0
        %2971 = vmatpush.bf16.xpose.msra.mxu0 0
        %2972 = vmatpush.bf16.xpose.msra.mxu0 %v2864
        %2973 = vmatmul.bf16.gmra.mxu0 %v2964
        %v2974 = vpop.f32.mrf.mxu0
        %v2975 = vadd.f32 0.0, %v2974
        %v2976 = vpop.f32.mrf.mxu0
        %2977 = vdwg.mxu0
        %v2978 = vmul.f32 %v2975, 0.25
        %v2979 = vsel %vm2164, %v2978, -inf
        %2980 = vmax.xlane.f32.xlu0 %v2979
        %v2981 = vpop.xlane.xlu0 %2980
        %v2982 = vsub.f32 %v2978, %v2981
        %v2983 = vmul.f32 %v2982, 1.442695
        %v2984 = vpow.pop %v2983
        %v2985 = vsel %vm2164, %v2984, 0.0
        %2986 = vadd.xlane.f32.xlu0 %v2985
        %v2987 = vpop.xlane.xlu0 %2986
        %v2988 = vrcp.pop %v2987
        %v2989 = vmul.f32 %v2984, %v2988
        %v2990 = vmul.f32 %v2812, %v1999
        %v2991 = vpack.c.bf16 %v2990, %v2990
        %v2992 = vpack.c.bf16 %v2989, %v2989
        %v2994 = vsel %vm2209, %v2992, 0
        %v2997 = vand.u32 %v2991, %v2216
        %2999 = vmatpush.bf16.msra.mxu0 0
        %3000 = vmatpush.bf16.msra.mxu0 0
        %3001 = vmatpush.bf16.msra.mxu0 0
        %3002 = vmatpush.bf16.msra.mxu0 0
        %3003 = vmatpush.bf16.msra.mxu0 0
        %3004 = vmatpush.bf16.msra.mxu0 0
        %3005 = vmatpush.bf16.msra.mxu0 0
        %3006 = vmatpush.bf16.msra.mxu0 %v2997
        %3007 = vmatmul.bf16.gmra.mxu0 %v2994
        %v3008 = vpop.f32.mrf.mxu0
        %v3009 = vadd.f32 0.0, %v3008
        %v3010 = vpop.f32.mrf.mxu0
        %3011 = vdwg.mxu0
        %v3012 = vadd.f32 %v2960, %v3009
        %v3013 = vmul.f32 %v2812, %v1987
        %v3014 = vpack.c.bf16 %v3013, %v3013
        %3015 = vmatpush.bf16.xpose.msra.mxu0 0
        %3016 = vmatpush.bf16.xpose.msra.mxu0 0
        %3017 = vmatpush.bf16.xpose.msra.mxu0 0
        %3018 = vmatpush.bf16.xpose.msra.mxu0 0
        %3019 = vmatpush.bf16.xpose.msra.mxu0 0
        %3020 = vmatpush.bf16.xpose.msra.mxu0 0
        %3021 = vmatpush.bf16.xpose.msra.mxu0 0
        %3022 = vmatpush.bf16.xpose.msra.mxu0 %v2864
        %3023 = vmatmul.bf16.gmra.mxu0 %v3014
        %v3024 = vpop.f32.mrf.mxu0
        %v3025 = vadd.f32 0.0, %v3024
        %v3026 = vpop.f32.mrf.mxu0
        %3027 = vdwg.mxu0
        %v3028 = vmul.f32 %v3025, 0.25
        %v3029 = vsel %vm2164, %v3028, -inf
        %3030 = vmax.xlane.f32.xlu0 %v3029
        %v3031 = vpop.xlane.xlu0 %3030
        %v3032 = vsub.f32 %v3028, %v3031
        %v3033 = vmul.f32 %v3032, 1.442695
        %v3034 = vpow.pop %v3033
        %v3035 = vsel %vm2164, %v3034, 0.0
        %3036 = vadd.xlane.f32.xlu0 %v3035
        %v3037 = vpop.xlane.xlu0 %3036
        %v3038 = vrcp.pop %v3037
        %v3039 = vmul.f32 %v3034, %v3038
        %v3040 = vmul.f32 %v2812, %v2003
        %v3041 = vpack.c.bf16 %v3040, %v3040
        %v3042 = vpack.c.bf16 %v3039, %v3039
        %v3044 = vsel %vm2209, %v3042, 0
        %v3047 = vand.u32 %v3041, %v2216
        %3049 = vmatpush.bf16.msra.mxu0 0
        %3050 = vmatpush.bf16.msra.mxu0 0
        %3051 = vmatpush.bf16.msra.mxu0 0
        %3052 = vmatpush.bf16.msra.mxu0 0
        %3053 = vmatpush.bf16.msra.mxu0 0
        %3054 = vmatpush.bf16.msra.mxu0 0
        %3055 = vmatpush.bf16.msra.mxu0 0
        %3056 = vmatpush.bf16.msra.mxu0 %v3047
        %3057 = vmatmul.bf16.gmra.mxu0 %v3044
        %v3058 = vpop.f32.mrf.mxu0
        %v3059 = vadd.f32 0.0, %v3058
        %v3060 = vpop.f32.mrf.mxu0
        %3061 = vdwg.mxu0
        %v3062 = vadd.f32 %v3012, %v3059
        %v3063 = vpack.c.bf16 %v3062, %v3062
        %v3064 = vld [vmem:[%s47] sm:$0xf]
        %v3065 = vld [vmem:[%s47 + $0x4] sm:$0xf]
        %v3066 = vld [vmem:[%s47 + $0x8] sm:$0xf]
        %v3067 = vld [vmem:[%s47 + $0xc] sm:$0xf]
        %v3068 = vld [vmem:[%s47 + $0x10] sm:$0xf]
        %v3069 = vld [vmem:[%s47 + $0x14] sm:$0xf]
        %v3070 = vld [vmem:[%s47 + $0x18] sm:$0xf]
        %v3071 = vld [vmem:[%s47 + $0x1c] sm:$0xf]
        %v3072 = vld [vmem:[%s47 + $0x20] sm:$0xf]
        %v3073 = vld [vmem:[%s47 + $0x24] sm:$0xf]
        %v3074 = vld [vmem:[%s47 + $0x28] sm:$0xf]
        %v3075 = vld [vmem:[%s47 + $0x2c] sm:$0xf]
        %v3076 = vld [vmem:[%s47 + $0x30] sm:$0xf]
        %v3077 = vld [vmem:[%s47 + $0x34] sm:$0xf]
        %v3078 = vld [vmem:[%s47 + $0x38] sm:$0xf]
        %v3079 = vld [vmem:[%s47 + $0x3c] sm:$0xf]
        %v3080 = vld [vmem:[%s49] sm:$0x1]
        %v3082 = vperm.slane %v3080, 0
        %v3100 = vunpack.c.l.b16 %v3064
        %v3101 = vunpack.c.l.b16 %v3065
        %v3102 = vunpack.c.l.b16 %v3066
        %v3103 = vunpack.c.l.b16 %v3067
        %v3104 = vunpack.c.l.b16 %v3068
        %v3105 = vunpack.c.l.b16 %v3069
        %v3106 = vunpack.c.l.b16 %v3070
        %v3107 = vunpack.c.l.b16 %v3071
        %v3108 = vunpack.c.l.b16 %v3072
        %v3109 = vunpack.c.l.b16 %v3073
        %v3110 = vunpack.c.l.b16 %v3074
        %v3111 = vunpack.c.l.b16 %v3075
        %v3112 = vunpack.c.l.b16 %v3076
        %v3113 = vunpack.c.l.b16 %v3077
        %v3114 = vunpack.c.l.b16 %v3078
        %v3115 = vunpack.c.l.b16 %v3079
        %v3116 = vpack.c.b16 %v3101, %v3100
        %v3117 = vpack.c.b16 %v3103, %v3102
        %v3118 = vpack.c.b16 %v3105, %v3104
        %v3119 = vpack.c.b16 %v3107, %v3106
        %v3120 = vpack.c.b16 %v3109, %v3108
        %v3121 = vpack.c.b16 %v3111, %v3110
        %v3122 = vpack.c.b16 %v3113, %v3112
        %v3123 = vpack.c.b16 %v3115, %v3114
        %3132 = vmatpush.bf16.msra.mxu0 %v3123
        %3133 = vmatpush.bf16.msra.mxu0 %v3122
        %3134 = vmatpush.bf16.msra.mxu0 %v3121
        %3135 = vmatpush.bf16.msra.mxu0 %v3120
        %3136 = vmatpush.bf16.msra.mxu0 %v3119
        %3137 = vmatpush.bf16.msra.mxu0 %v3118
        %3138 = vmatpush.bf16.msra.mxu0 %v3117
        %3139 = vmatpush.bf16.msra.mxu0 %v3116
        %3140 = vmatmul.bf16.gmra.mxu0 %v3063
        %v3141 = vpop.f32.mrf.mxu0
        %v3142 = vadd.f32 %v3082, %v3141
        %v3143 = vpop.f32.mrf.mxu0
        %3144 = vdwg.mxu0
        %v3145 = vadd.f32 %v2729, %v3142
        %v3146 = vld [vmem:[%s51] sm:$0x1]
        %v3147 = vld [vmem:[#allocation2] sm:$0x1]
        %v3148 = vsel %vm2006, %v3145, 0.0
        %3149 = vadd.xlane.f32.xlu0 %v3148
        %v3150 = vpop.xlane.xlu0 %3149
        %v3151 = vmul.f32 %v3150, %v2016
        %v3152 = vsub.f32 %v3145, %v3151
        %v3153 = vmul.f32 %v3152, %v3152
        %v3154 = vsel %vm2006, %v3153, 0.0
        %3155 = vadd.xlane.f32.xlu0 %v3154
        %v3156 = vpop.xlane.xlu0 %3155
        %v3157 = vmul.f32 %v3156, %v2016
        %v3158 = vadd.f32 %v3157, 1e-06
        %v3159 = vrsqrt.pop %v3158
        %v3160 = vmul.f32 %v3159, %v3158
        %v3161 = vmul.f32 %v3160, %v3159
        %v3162 = vmul.f32 0.5, %v3161
        %v3163 = vsub.f32 1.5, %v3162
        %v3164 = vmul.f32 %v3159, %v3163
        %vm3165 = vweird.f32 %v3158
        %vm3166 = vweird.f32 %v3159
        %vm3167 = vmor %vm3165, %vm3166
        %v3168 = vsel %vm3167, %v3159, %v3164
        %v3169 = vmul.f32 %v3152, %v3168
        %v3171 = vperm.slane %v3146, 0
        %v3173 = vmul.f32 %v3169, %v3171
        %v3175 = vperm.slane %v3147, 0
        %v3177 = vadd.f32 %v3173, %v3175
        %v3178 = vpack.c.bf16 %v3177, %v3177
        %v3179 = vld [vmem:[%s55] sm:$0xff]
        %v3180 = vld [vmem:[%s55 + $0x8] sm:$0xff]
        %v3181 = vld [vmem:[%s55 + $0x10] sm:$0xff]
        %v3182 = vld [vmem:[%s55 + $0x18] sm:$0xff]
        %v3183 = vld [vmem:[%s55 + $0x20] sm:$0xff]
        %v3184 = vld [vmem:[%s55 + $0x28] sm:$0xff]
        %v3185 = vld [vmem:[%s55 + $0x30] sm:$0xff]
        %v3186 = vld [vmem:[%s55 + $0x38] sm:$0xff]
        %v3187 = vld [vmem:[%s57] sm:$0x3]
        %v3189 = vperm.slane %v3187, 0
        %v3190 = vperm.slane %v3187, 1
        %v3201 = vunpack.c.l.b16 %v3179
        %v3202 = vunpack.c.h.b16 %v3179
        %v3203 = vunpack.c.l.b16 %v3180
        %v3204 = vunpack.c.h.b16 %v3180
        %v3205 = vunpack.c.l.b16 %v3181
        %v3206 = vunpack.c.h.b16 %v3181
        %v3207 = vunpack.c.l.b16 %v3182
        %v3208 = vunpack.c.h.b16 %v3182
        %v3209 = vunpack.c.l.b16 %v3183
        %v3210 = vunpack.c.h.b16 %v3183
        %v3211 = vunpack.c.l.b16 %v3184
        %v3212 = vunpack.c.h.b16 %v3184
        %v3213 = vunpack.c.l.b16 %v3185
        %v3214 = vunpack.c.h.b16 %v3185
        %v3215 = vunpack.c.l.b16 %v3186
        %v3216 = vunpack.c.h.b16 %v3186
        %v3217 = vpack.c.b16 %v3203, %v3201
        %v3218 = vpack.c.b16 %v3204, %v3202
        %v3219 = vpack.c.b16 %v3207, %v3205
        %v3220 = vpack.c.b16 %v3208, %v3206
        %v3221 = vpack.c.b16 %v3211, %v3209
        %v3222 = vpack.c.b16 %v3212, %v3210
        %v3223 = vpack.c.b16 %v3215, %v3213
        %v3224 = vpack.c.b16 %v3216, %v3214
        %v3234 = vsel %vm2081, %v3178, 0
        %3236 = vmatpush.bf16.msra.mxu0 0
        %3237 = vmatpush.bf16.msra.mxu0 0
        %3238 = vmatpush.bf16.msra.mxu0 0
        %3239 = vmatpush.bf16.msra.mxu0 0
        %3240 = vmatpush.bf16.msra.mxu0 %v3223
        %3241 = vmatpush.bf16.msra.mxu0 %v3221
        %3242 = vmatpush.bf16.msra.mxu0 %v3219
        %3243 = vmatpush.bf16.msra.mxu0 %v3217
        %3244 = vmatmul.bf16.gmra.mxu0 %v3234
        %v3245 = vpop.f32.mrf.mxu0
        %v3246 = vadd.f32 %v3189, %v3245
        %v3247 = vpop.f32.mrf.mxu0
        %3248 = vdwg.mxu0
        %3249 = vmatpush.bf16.msra.mxu0 0
        %3250 = vmatpush.bf16.msra.mxu0 0
        %3251 = vmatpush.bf16.msra.mxu0 0
        %3252 = vmatpush.bf16.msra.mxu0 0
        %3253 = vmatpush.bf16.msra.mxu0 %v3224
        %3254 = vmatpush.bf16.msra.mxu0 %v3222
        %3255 = vmatpush.bf16.msra.mxu0 %v3220
        %3256 = vmatpush.bf16.msra.mxu0 %v3218
        %3257 = vmatmul.bf16.gmra.mxu0 %v3234
        %v3258 = vpop.f32.mrf.mxu0
        %v3259 = vadd.f32 %v3190, %v3258
        %v3260 = vpop.f32.mrf.mxu0
        %3261 = vdwg.mxu0
        %v3262 = vmul.f32 %v3246, %v3246
        %v3263 = vmul.f32 %v3259, %v3259
        %v3264 = vmul.f32 %v3246, %v3262
        %v3265 = vmul.f32 %v3259, %v3263
        %v3266 = vmul.f32 %v3264, 0.044715
        %v3267 = vmul.f32 %v3265, 0.044715
        %v3268 = vadd.f32 %v3246, %v3266
        %v3269 = vadd.f32 %v3259, %v3267
        %v3270 = vmul.f32 %v3268, 0.7978846
        %v3271 = vmul.f32 %v3269, 0.7978846
        %v3272 = vtanh.pop %v3270
        %v3273 = vtanh.pop %v3271
        %v3274 = vadd.f32 %v3272, 1.0
        %v3275 = vadd.f32 %v3273, 1.0
        %v3276 = vmul.f32 %v3274, 0.5
        %v3277 = vmul.f32 %v3275, 0.5
        %v3278 = vmul.f32 %v3246, %v3276
        %v3279 = vmul.f32 %v3259, %v3277
        %v3280 = vpack.c.bf16 %v3278, %v3278
        %v3281 = vpack.c.bf16 %v3279, %v3279
        %v3282 = vld [vmem:[%s59] sm:$0xf]
        %v3283 = vld [vmem:[%s59 + $0x4] sm:$0xf]
        %v3284 = vld [vmem:[%s59 + $0x8] sm:$0xf]
        %v3285 = vld [vmem:[%s59 + $0xc] sm:$0xf]
        %v3286 = vld [vmem:[%s59 + $0x10] sm:$0xf]
        %v3287 = vld [vmem:[%s59 + $0x14] sm:$0xf]
        %v3288 = vld [vmem:[%s59 + $0x18] sm:$0xf]
        %v3289 = vld [vmem:[%s59 + $0x1c] sm:$0xf]
        %v3290 = vld [vmem:[%s59 + $0x20] sm:$0xf]
        %v3291 = vld [vmem:[%s59 + $0x24] sm:$0xf]
        %v3292 = vld [vmem:[%s59 + $0x28] sm:$0xf]
        %v3293 = vld [vmem:[%s59 + $0x2c] sm:$0xf]
        %v3294 = vld [vmem:[%s59 + $0x30] sm:$0xf]
        %v3295 = vld [vmem:[%s59 + $0x34] sm:$0xf]
        %v3296 = vld [vmem:[%s59 + $0x38] sm:$0xf]
        %v3297 = vld [vmem:[%s59 + $0x3c] sm:$0xf]
        %v3298 = vld [vmem:[%s59 + $0x40] sm:$0xf]
        %v3299 = vld [vmem:[%s59 + $0x44] sm:$0xf]
        %v3300 = vld [vmem:[%s59 + $0x48] sm:$0xf]
        %v3301 = vld [vmem:[%s59 + $0x4c] sm:$0xf]
        %v3302 = vld [vmem:[%s59 + $0x50] sm:$0xf]
        %v3303 = vld [vmem:[%s59 + $0x54] sm:$0xf]
        %v3304 = vld [vmem:[%s59 + $0x58] sm:$0xf]
        %v3305 = vld [vmem:[%s59 + $0x5c] sm:$0xf]
        %v3306 = vld [vmem:[%s59 + $0x60] sm:$0xf]
        %v3307 = vld [vmem:[%s59 + $0x64] sm:$0xf]
        %v3308 = vld [vmem:[%s59 + $0x68] sm:$0xf]
        %v3309 = vld [vmem:[%s59 + $0x6c] sm:$0xf]
        %v3310 = vld [vmem:[%s59 + $0x70] sm:$0xf]
        %v3311 = vld [vmem:[%s59 + $0x74] sm:$0xf]
        %v3312 = vld [vmem:[%s59 + $0x78] sm:$0xf]
        %v3313 = vld [vmem:[%s59 + $0x7c] sm:$0xf]
        %v3314 = vld [vmem:[#allocation5] sm:$0x1]
        %v3316 = vperm.slane %v3314, 0
        %v3350 = vunpack.c.l.b16 %v3282
        %v3351 = vunpack.c.l.b16 %v3283
        %v3352 = vunpack.c.l.b16 %v3284
        %v3353 = vunpack.c.l.b16 %v3285
        %v3354 = vunpack.c.l.b16 %v3286
        %v3355 = vunpack.c.l.b16 %v3287
        %v3356 = vunpack.c.l.b16 %v3288
        %v3357 = vunpack.c.l.b16 %v3289
        %v3358 = vunpack.c.l.b16 %v3290
        %v3359 = vunpack.c.l.b16 %v3291
        %v3360 = vunpack.c.l.b16 %v3292
        %v3361 = vunpack.c.l.b16 %v3293
        %v3362 = vunpack.c.l.b16 %v3294
        %v3363 = vunpack.c.l.b16 %v3295
        %v3364 = vunpack.c.l.b16 %v3296
        %v3365 = vunpack.c.l.b16 %v3297
        %v3366 = vunpack.c.l.b16 %v3298
        %v3367 = vunpack.c.l.b16 %v3299
        %v3368 = vunpack.c.l.b16 %v3300
        %v3369 = vunpack.c.l.b16 %v3301
        %v3370 = vunpack.c.l.b16 %v3302
        %v3371 = vunpack.c.l.b16 %v3303
        %v3372 = vunpack.c.l.b16 %v3304
        %v3373 = vunpack.c.l.b16 %v3305
        %v3374 = vunpack.c.l.b16 %v3306
        %v3375 = vunpack.c.l.b16 %v3307
        %v3376 = vunpack.c.l.b16 %v3308
        %v3377 = vunpack.c.l.b16 %v3309
        %v3378 = vunpack.c.l.b16 %v3310
        %v3379 = vunpack.c.l.b16 %v3311
        %v3380 = vunpack.c.l.b16 %v3312
        %v3381 = vunpack.c.l.b16 %v3313
        %v3382 = vpack.c.b16 %v3351, %v3350
        %v3383 = vpack.c.b16 %v3353, %v3352
        %v3384 = vpack.c.b16 %v3355, %v3354
        %v3385 = vpack.c.b16 %v3357, %v3356
        %v3386 = vpack.c.b16 %v3359, %v3358
        %v3387 = vpack.c.b16 %v3361, %v3360
        %v3388 = vpack.c.b16 %v3363, %v3362
        %v3389 = vpack.c.b16 %v3365, %v3364
        %v3390 = vpack.c.b16 %v3367, %v3366
        %v3391 = vpack.c.b16 %v3369, %v3368
        %v3392 = vpack.c.b16 %v3371, %v3370
        %v3393 = vpack.c.b16 %v3373, %v3372
        %v3394 = vpack.c.b16 %v3375, %v3374
        %v3395 = vpack.c.b16 %v3377, %v3376
        %v3396 = vpack.c.b16 %v3379, %v3378
        %v3397 = vpack.c.b16 %v3381, %v3380
        %3414 = vmatpush.bf16.msra.mxu0 %v3389
        %3415 = vmatpush.bf16.msra.mxu0 %v3388
        %3416 = vmatpush.bf16.msra.mxu0 %v3387
        %3417 = vmatpush.bf16.msra.mxu0 %v3386
        %3418 = vmatpush.bf16.msra.mxu0 %v3385
        %3419 = vmatpush.bf16.msra.mxu0 %v3384
        %3420 = vmatpush.bf16.msra.mxu0 %v3383
        %3421 = vmatpush.bf16.msra.mxu0 %v3382
        %3422 = vmatmul.bf16.gmra.mxu0 %v3280
        %v3423 = vpop.f32.mrf.mxu0
        %v3424 = vadd.f32 %v3316, %v3423
        %v3425 = vpop.f32.mrf.mxu0
        %3426 = vdwg.mxu0
        %3427 = vmatpush.bf16.msra.mxu0 %v3397
        %3428 = vmatpush.bf16.msra.mxu0 %v3396
        %3429 = vmatpush.bf16.msra.mxu0 %v3395
        %3430 = vmatpush.bf16.msra.mxu0 %v3394
        %3431 = vmatpush.bf16.msra.mxu0 %v3393
        %3432 = vmatpush.bf16.msra.mxu0 %v3392
        %3433 = vmatpush.bf16.msra.mxu0 %v3391
        %3434 = vmatpush.bf16.msra.mxu0 %v3390
        %3435 = vmatmul.bf16.gmra.mxu0 %v3281
        %v3436 = vpop.f32.mrf.mxu0
        %v3437 = vadd.f32 %v3424, %v3436
        %v3438 = vpop.f32.mrf.mxu0
        %3439 = vdwg.mxu0
        %v3440 = vadd.f32 %v3145, %v3437
        %v3441 = vld [vmem:[#allocation7] sm:$0x1]
        %v3442 = vld [vmem:[#allocation8] sm:$0x1]
        %vm3443 = vcmask 516096
        %v3444 = vsel %vm3443, %v3440, 0.0
        %3445 = vadd.xlane.f32.xlu0 %v3444
        %v3446 = vpop.xlane.xlu0 %3445
        %v3447 = vmul.f32 %v3446, %v2016
        %v3448 = vsub.f32 %v3440, %v3447
        %v3449 = vmul.f32 %v3448, %v3448
        %v3450 = vsel %vm3443, %v3449, 0.0
        %3451 = vadd.xlane.f32.xlu0 %v3450
        %v3452 = vpop.xlane.xlu0 %3451
        %v3453 = vmul.f32 %v3452, %v2016
        %v3454 = vadd.f32 %v3453, 1e-06
        %v3455 = vrsqrt.pop %v3454
        %v3456 = vmul.f32 %v3455, %v3454
        %v3457 = vmul.f32 %v3456, %v3455
        %v3458 = vmul.f32 0.5, %v3457
        %v3459 = vsub.f32 1.5, %v3458
        %v3460 = vmul.f32 %v3455, %v3459
        %vm3461 = vweird.f32 %v3454
        %vm3462 = vweird.f32 %v3455
        %vm3463 = vmor %vm3461, %vm3462
        %v3464 = vsel %vm3463, %v3455, %v3460
        %v3465 = vmul.f32 %v3448, %v3464
        %v3466 = vmul.f32 %v3465, %v3441
        %v3467 = vadd.f32 %v3466, %v3442
        %v3468 = vpack.c.bf16 %v3467, %v3467
        %v3469 = vld [vmem:[%s67] sm:$0xff]
        %v3470 = vld [vmem:[%s67 + $0x8] sm:$0xff]
        %v3471 = vld [vmem:[%s67 + $0x10] sm:$0xff]
        %v3472 = vld [vmem:[%s67 + $0x18] sm:$0xff]
        %v3473 = vld [vmem:[%s67 + $0x20] sm:$0xff]
        %v3474 = vld [vmem:[%s67 + $0x28] sm:$0xff]
        %v3475 = vld [vmem:[%s67 + $0x30] sm:$0xff]
        %v3476 = vld [vmem:[%s67 + $0x38] sm:$0xff]
        %v3477 = vld [vmem:[%s67 + $0x40] sm:$0xff]
        %v3478 = vld [vmem:[%s67 + $0x48] sm:$0xff]
        %v3479 = vld [vmem:[%s67 + $0x50] sm:$0xff]
        %v3480 = vld [vmem:[%s67 + $0x58] sm:$0xff]
        %v3481 = vld [vmem:[%s67 + $0x60] sm:$0xff]
        %v3482 = vld [vmem:[%s67 + $0x68] sm:$0xff]
        %v3483 = vld [vmem:[%s67 + $0x70] sm:$0xff]
        %v3484 = vld [vmem:[%s67 + $0x78] sm:$0xff]
        %v3485 = vld [vmem:[%s67 + $0x80] sm:$0xff]
        %v3486 = vld [vmem:[%s67 + $0x88] sm:$0xff]
        %v3487 = vld [vmem:[%s67 + $0x90] sm:$0xff]
        %v3488 = vld [vmem:[%s67 + $0x98] sm:$0xff]
        %v3489 = vld [vmem:[%s67 + $0xa0] sm:$0xff]
        %v3490 = vld [vmem:[%s67 + $0xa8] sm:$0xff]
        %v3491 = vld [vmem:[%s67 + $0xb0] sm:$0xff]
        %v3492 = vld [vmem:[%s67 + $0xb8] sm:$0xff]
        %v3493 = vld [vmem:[%s67 + $0xc0] sm:$0xff]
        %v3494 = vld [vmem:[%s67 + $0xc8] sm:$0xff]
        %v3495 = vld [vmem:[%s67 + $0xd0] sm:$0xff]
        %v3496 = vld [vmem:[%s67 + $0xd8] sm:$0xff]
        %v3497 = vld [vmem:[%s67 + $0xe0] sm:$0xff]
        %v3498 = vld [vmem:[%s67 + $0xe8] sm:$0xff]
        %v3499 = vld [vmem:[%s67 + $0xf0] sm:$0xff]
        %v3500 = vld [vmem:[%s67 + $0xf8] sm:$0xff]
        %v3501 = vld [vmem:[%s69] sm:$0xff]
        %v3534 = vunpack.c.l.b16 %v3469
        %v3535 = vunpack.c.h.b16 %v3469
        %v3536 = vunpack.c.l.b16 %v3470
        %v3537 = vunpack.c.h.b16 %v3470
        %v3538 = vunpack.c.l.b16 %v3471
        %v3539 = vunpack.c.h.b16 %v3471
        %v3540 = vunpack.c.l.b16 %v3472
        %v3541 = vunpack.c.h.b16 %v3472
        %v3542 = vunpack.c.l.b16 %v3473
        %v3543 = vunpack.c.h.b16 %v3473
        %v3544 = vunpack.c.l.b16 %v3474
        %v3545 = vunpack.c.h.b16 %v3474
        %v3546 = vunpack.c.l.b16 %v3475
        %v3547 = vunpack.c.h.b16 %v3475
        %v3548 = vunpack.c.l.b16 %v3476
        %v3549 = vunpack.c.h.b16 %v3476
        %v3550 = vunpack.c.l.b16 %v3477
        %v3551 = vunpack.c.h.b16 %v3477
        %v3552 = vunpack.c.l.b16 %v3478
        %v3553 = vunpack.c.h.b16 %v3478
        %v3554 = vunpack.c.l.b16 %v3479
        %v3555 = vunpack.c.h.b16 %v3479
        %v3556 = vunpack.c.l.b16 %v3480
        %v3557 = vunpack.c.h.b16 %v3480
        %v3558 = vunpack.c.l.b16 %v3481
        %v3559 = vunpack.c.h.b16 %v3481
        %v3560 = vunpack.c.l.b16 %v3482
        %v3561 = vunpack.c.h.b16 %v3482
        %v3562 = vunpack.c.l.b16 %v3483
        %v3563 = vunpack.c.h.b16 %v3483
        %v3564 = vunpack.c.l.b16 %v3484
        %v3565 = vunpack.c.h.b16 %v3484
        %v3566 = vunpack.c.l.b16 %v3485
        %v3567 = vunpack.c.h.b16 %v3485
        %v3568 = vunpack.c.l.b16 %v3486
        %v3569 = vunpack.c.h.b16 %v3486
        %v3570 = vunpack.c.l.b16 %v3487
        %v3571 = vunpack.c.h.b16 %v3487
        %v3572 = vunpack.c.l.b16 %v3488
        %v3573 = vunpack.c.h.b16 %v3488
        %v3574 = vunpack.c.l.b16 %v3489
        %v3575 = vunpack.c.h.b16 %v3489
        %v3576 = vunpack.c.l.b16 %v3490
        %v3577 = vunpack.c.h.b16 %v3490
        %v3578 = vunpack.c.l.b16 %v3491
        %v3579 = vunpack.c.h.b16 %v3491
        %v3580 = vunpack.c.l.b16 %v3492
        %v3581 = vunpack.c.h.b16 %v3492
        %v3582 = vunpack.c.l.b16 %v3493
        %v3583 = vunpack.c.h.b16 %v3493
        %v3584 = vunpack.c.l.b16 %v3494
        %v3585 = vunpack.c.h.b16 %v3494
        %v3586 = vunpack.c.l.b16 %v3495
        %v3587 = vunpack.c.h.b16 %v3495
        %v3588 = vunpack.c.l.b16 %v3496
        %v3589 = vunpack.c.h.b16 %v3496
        %v3590 = vunpack.c.l.b16 %v3497
        %v3591 = vunpack.c.h.b16 %v3497
        %v3592 = vunpack.c.l.b16 %v3498
        %v3593 = vunpack.c.h.b16 %v3498
        %v3594 = vunpack.c.l.b16 %v3499
        %v3595 = vunpack.c.h.b16 %v3499
        %v3596 = vunpack.c.l.b16 %v3500
        %v3597 = vunpack.c.h.b16 %v3500
        %v3598 = vpack.c.b16 %v3542, %v3534
        %v3599 = vpack.c.b16 %v3543, %v3535
        %v3600 = vpack.c.b16 %v3544, %v3536
        %v3601 = vpack.c.b16 %v3545, %v3537
        %v3602 = vpack.c.b16 %v3546, %v3538
        %v3603 = vpack.c.b16 %v3547, %v3539
        %v3604 = vpack.c.b16 %v3548, %v3540
        %v3605 = vpack.c.b16 %v3549, %v3541
        %v3606 = vpack.c.b16 %v3558, %v3550
        %v3607 = vpack.c.b16 %v3559, %v3551
        %v3608 = vpack.c.b16 %v3560, %v3552
        %v3609 = vpack.c.b16 %v3561, %v3553
        %v3610 = vpack.c.b16 %v3562, %v3554
        %v3611 = vpack.c.b16 %v3563, %v3555
        %v3612 = vpack.c.b16 %v3564, %v3556
        %v3613 = vpack.c.b16 %v3565, %v3557
        %v3614 = vpack.c.b16 %v3574, %v3566
        %v3615 = vpack.c.b16 %v3575, %v3567
        %v3616 = vpack.c.b16 %v3576, %v3568
        %v3617 = vpack.c.b16 %v3577, %v3569
        %v3618 = vpack.c.b16 %v3578, %v3570
        %v3619 = vpack.c.b16 %v3579, %v3571
        %v3620 = vpack.c.b16 %v3580, %v3572
        %v3621 = vpack.c.b16 %v3581, %v3573
        %v3622 = vpack.c.b16 %v3590, %v3582
        %v3623 = vpack.c.b16 %v3591, %v3583
        %v3624 = vpack.c.b16 %v3592, %v3584
        %v3625 = vpack.c.b16 %v3593, %v3585
        %v3626 = vpack.c.b16 %v3594, %v3586
        %v3627 = vpack.c.b16 %v3595, %v3587
        %v3628 = vpack.c.b16 %v3596, %v3588
        %v3629 = vpack.c.b16 %v3597, %v3589
        %v3663 = vperm.slane %v3501, 0
        %v3664 = vperm.slane %v3501, 1
        %v3665 = vperm.slane %v3501, 2
        %v3666 = vperm.slane %v3501, 3
        %v3667 = vperm.slane %v3501, 4
        %v3668 = vperm.slane %v3501, 5
        %v3669 = vperm.slane %v3501, 6
        %v3670 = vperm.slane %v3501, 7
        %v3680 = vsel %vm2081, %v3468, 0
        %3682 = vmatpush.bf16.msra.mxu0 0
        %3683 = vmatpush.bf16.msra.mxu0 0
        %3684 = vmatpush.bf16.msra.mxu0 0
        %3685 = vmatpush.bf16.msra.mxu0 0
        %3686 = vmatpush.bf16.msra.mxu0 %v3622
        %3687 = vmatpush.bf16.msra.mxu0 %v3614
        %3688 = vmatpush.bf16.msra.mxu0 %v3606
        %3689 = vmatpush.bf16.msra.mxu0 %v3598
        %3690 = vmatmul.bf16.gmra.mxu0 %v3680
        %v3691 = vpop.f32.mrf.mxu0
        %v3692 = vadd.f32 %v3663, %v3691
        %v3693 = vpop.f32.mrf.mxu0
        %3694 = vdwg.mxu0
        %3695 = vmatpush.bf16.msra.mxu0 0
        %3696 = vmatpush.bf16.msra.mxu0 0
        %3697 = vmatpush.bf16.msra.mxu0 0
        %3698 = vmatpush.bf16.msra.mxu0 0
        %3699 = vmatpush.bf16.msra.mxu0 %v3623
        %3700 = vmatpush.bf16.msra.mxu0 %v3615
        %3701 = vmatpush.bf16.msra.mxu0 %v3607
        %3702 = vmatpush.bf16.msra.mxu0 %v3599
        %3703 = vmatmul.bf16.gmra.mxu0 %v3680
        %v3704 = vpop.f32.mrf.mxu0
        %v3705 = vadd.f32 %v3664, %v3704
        %v3706 = vpop.f32.mrf.mxu0
        %3707 = vdwg.mxu0
        %3708 = vmatpush.bf16.msra.mxu0 0
        %3709 = vmatpush.bf16.msra.mxu0 0
        %3710 = vmatpush.bf16.msra.mxu0 0
        %3711 = vmatpush.bf16.msra.mxu0 0
        %3712 = vmatpush.bf16.msra.mxu0 %v3624
        %3713 = vmatpush.bf16.msra.mxu0 %v3616
        %3714 = vmatpush.bf16.msra.mxu0 %v3608
        %3715 = vmatpush.bf16.msra.mxu0 %v3600
        %3716 = vmatmul.bf16.gmra.mxu0 %v3680
        %v3717 = vpop.f32.mrf.mxu0
        %v3718 = vadd.f32 %v3665, %v3717
        %v3719 = vpop.f32.mrf.mxu0
        %3720 = vdwg.mxu0
        %3721 = vmatpush.bf16.msra.mxu0 0
        %3722 = vmatpush.bf16.msra.mxu0 0
        %3723 = vmatpush.bf16.msra.mxu0 0
        %3724 = vmatpush.bf16.msra.mxu0 0
        %3725 = vmatpush.bf16.msra.mxu0 %v3625
        %3726 = vmatpush.bf16.msra.mxu0 %v3617
        %3727 = vmatpush.bf16.msra.mxu0 %v3609
        %3728 = vmatpush.bf16.msra.mxu0 %v3601
        %3729 = vmatmul.bf16.gmra.mxu0 %v3680
        %v3730 = vpop.f32.mrf.mxu0
        %v3731 = vadd.f32 %v3666, %v3730
        %v3732 = vpop.f32.mrf.mxu0
        %3733 = vdwg.mxu0
        %3734 = vmatpush.bf16.msra.mxu0 0
        %3735 = vmatpush.bf16.msra.mxu0 0
        %3736 = vmatpush.bf16.msra.mxu0 0
        %3737 = vmatpush.bf16.msra.mxu0 0
        %3738 = vmatpush.bf16.msra.mxu0 %v3626
        %3739 = vmatpush.bf16.msra.mxu0 %v3618
        %3740 = vmatpush.bf16.msra.mxu0 %v3610
        %3741 = vmatpush.bf16.msra.mxu0 %v3602
        %3742 = vmatmul.bf16.gmra.mxu0 %v3680
        %v3743 = vpop.f32.mrf.mxu0
        %v3744 = vadd.f32 %v3667, %v3743
        %v3745 = vpop.f32.mrf.mxu0
        %3746 = vdwg.mxu0
        %3747 = vmatpush.bf16.msra.mxu0 0
        %3748 = vmatpush.bf16.msra.mxu0 0
        %3749 = vmatpush.bf16.msra.mxu0 0
        %3750 = vmatpush.bf16.msra.mxu0 0
        %3751 = vmatpush.bf16.msra.mxu0 %v3627
        %3752 = vmatpush.bf16.msra.mxu0 %v3619
        %3753 = vmatpush.bf16.msra.mxu0 %v3611
        %3754 = vmatpush.bf16.msra.mxu0 %v3603
        %3755 = vmatmul.bf16.gmra.mxu0 %v3680
        %v3756 = vpop.f32.mrf.mxu0
        %v3757 = vadd.f32 %v3668, %v3756
        %v3758 = vpop.f32.mrf.mxu0
        %3759 = vdwg.mxu0
        %3760 = vmatpush.bf16.msra.mxu0 0
        %3761 = vmatpush.bf16.msra.mxu0 0
        %3762 = vmatpush.bf16.msra.mxu0 0
        %3763 = vmatpush.bf16.msra.mxu0 0
        %3764 = vmatpush.bf16.msra.mxu0 %v3628
        %3765 = vmatpush.bf16.msra.mxu0 %v3620
        %3766 = vmatpush.bf16.msra.mxu0 %v3612
        %3767 = vmatpush.bf16.msra.mxu0 %v3604
        %3768 = vmatmul.bf16.gmra.mxu0 %v3680
        %v3769 = vpop.f32.mrf.mxu0
        %v3770 = vadd.f32 %v3669, %v3769
        %v3771 = vpop.f32.mrf.mxu0
        %3772 = vdwg.mxu0
        %3773 = vmatpush.bf16.msra.mxu0 0
        %3774 = vmatpush.bf16.msra.mxu0 0
        %3775 = vmatpush.bf16.msra.mxu0 0
        %3776 = vmatpush.bf16.msra.mxu0 0
        %3777 = vmatpush.bf16.msra.mxu0 %v3629
        %3778 = vmatpush.bf16.msra.mxu0 %v3621
        %3779 = vmatpush.bf16.msra.mxu0 %v3613
        %3780 = vmatpush.bf16.msra.mxu0 %v3605
        %3781 = vmatmul.bf16.gmra.mxu0 %v3680
        %v3782 = vpop.f32.mrf.mxu0
        %v3783 = vadd.f32 %v3670, %v3782
        %v3784 = vpop.f32.mrf.mxu0
        %3785 = vdwg.mxu0
        %v3786 = vld [vmem:[%s71] sm:$0xff]
        %v3788 = vperm.slane %v3786, 0
        %v3789 = vperm.slane %v3786, 1
        %v3790 = vperm.slane %v3786, 2
        %v3791 = vperm.slane %v3786, 3
        %v3792 = vperm.slane %v3786, 4
        %v3793 = vperm.slane %v3786, 5
        %v3794 = vperm.slane %v3786, 6
        %v3795 = vperm.slane %v3786, 7
        %v3804 = vmul.f32 %v3692, %v3788
        %v3805 = vmul.f32 %v3705, %v3789
        %v3806 = vmul.f32 %v3718, %v3790
        %v3807 = vmul.f32 %v3731, %v3791
        %v3808 = vmul.f32 %v3744, %v3792
        %v3809 = vmul.f32 %v3757, %v3793
        %v3810 = vmul.f32 %v3770, %v3794
        %v3811 = vmul.f32 %v3783, %v3795
        %v3812 = vld [vmem:[%s73] sm:$0xff]
        %v3814 = vperm.slane %v3812, 0
        %v3815 = vperm.slane %v3812, 1
        %v3816 = vperm.slane %v3812, 2
        %v3817 = vperm.slane %v3812, 3
        %v3818 = vperm.slane %v3812, 4
        %v3819 = vperm.slane %v3812, 5
        %v3820 = vperm.slane %v3812, 6
        %v3821 = vperm.slane %v3812, 7
        %v3830 = vadd.f32 %v3804, %v3814
        %v3831 = vadd.f32 %v3805, %v3815
        %v3832 = vadd.f32 %v3806, %v3816
        %v3833 = vadd.f32 %v3807, %v3817
        %v3834 = vadd.f32 %v3808, %v3818
        %v3835 = vadd.f32 %v3809, %v3819
        %v3836 = vadd.f32 %v3810, %v3820
        %v3837 = vadd.f32 %v3811, %v3821
        %v3838 = vmax.f32 %v3830, 0.0
        %v3839 = vmax.f32 %v3831, 0.0
        %v3840 = vmax.f32 %v3832, 0.0
        %v3841 = vmax.f32 %v3833, 0.0
        %v3842 = vmax.f32 %v3834, 0.0
        %v3843 = vmax.f32 %v3835, 0.0
        %v3844 = vmax.f32 %v3836, 0.0
        %v3845 = vmax.f32 %v3837, 0.0
        %v3846 = vpack.c.bf16 %v3838, %v3838
        %v3847 = vpack.c.bf16 %v3839, %v3839
        %v3848 = vpack.c.bf16 %v3840, %v3840
        %v3849 = vpack.c.bf16 %v3841, %v3841
        %v3850 = vpack.c.bf16 %v3842, %v3842
        %v3851 = vpack.c.bf16 %v3843, %v3843
        %v3852 = vpack.c.bf16 %v3844, %v3844
        %v3853 = vpack.c.bf16 %v3845, %v3845
        %v3854 = vld [vmem:[#allocation10] sm:$0xff]
        %v3855 = vld [vmem:[#allocation10 + $0x8] sm:$0xff]
        %v3856 = vld [vmem:[#allocation10 + $0x10] sm:$0xff]
        %v3857 = vld [vmem:[#allocation10 + $0x18] sm:$0xff]
        %v3858 = vld [vmem:[#allocation10 + $0x20] sm:$0xff]
        %v3859 = vld [vmem:[#allocation10 + $0x28] sm:$0xff]
        %v3860 = vld [vmem:[#allocation10 + $0x30] sm:$0xff]
        %v3861 = vld [vmem:[#allocation10 + $0x38] sm:$0xff]
        %v3862 = vld [vmem:[#allocation10 + $0x40] sm:$0xff]
        %v3863 = vld [vmem:[#allocation10 + $0x48] sm:$0xff]
        %v3864 = vld [vmem:[#allocation10 + $0x50] sm:$0xff]
        %v3865 = vld [vmem:[#allocation10 + $0x58] sm:$0xff]
        %v3866 = vld [vmem:[#allocation10 + $0x60] sm:$0xff]
        %v3867 = vld [vmem:[#allocation10 + $0x68] sm:$0xff]
        %v3868 = vld [vmem:[#allocation10 + $0x70] sm:$0xff]
        %v3869 = vld [vmem:[#allocation10 + $0x78] sm:$0xff]
        %v3870 = vld [vmem:[#allocation10 + $0x80] sm:$0xff]
        %v3871 = vld [vmem:[#allocation10 + $0x88] sm:$0xff]
        %v3872 = vld [vmem:[#allocation10 + $0x90] sm:$0xff]
        %v3873 = vld [vmem:[#allocation10 + $0x98] sm:$0xff]
        %v3874 = vld [vmem:[#allocation10 + $0xa0] sm:$0xff]
        %v3875 = vld [vmem:[#allocation10 + $0xa8] sm:$0xff]
        %v3876 = vld [vmem:[#allocation10 + $0xb0] sm:$0xff]
        %v3877 = vld [vmem:[#allocation10 + $0xb8] sm:$0xff]
        %v3878 = vld [vmem:[#allocation10 + $0xc0] sm:$0xff]
        %v3879 = vld [vmem:[#allocation10 + $0xc8] sm:$0xff]
        %v3880 = vld [vmem:[#allocation10 + $0xd0] sm:$0xff]
        %v3881 = vld [vmem:[#allocation10 + $0xd8] sm:$0xff]
        %v3882 = vld [vmem:[#allocation10 + $0xe0] sm:$0xff]
        %v3883 = vld [vmem:[#allocation10 + $0xe8] sm:$0xff]
        %v3884 = vld [vmem:[#allocation10 + $0xf0] sm:$0xff]
        %v3885 = vld [vmem:[#allocation10 + $0xf8] sm:$0xff]
        %v3886 = vld [vmem:[#allocation10 + $0x100] sm:$0xff]
        %v3887 = vld [vmem:[#allocation10 + $0x108] sm:$0xff]
        %v3888 = vld [vmem:[#allocation10 + $0x110] sm:$0xff]
        %v3889 = vld [vmem:[#allocation10 + $0x118] sm:$0xff]
        %v3890 = vld [vmem:[#allocation10 + $0x120] sm:$0xff]
        %v3891 = vld [vmem:[#allocation10 + $0x128] sm:$0xff]
        %v3892 = vld [vmem:[#allocation10 + $0x130] sm:$0xff]
        %v3893 = vld [vmem:[#allocation10 + $0x138] sm:$0xff]
        %v3894 = vld [vmem:[#allocation10 + $0x140] sm:$0xff]
        %v3895 = vld [vmem:[#allocation10 + $0x148] sm:$0xff]
        %v3896 = vld [vmem:[#allocation10 + $0x150] sm:$0xff]
        %v3897 = vld [vmem:[#allocation10 + $0x158] sm:$0xff]
        %v3898 = vld [vmem:[#allocation10 + $0x160] sm:$0xff]
        %v3899 = vld [vmem:[#allocation10 + $0x168] sm:$0xff]
        %v3900 = vld [vmem:[#allocation10 + $0x170] sm:$0xff]
        %v3901 = vld [vmem:[#allocation10 + $0x178] sm:$0xff]
        %v3902 = vld [vmem:[#allocation10 + $0x180] sm:$0xff]
        %v3903 = vld [vmem:[#allocation10 + $0x188] sm:$0xff]
        %v3904 = vld [vmem:[#allocation10 + $0x190] sm:$0xff]
        %v3905 = vld [vmem:[#allocation10 + $0x198] sm:$0xff]
        %v3906 = vld [vmem:[#allocation10 + $0x1a0] sm:$0xff]
        %v3907 = vld [vmem:[#allocation10 + $0x1a8] sm:$0xff]
        %v3908 = vld [vmem:[#allocation10 + $0x1b0] sm:$0xff]
        %v3909 = vld [vmem:[#allocation10 + $0x1b8] sm:$0xff]
        %v3910 = vld [vmem:[#allocation10 + $0x1c0] sm:$0xff]
        %v3911 = vld [vmem:[#allocation10 + $0x1c8] sm:$0xff]
        %v3912 = vld [vmem:[#allocation10 + $0x1d0] sm:$0xff]
        %v3913 = vld [vmem:[#allocation10 + $0x1d8] sm:$0xff]
        %v3914 = vld [vmem:[#allocation10 + $0x1e0] sm:$0xff]
        %v3915 = vld [vmem:[#allocation10 + $0x1e8] sm:$0xff]
        %v3916 = vld [vmem:[#allocation10 + $0x1f0] sm:$0xff]
        %v3917 = vld [vmem:[#allocation10 + $0x1f8] sm:$0xff]
        %v3918 = vld [vmem:[#allocation10 + $0x200] sm:$0xff]
        %v3919 = vld [vmem:[#allocation10 + $0x208] sm:$0xff]
        %v3920 = vld [vmem:[#allocation10 + $0x210] sm:$0xff]
        %v3921 = vld [vmem:[#allocation10 + $0x218] sm:$0xff]
        %v3922 = vld [vmem:[#allocation10 + $0x220] sm:$0xff]
        %v3923 = vld [vmem:[#allocation10 + $0x228] sm:$0xff]
        %v3924 = vld [vmem:[#allocation10 + $0x230] sm:$0xff]
        %v3925 = vld [vmem:[#allocation10 + $0x238] sm:$0xff]
        %v3926 = vld [vmem:[#allocation10 + $0x240] sm:$0xff]
        %v3927 = vld [vmem:[#allocation10 + $0x248] sm:$0xff]
        %v3928 = vld [vmem:[#allocation10 + $0x250] sm:$0xff]
        %v3929 = vld [vmem:[#allocation10 + $0x258] sm:$0xff]
        %v3930 = vld [vmem:[#allocation10 + $0x260] sm:$0xff]
        %v3931 = vld [vmem:[#allocation10 + $0x268] sm:$0xff]
        %v3932 = vld [vmem:[#allocation10 + $0x270] sm:$0xff]
        %v3933 = vld [vmem:[#allocation10 + $0x278] sm:$0xff]
        %v3934 = vld [vmem:[#allocation10 + $0x280] sm:$0xff]
        %v3935 = vld [vmem:[#allocation10 + $0x288] sm:$0xff]
        %v3936 = vld [vmem:[#allocation10 + $0x290] sm:$0xff]
        %v3937 = vld [vmem:[#allocation10 + $0x298] sm:$0xff]
        %v3938 = vld [vmem:[#allocation10 + $0x2a0] sm:$0xff]
        %v3939 = vld [vmem:[#allocation10 + $0x2a8] sm:$0xff]
        %v3940 = vld [vmem:[#allocation10 + $0x2b0] sm:$0xff]
        %v3941 = vld [vmem:[#allocation10 + $0x2b8] sm:$0xff]
        %v3942 = vld [vmem:[#allocation10 + $0x2c0] sm:$0xff]
        %v3943 = vld [vmem:[#allocation10 + $0x2c8] sm:$0xff]
        %v3944 = vld [vmem:[#allocation10 + $0x2d0] sm:$0xff]
        %v3945 = vld [vmem:[#allocation10 + $0x2d8] sm:$0xff]
        %v3946 = vld [vmem:[#allocation10 + $0x2e0] sm:$0xff]
        %v3947 = vld [vmem:[#allocation10 + $0x2e8] sm:$0xff]
        %v3948 = vld [vmem:[#allocation10 + $0x2f0] sm:$0xff]
        %v3949 = vld [vmem:[#allocation10 + $0x2f8] sm:$0xff]
        %v3950 = vld [vmem:[#allocation10 + $0x300] sm:$0xff]
        %v3951 = vld [vmem:[#allocation10 + $0x308] sm:$0xff]
        %v3952 = vld [vmem:[#allocation10 + $0x310] sm:$0xff]
        %v3953 = vld [vmem:[#allocation10 + $0x318] sm:$0xff]
        %v3954 = vld [vmem:[#allocation10 + $0x320] sm:$0xff]
        %v3955 = vld [vmem:[#allocation10 + $0x328] sm:$0xff]
        %v3956 = vld [vmem:[#allocation10 + $0x330] sm:$0xff]
        %v3957 = vld [vmem:[#allocation10 + $0x338] sm:$0xff]
        %v3958 = vld [vmem:[#allocation10 + $0x340] sm:$0xff]
        %v3959 = vld [vmem:[#allocation10 + $0x348] sm:$0xff]
        %v3960 = vld [vmem:[#allocation10 + $0x350] sm:$0xff]
        %v3961 = vld [vmem:[#allocation10 + $0x358] sm:$0xff]
        %v3962 = vld [vmem:[#allocation10 + $0x360] sm:$0xff]
        %v3963 = vld [vmem:[#allocation10 + $0x368] sm:$0xff]
        %v3964 = vld [vmem:[#allocation10 + $0x370] sm:$0xff]
        %v3965 = vld [vmem:[#allocation10 + $0x378] sm:$0xff]
        %v3966 = vld [vmem:[#allocation10 + $0x380] sm:$0xff]
        %v3967 = vld [vmem:[#allocation10 + $0x388] sm:$0xff]
        %v3968 = vld [vmem:[#allocation10 + $0x390] sm:$0xff]
        %v3969 = vld [vmem:[#allocation10 + $0x398] sm:$0xff]
        %v3970 = vld [vmem:[#allocation10 + $0x3a0] sm:$0xff]
        %v3971 = vld [vmem:[#allocation10 + $0x3a8] sm:$0xff]
        %v3972 = vld [vmem:[#allocation10 + $0x3b0] sm:$0xff]
        %v3973 = vld [vmem:[#allocation10 + $0x3b8] sm:$0xff]
        %v3974 = vld [vmem:[#allocation10 + $0x3c0] sm:$0xff]
        %v3975 = vld [vmem:[#allocation10 + $0x3c8] sm:$0xff]
        %v3976 = vld [vmem:[#allocation10 + $0x3d0] sm:$0xff]
        %v3977 = vld [vmem:[#allocation10 + $0x3d8] sm:$0xff]
        %v3978 = vld [vmem:[#allocation10 + $0x3e0] sm:$0xff]
        %v3979 = vld [vmem:[#allocation10 + $0x3e8] sm:$0xff]
        %v3980 = vld [vmem:[#allocation10 + $0x3f0] sm:$0xff]
        %v3981 = vld [vmem:[#allocation10 + $0x3f8] sm:$0xff]
        %v3982 = vld [vmem:[#allocation10 + $0x400] sm:$0xff]
        %v3983 = vld [vmem:[#allocation10 + $0x408] sm:$0xff]
        %v3984 = vld [vmem:[#allocation10 + $0x410] sm:$0xff]
        %v3985 = vld [vmem:[#allocation10 + $0x418] sm:$0xff]
        %v3986 = vld [vmem:[#allocation10 + $0x420] sm:$0xff]
        %v3987 = vld [vmem:[#allocation10 + $0x428] sm:$0xff]
        %v3988 = vld [vmem:[#allocation10 + $0x430] sm:$0xff]
        %v3989 = vld [vmem:[#allocation10 + $0x438] sm:$0xff]
        %v3990 = vld [vmem:[#allocation10 + $0x440] sm:$0xff]
        %v3991 = vld [vmem:[#allocation10 + $0x448] sm:$0xff]
        %v3992 = vld [vmem:[#allocation10 + $0x450] sm:$0xff]
        %v3993 = vld [vmem:[#allocation10 + $0x458] sm:$0xff]
        %v3994 = vld [vmem:[#allocation10 + $0x460] sm:$0xff]
        %v3995 = vld [vmem:[#allocation10 + $0x468] sm:$0xff]
        %v3996 = vld [vmem:[#allocation10 + $0x470] sm:$0xff]
        %v3997 = vld [vmem:[#allocation10 + $0x478] sm:$0xff]
        %v3998 = vld [vmem:[#allocation10 + $0x480] sm:$0xff]
        %v3999 = vld [vmem:[#allocation10 + $0x488] sm:$0xff]
        %v4000 = vld [vmem:[#allocation10 + $0x490] sm:$0xff]
        %v4001 = vld [vmem:[#allocation10 + $0x498] sm:$0xff]
        %v4002 = vld [vmem:[#allocation10 + $0x4a0] sm:$0xff]
        %v4003 = vld [vmem:[#allocation10 + $0x4a8] sm:$0xff]
        %v4004 = vld [vmem:[#allocation10 + $0x4b0] sm:$0xff]
        %v4005 = vld [vmem:[#allocation10 + $0x4b8] sm:$0xff]
        %v4006 = vld [vmem:[#allocation10 + $0x4c0] sm:$0xff]
        %v4007 = vld [vmem:[#allocation10 + $0x4c8] sm:$0xff]
        %v4008 = vld [vmem:[#allocation10 + $0x4d0] sm:$0xff]
        %v4009 = vld [vmem:[#allocation10 + $0x4d8] sm:$0xff]
        %v4010 = vld [vmem:[#allocation10 + $0x4e0] sm:$0xff]
        %v4011 = vld [vmem:[#allocation10 + $0x4e8] sm:$0xff]
        %v4012 = vld [vmem:[#allocation10 + $0x4f0] sm:$0xff]
        %v4013 = vld [vmem:[#allocation10 + $0x4f8] sm:$0xff]
        %v4014 = vld [vmem:[#allocation10 + $0x500] sm:$0xff]
        %v4015 = vld [vmem:[#allocation10 + $0x508] sm:$0xff]
        %v4016 = vld [vmem:[#allocation10 + $0x510] sm:$0xff]
        %v4017 = vld [vmem:[#allocation10 + $0x518] sm:$0xff]
        %v4018 = vld [vmem:[#allocation10 + $0x520] sm:$0xff]
        %v4019 = vld [vmem:[#allocation10 + $0x528] sm:$0xff]
        %v4020 = vld [vmem:[#allocation10 + $0x530] sm:$0xff]
        %v4021 = vld [vmem:[#allocation10 + $0x538] sm:$0xff]
        %v4022 = vld [vmem:[#allocation10 + $0x540] sm:$0xff]
        %v4023 = vld [vmem:[#allocation10 + $0x548] sm:$0xff]
        %v4024 = vld [vmem:[#allocation10 + $0x550] sm:$0xff]
        %v4025 = vld [vmem:[#allocation10 + $0x558] sm:$0xff]
        %v4026 = vld [vmem:[#allocation10 + $0x560] sm:$0xff]
        %v4027 = vld [vmem:[#allocation10 + $0x568] sm:$0xff]
        %v4028 = vld [vmem:[#allocation10 + $0x570] sm:$0xff]
        %v4029 = vld [vmem:[#allocation10 + $0x578] sm:$0xff]
        %v4030 = vld [vmem:[#allocation10 + $0x580] sm:$0xff]
        %v4031 = vld [vmem:[#allocation10 + $0x588] sm:$0xff]
        %v4032 = vld [vmem:[#allocation10 + $0x590] sm:$0xff]
        %v4033 = vld [vmem:[#allocation10 + $0x598] sm:$0xff]
        %v4034 = vld [vmem:[#allocation10 + $0x5a0] sm:$0xff]
        %v4035 = vld [vmem:[#allocation10 + $0x5a8] sm:$0xff]
        %v4036 = vld [vmem:[#allocation10 + $0x5b0] sm:$0xff]
        %v4037 = vld [vmem:[#allocation10 + $0x5b8] sm:$0xff]
        %v4038 = vld [vmem:[#allocation10 + $0x5c0] sm:$0xff]
        %v4039 = vld [vmem:[#allocation10 + $0x5c8] sm:$0xff]
        %v4040 = vld [vmem:[#allocation10 + $0x5d0] sm:$0xff]
        %v4041 = vld [vmem:[#allocation10 + $0x5d8] sm:$0xff]
        %v4042 = vld [vmem:[#allocation10 + $0x5e0] sm:$0xff]
        %v4043 = vld [vmem:[#allocation10 + $0x5e8] sm:$0xff]
        %v4044 = vld [vmem:[#allocation10 + $0x5f0] sm:$0xff]
        %v4045 = vld [vmem:[#allocation10 + $0x5f8] sm:$0xff]
        %v4046 = vld [vmem:[#allocation10 + $0x600] sm:$0xff]
        %v4047 = vld [vmem:[#allocation10 + $0x608] sm:$0xff]
        %v4048 = vld [vmem:[#allocation10 + $0x610] sm:$0xff]
        %v4049 = vld [vmem:[#allocation10 + $0x618] sm:$0xff]
        %v4050 = vld [vmem:[#allocation10 + $0x620] sm:$0xff]
        %v4051 = vld [vmem:[#allocation10 + $0x628] sm:$0xff]
        %v4052 = vld [vmem:[#allocation10 + $0x630] sm:$0xff]
        %v4053 = vld [vmem:[#allocation10 + $0x638] sm:$0xff]
        %v4054 = vld [vmem:[#allocation10 + $0x640] sm:$0xff]
        %v4055 = vld [vmem:[#allocation10 + $0x648] sm:$0xff]
        %v4056 = vld [vmem:[#allocation10 + $0x650] sm:$0xff]
        %v4057 = vld [vmem:[#allocation10 + $0x658] sm:$0xff]
        %v4058 = vld [vmem:[#allocation10 + $0x660] sm:$0xff]
        %v4059 = vld [vmem:[#allocation10 + $0x668] sm:$0xff]
        %v4060 = vld [vmem:[#allocation10 + $0x670] sm:$0xff]
        %v4061 = vld [vmem:[#allocation10 + $0x678] sm:$0xff]
        %v4062 = vld [vmem:[#allocation10 + $0x680] sm:$0xff]
        %v4063 = vld [vmem:[#allocation10 + $0x688] sm:$0xff]
        %v4064 = vld [vmem:[#allocation10 + $0x690] sm:$0xff]
        %v4065 = vld [vmem:[#allocation10 + $0x698] sm:$0xff]
        %v4066 = vld [vmem:[#allocation10 + $0x6a0] sm:$0xff]
        %v4067 = vld [vmem:[#allocation10 + $0x6a8] sm:$0xff]
        %v4068 = vld [vmem:[#allocation10 + $0x6b0] sm:$0xff]
        %v4069 = vld [vmem:[#allocation10 + $0x6b8] sm:$0xff]
        %v4070 = vld [vmem:[#allocation10 + $0x6c0] sm:$0xff]
        %v4071 = vld [vmem:[#allocation10 + $0x6c8] sm:$0xff]
        %v4072 = vld [vmem:[#allocation10 + $0x6d0] sm:$0xff]
        %v4073 = vld [vmem:[#allocation10 + $0x6d8] sm:$0xff]
        %v4074 = vld [vmem:[#allocation10 + $0x6e0] sm:$0xff]
        %v4075 = vld [vmem:[#allocation10 + $0x6e8] sm:$0xff]
        %v4076 = vld [vmem:[#allocation10 + $0x6f0] sm:$0xff]
        %v4077 = vld [vmem:[#allocation10 + $0x6f8] sm:$0xff]
        %v4078 = vld [vmem:[#allocation10 + $0x700] sm:$0xff]
        %v4079 = vld [vmem:[#allocation10 + $0x708] sm:$0xff]
        %v4080 = vld [vmem:[#allocation10 + $0x710] sm:$0xff]
        %v4081 = vld [vmem:[#allocation10 + $0x718] sm:$0xff]
        %v4082 = vld [vmem:[#allocation10 + $0x720] sm:$0xff]
        %v4083 = vld [vmem:[#allocation10 + $0x728] sm:$0xff]
        %v4084 = vld [vmem:[#allocation10 + $0x730] sm:$0xff]
        %v4085 = vld [vmem:[#allocation10 + $0x738] sm:$0xff]
        %v4086 = vld [vmem:[#allocation10 + $0x740] sm:$0xff]
        %v4087 = vld [vmem:[#allocation10 + $0x748] sm:$0xff]
        %v4088 = vld [vmem:[#allocation10 + $0x750] sm:$0xff]
        %v4089 = vld [vmem:[#allocation10 + $0x758] sm:$0xff]
        %v4090 = vld [vmem:[#allocation10 + $0x760] sm:$0xff]
        %v4091 = vld [vmem:[#allocation10 + $0x768] sm:$0xff]
        %v4092 = vld [vmem:[#allocation10 + $0x770] sm:$0xff]
        %v4093 = vld [vmem:[#allocation10 + $0x778] sm:$0xff]
        %v4094 = vld [vmem:[#allocation10 + $0x780] sm:$0xff]
        %v4095 = vld [vmem:[#allocation10 + $0x788] sm:$0xff]
        %v4096 = vld [vmem:[#allocation10 + $0x790] sm:$0xff]
        %v4097 = vld [vmem:[#allocation10 + $0x798] sm:$0xff]
        %v4098 = vld [vmem:[#allocation10 + $0x7a0] sm:$0xff]
        %v4099 = vld [vmem:[#allocation10 + $0x7a8] sm:$0xff]
        %v4100 = vld [vmem:[#allocation10 + $0x7b0] sm:$0xff]
        %v4101 = vld [vmem:[#allocation10 + $0x7b8] sm:$0xff]
        %v4102 = vld [vmem:[#allocation10 + $0x7c0] sm:$0xff]
        %v4103 = vld [vmem:[#allocation10 + $0x7c8] sm:$0xff]
        %v4104 = vld [vmem:[#allocation10 + $0x7d0] sm:$0xff]
        %v4105 = vld [vmem:[#allocation10 + $0x7d8] sm:$0xff]
        %v4106 = vld [vmem:[#allocation10 + $0x7e0] sm:$0xff]
        %v4107 = vld [vmem:[#allocation10 + $0x7e8] sm:$0xff]
        %v4108 = vld [vmem:[#allocation10 + $0x7f0] sm:$0xff]
        %v4109 = vld [vmem:[#allocation10 + $0x7f8] sm:$0xff]
        %v4110 = vld [vmem:[%s77] sm:$0xf]
        %v4367 = vunpack.c.l.b16 %v3854
        %v4368 = vunpack.c.h.b16 %v3854
        %v4369 = vunpack.c.l.b16 %v3855
        %v4370 = vunpack.c.h.b16 %v3855
        %v4371 = vunpack.c.l.b16 %v3856
        %v4372 = vunpack.c.h.b16 %v3856
        %v4373 = vunpack.c.l.b16 %v3857
        %v4374 = vunpack.c.h.b16 %v3857
        %v4375 = vunpack.c.l.b16 %v3858
        %v4376 = vunpack.c.h.b16 %v3858
        %v4377 = vunpack.c.l.b16 %v3859
        %v4378 = vunpack.c.h.b16 %v3859
        %v4379 = vunpack.c.l.b16 %v3860
        %v4380 = vunpack.c.h.b16 %v3860
        %v4381 = vunpack.c.l.b16 %v3861
        %v4382 = vunpack.c.h.b16 %v3861
        %v4383 = vunpack.c.l.b16 %v3862
        %v4384 = vunpack.c.h.b16 %v3862
        %v4385 = vunpack.c.l.b16 %v3863
        %v4386 = vunpack.c.h.b16 %v3863
        %v4387 = vunpack.c.l.b16 %v3864
        %v4388 = vunpack.c.h.b16 %v3864
        %v4389 = vunpack.c.l.b16 %v3865
        %v4390 = vunpack.c.h.b16 %v3865
        %v4391 = vunpack.c.l.b16 %v3866
        %v4392 = vunpack.c.h.b16 %v3866
        %v4393 = vunpack.c.l.b16 %v3867
        %v4394 = vunpack.c.h.b16 %v3867
        %v4395 = vunpack.c.l.b16 %v3868
        %v4396 = vunpack.c.h.b16 %v3868
        %v4397 = vunpack.c.l.b16 %v3869
        %v4398 = vunpack.c.h.b16 %v3869
        %v4399 = vunpack.c.l.b16 %v3870
        %v4400 = vunpack.c.h.b16 %v3870
        %v4401 = vunpack.c.l.b16 %v3871
        %v4402 = vunpack.c.h.b16 %v3871
        %v4403 = vunpack.c.l.b16 %v3872
        %v4404 = vunpack.c.h.b16 %v3872
        %v4405 = vunpack.c.l.b16 %v3873
        %v4406 = vunpack.c.h.b16 %v3873
        %v4407 = vunpack.c.l.b16 %v3874
        %v4408 = vunpack.c.h.b16 %v3874
        %v4409 = vunpack.c.l.b16 %v3875
        %v4410 = vunpack.c.h.b16 %v3875
        %v4411 = vunpack.c.l.b16 %v3876
        %v4412 = vunpack.c.h.b16 %v3876
        %v4413 = vunpack.c.l.b16 %v3877
        %v4414 = vunpack.c.h.b16 %v3877
        %v4415 = vunpack.c.l.b16 %v3878
        %v4416 = vunpack.c.h.b16 %v3878
        %v4417 = vunpack.c.l.b16 %v3879
        %v4418 = vunpack.c.h.b16 %v3879
        %v4419 = vunpack.c.l.b16 %v3880
        %v4420 = vunpack.c.h.b16 %v3880
        %v4421 = vunpack.c.l.b16 %v3881
        %v4422 = vunpack.c.h.b16 %v3881
        %v4423 = vunpack.c.l.b16 %v3882
        %v4424 = vunpack.c.h.b16 %v3882
        %v4425 = vunpack.c.l.b16 %v3883
        %v4426 = vunpack.c.h.b16 %v3883
        %v4427 = vunpack.c.l.b16 %v3884
        %v4428 = vunpack.c.h.b16 %v3884
        %v4429 = vunpack.c.l.b16 %v3885
        %v4430 = vunpack.c.h.b16 %v3885
        %v4431 = vunpack.c.l.b16 %v3886
        %v4432 = vunpack.c.h.b16 %v3886
        %v4433 = vunpack.c.l.b16 %v3887
        %v4434 = vunpack.c.h.b16 %v3887
        %v4435 = vunpack.c.l.b16 %v3888
        %v4436 = vunpack.c.h.b16 %v3888
        %v4437 = vunpack.c.l.b16 %v3889
        %v4438 = vunpack.c.h.b16 %v3889
        %v4439 = vunpack.c.l.b16 %v3890
        %v4440 = vunpack.c.h.b16 %v3890
        %v4441 = vunpack.c.l.b16 %v3891
        %v4442 = vunpack.c.h.b16 %v3891
        %v4443 = vunpack.c.l.b16 %v3892
        %v4444 = vunpack.c.h.b16 %v3892
        %v4445 = vunpack.c.l.b16 %v3893
        %v4446 = vunpack.c.h.b16 %v3893
        %v4447 = vunpack.c.l.b16 %v3894
        %v4448 = vunpack.c.h.b16 %v3894
        %v4449 = vunpack.c.l.b16 %v3895
        %v4450 = vunpack.c.h.b16 %v3895
        %v4451 = vunpack.c.l.b16 %v3896
        %v4452 = vunpack.c.h.b16 %v3896
        %v4453 = vunpack.c.l.b16 %v3897
        %v4454 = vunpack.c.h.b16 %v3897
        %v4455 = vunpack.c.l.b16 %v3898
        %v4456 = vunpack.c.h.b16 %v3898
        %v4457 = vunpack.c.l.b16 %v3899
        %v4458 = vunpack.c.h.b16 %v3899
        %v4459 = vunpack.c.l.b16 %v3900
        %v4460 = vunpack.c.h.b16 %v3900
        %v4461 = vunpack.c.l.b16 %v3901
        %v4462 = vunpack.c.h.b16 %v3901
        %v4463 = vunpack.c.l.b16 %v3902
        %v4464 = vunpack.c.h.b16 %v3902
        %v4465 = vunpack.c.l.b16 %v3903
        %v4466 = vunpack.c.h.b16 %v3903
        %v4467 = vunpack.c.l.b16 %v3904
        %v4468 = vunpack.c.h.b16 %v3904
        %v4469 = vunpack.c.l.b16 %v3905
        %v4470 = vunpack.c.h.b16 %v3905
        %v4471 = vunpack.c.l.b16 %v3906
        %v4472 = vunpack.c.h.b16 %v3906
        %v4473 = vunpack.c.l.b16 %v3907
        %v4474 = vunpack.c.h.b16 %v3907
        %v4475 = vunpack.c.l.b16 %v3908
        %v4476 = vunpack.c.h.b16 %v3908
        %v4477 = vunpack.c.l.b16 %v3909
        %v4478 = vunpack.c.h.b16 %v3909
        %v4479 = vunpack.c.l.b16 %v3910
        %v4480 = vunpack.c.h.b16 %v3910
        %v4481 = vunpack.c.l.b16 %v3911
        %v4482 = vunpack.c.h.b16 %v3911
        %v4483 = vunpack.c.l.b16 %v3912
        %v4484 = vunpack.c.h.b16 %v3912
        %v4485 = vunpack.c.l.b16 %v3913
        %v4486 = vunpack.c.h.b16 %v3913
        %v4487 = vunpack.c.l.b16 %v3914
        %v4488 = vunpack.c.h.b16 %v3914
        %v4489 = vunpack.c.l.b16 %v3915
        %v4490 = vunpack.c.h.b16 %v3915
        %v4491 = vunpack.c.l.b16 %v3916
        %v4492 = vunpack.c.h.b16 %v3916
        %v4493 = vunpack.c.l.b16 %v3917
        %v4494 = vunpack.c.h.b16 %v3917
        %v4495 = vunpack.c.l.b16 %v3918
        %v4496 = vunpack.c.h.b16 %v3918
        %v4497 = vunpack.c.l.b16 %v3919
        %v4498 = vunpack.c.h.b16 %v3919
        %v4499 = vunpack.c.l.b16 %v3920
        %v4500 = vunpack.c.h.b16 %v3920
        %v4501 = vunpack.c.l.b16 %v3921
        %v4502 = vunpack.c.h.b16 %v3921
        %v4503 = vunpack.c.l.b16 %v3922
        %v4504 = vunpack.c.h.b16 %v3922
        %v4505 = vunpack.c.l.b16 %v3923
        %v4506 = vunpack.c.h.b16 %v3923
        %v4507 = vunpack.c.l.b16 %v3924
        %v4508 = vunpack.c.h.b16 %v3924
        %v4509 = vunpack.c.l.b16 %v3925
        %v4510 = vunpack.c.h.b16 %v3925
        %v4511 = vunpack.c.l.b16 %v3926
        %v4512 = vunpack.c.h.b16 %v3926
        %v4513 = vunpack.c.l.b16 %v3927
        %v4514 = vunpack.c.h.b16 %v3927
        %v4515 = vunpack.c.l.b16 %v3928
        %v4516 = vunpack.c.h.b16 %v3928
        %v4517 = vunpack.c.l.b16 %v3929
        %v4518 = vunpack.c.h.b16 %v3929
        %v4519 = vunpack.c.l.b16 %v3930
        %v4520 = vunpack.c.h.b16 %v3930
        %v4521 = vunpack.c.l.b16 %v3931
        %v4522 = vunpack.c.h.b16 %v3931
        %v4523 = vunpack.c.l.b16 %v3932
        %v4524 = vunpack.c.h.b16 %v3932
        %v4525 = vunpack.c.l.b16 %v3933
        %v4526 = vunpack.c.h.b16 %v3933
        %v4527 = vunpack.c.l.b16 %v3934
        %v4528 = vunpack.c.h.b16 %v3934
        %v4529 = vunpack.c.l.b16 %v3935
        %v4530 = vunpack.c.h.b16 %v3935
        %v4531 = vunpack.c.l.b16 %v3936
        %v4532 = vunpack.c.h.b16 %v3936
        %v4533 = vunpack.c.l.b16 %v3937
        %v4534 = vunpack.c.h.b16 %v3937
        %v4535 = vunpack.c.l.b16 %v3938
        %v4536 = vunpack.c.h.b16 %v3938
        %v4537 = vunpack.c.l.b16 %v3939
        %v4538 = vunpack.c.h.b16 %v3939
        %v4539 = vunpack.c.l.b16 %v3940
        %v4540 = vunpack.c.h.b16 %v3940
        %v4541 = vunpack.c.l.b16 %v3941
        %v4542 = vunpack.c.h.b16 %v3941
        %v4543 = vunpack.c.l.b16 %v3942
        %v4544 = vunpack.c.h.b16 %v3942
        %v4545 = vunpack.c.l.b16 %v3943
        %v4546 = vunpack.c.h.b16 %v3943
        %v4547 = vunpack.c.l.b16 %v3944
        %v4548 = vunpack.c.h.b16 %v3944
        %v4549 = vunpack.c.l.b16 %v3945
        %v4550 = vunpack.c.h.b16 %v3945
        %v4551 = vunpack.c.l.b16 %v3946
        %v4552 = vunpack.c.h.b16 %v3946
        %v4553 = vunpack.c.l.b16 %v3947
        %v4554 = vunpack.c.h.b16 %v3947
        %v4555 = vunpack.c.l.b16 %v3948
        %v4556 = vunpack.c.h.b16 %v3948
        %v4557 = vunpack.c.l.b16 %v3949
        %v4558 = vunpack.c.h.b16 %v3949
        %v4559 = vunpack.c.l.b16 %v3950
        %v4560 = vunpack.c.h.b16 %v3950
        %v4561 = vunpack.c.l.b16 %v3951
        %v4562 = vunpack.c.h.b16 %v3951
        %v4563 = vunpack.c.l.b16 %v3952
        %v4564 = vunpack.c.h.b16 %v3952
        %v4565 = vunpack.c.l.b16 %v3953
        %v4566 = vunpack.c.h.b16 %v3953
        %v4567 = vunpack.c.l.b16 %v3954
        %v4568 = vunpack.c.h.b16 %v3954
        %v4569 = vunpack.c.l.b16 %v3955
        %v4570 = vunpack.c.h.b16 %v3955
        %v4571 = vunpack.c.l.b16 %v3956
        %v4572 = vunpack.c.h.b16 %v3956
        %v4573 = vunpack.c.l.b16 %v3957
        %v4574 = vunpack.c.h.b16 %v3957
        %v4575 = vunpack.c.l.b16 %v3958
        %v4576 = vunpack.c.h.b16 %v3958
        %v4577 = vunpack.c.l.b16 %v3959
        %v4578 = vunpack.c.h.b16 %v3959
        %v4579 = vunpack.c.l.b16 %v3960
        %v4580 = vunpack.c.h.b16 %v3960
        %v4581 = vunpack.c.l.b16 %v3961
        %v4582 = vunpack.c.h.b16 %v3961
        %v4583 = vunpack.c.l.b16 %v3962
        %v4584 = vunpack.c.h.b16 %v3962
        %v4585 = vunpack.c.l.b16 %v3963
        %v4586 = vunpack.c.h.b16 %v3963
        %v4587 = vunpack.c.l.b16 %v3964
        %v4588 = vunpack.c.h.b16 %v3964
        %v4589 = vunpack.c.l.b16 %v3965
        %v4590 = vunpack.c.h.b16 %v3965
        %v4591 = vunpack.c.l.b16 %v3966
        %v4592 = vunpack.c.h.b16 %v3966
        %v4593 = vunpack.c.l.b16 %v3967
        %v4594 = vunpack.c.h.b16 %v3967
        %v4595 = vunpack.c.l.b16 %v3968
        %v4596 = vunpack.c.h.b16 %v3968
        %v4597 = vunpack.c.l.b16 %v3969
        %v4598 = vunpack.c.h.b16 %v3969
        %v4599 = vunpack.c.l.b16 %v3970
        %v4600 = vunpack.c.h.b16 %v3970
        %v4601 = vunpack.c.l.b16 %v3971
        %v4602 = vunpack.c.h.b16 %v3971
        %v4603 = vunpack.c.l.b16 %v3972
        %v4604 = vunpack.c.h.b16 %v3972
        %v4605 = vunpack.c.l.b16 %v3973
        %v4606 = vunpack.c.h.b16 %v3973
        %v4607 = vunpack.c.l.b16 %v3974
        %v4608 = vunpack.c.h.b16 %v3974
        %v4609 = vunpack.c.l.b16 %v3975
        %v4610 = vunpack.c.h.b16 %v3975
        %v4611 = vunpack.c.l.b16 %v3976
        %v4612 = vunpack.c.h.b16 %v3976
        %v4613 = vunpack.c.l.b16 %v3977
        %v4614 = vunpack.c.h.b16 %v3977
        %v4615 = vunpack.c.l.b16 %v3978
        %v4616 = vunpack.c.h.b16 %v3978
        %v4617 = vunpack.c.l.b16 %v3979
        %v4618 = vunpack.c.h.b16 %v3979
        %v4619 = vunpack.c.l.b16 %v3980
        %v4620 = vunpack.c.h.b16 %v3980
        %v4621 = vunpack.c.l.b16 %v3981
        %v4622 = vunpack.c.h.b16 %v3981
        %v4623 = vunpack.c.l.b16 %v3982
        %v4624 = vunpack.c.h.b16 %v3982
        %v4625 = vunpack.c.l.b16 %v3983
        %v4626 = vunpack.c.h.b16 %v3983
        %v4627 = vunpack.c.l.b16 %v3984
        %v4628 = vunpack.c.h.b16 %v3984
        %v4629 = vunpack.c.l.b16 %v3985
        %v4630 = vunpack.c.h.b16 %v3985
        %v4631 = vunpack.c.l.b16 %v3986
        %v4632 = vunpack.c.h.b16 %v3986
        %v4633 = vunpack.c.l.b16 %v3987
        %v4634 = vunpack.c.h.b16 %v3987
        %v4635 = vunpack.c.l.b16 %v3988
        %v4636 = vunpack.c.h.b16 %v3988
        %v4637 = vunpack.c.l.b16 %v3989
        %v4638 = vunpack.c.h.b16 %v3989
        %v4639 = vunpack.c.l.b16 %v3990
        %v4640 = vunpack.c.h.b16 %v3990
        %v4641 = vunpack.c.l.b16 %v3991
        %v4642 = vunpack.c.h.b16 %v3991
        %v4643 = vunpack.c.l.b16 %v3992
        %v4644 = vunpack.c.h.b16 %v3992
        %v4645 = vunpack.c.l.b16 %v3993
        %v4646 = vunpack.c.h.b16 %v3993
        %v4647 = vunpack.c.l.b16 %v3994
        %v4648 = vunpack.c.h.b16 %v3994
        %v4649 = vunpack.c.l.b16 %v3995
        %v4650 = vunpack.c.h.b16 %v3995
        %v4651 = vunpack.c.l.b16 %v3996
        %v4652 = vunpack.c.h.b16 %v3996
        %v4653 = vunpack.c.l.b16 %v3997
        %v4654 = vunpack.c.h.b16 %v3997
        %v4655 = vunpack.c.l.b16 %v3998
        %v4656 = vunpack.c.h.b16 %v3998
        %v4657 = vunpack.c.l.b16 %v3999
        %v4658 = vunpack.c.h.b16 %v3999
        %v4659 = vunpack.c.l.b16 %v4000
        %v4660 = vunpack.c.h.b16 %v4000
        %v4661 = vunpack.c.l.b16 %v4001
        %v4662 = vunpack.c.h.b16 %v4001
        %v4663 = vunpack.c.l.b16 %v4002
        %v4664 = vunpack.c.h.b16 %v4002
        %v4665 = vunpack.c.l.b16 %v4003
        %v4666 = vunpack.c.h.b16 %v4003
        %v4667 = vunpack.c.l.b16 %v4004
        %v4668 = vunpack.c.h.b16 %v4004
        %v4669 = vunpack.c.l.b16 %v4005
        %v4670 = vunpack.c.h.b16 %v4005
        %v4671 = vunpack.c.l.b16 %v4006
        %v4672 = vunpack.c.h.b16 %v4006
        %v4673 = vunpack.c.l.b16 %v4007
        %v4674 = vunpack.c.h.b16 %v4007
        %v4675 = vunpack.c.l.b16 %v4008
        %v4676 = vunpack.c.h.b16 %v4008
        %v4677 = vunpack.c.l.b16 %v4009
        %v4678 = vunpack.c.h.b16 %v4009
        %v4679 = vunpack.c.l.b16 %v4010
        %v4680 = vunpack.c.h.b16 %v4010
        %v4681 = vunpack.c.l.b16 %v4011
        %v4682 = vunpack.c.h.b16 %v4011
        %v4683 = vunpack.c.l.b16 %v4012
        %v4684 = vunpack.c.h.b16 %v4012
        %v4685 = vunpack.c.l.b16 %v4013
        %v4686 = vunpack.c.h.b16 %v4013
        %v4687 = vunpack.c.l.b16 %v4014
        %v4688 = vunpack.c.h.b16 %v4014
        %v4689 = vunpack.c.l.b16 %v4015
        %v4690 = vunpack.c.h.b16 %v4015
        %v4691 = vunpack.c.l.b16 %v4016
        %v4692 = vunpack.c.h.b16 %v4016
        %v4693 = vunpack.c.l.b16 %v4017
        %v4694 = vunpack.c.h.b16 %v4017
        %v4695 = vunpack.c.l.b16 %v4018
        %v4696 = vunpack.c.h.b16 %v4018
        %v4697 = vunpack.c.l.b16 %v4019
        %v4698 = vunpack.c.h.b16 %v4019
        %v4699 = vunpack.c.l.b16 %v4020
        %v4700 = vunpack.c.h.b16 %v4020
        %v4701 = vunpack.c.l.b16 %v4021
        %v4702 = vunpack.c.h.b16 %v4021
        %v4703 = vunpack.c.l.b16 %v4022
        %v4704 = vunpack.c.h.b16 %v4022
        %v4705 = vunpack.c.l.b16 %v4023
        %v4706 = vunpack.c.h.b16 %v4023
        %v4707 = vunpack.c.l.b16 %v4024
        %v4708 = vunpack.c.h.b16 %v4024
        %v4709 = vunpack.c.l.b16 %v4025
        %v4710 = vunpack.c.h.b16 %v4025
        %v4711 = vunpack.c.l.b16 %v4026
        %v4712 = vunpack.c.h.b16 %v4026
        %v4713 = vunpack.c.l.b16 %v4027
        %v4714 = vunpack.c.h.b16 %v4027
        %v4715 = vunpack.c.l.b16 %v4028
        %v4716 = vunpack.c.h.b16 %v4028
        %v4717 = vunpack.c.l.b16 %v4029
        %v4718 = vunpack.c.h.b16 %v4029
        %v4719 = vunpack.c.l.b16 %v4030
        %v4720 = vunpack.c.h.b16 %v4030
        %v4721 = vunpack.c.l.b16 %v4031
        %v4722 = vunpack.c.h.b16 %v4031
        %v4723 = vunpack.c.l.b16 %v4032
        %v4724 = vunpack.c.h.b16 %v4032
        %v4725 = vunpack.c.l.b16 %v4033
        %v4726 = vunpack.c.h.b16 %v4033
        %v4727 = vunpack.c.l.b16 %v4034
        %v4728 = vunpack.c.h.b16 %v4034
        %v4729 = vunpack.c.l.b16 %v4035
        %v4730 = vunpack.c.h.b16 %v4035
        %v4731 = vunpack.c.l.b16 %v4036
        %v4732 = vunpack.c.h.b16 %v4036
        %v4733 = vunpack.c.l.b16 %v4037
        %v4734 = vunpack.c.h.b16 %v4037
        %v4735 = vunpack.c.l.b16 %v4038
        %v4736 = vunpack.c.h.b16 %v4038
        %v4737 = vunpack.c.l.b16 %v4039
        %v4738 = vunpack.c.h.b16 %v4039
        %v4739 = vunpack.c.l.b16 %v4040
        %v4740 = vunpack.c.h.b16 %v4040
        %v4741 = vunpack.c.l.b16 %v4041
        %v4742 = vunpack.c.h.b16 %v4041
        %v4743 = vunpack.c.l.b16 %v4042
        %v4744 = vunpack.c.h.b16 %v4042
        %v4745 = vunpack.c.l.b16 %v4043
        %v4746 = vunpack.c.h.b16 %v4043
        %v4747 = vunpack.c.l.b16 %v4044
        %v4748 = vunpack.c.h.b16 %v4044
        %v4749 = vunpack.c.l.b16 %v4045
        %v4750 = vunpack.c.h.b16 %v4045
        %v4751 = vunpack.c.l.b16 %v4046
        %v4752 = vunpack.c.h.b16 %v4046
        %v4753 = vunpack.c.l.b16 %v4047
        %v4754 = vunpack.c.h.b16 %v4047
        %v4755 = vunpack.c.l.b16 %v4048
        %v4756 = vunpack.c.h.b16 %v4048
        %v4757 = vunpack.c.l.b16 %v4049
        %v4758 = vunpack.c.h.b16 %v4049
        %v4759 = vunpack.c.l.b16 %v4050
        %v4760 = vunpack.c.h.b16 %v4050
        %v4761 = vunpack.c.l.b16 %v4051
        %v4762 = vunpack.c.h.b16 %v4051
        %v4763 = vunpack.c.l.b16 %v4052
        %v4764 = vunpack.c.h.b16 %v4052
        %v4765 = vunpack.c.l.b16 %v4053
        %v4766 = vunpack.c.h.b16 %v4053
        %v4767 = vunpack.c.l.b16 %v4054
        %v4768 = vunpack.c.h.b16 %v4054
        %v4769 = vunpack.c.l.b16 %v4055
        %v4770 = vunpack.c.h.b16 %v4055
        %v4771 = vunpack.c.l.b16 %v4056
        %v4772 = vunpack.c.h.b16 %v4056
        %v4773 = vunpack.c.l.b16 %v4057
        %v4774 = vunpack.c.h.b16 %v4057
        %v4775 = vunpack.c.l.b16 %v4058
        %v4776 = vunpack.c.h.b16 %v4058
        %v4777 = vunpack.c.l.b16 %v4059
        %v4778 = vunpack.c.h.b16 %v4059
        %v4779 = vunpack.c.l.b16 %v4060
        %v4780 = vunpack.c.h.b16 %v4060
        %v4781 = vunpack.c.l.b16 %v4061
        %v4782 = vunpack.c.h.b16 %v4061
        %v4783 = vunpack.c.l.b16 %v4062
        %v4784 = vunpack.c.h.b16 %v4062
        %v4785 = vunpack.c.l.b16 %v4063
        %v4786 = vunpack.c.h.b16 %v4063
        %v4787 = vunpack.c.l.b16 %v4064
        %v4788 = vunpack.c.h.b16 %v4064
        %v4789 = vunpack.c.l.b16 %v4065
        %v4790 = vunpack.c.h.b16 %v4065
        %v4791 = vunpack.c.l.b16 %v4066
        %v4792 = vunpack.c.h.b16 %v4066
        %v4793 = vunpack.c.l.b16 %v4067
        %v4794 = vunpack.c.h.b16 %v4067
        %v4795 = vunpack.c.l.b16 %v4068
        %v4796 = vunpack.c.h.b16 %v4068
        %v4797 = vunpack.c.l.b16 %v4069
        %v4798 = vunpack.c.h.b16 %v4069
        %v4799 = vunpack.c.l.b16 %v4070
        %v4800 = vunpack.c.h.b16 %v4070
        %v4801 = vunpack.c.l.b16 %v4071
        %v4802 = vunpack.c.h.b16 %v4071
        %v4803 = vunpack.c.l.b16 %v4072
        %v4804 = vunpack.c.h.b16 %v4072
        %v4805 = vunpack.c.l.b16 %v4073
        %v4806 = vunpack.c.h.b16 %v4073
        %v4807 = vunpack.c.l.b16 %v4074
        %v4808 = vunpack.c.h.b16 %v4074
        %v4809 = vunpack.c.l.b16 %v4075
        %v4810 = vunpack.c.h.b16 %v4075
        %v4811 = vunpack.c.l.b16 %v4076
        %v4812 = vunpack.c.h.b16 %v4076
        %v4813 = vunpack.c.l.b16 %v4077
        %v4814 = vunpack.c.h.b16 %v4077
        %v4815 = vunpack.c.l.b16 %v4078
        %v4816 = vunpack.c.h.b16 %v4078
        %v4817 = vunpack.c.l.b16 %v4079
        %v4818 = vunpack.c.h.b16 %v4079
        %v4819 = vunpack.c.l.b16 %v4080
        %v4820 = vunpack.c.h.b16 %v4080
        %v4821 = vunpack.c.l.b16 %v4081
        %v4822 = vunpack.c.h.b16 %v4081
        %v4823 = vunpack.c.l.b16 %v4082
        %v4824 = vunpack.c.h.b16 %v4082
        %v4825 = vunpack.c.l.b16 %v4083
        %v4826 = vunpack.c.h.b16 %v4083
        %v4827 = vunpack.c.l.b16 %v4084
        %v4828 = vunpack.c.h.b16 %v4084
        %v4829 = vunpack.c.l.b16 %v4085
        %v4830 = vunpack.c.h.b16 %v4085
        %v4831 = vunpack.c.l.b16 %v4086
        %v4832 = vunpack.c.h.b16 %v4086
        %v4833 = vunpack.c.l.b16 %v4087
        %v4834 = vunpack.c.h.b16 %v4087
        %v4835 = vunpack.c.l.b16 %v4088
        %v4836 = vunpack.c.h.b16 %v4088
        %v4837 = vunpack.c.l.b16 %v4089
        %v4838 = vunpack.c.h.b16 %v4089
        %v4839 = vunpack.c.l.b16 %v4090
        %v4840 = vunpack.c.h.b16 %v4090
        %v4841 = vunpack.c.l.b16 %v4091
        %v4842 = vunpack.c.h.b16 %v4091
        %v4843 = vunpack.c.l.b16 %v4092
        %v4844 = vunpack.c.h.b16 %v4092
        %v4845 = vunpack.c.l.b16 %v4093
        %v4846 = vunpack.c.h.b16 %v4093
        %v4847 = vunpack.c.l.b16 %v4094
        %v4848 = vunpack.c.h.b16 %v4094
        %v4849 = vunpack.c.l.b16 %v4095
        %v4850 = vunpack.c.h.b16 %v4095
        %v4851 = vunpack.c.l.b16 %v4096
        %v4852 = vunpack.c.h.b16 %v4096
        %v4853 = vunpack.c.l.b16 %v4097
        %v4854 = vunpack.c.h.b16 %v4097
        %v4855 = vunpack.c.l.b16 %v4098
        %v4856 = vunpack.c.h.b16 %v4098
        %v4857 = vunpack.c.l.b16 %v4099
        %v4858 = vunpack.c.h.b16 %v4099
        %v4859 = vunpack.c.l.b16 %v4100
        %v4860 = vunpack.c.h.b16 %v4100
        %v4861 = vunpack.c.l.b16 %v4101
        %v4862 = vunpack.c.h.b16 %v4101
        %v4863 = vunpack.c.l.b16 %v4102
        %v4864 = vunpack.c.h.b16 %v4102
        %v4865 = vunpack.c.l.b16 %v4103
        %v4866 = vunpack.c.h.b16 %v4103
        %v4867 = vunpack.c.l.b16 %v4104
        %v4868 = vunpack.c.h.b16 %v4104
        %v4869 = vunpack.c.l.b16 %v4105
        %v4870 = vunpack.c.h.b16 %v4105
        %v4871 = vunpack.c.l.b16 %v4106
        %v4872 = vunpack.c.h.b16 %v4106
        %v4873 = vunpack.c.l.b16 %v4107
        %v4874 = vunpack.c.h.b16 %v4107
        %v4875 = vunpack.c.l.b16 %v4108
        %v4876 = vunpack.c.h.b16 %v4108
        %v4877 = vunpack.c.l.b16 %v4109
        %v4878 = vunpack.c.h.b16 %v4109
        %v4879 = vpack.c.b16 %v4371, %v4367
        %v4880 = vpack.c.b16 %v4372, %v4368
        %v4881 = vpack.c.b16 %v4373, %v4369
        %v4882 = vpack.c.b16 %v4374, %v4370
        %v4883 = vpack.c.b16 %v4379, %v4375
        %v4884 = vpack.c.b16 %v4380, %v4376
        %v4885 = vpack.c.b16 %v4381, %v4377
        %v4886 = vpack.c.b16 %v4382, %v4378
        %v4887 = vpack.c.b16 %v4387, %v4383
        %v4888 = vpack.c.b16 %v4388, %v4384
        %v4889 = vpack.c.b16 %v4389, %v4385
        %v4890 = vpack.c.b16 %v4390, %v4386
        %v4891 = vpack.c.b16 %v4395, %v4391
        %v4892 = vpack.c.b16 %v4396, %v4392
        %v4893 = vpack.c.b16 %v4397, %v4393
        %v4894 = vpack.c.b16 %v4398, %v4394
        %v4895 = vpack.c.b16 %v4403, %v4399
        %v4896 = vpack.c.b16 %v4404, %v4400
        %v4897 = vpack.c.b16 %v4405, %v4401
        %v4898 = vpack.c.b16 %v4406, %v4402
        %v4899 = vpack.c.b16 %v4411, %v4407
        %v4900 = vpack.c.b16 %v4412, %v4408
        %v4901 = vpack.c.b16 %v4413, %v4409
        %v4902 = vpack.c.b16 %v4414, %v4410
        %v4903 = vpack.c.b16 %v4419, %v4415
        %v4904 = vpack.c.b16 %v4420, %v4416
        %v4905 = vpack.c.b16 %v4421, %v4417
        %v4906 = vpack.c.b16 %v4422, %v4418
        %v4907 = vpack.c.b16 %v4427, %v4423
        %v4908 = vpack.c.b16 %v4428, %v4424
        %v4909 = vpack.c.b16 %v4429, %v4425
        %v4910 = vpack.c.b16 %v4430, %v4426
        %v4911 = vpack.c.b16 %v4435, %v4431
        %v4912 = vpack.c.b16 %v4436, %v4432
        %v4913 = vpack.c.b16 %v4437, %v4433
        %v4914 = vpack.c.b16 %v4438, %v4434
        %v4915 = vpack.c.b16 %v4443, %v4439
        %v4916 = vpack.c.b16 %v4444, %v4440
        %v4917 = vpack.c.b16 %v4445, %v4441
        %v4918 = vpack.c.b16 %v4446, %v4442
        %v4919 = vpack.c.b16 %v4451, %v4447
        %v4920 = vpack.c.b16 %v4452, %v4448
        %v4921 = vpack.c.b16 %v4453, %v4449
        %v4922 = vpack.c.b16 %v4454, %v4450
        %v4923 = vpack.c.b16 %v4459, %v4455
        %v4924 = vpack.c.b16 %v4460, %v4456
        %v4925 = vpack.c.b16 %v4461, %v4457
        %v4926 = vpack.c.b16 %v4462, %v4458
        %v4927 = vpack.c.b16 %v4467, %v4463
        %v4928 = vpack.c.b16 %v4468, %v4464
        %v4929 = vpack.c.b16 %v4469, %v4465
        %v4930 = vpack.c.b16 %v4470, %v4466
        %v4931 = vpack.c.b16 %v4475, %v4471
        %v4932 = vpack.c.b16 %v4476, %v4472
        %v4933 = vpack.c.b16 %v4477, %v4473
        %v4934 = vpack.c.b16 %v4478, %v4474
        %v4935 = vpack.c.b16 %v4483, %v4479
        %v4936 = vpack.c.b16 %v4484, %v4480
        %v4937 = vpack.c.b16 %v4485, %v4481
        %v4938 = vpack.c.b16 %v4486, %v4482
        %v4939 = vpack.c.b16 %v4491, %v4487
        %v4940 = vpack.c.b16 %v4492, %v4488
        %v4941 = vpack.c.b16 %v4493, %v4489
        %v4942 = vpack.c.b16 %v4494, %v4490
        %v4943 = vpack.c.b16 %v4499, %v4495
        %v4944 = vpack.c.b16 %v4500, %v4496
        %v4945 = vpack.c.b16 %v4501, %v4497
        %v4946 = vpack.c.b16 %v4502, %v4498
        %v4947 = vpack.c.b16 %v4507, %v4503
        %v4948 = vpack.c.b16 %v4508, %v4504
        %v4949 = vpack.c.b16 %v4509, %v4505
        %v4950 = vpack.c.b16 %v4510, %v4506
        %v4951 = vpack.c.b16 %v4515, %v4511
        %v4952 = vpack.c.b16 %v4516, %v4512
        %v4953 = vpack.c.b16 %v4517, %v4513
        %v4954 = vpack.c.b16 %v4518, %v4514
        %v4955 = vpack.c.b16 %v4523, %v4519
        %v4956 = vpack.c.b16 %v4524, %v4520
        %v4957 = vpack.c.b16 %v4525, %v4521
        %v4958 = vpack.c.b16 %v4526, %v4522
        %v4959 = vpack.c.b16 %v4531, %v4527
        %v4960 = vpack.c.b16 %v4532, %v4528
        %v4961 = vpack.c.b16 %v4533, %v4529
        %v4962 = vpack.c.b16 %v4534, %v4530
        %v4963 = vpack.c.b16 %v4539, %v4535
        %v4964 = vpack.c.b16 %v4540, %v4536
        %v4965 = vpack.c.b16 %v4541, %v4537
        %v4966 = vpack.c.b16 %v4542, %v4538
        %v4967 = vpack.c.b16 %v4547, %v4543
        %v4968 = vpack.c.b16 %v4548, %v4544
        %v4969 = vpack.c.b16 %v4549, %v4545
        %v4970 = vpack.c.b16 %v4550, %v4546
        %v4971 = vpack.c.b16 %v4555, %v4551
        %v4972 = vpack.c.b16 %v4556, %v4552
        %v4973 = vpack.c.b16 %v4557, %v4553
        %v4974 = vpack.c.b16 %v4558, %v4554
        %v4975 = vpack.c.b16 %v4563, %v4559
        %v4976 = vpack.c.b16 %v4564, %v4560
        %v4977 = vpack.c.b16 %v4565, %v4561
        %v4978 = vpack.c.b16 %v4566, %v4562
        %v4979 = vpack.c.b16 %v4571, %v4567
        %v4980 = vpack.c.b16 %v4572, %v4568
        %v4981 = vpack.c.b16 %v4573, %v4569
        %v4982 = vpack.c.b16 %v4574, %v4570
        %v4983 = vpack.c.b16 %v4579, %v4575
        %v4984 = vpack.c.b16 %v4580, %v4576
        %v4985 = vpack.c.b16 %v4581, %v4577
        %v4986 = vpack.c.b16 %v4582, %v4578
        %v4987 = vpack.c.b16 %v4587, %v4583
        %v4988 = vpack.c.b16 %v4588, %v4584
        %v4989 = vpack.c.b16 %v4589, %v4585
        %v4990 = vpack.c.b16 %v4590, %v4586
        %v4991 = vpack.c.b16 %v4595, %v4591
        %v4992 = vpack.c.b16 %v4596, %v4592
        %v4993 = vpack.c.b16 %v4597, %v4593
        %v4994 = vpack.c.b16 %v4598, %v4594
        %v4995 = vpack.c.b16 %v4603, %v4599
        %v4996 = vpack.c.b16 %v4604, %v4600
        %v4997 = vpack.c.b16 %v4605, %v4601
        %v4998 = vpack.c.b16 %v4606, %v4602
        %v4999 = vpack.c.b16 %v4611, %v4607
        %v5000 = vpack.c.b16 %v4612, %v4608
        %v5001 = vpack.c.b16 %v4613, %v4609
        %v5002 = vpack.c.b16 %v4614, %v4610
        %v5003 = vpack.c.b16 %v4619, %v4615
        %v5004 = vpack.c.b16 %v4620, %v4616
        %v5005 = vpack.c.b16 %v4621, %v4617
        %v5006 = vpack.c.b16 %v4622, %v4618
        %v5007 = vpack.c.b16 %v4627, %v4623
        %v5008 = vpack.c.b16 %v4628, %v4624
        %v5009 = vpack.c.b16 %v4629, %v4625
        %v5010 = vpack.c.b16 %v4630, %v4626
        %v5011 = vpack.c.b16 %v4635, %v4631
        %v5012 = vpack.c.b16 %v4636, %v4632
        %v5013 = vpack.c.b16 %v4637, %v4633
        %v5014 = vpack.c.b16 %v4638, %v4634
        %v5015 = vpack.c.b16 %v4643, %v4639
        %v5016 = vpack.c.b16 %v4644, %v4640
        %v5017 = vpack.c.b16 %v4645, %v4641
        %v5018 = vpack.c.b16 %v4646, %v4642
        %v5019 = vpack.c.b16 %v4651, %v4647
        %v5020 = vpack.c.b16 %v4652, %v4648
        %v5021 = vpack.c.b16 %v4653, %v4649
        %v5022 = vpack.c.b16 %v4654, %v4650
        %v5023 = vpack.c.b16 %v4659, %v4655
        %v5024 = vpack.c.b16 %v4660, %v4656
        %v5025 = vpack.c.b16 %v4661, %v4657
        %v5026 = vpack.c.b16 %v4662, %v4658
        %v5027 = vpack.c.b16 %v4667, %v4663
        %v5028 = vpack.c.b16 %v4668, %v4664
        %v5029 = vpack.c.b16 %v4669, %v4665
        %v5030 = vpack.c.b16 %v4670, %v4666
        %v5031 = vpack.c.b16 %v4675, %v4671
        %v5032 = vpack.c.b16 %v4676, %v4672
        %v5033 = vpack.c.b16 %v4677, %v4673
        %v5034 = vpack.c.b16 %v4678, %v4674
        %v5035 = vpack.c.b16 %v4683, %v4679
        %v5036 = vpack.c.b16 %v4684, %v4680
        %v5037 = vpack.c.b16 %v4685, %v4681
        %v5038 = vpack.c.b16 %v4686, %v4682
        %v5039 = vpack.c.b16 %v4691, %v4687
        %v5040 = vpack.c.b16 %v4692, %v4688
        %v5041 = vpack.c.b16 %v4693, %v4689
        %v5042 = vpack.c.b16 %v4694, %v4690
        %v5043 = vpack.c.b16 %v4699, %v4695
        %v5044 = vpack.c.b16 %v4700, %v4696
        %v5045 = vpack.c.b16 %v4701, %v4697
        %v5046 = vpack.c.b16 %v4702, %v4698
        %v5047 = vpack.c.b16 %v4707, %v4703
        %v5048 = vpack.c.b16 %v4708, %v4704
        %v5049 = vpack.c.b16 %v4709, %v4705
        %v5050 = vpack.c.b16 %v4710, %v4706
        %v5051 = vpack.c.b16 %v4715, %v4711
        %v5052 = vpack.c.b16 %v4716, %v4712
        %v5053 = vpack.c.b16 %v4717, %v4713
        %v5054 = vpack.c.b16 %v4718, %v4714
        %v5055 = vpack.c.b16 %v4723, %v4719
        %v5056 = vpack.c.b16 %v4724, %v4720
        %v5057 = vpack.c.b16 %v4725, %v4721
        %v5058 = vpack.c.b16 %v4726, %v4722
        %v5059 = vpack.c.b16 %v4731, %v4727
        %v5060 = vpack.c.b16 %v4732, %v4728
        %v5061 = vpack.c.b16 %v4733, %v4729
        %v5062 = vpack.c.b16 %v4734, %v4730
        %v5063 = vpack.c.b16 %v4739, %v4735
        %v5064 = vpack.c.b16 %v4740, %v4736
        %v5065 = vpack.c.b16 %v4741, %v4737
        %v5066 = vpack.c.b16 %v4742, %v4738
        %v5067 = vpack.c.b16 %v4747, %v4743
        %v5068 = vpack.c.b16 %v4748, %v4744
        %v5069 = vpack.c.b16 %v4749, %v4745
        %v5070 = vpack.c.b16 %v4750, %v4746
        %v5071 = vpack.c.b16 %v4755, %v4751
        %v5072 = vpack.c.b16 %v4756, %v4752
        %v5073 = vpack.c.b16 %v4757, %v4753
        %v5074 = vpack.c.b16 %v4758, %v4754
        %v5075 = vpack.c.b16 %v4763, %v4759
        %v5076 = vpack.c.b16 %v4764, %v4760
        %v5077 = vpack.c.b16 %v4765, %v4761
        %v5078 = vpack.c.b16 %v4766, %v4762
        %v5079 = vpack.c.b16 %v4771, %v4767
        %v5080 = vpack.c.b16 %v4772, %v4768
        %v5081 = vpack.c.b16 %v4773, %v4769
        %v5082 = vpack.c.b16 %v4774, %v4770
        %v5083 = vpack.c.b16 %v4779, %v4775
        %v5084 = vpack.c.b16 %v4780, %v4776
        %v5085 = vpack.c.b16 %v4781, %v4777
        %v5086 = vpack.c.b16 %v4782, %v4778
        %v5087 = vpack.c.b16 %v4787, %v4783
        %v5088 = vpack.c.b16 %v4788, %v4784
        %v5089 = vpack.c.b16 %v4789, %v4785
        %v5090 = vpack.c.b16 %v4790, %v4786
        %v5091 = vpack.c.b16 %v4795, %v4791
        %v5092 = vpack.c.b16 %v4796, %v4792
        %v5093 = vpack.c.b16 %v4797, %v4793
        %v5094 = vpack.c.b16 %v4798, %v4794
        %v5095 = vpack.c.b16 %v4803, %v4799
        %v5096 = vpack.c.b16 %v4804, %v4800
        %v5097 = vpack.c.b16 %v4805, %v4801
        %v5098 = vpack.c.b16 %v4806, %v4802
        %v5099 = vpack.c.b16 %v4811, %v4807
        %v5100 = vpack.c.b16 %v4812, %v4808
        %v5101 = vpack.c.b16 %v4813, %v4809
        %v5102 = vpack.c.b16 %v4814, %v4810
        %v5103 = vpack.c.b16 %v4819, %v4815
        %v5104 = vpack.c.b16 %v4820, %v4816
        %v5105 = vpack.c.b16 %v4821, %v4817
        %v5106 = vpack.c.b16 %v4822, %v4818
        %v5107 = vpack.c.b16 %v4827, %v4823
        %v5108 = vpack.c.b16 %v4828, %v4824
        %v5109 = vpack.c.b16 %v4829, %v4825
        %v5110 = vpack.c.b16 %v4830, %v4826
        %v5111 = vpack.c.b16 %v4835, %v4831
        %v5112 = vpack.c.b16 %v4836, %v4832
        %v5113 = vpack.c.b16 %v4837, %v4833
        %v5114 = vpack.c.b16 %v4838, %v4834
        %v5115 = vpack.c.b16 %v4843, %v4839
        %v5116 = vpack.c.b16 %v4844, %v4840
        %v5117 = vpack.c.b16 %v4845, %v4841
        %v5118 = vpack.c.b16 %v4846, %v4842
        %v5119 = vpack.c.b16 %v4851, %v4847
        %v5120 = vpack.c.b16 %v4852, %v4848
        %v5121 = vpack.c.b16 %v4853, %v4849
        %v5122 = vpack.c.b16 %v4854, %v4850
        %v5123 = vpack.c.b16 %v4859, %v4855
        %v5124 = vpack.c.b16 %v4860, %v4856
        %v5125 = vpack.c.b16 %v4861, %v4857
        %v5126 = vpack.c.b16 %v4862, %v4858
        %v5127 = vpack.c.b16 %v4867, %v4863
        %v5128 = vpack.c.b16 %v4868, %v4864
        %v5129 = vpack.c.b16 %v4869, %v4865
        %v5130 = vpack.c.b16 %v4870, %v4866
        %v5131 = vpack.c.b16 %v4875, %v4871
        %v5132 = vpack.c.b16 %v4876, %v4872
        %v5133 = vpack.c.b16 %v4877, %v4873
        %v5134 = vpack.c.b16 %v4878, %v4874
        %v5392 = vperm.slane %v4110, 0
        %v5393 = vperm.slane %v4110, 1
        %v5394 = vperm.slane %v4110, 2
        %v5395 = vperm.slane %v4110, 3
        %5400 = vmatpush.bf16.msra.mxu0 %v4907
        %5401 = vmatpush.bf16.msra.mxu0 %v4903
        %5402 = vmatpush.bf16.msra.mxu0 %v4899
        %5403 = vmatpush.bf16.msra.mxu0 %v4895
        %5404 = vmatpush.bf16.msra.mxu0 %v4891
        %5405 = vmatpush.bf16.msra.mxu0 %v4887
        %5406 = vmatpush.bf16.msra.mxu0 %v4883
        %5407 = vmatpush.bf16.msra.mxu0 %v4879
        %5408 = vmatmul.bf16.gmra.mxu0 %v3846
        %v5409 = vpop.f32.mrf.mxu0
        %v5410 = vadd.f32 %v5392, %v5409
        %v5411 = vpop.f32.mrf.mxu0
        %5412 = vdwg.mxu0
        %5413 = vmatpush.bf16.msra.mxu0 %v4939
        %5414 = vmatpush.bf16.msra.mxu0 %v4935
        %5415 = vmatpush.bf16.msra.mxu0 %v4931
        %5416 = vmatpush.bf16.msra.mxu0 %v4927
        %5417 = vmatpush.bf16.msra.mxu0 %v4923
        %5418 = vmatpush.bf16.msra.mxu0 %v4919
        %5419 = vmatpush.bf16.msra.mxu0 %v4915
        %5420 = vmatpush.bf16.msra.mxu0 %v4911
        %5421 = vmatmul.bf16.gmra.mxu0 %v3847
        %v5422 = vpop.f32.mrf.mxu0
        %v5423 = vadd.f32 %v5410, %v5422
        %v5424 = vpop.f32.mrf.mxu0
        %5425 = vdwg.mxu0
        %5426 = vmatpush.bf16.msra.mxu0 %v4971
        %5427 = vmatpush.bf16.msra.mxu0 %v4967
        %5428 = vmatpush.bf16.msra.mxu0 %v4963
        %5429 = vmatpush.bf16.msra.mxu0 %v4959
        %5430 = vmatpush.bf16.msra.mxu0 %v4955
        %5431 = vmatpush.bf16.msra.mxu0 %v4951
        %5432 = vmatpush.bf16.msra.mxu0 %v4947
        %5433 = vmatpush.bf16.msra.mxu0 %v4943
        %5434 = vmatmul.bf16.gmra.mxu0 %v3848
        %v5435 = vpop.f32.mrf.mxu0
        %v5436 = vadd.f32 %v5423, %v5435
        %v5437 = vpop.f32.mrf.mxu0
        %5438 = vdwg.mxu0
        %5439 = vmatpush.bf16.msra.mxu0 %v5003
        %5440 = vmatpush.bf16.msra.mxu0 %v4999
        %5441 = vmatpush.bf16.msra.mxu0 %v4995
        %5442 = vmatpush.bf16.msra.mxu0 %v4991
        %5443 = vmatpush.bf16.msra.mxu0 %v4987
        %5444 = vmatpush.bf16.msra.mxu0 %v4983
        %5445 = vmatpush.bf16.msra.mxu0 %v4979
        %5446 = vmatpush.bf16.msra.mxu0 %v4975
        %5447 = vmatmul.bf16.gmra.mxu0 %v3849
        %v5448 = vpop.f32.mrf.mxu0
        %v5449 = vadd.f32 %v5436, %v5448
        %v5450 = vpop.f32.mrf.mxu0
        %5451 = vdwg.mxu0
        %5452 = vmatpush.bf16.msra.mxu0 %v5035
        %5453 = vmatpush.bf16.msra.mxu0 %v5031
        %5454 = vmatpush.bf16.msra.mxu0 %v5027
        %5455 = vmatpush.bf16.msra.mxu0 %v5023
        %5456 = vmatpush.bf16.msra.mxu0 %v5019
        %5457 = vmatpush.bf16.msra.mxu0 %v5015
        %5458 = vmatpush.bf16.msra.mxu0 %v5011
        %5459 = vmatpush.bf16.msra.mxu0 %v5007
        %5460 = vmatmul.bf16.gmra.mxu0 %v3850
        %v5461 = vpop.f32.mrf.mxu0
        %v5462 = vadd.f32 %v5449, %v5461
        %v5463 = vpop.f32.mrf.mxu0
        %5464 = vdwg.mxu0
        %5465 = vmatpush.bf16.msra.mxu0 %v5067
        %5466 = vmatpush.bf16.msra.mxu0 %v5063
        %5467 = vmatpush.bf16.msra.mxu0 %v5059
        %5468 = vmatpush.bf16.msra.mxu0 %v5055
        %5469 = vmatpush.bf16.msra.mxu0 %v5051
        %5470 = vmatpush.bf16.msra.mxu0 %v5047
        %5471 = vmatpush.bf16.msra.mxu0 %v5043
        %5472 = vmatpush.bf16.msra.mxu0 %v5039
        %5473 = vmatmul.bf16.gmra.mxu0 %v3851
        %v5474 = vpop.f32.mrf.mxu0
        %v5475 = vadd.f32 %v5462, %v5474
        %v5476 = vpop.f32.mrf.mxu0
        %5477 = vdwg.mxu0
        %5478 = vmatpush.bf16.msra.mxu0 %v5099
        %5479 = vmatpush.bf16.msra.mxu0 %v5095
        %5480 = vmatpush.bf16.msra.mxu0 %v5091
        %5481 = vmatpush.bf16.msra.mxu0 %v5087
        %5482 = vmatpush.bf16.msra.mxu0 %v5083
        %5483 = vmatpush.bf16.msra.mxu0 %v5079
        %5484 = vmatpush.bf16.msra.mxu0 %v5075
        %5485 = vmatpush.bf16.msra.mxu0 %v5071
        %5486 = vmatmul.bf16.gmra.mxu0 %v3852
        %v5487 = vpop.f32.mrf.mxu0
        %v5488 = vadd.f32 %v5475, %v5487
        %v5489 = vpop.f32.mrf.mxu0
        %5490 = vdwg.mxu0
        %5491 = vmatpush.bf16.msra.mxu0 %v5131
        %5492 = vmatpush.bf16.msra.mxu0 %v5127
        %5493 = vmatpush.bf16.msra.mxu0 %v5123
        %5494 = vmatpush.bf16.msra.mxu0 %v5119
        %5495 = vmatpush.bf16.msra.mxu0 %v5115
        %5496 = vmatpush.bf16.msra.mxu0 %v5111
        %5497 = vmatpush.bf16.msra.mxu0 %v5107
        %5498 = vmatpush.bf16.msra.mxu0 %v5103
        %5499 = vmatmul.bf16.gmra.mxu0 %v3853
        %v5500 = vpop.f32.mrf.mxu0
        %v5501 = vadd.f32 %v5488, %v5500
        %v5502 = vpop.f32.mrf.mxu0
        %5503 = vdwg.mxu0
        %5504 = vmatpush.bf16.msra.mxu0 %v4908
        %5505 = vmatpush.bf16.msra.mxu0 %v4904
        %5506 = vmatpush.bf16.msra.mxu0 %v4900
        %5507 = vmatpush.bf16.msra.mxu0 %v4896
        %5508 = vmatpush.bf16.msra.mxu0 %v4892
        %5509 = vmatpush.bf16.msra.mxu0 %v4888
        %5510 = vmatpush.bf16.msra.mxu0 %v4884
        %5511 = vmatpush.bf16.msra.mxu0 %v4880
        %5512 = vmatmul.bf16.gmra.mxu0 %v3846
        %v5513 = vpop.f32.mrf.mxu0
        %v5514 = vadd.f32 %v5393, %v5513
        %v5515 = vpop.f32.mrf.mxu0
        %5516 = vdwg.mxu0
        %5517 = vmatpush.bf16.msra.mxu0 %v4940
        %5518 = vmatpush.bf16.msra.mxu0 %v4936
        %5519 = vmatpush.bf16.msra.mxu0 %v4932
        %5520 = vmatpush.bf16.msra.mxu0 %v4928
        %5521 = vmatpush.bf16.msra.mxu0 %v4924
        %5522 = vmatpush.bf16.msra.mxu0 %v4920
        %5523 = vmatpush.bf16.msra.mxu0 %v4916
        %5524 = vmatpush.bf16.msra.mxu0 %v4912
        %5525 = vmatmul.bf16.gmra.mxu0 %v3847
        %v5526 = vpop.f32.mrf.mxu0
        %v5527 = vadd.f32 %v5514, %v5526
        %v5528 = vpop.f32.mrf.mxu0
        %5529 = vdwg.mxu0
        %5530 = vmatpush.bf16.msra.mxu0 %v4972
        %5531 = vmatpush.bf16.msra.mxu0 %v4968
        %5532 = vmatpush.bf16.msra.mxu0 %v4964
        %5533 = vmatpush.bf16.msra.mxu0 %v4960
        %5534 = vmatpush.bf16.msra.mxu0 %v4956
        %5535 = vmatpush.bf16.msra.mxu0 %v4952
        %5536 = vmatpush.bf16.msra.mxu0 %v4948
        %5537 = vmatpush.bf16.msra.mxu0 %v4944
        %5538 = vmatmul.bf16.gmra.mxu0 %v3848
        %v5539 = vpop.f32.mrf.mxu0
        %v5540 = vadd.f32 %v5527, %v5539
        %v5541 = vpop.f32.mrf.mxu0
        %5542 = vdwg.mxu0
        %5543 = vmatpush.bf16.msra.mxu0 %v5004
        %5544 = vmatpush.bf16.msra.mxu0 %v5000
        %5545 = vmatpush.bf16.msra.mxu0 %v4996
        %5546 = vmatpush.bf16.msra.mxu0 %v4992
        %5547 = vmatpush.bf16.msra.mxu0 %v4988
        %5548 = vmatpush.bf16.msra.mxu0 %v4984
        %5549 = vmatpush.bf16.msra.mxu0 %v4980
        %5550 = vmatpush.bf16.msra.mxu0 %v4976
        %5551 = vmatmul.bf16.gmra.mxu0 %v3849
        %v5552 = vpop.f32.mrf.mxu0
        %v5553 = vadd.f32 %v5540, %v5552
        %v5554 = vpop.f32.mrf.mxu0
        %5555 = vdwg.mxu0
        %5556 = vmatpush.bf16.msra.mxu0 %v5036
        %5557 = vmatpush.bf16.msra.mxu0 %v5032
        %5558 = vmatpush.bf16.msra.mxu0 %v5028
        %5559 = vmatpush.bf16.msra.mxu0 %v5024
        %5560 = vmatpush.bf16.msra.mxu0 %v5020
        %5561 = vmatpush.bf16.msra.mxu0 %v5016
        %5562 = vmatpush.bf16.msra.mxu0 %v5012
        %5563 = vmatpush.bf16.msra.mxu0 %v5008
        %5564 = vmatmul.bf16.gmra.mxu0 %v3850
        %v5565 = vpop.f32.mrf.mxu0
        %v5566 = vadd.f32 %v5553, %v5565
        %v5567 = vpop.f32.mrf.mxu0
        %5568 = vdwg.mxu0
        %5569 = vmatpush.bf16.msra.mxu0 %v5068
        %5570 = vmatpush.bf16.msra.mxu0 %v5064
        %5571 = vmatpush.bf16.msra.mxu0 %v5060
        %5572 = vmatpush.bf16.msra.mxu0 %v5056
        %5573 = vmatpush.bf16.msra.mxu0 %v5052
        %5574 = vmatpush.bf16.msra.mxu0 %v5048
        %5575 = vmatpush.bf16.msra.mxu0 %v5044
        %5576 = vmatpush.bf16.msra.mxu0 %v5040
        %5577 = vmatmul.bf16.gmra.mxu0 %v3851
        %v5578 = vpop.f32.mrf.mxu0
        %v5579 = vadd.f32 %v5566, %v5578
        %v5580 = vpop.f32.mrf.mxu0
        %5581 = vdwg.mxu0
        %5582 = vmatpush.bf16.msra.mxu0 %v5100
        %5583 = vmatpush.bf16.msra.mxu0 %v5096
        %5584 = vmatpush.bf16.msra.mxu0 %v5092
        %5585 = vmatpush.bf16.msra.mxu0 %v5088
        %5586 = vmatpush.bf16.msra.mxu0 %v5084
        %5587 = vmatpush.bf16.msra.mxu0 %v5080
        %5588 = vmatpush.bf16.msra.mxu0 %v5076
        %5589 = vmatpush.bf16.msra.mxu0 %v5072
        %5590 = vmatmul.bf16.gmra.mxu0 %v3852
        %v5591 = vpop.f32.mrf.mxu0
        %v5592 = vadd.f32 %v5579, %v5591
        %v5593 = vpop.f32.mrf.mxu0
        %5594 = vdwg.mxu0
        %5595 = vmatpush.bf16.msra.mxu0 %v5132
        %5596 = vmatpush.bf16.msra.mxu0 %v5128
        %5597 = vmatpush.bf16.msra.mxu0 %v5124
        %5598 = vmatpush.bf16.msra.mxu0 %v5120
        %5599 = vmatpush.bf16.msra.mxu0 %v5116
        %5600 = vmatpush.bf16.msra.mxu0 %v5112
        %5601 = vmatpush.bf16.msra.mxu0 %v5108
        %5602 = vmatpush.bf16.msra.mxu0 %v5104
        %5603 = vmatmul.bf16.gmra.mxu0 %v3853
        %v5604 = vpop.f32.mrf.mxu0
        %v5605 = vadd.f32 %v5592, %v5604
        %v5606 = vpop.f32.mrf.mxu0
        %5607 = vdwg.mxu0
        %5608 = vmatpush.bf16.msra.mxu0 %v4909
        %5609 = vmatpush.bf16.msra.mxu0 %v4905
        %5610 = vmatpush.bf16.msra.mxu0 %v4901
        %5611 = vmatpush.bf16.msra.mxu0 %v4897
        %5612 = vmatpush.bf16.msra.mxu0 %v4893
        %5613 = vmatpush.bf16.msra.mxu0 %v4889
        %5614 = vmatpush.bf16.msra.mxu0 %v4885
        %5615 = vmatpush.bf16.msra.mxu0 %v4881
        %5616 = vmatmul.bf16.gmra.mxu0 %v3846
        %v5617 = vpop.f32.mrf.mxu0
        %v5618 = vadd.f32 %v5394, %v5617
        %v5619 = vpop.f32.mrf.mxu0
        %5620 = vdwg.mxu0
        %5621 = vmatpush.bf16.msra.mxu0 %v4941
        %5622 = vmatpush.bf16.msra.mxu0 %v4937
        %5623 = vmatpush.bf16.msra.mxu0 %v4933
        %5624 = vmatpush.bf16.msra.mxu0 %v4929
        %5625 = vmatpush.bf16.msra.mxu0 %v4925
        %5626 = vmatpush.bf16.msra.mxu0 %v4921
        %5627 = vmatpush.bf16.msra.mxu0 %v4917
        %5628 = vmatpush.bf16.msra.mxu0 %v4913
        %5629 = vmatmul.bf16.gmra.mxu0 %v3847
        %v5630 = vpop.f32.mrf.mxu0
        %v5631 = vadd.f32 %v5618, %v5630
        %v5632 = vpop.f32.mrf.mxu0
        %5633 = vdwg.mxu0
        %5634 = vmatpush.bf16.msra.mxu0 %v4973
        %5635 = vmatpush.bf16.msra.mxu0 %v4969
        %5636 = vmatpush.bf16.msra.mxu0 %v4965
        %5637 = vmatpush.bf16.msra.mxu0 %v4961
        %5638 = vmatpush.bf16.msra.mxu0 %v4957
        %5639 = vmatpush.bf16.msra.mxu0 %v4953
        %5640 = vmatpush.bf16.msra.mxu0 %v4949
        %5641 = vmatpush.bf16.msra.mxu0 %v4945
        %5642 = vmatmul.bf16.gmra.mxu0 %v3848
        %v5643 = vpop.f32.mrf.mxu0
        %v5644 = vadd.f32 %v5631, %v5643
        %v5645 = vpop.f32.mrf.mxu0
        %5646 = vdwg.mxu0
        %5647 = vmatpush.bf16.msra.mxu0 %v5005
        %5648 = vmatpush.bf16.msra.mxu0 %v5001
        %5649 = vmatpush.bf16.msra.mxu0 %v4997
        %5650 = vmatpush.bf16.msra.mxu0 %v4993
        %5651 = vmatpush.bf16.msra.mxu0 %v4989
        %5652 = vmatpush.bf16.msra.mxu0 %v4985
        %5653 = vmatpush.bf16.msra.mxu0 %v4981
        %5654 = vmatpush.bf16.msra.mxu0 %v4977
        %5655 = vmatmul.bf16.gmra.mxu0 %v3849
        %v5656 = vpop.f32.mrf.mxu0
        %v5657 = vadd.f32 %v5644, %v5656
        %v5658 = vpop.f32.mrf.mxu0
        %5659 = vdwg.mxu0
        %5660 = vmatpush.bf16.msra.mxu0 %v5037
        %5661 = vmatpush.bf16.msra.mxu0 %v5033
        %5662 = vmatpush.bf16.msra.mxu0 %v5029
        %5663 = vmatpush.bf16.msra.mxu0 %v5025
        %5664 = vmatpush.bf16.msra.mxu0 %v5021
        %5665 = vmatpush.bf16.msra.mxu0 %v5017
        %5666 = vmatpush.bf16.msra.mxu0 %v5013
        %5667 = vmatpush.bf16.msra.mxu0 %v5009
        %5668 = vmatmul.bf16.gmra.mxu0 %v3850
        %v5669 = vpop.f32.mrf.mxu0
        %v5670 = vadd.f32 %v5657, %v5669
        %v5671 = vpop.f32.mrf.mxu0
        %5672 = vdwg.mxu0
        %5673 = vmatpush.bf16.msra.mxu0 %v5069
        %5674 = vmatpush.bf16.msra.mxu0 %v5065
        %5675 = vmatpush.bf16.msra.mxu0 %v5061
        %5676 = vmatpush.bf16.msra.mxu0 %v5057
        %5677 = vmatpush.bf16.msra.mxu0 %v5053
        %5678 = vmatpush.bf16.msra.mxu0 %v5049
        %5679 = vmatpush.bf16.msra.mxu0 %v5045
        %5680 = vmatpush.bf16.msra.mxu0 %v5041
        %5681 = vmatmul.bf16.gmra.mxu0 %v3851
        %v5682 = vpop.f32.mrf.mxu0
        %v5683 = vadd.f32 %v5670, %v5682
        %v5684 = vpop.f32.mrf.mxu0
        %5685 = vdwg.mxu0
        %5686 = vmatpush.bf16.msra.mxu0 %v5101
        %5687 = vmatpush.bf16.msra.mxu0 %v5097
        %5688 = vmatpush.bf16.msra.mxu0 %v5093
        %5689 = vmatpush.bf16.msra.mxu0 %v5089
        %5690 = vmatpush.bf16.msra.mxu0 %v5085
        %5691 = vmatpush.bf16.msra.mxu0 %v5081
        %5692 = vmatpush.bf16.msra.mxu0 %v5077
        %5693 = vmatpush.bf16.msra.mxu0 %v5073
        %5694 = vmatmul.bf16.gmra.mxu0 %v3852
        %v5695 = vpop.f32.mrf.mxu0
        %v5696 = vadd.f32 %v5683, %v5695
        %v5697 = vpop.f32.mrf.mxu0
        %5698 = vdwg.mxu0
        %5699 = vmatpush.bf16.msra.mxu0 %v5133
        %5700 = vmatpush.bf16.msra.mxu0 %v5129
        %5701 = vmatpush.bf16.msra.mxu0 %v5125
        %5702 = vmatpush.bf16.msra.mxu0 %v5121
        %5703 = vmatpush.bf16.msra.mxu0 %v5117
        %5704 = vmatpush.bf16.msra.mxu0 %v5113
        %5705 = vmatpush.bf16.msra.mxu0 %v5109
        %5706 = vmatpush.bf16.msra.mxu0 %v5105
        %5707 = vmatmul.bf16.gmra.mxu0 %v3853
        %v5708 = vpop.f32.mrf.mxu0
        %v5709 = vadd.f32 %v5696, %v5708
        %v5710 = vpop.f32.mrf.mxu0
        %5711 = vdwg.mxu0
        %5712 = vmatpush.bf16.msra.mxu0 %v4910
        %5713 = vmatpush.bf16.msra.mxu0 %v4906
        %5714 = vmatpush.bf16.msra.mxu0 %v4902
        %5715 = vmatpush.bf16.msra.mxu0 %v4898
        %5716 = vmatpush.bf16.msra.mxu0 %v4894
        %5717 = vmatpush.bf16.msra.mxu0 %v4890
        %5718 = vmatpush.bf16.msra.mxu0 %v4886
        %5719 = vmatpush.bf16.msra.mxu0 %v4882
        %5720 = vmatmul.bf16.gmra.mxu0 %v3846
        %v5721 = vpop.f32.mrf.mxu0
        %v5722 = vadd.f32 %v5395, %v5721
        %v5723 = vpop.f32.mrf.mxu0
        %5724 = vdwg.mxu0
        %5725 = vmatpush.bf16.msra.mxu0 %v4942
        %5726 = vmatpush.bf16.msra.mxu0 %v4938
        %5727 = vmatpush.bf16.msra.mxu0 %v4934
        %5728 = vmatpush.bf16.msra.mxu0 %v4930
        %5729 = vmatpush.bf16.msra.mxu0 %v4926
        %5730 = vmatpush.bf16.msra.mxu0 %v4922
        %5731 = vmatpush.bf16.msra.mxu0 %v4918
        %5732 = vmatpush.bf16.msra.mxu0 %v4914
        %5733 = vmatmul.bf16.gmra.mxu0 %v3847
        %v5734 = vpop.f32.mrf.mxu0
        %v5735 = vadd.f32 %v5722, %v5734
        %v5736 = vpop.f32.mrf.mxu0
        %5737 = vdwg.mxu0
        %5738 = vmatpush.bf16.msra.mxu0 %v4974
        %5739 = vmatpush.bf16.msra.mxu0 %v4970
        %5740 = vmatpush.bf16.msra.mxu0 %v4966
        %5741 = vmatpush.bf16.msra.mxu0 %v4962
        %5742 = vmatpush.bf16.msra.mxu0 %v4958
        %5743 = vmatpush.bf16.msra.mxu0 %v4954
        %5744 = vmatpush.bf16.msra.mxu0 %v4950
        %5745 = vmatpush.bf16.msra.mxu0 %v4946
        %5746 = vmatmul.bf16.gmra.mxu0 %v3848
        %v5747 = vpop.f32.mrf.mxu0
        %v5748 = vadd.f32 %v5735, %v5747
        %v5749 = vpop.f32.mrf.mxu0
        %5750 = vdwg.mxu0
        %5751 = vmatpush.bf16.msra.mxu0 %v5006
        %5752 = vmatpush.bf16.msra.mxu0 %v5002
        %5753 = vmatpush.bf16.msra.mxu0 %v4998
        %5754 = vmatpush.bf16.msra.mxu0 %v4994
        %5755 = vmatpush.bf16.msra.mxu0 %v4990
        %5756 = vmatpush.bf16.msra.mxu0 %v4986
        %5757 = vmatpush.bf16.msra.mxu0 %v4982
        %5758 = vmatpush.bf16.msra.mxu0 %v4978
        %5759 = vmatmul.bf16.gmra.mxu0 %v3849
        %v5760 = vpop.f32.mrf.mxu0
        %v5761 = vadd.f32 %v5748, %v5760
        %v5762 = vpop.f32.mrf.mxu0
        %5763 = vdwg.mxu0
        %5764 = vmatpush.bf16.msra.mxu0 %v5038
        %5765 = vmatpush.bf16.msra.mxu0 %v5034
        %5766 = vmatpush.bf16.msra.mxu0 %v5030
        %5767 = vmatpush.bf16.msra.mxu0 %v5026
        %5768 = vmatpush.bf16.msra.mxu0 %v5022
        %5769 = vmatpush.bf16.msra.mxu0 %v5018
        %5770 = vmatpush.bf16.msra.mxu0 %v5014
        %5771 = vmatpush.bf16.msra.mxu0 %v5010
        %5772 = vmatmul.bf16.gmra.mxu0 %v3850
        %v5773 = vpop.f32.mrf.mxu0
        %v5774 = vadd.f32 %v5761, %v5773
        %v5775 = vpop.f32.mrf.mxu0
        %5776 = vdwg.mxu0
        %5777 = vmatpush.bf16.msra.mxu0 %v5070
        %5778 = vmatpush.bf16.msra.mxu0 %v5066
        %5779 = vmatpush.bf16.msra.mxu0 %v5062
        %5780 = vmatpush.bf16.msra.mxu0 %v5058
        %5781 = vmatpush.bf16.msra.mxu0 %v5054
        %5782 = vmatpush.bf16.msra.mxu0 %v5050
        %5783 = vmatpush.bf16.msra.mxu0 %v5046
        %5784 = vmatpush.bf16.msra.mxu0 %v5042
        %5785 = vmatmul.bf16.gmra.mxu0 %v3851
        %v5786 = vpop.f32.mrf.mxu0
        %v5787 = vadd.f32 %v5774, %v5786
        %v5788 = vpop.f32.mrf.mxu0
        %5789 = vdwg.mxu0
        %5790 = vmatpush.bf16.msra.mxu0 %v5102
        %5791 = vmatpush.bf16.msra.mxu0 %v5098
        %5792 = vmatpush.bf16.msra.mxu0 %v5094
        %5793 = vmatpush.bf16.msra.mxu0 %v5090
        %5794 = vmatpush.bf16.msra.mxu0 %v5086
        %5795 = vmatpush.bf16.msra.mxu0 %v5082
        %5796 = vmatpush.bf16.msra.mxu0 %v5078
        %5797 = vmatpush.bf16.msra.mxu0 %v5074
        %5798 = vmatmul.bf16.gmra.mxu0 %v3852
        %v5799 = vpop.f32.mrf.mxu0
        %v5800 = vadd.f32 %v5787, %v5799
        %v5801 = vpop.f32.mrf.mxu0
        %5802 = vdwg.mxu0
        %5803 = vmatpush.bf16.msra.mxu0 %v5134
        %5804 = vmatpush.bf16.msra.mxu0 %v5130
        %5805 = vmatpush.bf16.msra.mxu0 %v5126
        %5806 = vmatpush.bf16.msra.mxu0 %v5122
        %5807 = vmatpush.bf16.msra.mxu0 %v5118
        %5808 = vmatpush.bf16.msra.mxu0 %v5114
        %5809 = vmatpush.bf16.msra.mxu0 %v5110
        %5810 = vmatpush.bf16.msra.mxu0 %v5106
        %5811 = vmatmul.bf16.gmra.mxu0 %v3853
        %v5812 = vpop.f32.mrf.mxu0
        %v5813 = vadd.f32 %v5800, %v5812
        %v5814 = vpop.f32.mrf.mxu0
        %5815 = vdwg.mxu0
        %v5816 = vld [vmem:[%s79] sm:$0xf]
        %v5818 = vperm.slane %v5816, 0
        %v5819 = vperm.slane %v5816, 1
        %v5820 = vperm.slane %v5816, 2
        %v5821 = vperm.slane %v5816, 3
        %v5826 = vmul.f32 %v5501, %v5818
        %v5827 = vmul.f32 %v5605, %v5819
        %v5828 = vmul.f32 %v5709, %v5820
        %v5829 = vmul.f32 %v5813, %v5821
        %v5830 = vld [vmem:[%s81] sm:$0xf]
        %v5832 = vperm.slane %v5830, 0
        %v5833 = vperm.slane %v5830, 1
        %v5834 = vperm.slane %v5830, 2
        %v5835 = vperm.slane %v5830, 3
        %v5840 = vadd.f32 %v5826, %v5832
        %v5841 = vadd.f32 %v5827, %v5833
        %v5842 = vadd.f32 %v5828, %v5834
        %v5843 = vadd.f32 %v5829, %v5835
        %v5844 = vmax.f32 %v5840, 0.0
        %v5845 = vmax.f32 %v5841, 0.0
        %v5846 = vmax.f32 %v5842, 0.0
        %v5847 = vmax.f32 %v5843, 0.0
        %v5848 = vpack.c.bf16 %v5844, %v5844
        %v5849 = vpack.c.bf16 %v5845, %v5845
        %v5850 = vpack.c.bf16 %v5846, %v5846
        %v5851 = vpack.c.bf16 %v5847, %v5847
        %v5852 = vld [vmem:[%s83] sm:$0xff]
        %v5853 = vld [vmem:[%s83 + $0x8] sm:$0xff]
        %v5854 = vld [vmem:[%s83 + $0x10] sm:$0xff]
        %v5855 = vld [vmem:[%s83 + $0x18] sm:$0xff]
        %v5856 = vld [vmem:[%s83 + $0x20] sm:$0xff]
        %v5857 = vld [vmem:[%s83 + $0x28] sm:$0xff]
        %v5858 = vld [vmem:[%s83 + $0x30] sm:$0xff]
        %v5859 = vld [vmem:[%s83 + $0x38] sm:$0xff]
        %v5860 = vld [vmem:[%s83 + $0x40] sm:$0xff]
        %v5861 = vld [vmem:[%s83 + $0x48] sm:$0xff]
        %v5862 = vld [vmem:[%s83 + $0x50] sm:$0xff]
        %v5863 = vld [vmem:[%s83 + $0x58] sm:$0xff]
        %v5864 = vld [vmem:[%s83 + $0x60] sm:$0xff]
        %v5865 = vld [vmem:[%s83 + $0x68] sm:$0xff]
        %v5866 = vld [vmem:[%s83 + $0x70] sm:$0xff]
        %v5867 = vld [vmem:[%s83 + $0x78] sm:$0xff]
        %v5868 = vld [vmem:[%s83 + $0x80] sm:$0xff]
        %v5869 = vld [vmem:[%s83 + $0x88] sm:$0xff]
        %v5870 = vld [vmem:[%s83 + $0x90] sm:$0xff]
        %v5871 = vld [vmem:[%s83 + $0x98] sm:$0xff]
        %v5872 = vld [vmem:[%s83 + $0xa0] sm:$0xff]
        %v5873 = vld [vmem:[%s83 + $0xa8] sm:$0xff]
        %v5874 = vld [vmem:[%s83 + $0xb0] sm:$0xff]
        %v5875 = vld [vmem:[%s83 + $0xb8] sm:$0xff]
        %v5876 = vld [vmem:[%s83 + $0xc0] sm:$0xff]
        %v5877 = vld [vmem:[%s83 + $0xc8] sm:$0xff]
        %v5878 = vld [vmem:[%s83 + $0xd0] sm:$0xff]
        %v5879 = vld [vmem:[%s83 + $0xd8] sm:$0xff]
        %v5880 = vld [vmem:[%s83 + $0xe0] sm:$0xff]
        %v5881 = vld [vmem:[%s83 + $0xe8] sm:$0xff]
        %v5882 = vld [vmem:[%s83 + $0xf0] sm:$0xff]
        %v5883 = vld [vmem:[%s83 + $0xf8] sm:$0xff]
        %v5884 = vld [vmem:[%s83 + $0x100] sm:$0xff]
        %v5885 = vld [vmem:[%s83 + $0x108] sm:$0xff]
        %v5886 = vld [vmem:[%s83 + $0x110] sm:$0xff]
        %v5887 = vld [vmem:[%s83 + $0x118] sm:$0xff]
        %v5888 = vld [vmem:[%s83 + $0x120] sm:$0xff]
        %v5889 = vld [vmem:[%s83 + $0x128] sm:$0xff]
        %v5890 = vld [vmem:[%s83 + $0x130] sm:$0xff]
        %v5891 = vld [vmem:[%s83 + $0x138] sm:$0xff]
        %v5892 = vld [vmem:[%s83 + $0x140] sm:$0xff]
        %v5893 = vld [vmem:[%s83 + $0x148] sm:$0xff]
        %v5894 = vld [vmem:[%s83 + $0x150] sm:$0xff]
        %v5895 = vld [vmem:[%s83 + $0x158] sm:$0xff]
        %v5896 = vld [vmem:[%s83 + $0x160] sm:$0xff]
        %v5897 = vld [vmem:[%s83 + $0x168] sm:$0xff]
        %v5898 = vld [vmem:[%s83 + $0x170] sm:$0xff]
        %v5899 = vld [vmem:[%s83 + $0x178] sm:$0xff]
        %v5900 = vld [vmem:[%s83 + $0x180] sm:$0xff]
        %v5901 = vld [vmem:[%s83 + $0x188] sm:$0xff]
        %v5902 = vld [vmem:[%s83 + $0x190] sm:$0xff]
        %v5903 = vld [vmem:[%s83 + $0x198] sm:$0xff]
        %v5904 = vld [vmem:[%s83 + $0x1a0] sm:$0xff]
        %v5905 = vld [vmem:[%s83 + $0x1a8] sm:$0xff]
        %v5906 = vld [vmem:[%s83 + $0x1b0] sm:$0xff]
        %v5907 = vld [vmem:[%s83 + $0x1b8] sm:$0xff]
        %v5908 = vld [vmem:[%s83 + $0x1c0] sm:$0xff]
        %v5909 = vld [vmem:[%s83 + $0x1c8] sm:$0xff]
        %v5910 = vld [vmem:[%s83 + $0x1d0] sm:$0xff]
        %v5911 = vld [vmem:[%s83 + $0x1d8] sm:$0xff]
        %v5912 = vld [vmem:[%s83 + $0x1e0] sm:$0xff]
        %v5913 = vld [vmem:[%s83 + $0x1e8] sm:$0xff]
        %v5914 = vld [vmem:[%s83 + $0x1f0] sm:$0xff]
        %v5915 = vld [vmem:[%s83 + $0x1f8] sm:$0xff]
        %v5916 = vld [vmem:[%s85] sm:$0x3]
        %v5981 = vunpack.c.l.b16 %v5852
        %v5982 = vunpack.c.h.b16 %v5852
        %v5983 = vunpack.c.l.b16 %v5853
        %v5984 = vunpack.c.h.b16 %v5853
        %v5985 = vunpack.c.l.b16 %v5854
        %v5986 = vunpack.c.h.b16 %v5854
        %v5987 = vunpack.c.l.b16 %v5855
        %v5988 = vunpack.c.h.b16 %v5855
        %v5989 = vunpack.c.l.b16 %v5856
        %v5990 = vunpack.c.h.b16 %v5856
        %v5991 = vunpack.c.l.b16 %v5857
        %v5992 = vunpack.c.h.b16 %v5857
        %v5993 = vunpack.c.l.b16 %v5858
        %v5994 = vunpack.c.h.b16 %v5858
        %v5995 = vunpack.c.l.b16 %v5859
        %v5996 = vunpack.c.h.b16 %v5859
        %v5997 = vunpack.c.l.b16 %v5860
        %v5998 = vunpack.c.h.b16 %v5860
        %v5999 = vunpack.c.l.b16 %v5861
        %v6000 = vunpack.c.h.b16 %v5861
        %v6001 = vunpack.c.l.b16 %v5862
        %v6002 = vunpack.c.h.b16 %v5862
        %v6003 = vunpack.c.l.b16 %v5863
        %v6004 = vunpack.c.h.b16 %v5863
        %v6005 = vunpack.c.l.b16 %v5864
        %v6006 = vunpack.c.h.b16 %v5864
        %v6007 = vunpack.c.l.b16 %v5865
        %v6008 = vunpack.c.h.b16 %v5865
        %v6009 = vunpack.c.l.b16 %v5866
        %v6010 = vunpack.c.h.b16 %v5866
        %v6011 = vunpack.c.l.b16 %v5867
        %v6012 = vunpack.c.h.b16 %v5867
        %v6013 = vunpack.c.l.b16 %v5868
        %v6014 = vunpack.c.h.b16 %v5868
        %v6015 = vunpack.c.l.b16 %v5869
        %v6016 = vunpack.c.h.b16 %v5869
        %v6017 = vunpack.c.l.b16 %v5870
        %v6018 = vunpack.c.h.b16 %v5870
        %v6019 = vunpack.c.l.b16 %v5871
        %v6020 = vunpack.c.h.b16 %v5871
        %v6021 = vunpack.c.l.b16 %v5872
        %v6022 = vunpack.c.h.b16 %v5872
        %v6023 = vunpack.c.l.b16 %v5873
        %v6024 = vunpack.c.h.b16 %v5873
        %v6025 = vunpack.c.l.b16 %v5874
        %v6026 = vunpack.c.h.b16 %v5874
        %v6027 = vunpack.c.l.b16 %v5875
        %v6028 = vunpack.c.h.b16 %v5875
        %v6029 = vunpack.c.l.b16 %v5876
        %v6030 = vunpack.c.h.b16 %v5876
        %v6031 = vunpack.c.l.b16 %v5877
        %v6032 = vunpack.c.h.b16 %v5877
        %v6033 = vunpack.c.l.b16 %v5878
        %v6034 = vunpack.c.h.b16 %v5878
        %v6035 = vunpack.c.l.b16 %v5879
        %v6036 = vunpack.c.h.b16 %v5879
        %v6037 = vunpack.c.l.b16 %v5880
        %v6038 = vunpack.c.h.b16 %v5880
        %v6039 = vunpack.c.l.b16 %v5881
        %v6040 = vunpack.c.h.b16 %v5881
        %v6041 = vunpack.c.l.b16 %v5882
        %v6042 = vunpack.c.h.b16 %v5882
        %v6043 = vunpack.c.l.b16 %v5883
        %v6044 = vunpack.c.h.b16 %v5883
        %v6045 = vunpack.c.l.b16 %v5884
        %v6046 = vunpack.c.h.b16 %v5884
        %v6047 = vunpack.c.l.b16 %v5885
        %v6048 = vunpack.c.h.b16 %v5885
        %v6049 = vunpack.c.l.b16 %v5886
        %v6050 = vunpack.c.h.b16 %v5886
        %v6051 = vunpack.c.l.b16 %v5887
        %v6052 = vunpack.c.h.b16 %v5887
        %v6053 = vunpack.c.l.b16 %v5888
        %v6054 = vunpack.c.h.b16 %v5888
        %v6055 = vunpack.c.l.b16 %v5889
        %v6056 = vunpack.c.h.b16 %v5889
        %v6057 = vunpack.c.l.b16 %v5890
        %v6058 = vunpack.c.h.b16 %v5890
        %v6059 = vunpack.c.l.b16 %v5891
        %v6060 = vunpack.c.h.b16 %v5891
        %v6061 = vunpack.c.l.b16 %v5892
        %v6062 = vunpack.c.h.b16 %v5892
        %v6063 = vunpack.c.l.b16 %v5893
        %v6064 = vunpack.c.h.b16 %v5893
        %v6065 = vunpack.c.l.b16 %v5894
        %v6066 = vunpack.c.h.b16 %v5894
        %v6067 = vunpack.c.l.b16 %v5895
        %v6068 = vunpack.c.h.b16 %v5895
        %v6069 = vunpack.c.l.b16 %v5896
        %v6070 = vunpack.c.h.b16 %v5896
        %v6071 = vunpack.c.l.b16 %v5897
        %v6072 = vunpack.c.h.b16 %v5897
        %v6073 = vunpack.c.l.b16 %v5898
        %v6074 = vunpack.c.h.b16 %v5898
        %v6075 = vunpack.c.l.b16 %v5899
        %v6076 = vunpack.c.h.b16 %v5899
        %v6077 = vunpack.c.l.b16 %v5900
        %v6078 = vunpack.c.h.b16 %v5900
        %v6079 = vunpack.c.l.b16 %v5901
        %v6080 = vunpack.c.h.b16 %v5901
        %v6081 = vunpack.c.l.b16 %v5902
        %v6082 = vunpack.c.h.b16 %v5902
        %v6083 = vunpack.c.l.b16 %v5903
        %v6084 = vunpack.c.h.b16 %v5903
        %v6085 = vunpack.c.l.b16 %v5904
        %v6086 = vunpack.c.h.b16 %v5904
        %v6087 = vunpack.c.l.b16 %v5905
        %v6088 = vunpack.c.h.b16 %v5905
        %v6089 = vunpack.c.l.b16 %v5906
        %v6090 = vunpack.c.h.b16 %v5906
        %v6091 = vunpack.c.l.b16 %v5907
        %v6092 = vunpack.c.h.b16 %v5907
        %v6093 = vunpack.c.l.b16 %v5908
        %v6094 = vunpack.c.h.b16 %v5908
        %v6095 = vunpack.c.l.b16 %v5909
        %v6096 = vunpack.c.h.b16 %v5909
        %v6097 = vunpack.c.l.b16 %v5910
        %v6098 = vunpack.c.h.b16 %v5910
        %v6099 = vunpack.c.l.b16 %v5911
        %v6100 = vunpack.c.h.b16 %v5911
        %v6101 = vunpack.c.l.b16 %v5912
        %v6102 = vunpack.c.h.b16 %v5912
        %v6103 = vunpack.c.l.b16 %v5913
        %v6104 = vunpack.c.h.b16 %v5913
        %v6105 = vunpack.c.l.b16 %v5914
        %v6106 = vunpack.c.h.b16 %v5914
        %v6107 = vunpack.c.l.b16 %v5915
        %v6108 = vunpack.c.h.b16 %v5915
        %v6109 = vpack.c.b16 %v5983, %v5981
        %v6110 = vpack.c.b16 %v5984, %v5982
        %v6111 = vpack.c.b16 %v5987, %v5985
        %v6112 = vpack.c.b16 %v5988, %v5986
        %v6113 = vpack.c.b16 %v5991, %v5989
        %v6114 = vpack.c.b16 %v5992, %v5990
        %v6115 = vpack.c.b16 %v5995, %v5993
        %v6116 = vpack.c.b16 %v5996, %v5994
        %v6117 = vpack.c.b16 %v5999, %v5997
        %v6118 = vpack.c.b16 %v6000, %v5998
        %v6119 = vpack.c.b16 %v6003, %v6001
        %v6120 = vpack.c.b16 %v6004, %v6002
        %v6121 = vpack.c.b16 %v6007, %v6005
        %v6122 = vpack.c.b16 %v6008, %v6006
        %v6123 = vpack.c.b16 %v6011, %v6009
        %v6124 = vpack.c.b16 %v6012, %v6010
        %v6125 = vpack.c.b16 %v6015, %v6013
        %v6126 = vpack.c.b16 %v6016, %v6014
        %v6127 = vpack.c.b16 %v6019, %v6017
        %v6128 = vpack.c.b16 %v6020, %v6018
        %v6129 = vpack.c.b16 %v6023, %v6021
        %v6130 = vpack.c.b16 %v6024, %v6022
        %v6131 = vpack.c.b16 %v6027, %v6025
        %v6132 = vpack.c.b16 %v6028, %v6026
        %v6133 = vpack.c.b16 %v6031, %v6029
        %v6134 = vpack.c.b16 %v6032, %v6030
        %v6135 = vpack.c.b16 %v6035, %v6033
        %v6136 = vpack.c.b16 %v6036, %v6034
        %v6137 = vpack.c.b16 %v6039, %v6037
        %v6138 = vpack.c.b16 %v6040, %v6038
        %v6139 = vpack.c.b16 %v6043, %v6041
        %v6140 = vpack.c.b16 %v6044, %v6042
        %v6141 = vpack.c.b16 %v6047, %v6045
        %v6142 = vpack.c.b16 %v6048, %v6046
        %v6143 = vpack.c.b16 %v6051, %v6049
        %v6144 = vpack.c.b16 %v6052, %v6050
        %v6145 = vpack.c.b16 %v6055, %v6053
        %v6146 = vpack.c.b16 %v6056, %v6054
        %v6147 = vpack.c.b16 %v6059, %v6057
        %v6148 = vpack.c.b16 %v6060, %v6058
        %v6149 = vpack.c.b16 %v6063, %v6061
        %v6150 = vpack.c.b16 %v6064, %v6062
        %v6151 = vpack.c.b16 %v6067, %v6065
        %v6152 = vpack.c.b16 %v6068, %v6066
        %v6153 = vpack.c.b16 %v6071, %v6069
        %v6154 = vpack.c.b16 %v6072, %v6070
        %v6155 = vpack.c.b16 %v6075, %v6073
        %v6156 = vpack.c.b16 %v6076, %v6074
        %v6157 = vpack.c.b16 %v6079, %v6077
        %v6158 = vpack.c.b16 %v6080, %v6078
        %v6159 = vpack.c.b16 %v6083, %v6081
        %v6160 = vpack.c.b16 %v6084, %v6082
        %v6161 = vpack.c.b16 %v6087, %v6085
        %v6162 = vpack.c.b16 %v6088, %v6086
        %v6163 = vpack.c.b16 %v6091, %v6089
        %v6164 = vpack.c.b16 %v6092, %v6090
        %v6165 = vpack.c.b16 %v6095, %v6093
        %v6166 = vpack.c.b16 %v6096, %v6094
        %v6167 = vpack.c.b16 %v6099, %v6097
        %v6168 = vpack.c.b16 %v6100, %v6098
        %v6169 = vpack.c.b16 %v6103, %v6101
        %v6170 = vpack.c.b16 %v6104, %v6102
        %v6171 = vpack.c.b16 %v6107, %v6105
        %v6172 = vpack.c.b16 %v6108, %v6106
        %v6238 = vperm.slane %v5916, 0
        %v6239 = vperm.slane %v5916, 1
        %6242 = vmatpush.bf16.msra.mxu0 %v6123
        %6243 = vmatpush.bf16.msra.mxu0 %v6121
        %6244 = vmatpush.bf16.msra.mxu0 %v6119
        %6245 = vmatpush.bf16.msra.mxu0 %v6117
        %6246 = vmatpush.bf16.msra.mxu0 %v6115
        %6247 = vmatpush.bf16.msra.mxu0 %v6113
        %6248 = vmatpush.bf16.msra.mxu0 %v6111
        %6249 = vmatpush.bf16.msra.mxu0 %v6109
        %6250 = vmatmul.bf16.gmra.mxu0 %v5848
        %v6251 = vpop.f32.mrf.mxu0
        %v6252 = vadd.f32 %v6238, %v6251
        %v6253 = vpop.f32.mrf.mxu0
        %6254 = vdwg.mxu0
        %6255 = vmatpush.bf16.msra.mxu0 %v6139
        %6256 = vmatpush.bf16.msra.mxu0 %v6137
        %6257 = vmatpush.bf16.msra.mxu0 %v6135
        %6258 = vmatpush.bf16.msra.mxu0 %v6133
        %6259 = vmatpush.bf16.msra.mxu0 %v6131
        %6260 = vmatpush.bf16.msra.mxu0 %v6129
        %6261 = vmatpush.bf16.msra.mxu0 %v6127
        %6262 = vmatpush.bf16.msra.mxu0 %v6125
        %6263 = vmatmul.bf16.gmra.mxu0 %v5849
        %v6264 = vpop.f32.mrf.mxu0
        %v6265 = vadd.f32 %v6252, %v6264
        %v6266 = vpop.f32.mrf.mxu0
        %6267 = vdwg.mxu0
        %6268 = vmatpush.bf16.msra.mxu0 %v6155
        %6269 = vmatpush.bf16.msra.mxu0 %v6153
        %6270 = vmatpush.bf16.msra.mxu0 %v6151
        %6271 = vmatpush.bf16.msra.mxu0 %v6149
        %6272 = vmatpush.bf16.msra.mxu0 %v6147
        %6273 = vmatpush.bf16.msra.mxu0 %v6145
        %6274 = vmatpush.bf16.msra.mxu0 %v6143
        %6275 = vmatpush.bf16.msra.mxu0 %v6141
        %6276 = vmatmul.bf16.gmra.mxu0 %v5850
        %v6277 = vpop.f32.mrf.mxu0
        %v6278 = vadd.f32 %v6265, %v6277
        %v6279 = vpop.f32.mrf.mxu0
        %6280 = vdwg.mxu0
        %6281 = vmatpush.bf16.msra.mxu0 %v6171
        %6282 = vmatpush.bf16.msra.mxu0 %v6169
        %6283 = vmatpush.bf16.msra.mxu0 %v6167
        %6284 = vmatpush.bf16.msra.mxu0 %v6165
        %6285 = vmatpush.bf16.msra.mxu0 %v6163
        %6286 = vmatpush.bf16.msra.mxu0 %v6161
        %6287 = vmatpush.bf16.msra.mxu0 %v6159
        %6288 = vmatpush.bf16.msra.mxu0 %v6157
        %6289 = vmatmul.bf16.gmra.mxu0 %v5851
        %v6290 = vpop.f32.mrf.mxu0
        %v6291 = vadd.f32 %v6278, %v6290
        %v6292 = vpop.f32.mrf.mxu0
        %6293 = vdwg.mxu0
        %6294 = vmatpush.bf16.msra.mxu0 %v6124
        %6295 = vmatpush.bf16.msra.mxu0 %v6122
        %6296 = vmatpush.bf16.msra.mxu0 %v6120
        %6297 = vmatpush.bf16.msra.mxu0 %v6118
        %6298 = vmatpush.bf16.msra.mxu0 %v6116
        %6299 = vmatpush.bf16.msra.mxu0 %v6114
        %6300 = vmatpush.bf16.msra.mxu0 %v6112
        %6301 = vmatpush.bf16.msra.mxu0 %v6110
        %6302 = vmatmul.bf16.gmra.mxu0 %v5848
        %v6303 = vpop.f32.mrf.mxu0
        %v6304 = vadd.f32 %v6239, %v6303
        %v6305 = vpop.f32.mrf.mxu0
        %6306 = vdwg.mxu0
        %6307 = vmatpush.bf16.msra.mxu0 %v6140
        %6308 = vmatpush.bf16.msra.mxu0 %v6138
        %6309 = vmatpush.bf16.msra.mxu0 %v6136
        %6310 = vmatpush.bf16.msra.mxu0 %v6134
        %6311 = vmatpush.bf16.msra.mxu0 %v6132
        %6312 = vmatpush.bf16.msra.mxu0 %v6130
        %6313 = vmatpush.bf16.msra.mxu0 %v6128
        %6314 = vmatpush.bf16.msra.mxu0 %v6126
        %6315 = vmatmul.bf16.gmra.mxu0 %v5849
        %v6316 = vpop.f32.mrf.mxu0
        %v6317 = vadd.f32 %v6304, %v6316
        %v6318 = vpop.f32.mrf.mxu0
        %6319 = vdwg.mxu0
        %6320 = vmatpush.bf16.msra.mxu0 %v6156
        %6321 = vmatpush.bf16.msra.mxu0 %v6154
        %6322 = vmatpush.bf16.msra.mxu0 %v6152
        %6323 = vmatpush.bf16.msra.mxu0 %v6150
        %6324 = vmatpush.bf16.msra.mxu0 %v6148
        %6325 = vmatpush.bf16.msra.mxu0 %v6146
        %6326 = vmatpush.bf16.msra.mxu0 %v6144
        %6327 = vmatpush.bf16.msra.mxu0 %v6142
        %6328 = vmatmul.bf16.gmra.mxu0 %v5850
        %v6329 = vpop.f32.mrf.mxu0
        %v6330 = vadd.f32 %v6317, %v6329
        %v6331 = vpop.f32.mrf.mxu0
        %6332 = vdwg.mxu0
        %6333 = vmatpush.bf16.msra.mxu0 %v6172
        %6334 = vmatpush.bf16.msra.mxu0 %v6170
        %6335 = vmatpush.bf16.msra.mxu0 %v6168
        %6336 = vmatpush.bf16.msra.mxu0 %v6166
        %6337 = vmatpush.bf16.msra.mxu0 %v6164
        %6338 = vmatpush.bf16.msra.mxu0 %v6162
        %6339 = vmatpush.bf16.msra.mxu0 %v6160
        %6340 = vmatpush.bf16.msra.mxu0 %v6158
        %6341 = vmatmul.bf16.gmra.mxu0 %v5851
        %v6342 = vpop.f32.mrf.mxu0
        %v6343 = vadd.f32 %v6330, %v6342
        %v6344 = vpop.f32.mrf.mxu0
        %6345 = vdwg.mxu0
        %v6346 = vld [vmem:[%s87] sm:$0x3]
        %v6348 = vperm.slane %v6346, 0
        %v6349 = vperm.slane %v6346, 1
        %v6352 = vmul.f32 %v6291, %v6348
        %v6353 = vmul.f32 %v6343, %v6349
        %v6354 = vld [vmem:[%s89] sm:$0x3]
        %v6356 = vperm.slane %v6354, 0
        %v6357 = vperm.slane %v6354, 1
        %v6360 = vadd.f32 %v6352, %v6356
        %v6361 = vadd.f32 %v6353, %v6357
        %v6362 = vmax.f32 %v6360, 0.0
        %v6363 = vmax.f32 %v6361, 0.0
        %v6364 = vpack.c.bf16 %v6362, %v6362
        %v6365 = vpack.c.bf16 %v6363, %v6363
        %v6366 = vld [vmem:[%s91] sm:$0xf]
        %v6367 = vld [vmem:[%s91 + $0x4] sm:$0xf]
        %v6368 = vld [vmem:[%s91 + $0x8] sm:$0xf]
        %v6369 = vld [vmem:[%s91 + $0xc] sm:$0xf]
        %v6370 = vld [vmem:[%s91 + $0x10] sm:$0xf]
        %v6371 = vld [vmem:[%s91 + $0x14] sm:$0xf]
        %v6372 = vld [vmem:[%s91 + $0x18] sm:$0xf]
        %v6373 = vld [vmem:[%s91 + $0x1c] sm:$0xf]
        %v6374 = vld [vmem:[%s91 + $0x20] sm:$0xf]
        %v6375 = vld [vmem:[%s91 + $0x24] sm:$0xf]
        %v6376 = vld [vmem:[%s91 + $0x28] sm:$0xf]
        %v6377 = vld [vmem:[%s91 + $0x2c] sm:$0xf]
        %v6378 = vld [vmem:[%s91 + $0x30] sm:$0xf]
        %v6379 = vld [vmem:[%s91 + $0x34] sm:$0xf]
        %v6380 = vld [vmem:[%s91 + $0x38] sm:$0xf]
        %v6381 = vld [vmem:[%s91 + $0x3c] sm:$0xf]
        %v6382 = vld [vmem:[%s91 + $0x40] sm:$0xf]
        %v6383 = vld [vmem:[%s91 + $0x44] sm:$0xf]
        %v6384 = vld [vmem:[%s91 + $0x48] sm:$0xf]
        %v6385 = vld [vmem:[%s91 + $0x4c] sm:$0xf]
        %v6386 = vld [vmem:[%s91 + $0x50] sm:$0xf]
        %v6387 = vld [vmem:[%s91 + $0x54] sm:$0xf]
        %v6388 = vld [vmem:[%s91 + $0x58] sm:$0xf]
        %v6389 = vld [vmem:[%s91 + $0x5c] sm:$0xf]
        %v6390 = vld [vmem:[%s91 + $0x60] sm:$0xf]
        %v6391 = vld [vmem:[%s91 + $0x64] sm:$0xf]
        %v6392 = vld [vmem:[%s91 + $0x68] sm:$0xf]
        %v6393 = vld [vmem:[%s91 + $0x6c] sm:$0xf]
        %v6394 = vld [vmem:[%s91 + $0x70] sm:$0xf]
        %v6395 = vld [vmem:[%s91 + $0x74] sm:$0xf]
        %v6396 = vld [vmem:[%s91 + $0x78] sm:$0xf]
        %v6397 = vld [vmem:[%s91 + $0x7c] sm:$0xf]
        %v6398 = vld [vmem:[#allocation11] sm:$0x1]
        %v6431 = vunpack.c.l.b16 %v6366
        %v6432 = vunpack.c.l.b16 %v6367
        %v6433 = vunpack.c.l.b16 %v6368
        %v6434 = vunpack.c.l.b16 %v6369
        %v6435 = vunpack.c.l.b16 %v6370
        %v6436 = vunpack.c.l.b16 %v6371
        %v6437 = vunpack.c.l.b16 %v6372
        %v6438 = vunpack.c.l.b16 %v6373
        %v6439 = vunpack.c.l.b16 %v6374
        %v6440 = vunpack.c.l.b16 %v6375
        %v6441 = vunpack.c.l.b16 %v6376
        %v6442 = vunpack.c.l.b16 %v6377
        %v6443 = vunpack.c.l.b16 %v6378
        %v6444 = vunpack.c.l.b16 %v6379
        %v6445 = vunpack.c.l.b16 %v6380
        %v6446 = vunpack.c.l.b16 %v6381
        %v6447 = vunpack.c.l.b16 %v6382
        %v6448 = vunpack.c.l.b16 %v6383
        %v6449 = vunpack.c.l.b16 %v6384
        %v6450 = vunpack.c.l.b16 %v6385
        %v6451 = vunpack.c.l.b16 %v6386
        %v6452 = vunpack.c.l.b16 %v6387
        %v6453 = vunpack.c.l.b16 %v6388
        %v6454 = vunpack.c.l.b16 %v6389
        %v6455 = vunpack.c.l.b16 %v6390
        %v6456 = vunpack.c.l.b16 %v6391
        %v6457 = vunpack.c.l.b16 %v6392
        %v6458 = vunpack.c.l.b16 %v6393
        %v6459 = vunpack.c.l.b16 %v6394
        %v6460 = vunpack.c.l.b16 %v6395
        %v6461 = vunpack.c.l.b16 %v6396
        %v6462 = vunpack.c.l.b16 %v6397
        %v6463 = vpack.c.b16 %v6432, %v6431
        %v6464 = vpack.c.b16 %v6434, %v6433
        %v6465 = vpack.c.b16 %v6436, %v6435
        %v6466 = vpack.c.b16 %v6438, %v6437
        %v6467 = vpack.c.b16 %v6440, %v6439
        %v6468 = vpack.c.b16 %v6442, %v6441
        %v6469 = vpack.c.b16 %v6444, %v6443
        %v6470 = vpack.c.b16 %v6446, %v6445
        %v6471 = vpack.c.b16 %v6448, %v6447
        %v6472 = vpack.c.b16 %v6450, %v6449
        %v6473 = vpack.c.b16 %v6452, %v6451
        %v6474 = vpack.c.b16 %v6454, %v6453
        %v6475 = vpack.c.b16 %v6456, %v6455
        %v6476 = vpack.c.b16 %v6458, %v6457
        %v6477 = vpack.c.b16 %v6460, %v6459
        %v6478 = vpack.c.b16 %v6462, %v6461
        %6495 = vmatpush.bf16.msra.mxu0 %v6470
        %6496 = vmatpush.bf16.msra.mxu0 %v6469
        %6497 = vmatpush.bf16.msra.mxu0 %v6468
        %6498 = vmatpush.bf16.msra.mxu0 %v6467
        %6499 = vmatpush.bf16.msra.mxu0 %v6466
        %6500 = vmatpush.bf16.msra.mxu0 %v6465
        %6501 = vmatpush.bf16.msra.mxu0 %v6464
        %6502 = vmatpush.bf16.msra.mxu0 %v6463
        %6503 = vmatmul.bf16.gmra.mxu0 %v6364
        %v6504 = vpop.f32.mrf.mxu0
        %v6505 = vadd.f32 %v6398, %v6504
        %v6506 = vpop.f32.mrf.mxu0
        %6507 = vdwg.mxu0
        %6508 = vmatpush.bf16.msra.mxu0 %v6478
        %6509 = vmatpush.bf16.msra.mxu0 %v6477
        %6510 = vmatpush.bf16.msra.mxu0 %v6476
        %6511 = vmatpush.bf16.msra.mxu0 %v6475
        %6512 = vmatpush.bf16.msra.mxu0 %v6474
        %6513 = vmatpush.bf16.msra.mxu0 %v6473
        %6514 = vmatpush.bf16.msra.mxu0 %v6472
        %6515 = vmatpush.bf16.msra.mxu0 %v6471
        %6516 = vmatmul.bf16.gmra.mxu0 %v6365
        %v6517 = vpop.f32.mrf.mxu0
        %v6518 = vadd.f32 %v6505, %v6517
        %v6519 = vpop.f32.mrf.mxu0
        %6520 = vdwg.mxu0
        %6521 = vst [vmem:[%s1488] sm:$0x1] %v6518
        %s6522 = sand.u32 %s1113, 1
        %s6523 = scalar_lea.sflag [#allocation4], %s6522
        %s6524 = sand.u32 %s1113, 1
        %s6525 = scalar_lea.vmem [#allocation13], %s6524
        // Predicated region
        $region233: #{maskvit_forward.1} parent=207 // pred_check
          %p6526 = pneg %p1123
        $region234: #{maskvit_forward.1} parent=207 // pred_check_branch
          %6528 = sbr.rel (%p6526) target = $region236
        $region235: #{maskvit_forward.1} parent=207 // pred_region
          %6530 = vsyncadd %s6523, 0
          %s6531 = scalar_lea.hbm %s95, %s113
          %s6533 = sshll.u32 %s6525, 4
          %s6534 = int_to_ptr.vmem [resolvable:$true] %s6533
          %s6535 = sshll.u32 %s6531, 4
          %s6536 = int_to_ptr.hbm [resolvable:$true] %s6535
          %6538 = dma.vmem_to_hbm [thread:$0]  %s6534, 16, %s6536, %s6523
        $region236: #{maskvit_forward.1} parent=207 // pred_fallthru
          _
      $region208: #{maskvit_forward.1} parent=5 // pred_fallthru
        _
      %p6539 = scmp.le.s32.totalorder 2, %s108
      // Predicated region
      $region237: #{maskvit_forward.1} parent=5 // pred_check
        %p6540 = pneg %p6539
      $region238: #{maskvit_forward.1} parent=5 // pred_check_branch
        %6542 = sbr.rel (%p6540) target = $region240
      $region239: #{maskvit_forward.1} parent=5 // pred_region
        %s6543 = ssub.s32 %s108, 2
        // Predicated region
        $region241: #{maskvit_forward.1} parent=239 // pred_check
          %p6544 = pneg %p1129
        $region242: #{maskvit_forward.1} parent=239 // pred_check_branch
          %6546 = sbr.rel (%p6544) target = $region244
        $region243: #{maskvit_forward.1} parent=239 // pred_region
          %s6547 = sand.u32 %s1114, 1
          %s6548 = scalar_lea.sflag [#allocation4], %s6547
          %s6549 = sand.u32 %s1114, 1
          %s6550 = scalar_lea.vmem [#allocation13], %s6549
          %6552 = dma.done %s6548, 16
        $region244: #{maskvit_forward.1} parent=239 // pred_fallthru
          _
      $region240: #{maskvit_forward.1} parent=5 // pred_fallthru
        _
    $region6: #{maskvit_forward.1} parent=1 // loop_footer
      %s112 = sadd.s32 1, %s108
    $region7: #{maskvit_forward.1} parent=1 // loop_footer_branch
      %107 = sbr.rel target = $region3
    $region8: #{maskvit_forward.1} parent=1 // loop_exit
      _
    %6553 = vsyncpa [#allocation3], 1
    %s6554 = scalar_lea.sflag [#allocation3], 1
    %6555 = vsyncpa %s6554, 1
    %6556 = vsyncpa [#allocation6], 1
    %6557 = vsyncpa [#allocation9], 1
    %6558 = vsyncpa [#allocation12], 1
    %6559 = vsyncpa [#allocation4], 1
    %s6560 = scalar_lea.sflag [#allocation4], 1
    %6561 = vsyncpa %s6560, 1

</llo_original>
